<compile_context>
chip_gen: v6e
topology: v6e:2x2x1
jax: 0.10.0
libtpu: 0.0.40
codegen_flags: <defaults>
</compile_context>

<pallas_src>
import jax
import jax.numpy as jnp
from jax import lax
from jax.experimental import pallas as pl
from jax.experimental.pallas import tpu as pltpu

BN_EPS = 1e-5


# -----------------------------------------------------------------------------
# Fused DownConv kernel: B batch elements per grid step.
# -----------------------------------------------------------------------------
def _downconv_kernel(x_ref, w1_ref, s1_ref, b1_ref, w2_ref, s2_ref, b2_ref,
                     o_ref, xpad_ref, y1pad_ref, pool_ref):
    # x_ref    : (B, H, W, Cin)        bf16
    # w1_ref   : (3, 3*Cin, C)         bf16  (tap-packed: K index = q*Cin + ci)
    # w2_ref   : (3, 3*C,  C)          bf16
    # s*/b*_ref: (1, C)                f32   (folded BN scale / bias)
    # o_ref    : (B, H//2, (W//2)*C)   bf16  (lane-dense pooled output)
    # xpad_ref : (B, H+2, W+2, Cin)    bf16  scratch (input + halo)
    # y1pad_ref: (B, H+2, W+2, C)      bf16  scratch (conv1 out + halo)
    # pool_ref : (B, H//2, W, C)       f32   scratch (H-pooled conv2 out)
    B, H, W, Cin = x_ref.shape
    C = w1_ref.shape[-1]
    Ho, Wo = H // 2, W // 2

    def zero_halo(pad_ref, c):
        # Zero only the four 1-wide border strips (interior is overwritten below).
        z_row = jnp.zeros((B, 1, W + 2, c), pad_ref.dtype)
        z_col = jnp.zeros((B, H + 2, 1, c), pad_ref.dtype)
        pad_ref[:, 0:1, :, :] = z_row
        pad_ref[:, H + 1:H + 2, :, :] = z_row
        pad_ref[:, :, 0:1, :] = z_col
        pad_ref[:, :, W + 1:W + 2, :] = z_col

    def conv3x3_bn_relu(src_ref, w_ref, s_ref, b_ref, cin):
        # 3 tap-packed matmuls on the MXU (bf16 inputs, f32 accumulation).
        acc = jnp.zeros((B * H * W, C), jnp.float32)
        for p in range(3):
            patch = jnp.concatenate(
                [src_ref[:, p:p + H, q:q + W, :] for q in range(3)], axis=-1)
            acc = acc + jnp.dot(patch.reshape(B * H * W, 3 * cin), w_ref[p],
                                preferred_element_type=jnp.float32)
        return jnp.maximum(acc * s_ref[...] + b_ref[...], 0.0)   # fused BN + ReLU

    # ---- stage input with halo (no host-side jnp.pad) -----------------------
    zero_halo(xpad_ref, Cin)
    xpad_ref[:, 1:H + 1, 1:W + 1, :] = x_ref[...]

    # ---- conv1 + BN + ReLU ---------------------------------------------------
    y1 = conv3x3_bn_relu(xpad_ref, w1_ref, s1_ref, b1_ref, Cin)
    zero_halo(y1pad_ref, C)
    y1pad_ref[:, 1:H + 1, 1:W + 1, :] = y1.astype(jnp.bfloat16).reshape(B, H, W, C)

    # ---- conv2 + BN + ReLU ---------------------------------------------------
    y2 = conv3x3_bn_relu(y1pad_ref, w2_ref, s2_ref, b2_ref, C)   # (B*H*W, C) f32

    # ---- MaxPool 2x2 stride 2 ------------------------------------------------
    # H direction: split the (major) row dim in registers and reduce -> half scratch.
    y2r = y2.reshape(B, Ho, 2, W, C)
    pool_ref[...] = jnp.maximum(y2r[:, :, 0], y2r[:, :, 1])      # (B, Ho, W, C)
    # W direction: per-wo max of adjacent columns, packed straight into the
    # lane-dense (Wo*C) output layout (unmasked stores).
    packed = jnp.concatenate(
        [jnp.maximum(pool_ref[:, :, 2 * wo, :], pool_ref[:, :, 2 * wo + 1, :])
         for wo in range(Wo)], axis=-1)                          # (B, Ho, Wo*C)
    o_ref[...] = packed.astype(o_ref.dtype)


def _pick_batch_block(n):
    # Amortize per-grid-step overhead over several images, but keep >=2 grid steps
    # when possible so both TensorCores get work on v7x.
    for b in (8, 4, 2):
        if n % b == 0 and n // b >= 2:
            return b
    return 1


def downconv_pallas(x_nhwc_bf16, w1, s1, b1, w2, s2, b2, *, batch_block=None):
    N, H, W, Cin = x_nhwc_bf16.shape
    C = w1.shape[-1]
    Ho, Wo = H // 2, W // 2
    B = batch_block if batch_block is not None else _pick_batch_block(N)
    assert N % B == 0

    out = pl.pallas_call(
        _downconv_kernel,
        out_shape=jax.ShapeDtypeStruct((N, Ho, Wo * C), jnp.bfloat16),
        grid_spec=pltpu.PrefetchScalarGridSpec(
            num_scalar_prefetch=0,
            grid=(N // B,),
            in_specs=[
                pl.BlockSpec((B, H, W, Cin), lambda n: (n, 0, 0, 0)),
                # Constant index_maps: weights / BN params are DMA'd once and stay
                # resident across batch blocks.
                pl.BlockSpec((3, 3 * Cin, C), lambda n: (0, 0, 0)),
                pl.BlockSpec((1, C), lambda n: (0, 0)),
                pl.BlockSpec((1, C), lambda n: (0, 0)),
                pl.BlockSpec((3, 3 * C, C), lambda n: (0, 0, 0)),
                pl.BlockSpec((1, C), lambda n: (0, 0)),
                pl.BlockSpec((1, C), lambda n: (0, 0)),
            ],
            out_specs=pl.BlockSpec((B, Ho, Wo * C), lambda n: (n, 0, 0)),
            scratch_shapes=[
                pltpu.VMEM((B, H + 2, W + 2, Cin), jnp.bfloat16),
                pltpu.VMEM((B, H + 2, W + 2, C), jnp.bfloat16),
                pltpu.VMEM((B, Ho, W, C), jnp.float32),
            ],
        ),
        compiler_params=pltpu.CompilerParams(
            dimension_semantics=("parallel",)),
    )(x_nhwc_bf16, w1, s1, b1, w2, s2, b2)
    # (N, Ho, Wo*C) -> (N, Ho, Wo, C) is layout-identical (free).
    return out.reshape(N, Ho, Wo, C)


# -----------------------------------------------------------------------------
# Parameter preparation (done once, outside the jitted forward).
# -----------------------------------------------------------------------------
def fold_bn(gamma, beta, mean, var):
    scale = gamma / jnp.sqrt(var + BN_EPS)
    return scale, beta - mean * scale


def prepare_params(p):
    """Fold BN into scale/bias, tap-pack weights to (3, 3*Cin, C) and cast to bf16."""
    C = p["w1"].shape[0]

    def pack(w):  # torch (co, ci, 3, 3) -> (p, 3*ci, co), K index = q*ci + c
        co, ci = w.shape[0], w.shape[1]
        return (jnp.transpose(w, (2, 3, 1, 0))      # (p, q, ci, co)
                .reshape(3, 3 * ci, co)
                .astype(jnp.bfloat16))

    s1, b1 = fold_bn(**p["bn1"])
    s2, b2 = fold_bn(**p["bn2"])
    return dict(
        w1=pack(p["w1"]), w2=pack(p["w2"]),
        s1=s1.reshape(1, C).astype(jnp.float32),
        b1=b1.reshape(1, C).astype(jnp.float32),
        s2=s2.reshape(1, C).astype(jnp.float32),
        b2=b2.reshape(1, C).astype(jnp.float32),
    )


# -----------------------------------------------------------------------------
# Forward wrappers.
# -----------------------------------------------------------------------------
def downconv_forward_nhwc(prep, x_nhwc):
    """Preferred entry point when chaining layers: NHWC in / NHWC out, no transposes."""
    return downconv_pallas(x_nhwc.astype(jnp.bfloat16),
                           prep["w1"], prep["s1"], prep["b1"],
                           prep["w2"], prep["s2"], prep["b2"])


def downconv_forward(prep, x_nchw):
    # NCHW entry point for parity with the PyTorch module. Each transpose is a full
    # extra HBM pass; keep activations NHWC end-to-end (downconv_forward_nhwc) when
    # stacking DownConv layers.
    x = jnp.transpose(x_nchw, (0, 2, 3, 1))
    y = downconv_forward_nhwc(prep, x)
    return jnp.transpose(y, (0, 3, 1, 2))


# -----------------------------------------------------------------------------
# Pure-JAX reference (mirrors the kernel's bf16 rounding points).
# -----------------------------------------------------------------------------
def _unpack_weight(w_packed):
    three, k, co = w_packed.shape
    ci = k // 3
    return w_packed.reshape(3, 3, ci, co).astype(jnp.float32)   # HWIO


def downconv_reference(prep, x_nchw):
    dn = ("NHWC", "HWIO", "NHWC")
    x = jnp.transpose(x_nchw, (0, 2, 3, 1)).astype(jnp.bfloat16).astype(jnp.float32)
    w1 = _unpack_weight(prep["w1"])
    w2 = _unpack_weight(prep["w2"])
    y = lax.conv_general_dilated(x, w1, (1, 1), ((1, 1), (1, 1)),
                                 dimension_numbers=dn,
                                 precision=lax.Precision.HIGHEST)
    y = jnp.maximum(y * prep["s1"][0] + prep["b1"][0], 0.0)
    y = y.astype(jnp.bfloat16).astype(jnp.float32)
    y = lax.conv_general_dilated(y, w2, (1, 1), ((1, 1), (1, 1)),
                                 dimension_numbers=dn,
                                 precision=lax.Precision.HIGHEST)
    y = jnp.maximum(y * prep["s2"][0] + prep["b2"][0], 0.0)
    y = lax.reduce_window(y, -jnp.inf, lax.max, (1, 2, 2, 1), (1, 2, 2, 1), "VALID")
    return jnp.transpose(y, (0, 3, 1, 2))


# -----------------------------------------------------------------------------
# Parameter init (eval-mode BatchNorm running stats, He-init convs, no conv bias).
# -----------------------------------------------------------------------------
def init_downconv_params(key, cin, cout):
    k1, k2, k3, k4 = jax.random.split(key, 4)

    def he(k, co, ci):
        std = (2.0 / (ci * 9)) ** 0.5
        return std * jax.random.normal(k, (co, ci, 3, 3), jnp.float32)

    def bn(k, c):
        ka, kb, kc, kd = jax.random.split(k, 4)
        return dict(gamma=1.0 + 0.05 * jax.random.normal(ka, (c,), jnp.float32),
                    beta=0.05 * jax.random.normal(kb, (c,), jnp.float32),
                    mean=0.05 * jax.random.normal(kc, (c,), jnp.float32),
                    var=1.0 + 0.05 * jax.random.uniform(kd, (c,), jnp.float32))

    return dict(w1=he(k1, cout, cin), bn1=bn(k2, cout),
                w2=he(k3, cout, cout), bn2=bn(k4, cout))


if __name__ == "__main__":
    root = jax.random.PRNGKey(0)
    params = init_downconv_params(jax.random.fold_in(root, 1), cin=4, cout=32)
    x = jax.random.normal(jax.random.fold_in(root, 2), (2, 4, 16, 16), jnp.float32)

    prep = prepare_params(params)            # fold BN + tap-pack weights once
    fwd = jax.jit(downconv_forward)
    out = jax.block_until_ready(fwd(prep, x))

    assert out.shape == (2, 32, 8, 8), out.shape
    assert bool(jnp.all(jnp.isfinite(out.astype(jnp.float32))))

    ref = downconv_reference(prep, x)
    out_f32 = out.astype(jnp.float32)
    max_err = float(jnp.max(jnp.abs(out_f32 - ref)))
    assert bool(jnp.allclose(out_f32, ref, atol=2e-2, rtol=2e-2)), max_err

    print("KERNEL_OK")
</pallas_src>

<mosaic_0001>
module attributes {stable_mosaic.version = 11 : i64} {
  func.func @_downconv_kernel(%arg0: i32, %arg1: memref<1x16x16x4xbf16, #tpu.memory_space<vmem>>, %arg2: memref<3x12x32xbf16, #tpu.memory_space<vmem>>, %arg3: memref<1x32xf32, #tpu.memory_space<vmem>>, %arg4: memref<1x32xf32, #tpu.memory_space<vmem>>, %arg5: memref<3x96x32xbf16, #tpu.memory_space<vmem>>, %arg6: memref<1x32xf32, #tpu.memory_space<vmem>>, %arg7: memref<1x32xf32, #tpu.memory_space<vmem>>, %arg8: memref<1x8x256xbf16, #tpu.memory_space<vmem>>, %arg9: memref<1x18x18x4xbf16, #tpu.memory_space<vmem>>, %arg10: memref<1x18x18x32xbf16, #tpu.memory_space<vmem>>, %arg11: memref<1x8x16x32xf32, #tpu.memory_space<vmem>>) attributes {dimension_semantics = [#tpu.dimension_semantics<parallel>], iteration_bounds = array<i64: 2>, scalar_prefetch = 0 : i64, scratch_operands = 3 : i64, tpu.core_type = #tpu.core_type<tc>, window_params = [{transform_indices = @transform_0, window_bounds = array<i64: 1, 16, 16, 4>}, {pipeline_mode = #tpu.pipeline_mode<synchronous>, transform_indices = @transform_1, window_bounds = array<i64: 3, 12, 32>}, {pipeline_mode = #tpu.pipeline_mode<synchronous>, transform_indices = @transform_2, window_bounds = array<i64: 1, 32>}, {pipeline_mode = #tpu.pipeline_mode<synchronous>, transform_indices = @transform_3, window_bounds = array<i64: 1, 32>}, {pipeline_mode = #tpu.pipeline_mode<synchronous>, transform_indices = @transform_4, window_bounds = array<i64: 3, 96, 32>}, {pipeline_mode = #tpu.pipeline_mode<synchronous>, transform_indices = @transform_5, window_bounds = array<i64: 1, 32>}, {pipeline_mode = #tpu.pipeline_mode<synchronous>, transform_indices = @transform_6, window_bounds = array<i64: 1, 32>}, {transform_indices = @transform_7, window_bounds = array<i64: 1, 8, 256>}]} {
    %cst = arith.constant 0.000000e+00 : bf16
    %0 = vector.broadcast %cst : bf16 to vector<1x1x18x4xbf16>
    %cst_0 = arith.constant 0.000000e+00 : bf16
    %1 = vector.broadcast %cst_0 : bf16 to vector<1x18x1x4xbf16>
    %c0 = arith.constant 0 : index
    %c0_1 = arith.constant 0 : index
    %c0_2 = arith.constant 0 : index
    %c0_3 = arith.constant 0 : index
    %2 = vector.load %arg9[%c0, %c0_1, %c0_2, %c0_3] : memref<1x18x18x4xbf16, #tpu.memory_space<vmem>>, vector<1x1x18x4xbf16>
    tpu.vector_store %arg9[%c0, %c0_1, %c0_2, %c0_3], %0 {strides = array<i32>} : memref<1x18x18x4xbf16, #tpu.memory_space<vmem>>, vector<1x1x18x4xbf16>,
    %c0_4 = arith.constant 0 : index
    %c17 = arith.constant 17 : index
    %c0_5 = arith.constant 0 : index
    %c0_6 = arith.constant 0 : index
    %3 = vector.load %arg9[%c0_4, %c17, %c0_5, %c0_6] : memref<1x18x18x4xbf16, #tpu.memory_space<vmem>>, vector<1x1x18x4xbf16>
    tpu.vector_store %arg9[%c0_4, %c17, %c0_5, %c0_6], %0 {strides = array<i32>} : memref<1x18x18x4xbf16, #tpu.memory_space<vmem>>, vector<1x1x18x4xbf16>,
    %c0_7 = arith.constant 0 : index
    %c0_8 = arith.constant 0 : index
    %c0_9 = arith.constant 0 : index
    %c0_10 = arith.constant 0 : index
    %4 = vector.load %arg9[%c0_7, %c0_8, %c0_9, %c0_10] : memref<1x18x18x4xbf16, #tpu.memory_space<vmem>>, vector<1x18x1x4xbf16>
    tpu.vector_store %arg9[%c0_7, %c0_8, %c0_9, %c0_10], %1 {strides = array<i32>} : memref<1x18x18x4xbf16, #tpu.memory_space<vmem>>, vector<1x18x1x4xbf16>,
    %c0_11 = arith.constant 0 : index
    %c0_12 = arith.constant 0 : index
    %c17_13 = arith.constant 17 : index
    %c0_14 = arith.constant 0 : index
    %5 = vector.load %arg9[%c0_11, %c0_12, %c17_13, %c0_14] : memref<1x18x18x4xbf16, #tpu.memory_space<vmem>>, vector<1x18x1x4xbf16>
    tpu.vector_store %arg9[%c0_11, %c0_12, %c17_13, %c0_14], %1 {strides = array<i32>} : memref<1x18x18x4xbf16, #tpu.memory_space<vmem>>, vector<1x18x1x4xbf16>,
    %c0_15 = arith.constant 0 : index
    %c0_16 = arith.constant 0 : index
    %c0_17 = arith.constant 0 : index
    %c0_18 = arith.constant 0 : index
    %6 = vector.load %arg1[%c0_15, %c0_16, %c0_17, %c0_18] : memref<1x16x16x4xbf16, #tpu.memory_space<vmem>>, vector<1x16x16x4xbf16>
    %c0_19 = arith.constant 0 : index
    %c1 = arith.constant 1 : index
    %c1_20 = arith.constant 1 : index
    %c0_21 = arith.constant 0 : index
    %7 = vector.load %arg9[%c0_19, %c1, %c1_20, %c0_21] : memref<1x18x18x4xbf16, #tpu.memory_space<vmem>>, vector<1x16x16x4xbf16>
    tpu.vector_store %arg9[%c0_19, %c1, %c1_20, %c0_21], %6 {strides = array<i32>} : memref<1x18x18x4xbf16, #tpu.memory_space<vmem>>, vector<1x16x16x4xbf16>,
    %cst_22 = arith.constant 0.000000e+00 : f32
    %8 = vector.broadcast %cst_22 : f32 to vector<256x32xf32>
    %c0_23 = arith.constant 0 : index
    %c0_24 = arith.constant 0 : index
    %c0_25 = arith.constant 0 : index
    %c0_26 = arith.constant 0 : index
    %9 = vector.load %arg9[%c0_23, %c0_24, %c0_25, %c0_26] : memref<1x18x18x4xbf16, #tpu.memory_space<vmem>>, vector<1x16x16x4xbf16>
    %c0_27 = arith.constant 0 : index
    %c0_28 = arith.constant 0 : index
    %c1_29 = arith.constant 1 : index
    %c0_30 = arith.constant 0 : index
    %10 = vector.load %arg9[%c0_27, %c0_28, %c1_29, %c0_30] : memref<1x18x18x4xbf16, #tpu.memory_space<vmem>>, vector<1x16x16x4xbf16>
    %c0_31 = arith.constant 0 : index
    %c0_32 = arith.constant 0 : index
    %c2 = arith.constant 2 : index
    %c0_33 = arith.constant 0 : index
    %11 = vector.load %arg9[%c0_31, %c0_32, %c2, %c0_33] : memref<1x18x18x4xbf16, #tpu.memory_space<vmem>>, vector<1x16x16x4xbf16>
    %12 = tpu.concatenate %9, %10, %11 in 3 : vector<1x16x16x4xbf16>, vector<1x16x16x4xbf16>, vector<1x16x16x4xbf16> -> vector<1x16x16x12xbf16>
    %13 = vector.shape_cast %12 : vector<1x16x16x12xbf16> to vector<256x12xbf16>
    %c0_34 = arith.constant 0 : index
    %c0_35 = arith.constant 0 : index
    %c0_36 = arith.constant 0 : index
    %14 = vector.load %arg2[%c0_34, %c0_35, %c0_36] : memref<3x12x32xbf16, #tpu.memory_space<vmem>>, vector<1x12x32xbf16>
    %15 = vector.shape_cast %14 : vector<1x12x32xbf16> to vector<12x32xbf16>
    %cst_37 = arith.constant dense<0.000000e+00> : vector<256x32xf32>
    %16 = tpu.matmul %13, %15, %cst_37 {dimension_numbers = #tpu.dot_dimension_numbers<[1], [0], [0], [1], [0, 0, 1, 1], [], []>} : vector<256x12xbf16>, vector<12x32xbf16>, vector<256x32xf32> -> vector<256x32xf32>
    %17 = arith.addf %8, %16 : vector<256x32xf32>
    %c0_38 = arith.constant 0 : index
    %c1_39 = arith.constant 1 : index
    %c0_40 = arith.constant 0 : index
    %c0_41 = arith.constant 0 : index
    %18 = vector.load %arg9[%c0_38, %c1_39, %c0_40, %c0_41] : memref<1x18x18x4xbf16, #tpu.memory_space<vmem>>, vector<1x16x16x4xbf16>
    %c0_42 = arith.constant 0 : index
    %c1_43 = arith.constant 1 : index
    %c1_44 = arith.constant 1 : index
    %c0_45 = arith.constant 0 : index
    %19 = vector.load %arg9[%c0_42, %c1_43, %c1_44, %c0_45] : memref<1x18x18x4xbf16, #tpu.memory_space<vmem>>, vector<1x16x16x4xbf16>
    %c0_46 = arith.constant 0 : index
    %c1_47 = arith.constant 1 : index
    %c2_48 = arith.constant 2 : index
    %c0_49 = arith.constant 0 : index
    %20 = vector.load %arg9[%c0_46, %c1_47, %c2_48, %c0_49] : memref<1x18x18x4xbf16, #tpu.memory_space<vmem>>, vector<1x16x16x4xbf16>
    %21 = tpu.concatenate %18, %19, %20 in 3 : vector<1x16x16x4xbf16>, vector<1x16x16x4xbf16>, vector<1x16x16x4xbf16> -> vector<1x16x16x12xbf16>
    %22 = vector.shape_cast %21 : vector<1x16x16x12xbf16> to vector<256x12xbf16>
    %c1_50 = arith.constant 1 : index
    %c0_51 = arith.constant 0 : index
    %c0_52 = arith.constant 0 : index
    %23 = vector.load %arg2[%c1_50, %c0_51, %c0_52] : memref<3x12x32xbf16, #tpu.memory_space<vmem>>, vector<1x12x32xbf16>
    %24 = vector.shape_cast %23 : vector<1x12x32xbf16> to vector<12x32xbf16>
    %cst_53 = arith.constant dense<0.000000e+00> : vector<256x32xf32>
    %25 = tpu.matmul %22, %24, %cst_53 {dimension_numbers = #tpu.dot_dimension_numbers<[1], [0], [0], [1], [0, 0, 1, 1], [], []>} : vector<256x12xbf16>, vector<12x32xbf16>, vector<256x32xf32> -> vector<256x32xf32>
    %26 = arith.addf %17, %25 : vector<256x32xf32>
    %c0_54 = arith.constant 0 : index
    %c2_55 = arith.constant 2 : index
    %c0_56 = arith.constant 0 : index
    %c0_57 = arith.constant 0 : index
    %27 = vector.load %arg9[%c0_54, %c2_55, %c0_56, %c0_57] : memref<1x18x18x4xbf16, #tpu.memory_space<vmem>>, vector<1x16x16x4xbf16>
    %c0_58 = arith.constant 0 : index
    %c2_59 = arith.constant 2 : index
    %c1_60 = arith.constant 1 : index
    %c0_61 = arith.constant 0 : index
    %28 = vector.load %arg9[%c0_58, %c2_59, %c1_60, %c0_61] : memref<1x18x18x4xbf16, #tpu.memory_space<vmem>>, vector<1x16x16x4xbf16>
    %c0_62 = arith.constant 0 : index
    %c2_63 = arith.constant 2 : index
    %c2_64 = arith.constant 2 : index
    %c0_65 = arith.constant 0 : index
    %29 = vector.load %arg9[%c0_62, %c2_63, %c2_64, %c0_65] : memref<1x18x18x4xbf16, #tpu.memory_space<vmem>>, vector<1x16x16x4xbf16>
    %30 = tpu.concatenate %27, %28, %29 in 3 : vector<1x16x16x4xbf16>, vector<1x16x16x4xbf16>, vector<1x16x16x4xbf16> -> vector<1x16x16x12xbf16>
    %31 = vector.shape_cast %30 : vector<1x16x16x12xbf16> to vector<256x12xbf16>
    %c2_66 = arith.constant 2 : index
    %c0_67 = arith.constant 0 : index
    %c0_68 = arith.constant 0 : index
    %32 = vector.load %arg2[%c2_66, %c0_67, %c0_68] : memref<3x12x32xbf16, #tpu.memory_space<vmem>>, vector<1x12x32xbf16>
    %33 = vector.shape_cast %32 : vector<1x12x32xbf16> to vector<12x32xbf16>
    %cst_69 = arith.constant dense<0.000000e+00> : vector<256x32xf32>
    %34 = tpu.matmul %31, %33, %cst_69 {dimension_numbers = #tpu.dot_dimension_numbers<[1], [0], [0], [1], [0, 0, 1, 1], [], []>} : vector<256x12xbf16>, vector<12x32xbf16>, vector<256x32xf32> -> vector<256x32xf32>
    %35 = arith.addf %26, %34 : vector<256x32xf32>
    %c0_70 = arith.constant 0 : index
    %c0_71 = arith.constant 0 : index
    %36 = vector.load %arg3[%c0_70, %c0_71] : memref<1x32xf32, #tpu.memory_space<vmem>>, vector<1x32xf32>
    %37 = vector.broadcast %36 : vector<1x32xf32> to vector<256x32xf32>
    %38 = arith.mulf %35, %37 : vector<256x32xf32>
    %c0_72 = arith.constant 0 : index
    %c0_73 = arith.constant 0 : index
    %39 = vector.load %arg4[%c0_72, %c0_73] : memref<1x32xf32, #tpu.memory_space<vmem>>, vector<1x32xf32>
    %40 = vector.broadcast %39 : vector<1x32xf32> to vector<256x32xf32>
    %41 = arith.addf %38, %40 : vector<256x32xf32>
    %cst_74 = arith.constant 0.000000e+00 : f32
    %42 = vector.broadcast %cst_74 : f32 to vector<256x32xf32>
    %43 = arith.maximumf %41, %42 : vector<256x32xf32>
    %cst_75 = arith.constant 0.000000e+00 : bf16
    %44 = vector.broadcast %cst_75 : bf16 to vector<1x1x18x32xbf16>
    %cst_76 = arith.constant 0.000000e+00 : bf16
    %45 = vector.broadcast %cst_76 : bf16 to vector<1x18x1x32xbf16>
    %c0_77 = arith.constant 0 : index
    %c0_78 = arith.constant 0 : index
    %c0_79 = arith.constant 0 : index
    %c0_80 = arith.constant 0 : index
    %46 = vector.load %arg10[%c0_77, %c0_78, %c0_79, %c0_80] : memref<1x18x18x32xbf16, #tpu.memory_space<vmem>>, vector<1x1x18x32xbf16>
    tpu.vector_store %arg10[%c0_77, %c0_78, %c0_79, %c0_80], %44 {strides = array<i32>} : memref<1x18x18x32xbf16, #tpu.memory_space<vmem>>, vector<1x1x18x32xbf16>,
    %c0_81 = arith.constant 0 : index
    %c17_82 = arith.constant 17 : index
    %c0_83 = arith.constant 0 : index
    %c0_84 = arith.constant 0 : index
    %47 = vector.load %arg10[%c0_81, %c17_82, %c0_83, %c0_84] : memref<1x18x18x32xbf16, #tpu.memory_space<vmem>>, vector<1x1x18x32xbf16>
    tpu.vector_store %arg10[%c0_81, %c17_82, %c0_83, %c0_84], %44 {strides = array<i32>} : memref<1x18x18x32xbf16, #tpu.memory_space<vmem>>, vector<1x1x18x32xbf16>,
    %c0_85 = arith.constant 0 : index
    %c0_86 = arith.constant 0 : index
    %c0_87 = arith.constant 0 : index
    %c0_88 = arith.constant 0 : index
    %48 = vector.load %arg10[%c0_85, %c0_86, %c0_87, %c0_88] : memref<1x18x18x32xbf16, #tpu.memory_space<vmem>>, vector<1x18x1x32xbf16>
    tpu.vector_store %arg10[%c0_85, %c0_86, %c0_87, %c0_88], %45 {strides = array<i32>} : memref<1x18x18x32xbf16, #tpu.memory_space<vmem>>, vector<1x18x1x32xbf16>,
    %c0_89 = arith.constant 0 : index
    %c0_90 = arith.constant 0 : index
    %c17_91 = arith.constant 17 : index
    %c0_92 = arith.constant 0 : index
    %49 = vector.load %arg10[%c0_89, %c0_90, %c17_91, %c0_92] : memref<1x18x18x32xbf16, #tpu.memory_space<vmem>>, vector<1x18x1x32xbf16>
    tpu.vector_store %arg10[%c0_89, %c0_90, %c17_91, %c0_92], %45 {strides = array<i32>} : memref<1x18x18x32xbf16, #tpu.memory_space<vmem>>, vector<1x18x1x32xbf16>,
    %50 = arith.truncf %43 : vector<256x32xf32> to vector<256x32xbf16>
    %51 = vector.shape_cast %50 : vector<256x32xbf16> to vector<1x16x16x32xbf16>
    %c0_93 = arith.constant 0 : index
    %c1_94 = arith.constant 1 : index
    %c1_95 = arith.constant 1 : index
    %c0_96 = arith.constant 0 : index
    %52 = vector.load %arg10[%c0_93, %c1_94, %c1_95, %c0_96] : memref<1x18x18x32xbf16, #tpu.memory_space<vmem>>, vector<1x16x16x32xbf16>
    tpu.vector_store %arg10[%c0_93, %c1_94, %c1_95, %c0_96], %51 {strides = array<i32>} : memref<1x18x18x32xbf16, #tpu.memory_space<vmem>>, vector<1x16x16x32xbf16>,
    %cst_97 = arith.constant 0.000000e+00 : f32
    %53 = vector.broadcast %cst_97 : f32 to vector<256x32xf32>
    %c0_98 = arith.constant 0 : index
    %c0_99 = arith.constant 0 : index
    %c0_100 = arith.constant 0 : index
    %c0_101 = arith.constant 0 : index
    %54 = vector.load %arg10[%c0_98, %c0_99, %c0_100, %c0_101] : memref<1x18x18x32xbf16, #tpu.memory_space<vmem>>, vector<1x16x16x32xbf16>
    %c0_102 = arith.constant 0 : index
    %c0_103 = arith.constant 0 : index
    %c1_104 = arith.constant 1 : index
    %c0_105 = arith.constant 0 : index
    %55 = vector.load %arg10[%c0_102, %c0_103, %c1_104, %c0_105] : memref<1x18x18x32xbf16, #tpu.memory_space<vmem>>, vector<1x16x16x32xbf16>
    %c0_106 = arith.constant 0 : index
    %c0_107 = arith.constant 0 : index
    %c2_108 = arith.constant 2 : index
    %c0_109 = arith.constant 0 : index
    %56 = vector.load %arg10[%c0_106, %c0_107, %c2_108, %c0_109] : memref<1x18x18x32xbf16, #tpu.memory_space<vmem>>, vector<1x16x16x32xbf16>
    %57 = tpu.concatenate %54, %55, %56 in 3 : vector<1x16x16x32xbf16>, vector<1x16x16x32xbf16>, vector<1x16x16x32xbf16> -> vector<1x16x16x96xbf16>
    %58 = vector.shape_cast %57 : vector<1x16x16x96xbf16> to vector<256x96xbf16>
    %c0_110 = arith.constant 0 : index
    %c0_111 = arith.constant 0 : index
    %c0_112 = arith.constant 0 : index
    %59 = vector.load %arg5[%c0_110, %c0_111, %c0_112] : memref<3x96x32xbf16, #tpu.memory_space<vmem>>, vector<1x96x32xbf16>
    %60 = vector.shape_cast %59 : vector<1x96x32xbf16> to vector<96x32xbf16>
    %cst_113 = arith.constant dense<0.000000e+00> : vector<256x32xf32>
    %61 = tpu.matmul %58, %60, %cst_113 {dimension_numbers = #tpu.dot_dimension_numbers<[1], [0], [0], [1], [0, 0, 1, 1], [], []>} : vector<256x96xbf16>, vector<96x32xbf16>, vector<256x32xf32> -> vector<256x32xf32>
    %62 = arith.addf %53, %61 : vector<256x32xf32>
    %c0_114 = arith.constant 0 : index
    %c1_115 = arith.constant 1 : index
    %c0_116 = arith.constant 0 : index
    %c0_117 = arith.constant 0 : index
    %63 = vector.load %arg10[%c0_114, %c1_115, %c0_116, %c0_117] : memref<1x18x18x32xbf16, #tpu.memory_space<vmem>>, vector<1x16x16x32xbf16>
    %c0_118 = arith.constant 0 : index
    %c1_119 = arith.constant 1 : index
    %c1_120 = arith.constant 1 : index
    %c0_121 = arith.constant 0 : index
    %64 = vector.load %arg10[%c0_118, %c1_119, %c1_120, %c0_121] : memref<1x18x18x32xbf16, #tpu.memory_space<vmem>>, vector<1x16x16x32xbf16>
    %c0_122 = arith.constant 0 : index
    %c1_123 = arith.constant 1 : index
    %c2_124 = arith.constant 2 : index
    %c0_125 = arith.constant 0 : index
    %65 = vector.load %arg10[%c0_122, %c1_123, %c2_124, %c0_125] : memref<1x18x18x32xbf16, #tpu.memory_space<vmem>>, vector<1x16x16x32xbf16>
    %66 = tpu.concatenate %63, %64, %65 in 3 : vector<1x16x16x32xbf16>, vector<1x16x16x32xbf16>, vector<1x16x16x32xbf16> -> vector<1x16x16x96xbf16>
    %67 = vector.shape_cast %66 : vector<1x16x16x96xbf16> to vector<256x96xbf16>
    %c1_126 = arith.constant 1 : index
    %c0_127 = arith.constant 0 : index
    %c0_128 = arith.constant 0 : index
    %68 = vector.load %arg5[%c1_126, %c0_127, %c0_128] : memref<3x96x32xbf16, #tpu.memory_space<vmem>>, vector<1x96x32xbf16>
    %69 = vector.shape_cast %68 : vector<1x96x32xbf16> to vector<96x32xbf16>
    %cst_129 = arith.constant dense<0.000000e+00> : vector<256x32xf32>
    %70 = tpu.matmul %67, %69, %cst_129 {dimension_numbers = #tpu.dot_dimension_numbers<[1], [0], [0], [1], [0, 0, 1, 1], [], []>} : vector<256x96xbf16>, vector<96x32xbf16>, vector<256x32xf32> -> vector<256x32xf32>
    %71 = arith.addf %62, %70 : vector<256x32xf32>
    %c0_130 = arith.constant 0 : index
    %c2_131 = arith.constant 2 : index
    %c0_132 = arith.constant 0 : index
    %c0_133 = arith.constant 0 : index
    %72 = vector.load %arg10[%c0_130, %c2_131, %c0_132, %c0_133] : memref<1x18x18x32xbf16, #tpu.memory_space<vmem>>, vector<1x16x16x32xbf16>
    %c0_134 = arith.constant 0 : index
    %c2_135 = arith.constant 2 : index
    %c1_136 = arith.constant 1 : index
    %c0_137 = arith.constant 0 : index
    %73 = vector.load %arg10[%c0_134, %c2_135, %c1_136, %c0_137] : memref<1x18x18x32xbf16, #tpu.memory_space<vmem>>, vector<1x16x16x32xbf16>
    %c0_138 = arith.constant 0 : index
    %c2_139 = arith.constant 2 : index
    %c2_140 = arith.constant 2 : index
    %c0_141 = arith.constant 0 : index
    %74 = vector.load %arg10[%c0_138, %c2_139, %c2_140, %c0_141] : memref<1x18x18x32xbf16, #tpu.memory_space<vmem>>, vector<1x16x16x32xbf16>
    %75 = tpu.concatenate %72, %73, %74 in 3 : vector<1x16x16x32xbf16>, vector<1x16x16x32xbf16>, vector<1x16x16x32xbf16> -> vector<1x16x16x96xbf16>
    %76 = vector.shape_cast %75 : vector<1x16x16x96xbf16> to vector<256x96xbf16>
    %c2_142 = arith.constant 2 : index
    %c0_143 = arith.constant 0 : index
    %c0_144 = arith.constant 0 : index
    %77 = vector.load %arg5[%c2_142, %c0_143, %c0_144] : memref<3x96x32xbf16, #tpu.memory_space<vmem>>, vector<1x96x32xbf16>
    %78 = vector.shape_cast %77 : vector<1x96x32xbf16> to vector<96x32xbf16>
    %cst_145 = arith.constant dense<0.000000e+00> : vector<256x32xf32>
    %79 = tpu.matmul %76, %78, %cst_145 {dimension_numbers = #tpu.dot_dimension_numbers<[1], [0], [0], [1], [0, 0, 1, 1], [], []>} : vector<256x96xbf16>, vector<96x32xbf16>, vector<256x32xf32> -> vector<256x32xf32>
    %80 = arith.addf %71, %79 : vector<256x32xf32>
    %c0_146 = arith.constant 0 : index
    %c0_147 = arith.constant 0 : index
    %81 = vector.load %arg6[%c0_146, %c0_147] : memref<1x32xf32, #tpu.memory_space<vmem>>, vector<1x32xf32>
    %82 = vector.broadcast %81 : vector<1x32xf32> to vector<256x32xf32>
    %83 = arith.mulf %80, %82 : vector<256x32xf32>
    %c0_148 = arith.constant 0 : index
    %c0_149 = arith.constant 0 : index
    %84 = vector.load %arg7[%c0_148, %c0_149] : memref<1x32xf32, #tpu.memory_space<vmem>>, vector<1x32xf32>
    %85 = vector.broadcast %84 : vector<1x32xf32> to vector<256x32xf32>
    %86 = arith.addf %83, %85 : vector<256x32xf32>
    %cst_150 = arith.constant 0.000000e+00 : f32
    %87 = vector.broadcast %cst_150 : f32 to vector<256x32xf32>
    %88 = arith.maximumf %86, %87 : vector<256x32xf32>
    %89 = vector.shape_cast %88 : vector<256x32xf32> to vector<1x8x2x16x32xf32>
    %90 = vector.extract_strided_slice %89 {offsets = [0, 0, 0, 0, 0], sizes = [1, 8, 1, 16, 32], strides = [1, 1, 1, 1, 1]} : vector<1x8x2x16x32xf32> to vector<1x8x1x16x32xf32>
    %91 = vector.shape_cast %90 : vector<1x8x1x16x32xf32> to vector<1x8x16x32xf32>
    %92 = vector.extract_strided_slice %89 {offsets = [0, 0, 1, 0, 0], sizes = [1, 8, 1, 16, 32], strides = [1, 1, 1, 1, 1]} : vector<1x8x2x16x32xf32> to vector<1x8x1x16x32xf32>
    %93 = vector.shape_cast %92 : vector<1x8x1x16x32xf32> to vector<1x8x16x32xf32>
    %94 = arith.maximumf %91, %93 : vector<1x8x16x32xf32>
    %c0_151 = arith.constant 0 : index
    %c0_152 = arith.constant 0 : index
    %c0_153 = arith.constant 0 : index
    %c0_154 = arith.constant 0 : index
    %95 = vector.load %arg11[%c0_151, %c0_152, %c0_153, %c0_154] : memref<1x8x16x32xf32, #tpu.memory_space<vmem>>, vector<1x8x16x32xf32>
    tpu.vector_store %arg11[%c0_151, %c0_152, %c0_153, %c0_154], %94 {strides = array<i32>} : memref<1x8x16x32xf32, #tpu.memory_space<vmem>>, vector<1x8x16x32xf32>,
    %c0_155 = arith.constant 0 : index
    %c0_156 = arith.constant 0 : index
    %c0_157 = arith.constant 0 : index
    %c0_158 = arith.constant 0 : index
    %96 = vector.load %arg11[%c0_155, %c0_156, %c0_157, %c0_158] : memref<1x8x16x32xf32, #tpu.memory_space<vmem>>, vector<1x8x1x32xf32>
    %97 = vector.shape_cast %96 : vector<1x8x1x32xf32> to vector<1x8x32xf32>
    %c0_159 = arith.constant 0 : index
    %c0_160 = arith.constant 0 : index
    %c1_161 = arith.constant 1 : index
    %c0_162 = arith.constant 0 : index
    %98 = vector.load %arg11[%c0_159, %c0_160, %c1_161, %c0_162] : memref<1x8x16x32xf32, #tpu.memory_space<vmem>>, vector<1x8x1x32xf32>
    %99 = vector.shape_cast %98 : vector<1x8x1x32xf32> to vector<1x8x32xf32>
    %100 = arith.maximumf %97, %99 : vector<1x8x32xf32>
    %c0_163 = arith.constant 0 : index
    %c0_164 = arith.constant 0 : index
    %c2_165 = arith.constant 2 : index
    %c0_166 = arith.constant 0 : index
    %101 = vector.load %arg11[%c0_163, %c0_164, %c2_165, %c0_166] : memref<1x8x16x32xf32, #tpu.memory_space<vmem>>, vector<1x8x1x32xf32>
    %102 = vector.shape_cast %101 : vector<1x8x1x32xf32> to vector<1x8x32xf32>
    %c0_167 = arith.constant 0 : index
    %c0_168 = arith.constant 0 : index
    %c3 = arith.constant 3 : index
    %c0_169 = arith.constant 0 : index
    %103 = vector.load %arg11[%c0_167, %c0_168, %c3, %c0_169] : memref<1x8x16x32xf32, #tpu.memory_space<vmem>>, vector<1x8x1x32xf32>
    %104 = vector.shape_cast %103 : vector<1x8x1x32xf32> to vector<1x8x32xf32>
    %105 = arith.maximumf %102, %104 : vector<1x8x32xf32>
    %c0_170 = arith.constant 0 : index
    %c0_171 = arith.constant 0 : index
    %c4 = arith.constant 4 : index
    %c0_172 = arith.constant 0 : index
    %106 = vector.load %arg11[%c0_170, %c0_171, %c4, %c0_172] : memref<1x8x16x32xf32, #tpu.memory_space<vmem>>, vector<1x8x1x32xf32>
    %107 = vector.shape_cast %106 : vector<1x8x1x32xf32> to vector<1x8x32xf32>
    %c0_173 = arith.constant 0 : index
    %c0_174 = arith.constant 0 : index
    %c5 = arith.constant 5 : index
    %c0_175 = arith.constant 0 : index
    %108 = vector.load %arg11[%c0_173, %c0_174, %c5, %c0_175] : memref<1x8x16x32xf32, #tpu.memory_space<vmem>>, vector<1x8x1x32xf32>
    %109 = vector.shape_cast %108 : vector<1x8x1x32xf32> to vector<1x8x32xf32>
    %110 = arith.maximumf %107, %109 : vector<1x8x32xf32>
    %c0_176 = arith.constant 0 : index
    %c0_177 = arith.constant 0 : index
    %c6 = arith.constant 6 : index
    %c0_178 = arith.constant 0 : index
    %111 = vector.load %arg11[%c0_176, %c0_177, %c6, %c0_178] : memref<1x8x16x32xf32, #tpu.memory_space<vmem>>, vector<1x8x1x32xf32>
    %112 = vector.shape_cast %111 : vector<1x8x1x32xf32> to vector<1x8x32xf32>
    %c0_179 = arith.constant 0 : index
    %c0_180 = arith.constant 0 : index
    %c7 = arith.constant 7 : index
    %c0_181 = arith.constant 0 : index
    %113 = vector.load %arg11[%c0_179, %c0_180, %c7, %c0_181] : memref<1x8x16x32xf32, #tpu.memory_space<vmem>>, vector<1x8x1x32xf32>
    %114 = vector.shape_cast %113 : vector<1x8x1x32xf32> to vector<1x8x32xf32>
    %115 = arith.maximumf %112, %114 : vector<1x8x32xf32>
    %c0_182 = arith.constant 0 : index
    %c0_183 = arith.constant 0 : index
    %c8 = arith.constant 8 : index
    %c0_184 = arith.constant 0 : index
    %116 = vector.load %arg11[%c0_182, %c0_183, %c8, %c0_184] : memref<1x8x16x32xf32, #tpu.memory_space<vmem>>, vector<1x8x1x32xf32>
    %117 = vector.shape_cast %116 : vector<1x8x1x32xf32> to vector<1x8x32xf32>
    %c0_185 = arith.constant 0 : index
    %c0_186 = arith.constant 0 : index
    %c9 = arith.constant 9 : index
    %c0_187 = arith.constant 0 : index
    %118 = vector.load %arg11[%c0_185, %c0_186, %c9, %c0_187] : memref<1x8x16x32xf32, #tpu.memory_space<vmem>>, vector<1x8x1x32xf32>
    %119 = vector.shape_cast %118 : vector<1x8x1x32xf32> to vector<1x8x32xf32>
    %120 = arith.maximumf %117, %119 : vector<1x8x32xf32>
    %c0_188 = arith.constant 0 : index
    %c0_189 = arith.constant 0 : index
    %c10 = arith.constant 10 : index
    %c0_190 = arith.constant 0 : index
    %121 = vector.load %arg11[%c0_188, %c0_189, %c10, %c0_190] : memref<1x8x16x32xf32, #tpu.memory_space<vmem>>, vector<1x8x1x32xf32>
    %122 = vector.shape_cast %121 : vector<1x8x1x32xf32> to vector<1x8x32xf32>
    %c0_191 = arith.constant 0 : index
    %c0_192 = arith.constant 0 : index
    %c11 = arith.constant 11 : index
    %c0_193 = arith.constant 0 : index
    %123 = vector.load %arg11[%c0_191, %c0_192, %c11, %c0_193] : memref<1x8x16x32xf32, #tpu.memory_space<vmem>>, vector<1x8x1x32xf32>
    %124 = vector.shape_cast %123 : vector<1x8x1x32xf32> to vector<1x8x32xf32>
    %125 = arith.maximumf %122, %124 : vector<1x8x32xf32>
    %c0_194 = arith.constant 0 : index
    %c0_195 = arith.constant 0 : index
    %c12 = arith.constant 12 : index
    %c0_196 = arith.constant 0 : index
    %126 = vector.load %arg11[%c0_194, %c0_195, %c12, %c0_196] : memref<1x8x16x32xf32, #tpu.memory_space<vmem>>, vector<1x8x1x32xf32>
    %127 = vector.shape_cast %126 : vector<1x8x1x32xf32> to vector<1x8x32xf32>
    %c0_197 = arith.constant 0 : index
    %c0_198 = arith.constant 0 : index
    %c13 = arith.constant 13 : index
    %c0_199 = arith.constant 0 : index
    %128 = vector.load %arg11[%c0_197, %c0_198, %c13, %c0_199] : memref<1x8x16x32xf32, #tpu.memory_space<vmem>>, vector<1x8x1x32xf32>
    %129 = vector.shape_cast %128 : vector<1x8x1x32xf32> to vector<1x8x32xf32>
    %130 = arith.maximumf %127, %129 : vector<1x8x32xf32>
    %c0_200 = arith.constant 0 : index
    %c0_201 = arith.constant 0 : index
    %c14 = arith.constant 14 : index
    %c0_202 = arith.constant 0 : index
    %131 = vector.load %arg11[%c0_200, %c0_201, %c14, %c0_202] : memref<1x8x16x32xf32, #tpu.memory_space<vmem>>, vector<1x8x1x32xf32>
    %132 = vector.shape_cast %131 : vector<1x8x1x32xf32> to vector<1x8x32xf32>
    %c0_203 = arith.constant 0 : index
    %c0_204 = arith.constant 0 : index
    %c15 = arith.constant 15 : index
    %c0_205 = arith.constant 0 : index
    %133 = vector.load %arg11[%c0_203, %c0_204, %c15, %c0_205] : memref<1x8x16x32xf32, #tpu.memory_space<vmem>>, vector<1x8x1x32xf32>
    %134 = vector.shape_cast %133 : vector<1x8x1x32xf32> to vector<1x8x32xf32>
    %135 = arith.maximumf %132, %134 : vector<1x8x32xf32>
    %136 = tpu.concatenate %100, %105, %110, %115, %120, %125, %130, %135 in 2 : vector<1x8x32xf32>, vector<1x8x32xf32>, vector<1x8x32xf32>, vector<1x8x32xf32>, vector<1x8x32xf32>, vector<1x8x32xf32>, vector<1x8x32xf32>, vector<1x8x32xf32> -> vector<1x8x256xf32>
    %137 = arith.truncf %136 : vector<1x8x256xf32> to vector<1x8x256xbf16>
    %c0_206 = arith.constant 0 : index
    %c0_207 = arith.constant 0 : index
    %c0_208 = arith.constant 0 : index
    %138 = vector.load %arg8[%c0_206, %c0_207, %c0_208] : memref<1x8x256xbf16, #tpu.memory_space<vmem>>, vector<1x8x256xbf16>
    tpu.vector_store %arg8[%c0_206, %c0_207, %c0_208], %137 {strides = array<i32>} : memref<1x8x256xbf16, #tpu.memory_space<vmem>>, vector<1x8x256xbf16>,
    return
  }
  func.func @transform_0(%arg0: i32) -> (i32, i32, i32, i32) {
    %c0_i32 = arith.constant 0 : i32
    %c0_i32_0 = arith.constant 0 : i32
    %c0_i32_1 = arith.constant 0 : i32
    %c0_i32_2 = arith.constant 0 : i32
    return %arg0, %c0_i32, %c0_i32_0, %c0_i32_1 : i32, i32, i32, i32
  }
  func.func @transform_1(%arg0: i32) -> (i32, i32, i32) {
    %c0_i32 = arith.constant 0 : i32
    %c0_i32_0 = arith.constant 0 : i32
    %c0_i32_1 = arith.constant 0 : i32
    %c0_i32_2 = arith.constant 0 : i32
    return %c0_i32, %c0_i32_0, %c0_i32_1 : i32, i32, i32
  }
  func.func @transform_2(%arg0: i32) -> (i32, i32) {
    %c0_i32 = arith.constant 0 : i32
    %c0_i32_0 = arith.constant 0 : i32
    %c0_i32_1 = arith.constant 0 : i32
    return %c0_i32, %c0_i32_0 : i32, i32
  }
  func.func @transform_3(%arg0: i32) -> (i32, i32) {
    %c0_i32 = arith.constant 0 : i32
    %c0_i32_0 = arith.constant 0 : i32
    %c0_i32_1 = arith.constant 0 : i32
    return %c0_i32, %c0_i32_0 : i32, i32
  }
  func.func @transform_4(%arg0: i32) -> (i32, i32, i32) {
    %c0_i32 = arith.constant 0 : i32
    %c0_i32_0 = arith.constant 0 : i32
    %c0_i32_1 = arith.constant 0 : i32
    %c0_i32_2 = arith.constant 0 : i32
    return %c0_i32, %c0_i32_0, %c0_i32_1 : i32, i32, i32
  }
  func.func @transform_5(%arg0: i32) -> (i32, i32) {
    %c0_i32 = arith.constant 0 : i32
    %c0_i32_0 = arith.constant 0 : i32
    %c0_i32_1 = arith.constant 0 : i32
    return %c0_i32, %c0_i32_0 : i32, i32
  }
  func.func @transform_6(%arg0: i32) -> (i32, i32) {
    %c0_i32 = arith.constant 0 : i32
    %c0_i32_0 = arith.constant 0 : i32
    %c0_i32_1 = arith.constant 0 : i32
    return %c0_i32, %c0_i32_0 : i32, i32
  }
  func.func @transform_7(%arg0: i32) -> (i32, i32, i32) {
    %c0_i32 = arith.constant 0 : i32
    %c0_i32_0 = arith.constant 0 : i32
    %c0_i32_1 = arith.constant 0 : i32
    return %arg0, %c0_i32, %c0_i32_0 : i32, i32, i32
  }
}

</mosaic_0001>

<llo_original>
// kernel: downconv_forward.1
$region0: #{downconv_forward.1}
  #allocation0 [shape = 'u32[]', space=smem, size = 0x4, offset = 0x4, fixed_abs, tag = 'smem constant byte address 0x4 - core index']
  #allocation1 [shape = 'u32[144,128]{1,0:T(1,128)}', space=vmem, size = 0x12000, scoped, tag = 'internal scratch']
  #allocation2 [shape = 'bf16[1,18,18,4]{3,2,1,0:T(8,128)(2,1)}', space=vmem, size = 0x1b000, scoped, tag = 'scratch operand']
  #allocation3 [shape = 'bf16[1,18,18,32]{3,2,1,0:T(8,128)(2,1)}', space=vmem, size = 0x1b000, scoped, tag = 'scratch operand']
  #allocation4 [shape = 'f32[1,8,16,32]{3,2,1,0:T(8,128)}', space=vmem, size = 0x10000, scoped, tag = 'scratch operand']
  %s0 = inlined_call_operand.vmem [shape: bf16[2,16,16,4], index: 0, kind: input, shape index: {}]
  %s1 = inlined_call_operand.vmem [shape: bf16[3,12,32], index: 1, kind: input, shape index: {}]
  %s2 = inlined_call_operand.vmem [shape: f32[1,32], index: 2, kind: input, shape index: {}]
  %s3 = inlined_call_operand.vmem [shape: f32[1,32], index: 3, kind: input, shape index: {}]
  %s4 = inlined_call_operand.vmem [shape: bf16[3,96,32], index: 4, kind: input, shape index: {}]
  %s5 = inlined_call_operand.vmem [shape: f32[1,32], index: 5, kind: input, shape index: {}]
  %s6 = inlined_call_operand.vmem [shape: f32[1,32], index: 6, kind: input, shape index: {}]
  %s7 = inlined_call_operand.vmem [shape: bf16[2,8,256], index: 7, kind: output, shape index: {}]
  %s8 = sld [smem:[#allocation0]]
  $region61: #{downconv_forward.1} parent=0
    _
  %s10 = ssub.s32 1, %s8
  %s11 = scalar_select 0, %s10, %s8
  loop: start=0, step=1, limit=4
  $region2: #{downconv_forward.1} parent=0 // loop_pre_header
    _
  $region3: #{downconv_forward.1} parent=0 // loop_header
    %s13 = sphi 0, %s17
    %p14 = scmp.ge.s32.totalorder %s13, 4
    %s23 = sphi 0, %s25
    %s26 = sphi 0, %s23
    %s27 = sphi 0, %s26
    %s43 = sphi 0, %s27
    %s47 = sphi 0, %s47
    %s49 = sphi 0, %s47
    %s50 = sphi 0, %s49
    %s64 = sphi 0, %s50
    %s68 = sphi 0, %s68
    %s70 = sphi 0, %s68
    %s71 = sphi 0, %s70
    %s85 = sphi 0, %s71
    %s89 = sphi 0, %s89
    %s91 = sphi 0, %s89
    %s92 = sphi 0, %s91
    %s106 = sphi 0, %s92
    %s110 = sphi 0, %s110
    %s112 = sphi 0, %s110
    %s113 = sphi 0, %s112
    %s127 = sphi 0, %s113
    %s131 = sphi 0, %s131
    %s133 = sphi 0, %s131
    %s134 = sphi 0, %s133
    %s148 = sphi 0, %s134
    %s152 = sphi 0, %s152
    %s154 = sphi 0, %s152
    %s155 = sphi 0, %s154
    %s169 = sphi 0, %s155
    %s175 = sphi 0, %s177
    %s178 = sphi 0, %s175
    %s179 = sphi 0, %s178
    %s195 = sphi 0, %s179
  $region4: #{downconv_forward.1} parent=0 // loop_header_branch
    %16 = sbr.rel (%p14) target = $region8
  $region5: #{downconv_forward.1} parent=0 // loop_body
    %s18 = ssub.s32 %s13, 1
    %s19 = ssub.s32 %s13, 2
    %s20 = sadd.s32 %s13, 1
    %s21 = ssub.s32 %s13, %s20
    %p22 = scmp.eq.s32.totalorder %s21, 0
    %s24 = sadd.s32 %s23, 1
    %s25 = scalar_select %p22, %s23, %s24
    %p28 = pneg %p22
    %p29 = scmp.eq.s32.totalorder %s13, 1
    %p30 = por %p28, %p29
    %p31 = scmp.ne.s32.totalorder %s23, %s26
    %p32 = scmp.eq.s32.totalorder %s13, 0
    %p33 = por %p31, %p32
    %p34 = scmp.ne.s32.totalorder %s23, %s26
    %p35 = scmp.eq.s32.totalorder %s18, 1
    %p36 = por %p34, %p35
    %p37 = scmp.ne.s32.totalorder %s26, %s27
    %p38 = scmp.eq.s32.totalorder %s18, 0
    %p39 = por %p37, %p38
    %p40 = scmp.ne.s32.totalorder %s26, %s27
    %p41 = scmp.eq.s32.totalorder %s19, 1
    %p42 = por %p40, %p41
    %p44 = scmp.ne.s32.totalorder %s27, %s43
    %p45 = scmp.eq.s32.totalorder %s19, 0
    %p46 = por %p44, %p45
    %s48 = sadd.s32 %s47, 1
    %p51 = scmp.eq.s32.totalorder %s13, 1
    %p52 = scmp.ne.s32.totalorder %s47, %s49
    %p53 = scmp.eq.s32.totalorder %s13, 0
    %p54 = por %p52, %p53
    %p55 = scmp.ne.s32.totalorder %s47, %s49
    %p56 = scmp.eq.s32.totalorder %s18, 1
    %p57 = por %p55, %p56
    %p58 = scmp.ne.s32.totalorder %s49, %s50
    %p59 = scmp.eq.s32.totalorder %s18, 0
    %p60 = por %p58, %p59
    %p61 = scmp.ne.s32.totalorder %s49, %s50
    %p62 = scmp.eq.s32.totalorder %s19, 1
    %p63 = por %p61, %p62
    %p65 = scmp.ne.s32.totalorder %s50, %s64
    %p66 = scmp.eq.s32.totalorder %s19, 0
    %p67 = por %p65, %p66
    %s69 = sadd.s32 %s68, 1
    %p72 = scmp.eq.s32.totalorder %s13, 1
    %p73 = scmp.ne.s32.totalorder %s68, %s70
    %p74 = scmp.eq.s32.totalorder %s13, 0
    %p75 = por %p73, %p74
    %p76 = scmp.ne.s32.totalorder %s68, %s70
    %p77 = scmp.eq.s32.totalorder %s18, 1
    %p78 = por %p76, %p77
    %p79 = scmp.ne.s32.totalorder %s70, %s71
    %p80 = scmp.eq.s32.totalorder %s18, 0
    %p81 = por %p79, %p80
    %p82 = scmp.ne.s32.totalorder %s70, %s71
    %p83 = scmp.eq.s32.totalorder %s19, 1
    %p84 = por %p82, %p83
    %p86 = scmp.ne.s32.totalorder %s71, %s85
    %p87 = scmp.eq.s32.totalorder %s19, 0
    %p88 = por %p86, %p87
    %s90 = sadd.s32 %s89, 1
    %p93 = scmp.eq.s32.totalorder %s13, 1
    %p94 = scmp.ne.s32.totalorder %s89, %s91
    %p95 = scmp.eq.s32.totalorder %s13, 0
    %p96 = por %p94, %p95
    %p97 = scmp.ne.s32.totalorder %s89, %s91
    %p98 = scmp.eq.s32.totalorder %s18, 1
    %p99 = por %p97, %p98
    %p100 = scmp.ne.s32.totalorder %s91, %s92
    %p101 = scmp.eq.s32.totalorder %s18, 0
    %p102 = por %p100, %p101
    %p103 = scmp.ne.s32.totalorder %s91, %s92
    %p104 = scmp.eq.s32.totalorder %s19, 1
    %p105 = por %p103, %p104
    %p107 = scmp.ne.s32.totalorder %s92, %s106
    %p108 = scmp.eq.s32.totalorder %s19, 0
    %p109 = por %p107, %p108
    %s111 = sadd.s32 %s110, 1
    %p114 = scmp.eq.s32.totalorder %s13, 1
    %p115 = scmp.ne.s32.totalorder %s110, %s112
    %p116 = scmp.eq.s32.totalorder %s13, 0
    %p117 = por %p115, %p116
    %p118 = scmp.ne.s32.totalorder %s110, %s112
    %p119 = scmp.eq.s32.totalorder %s18, 1
    %p120 = por %p118, %p119
    %p121 = scmp.ne.s32.totalorder %s112, %s113
    %p122 = scmp.eq.s32.totalorder %s18, 0
    %p123 = por %p121, %p122
    %p124 = scmp.ne.s32.totalorder %s112, %s113
    %p125 = scmp.eq.s32.totalorder %s19, 1
    %p126 = por %p124, %p125
    %p128 = scmp.ne.s32.totalorder %s113, %s127
    %p129 = scmp.eq.s32.totalorder %s19, 0
    %p130 = por %p128, %p129
    %s132 = sadd.s32 %s131, 1
    %p135 = scmp.eq.s32.totalorder %s13, 1
    %p136 = scmp.ne.s32.totalorder %s131, %s133
    %p137 = scmp.eq.s32.totalorder %s13, 0
    %p138 = por %p136, %p137
    %p139 = scmp.ne.s32.totalorder %s131, %s133
    %p140 = scmp.eq.s32.totalorder %s18, 1
    %p141 = por %p139, %p140
    %p142 = scmp.ne.s32.totalorder %s133, %s134
    %p143 = scmp.eq.s32.totalorder %s18, 0
    %p144 = por %p142, %p143
    %p145 = scmp.ne.s32.totalorder %s133, %s134
    %p146 = scmp.eq.s32.totalorder %s19, 1
    %p147 = por %p145, %p146
    %p149 = scmp.ne.s32.totalorder %s134, %s148
    %p150 = scmp.eq.s32.totalorder %s19, 0
    %p151 = por %p149, %p150
    %s153 = sadd.s32 %s152, 1
    %p156 = scmp.eq.s32.totalorder %s13, 1
    %p157 = scmp.ne.s32.totalorder %s152, %s154
    %p158 = scmp.eq.s32.totalorder %s13, 0
    %p159 = por %p157, %p158
    %p160 = scmp.ne.s32.totalorder %s152, %s154
    %p161 = scmp.eq.s32.totalorder %s18, 1
    %p162 = por %p160, %p161
    %p163 = scmp.ne.s32.totalorder %s154, %s155
    %p164 = scmp.eq.s32.totalorder %s18, 0
    %p165 = por %p163, %p164
    %p166 = scmp.ne.s32.totalorder %s154, %s155
    %p167 = scmp.eq.s32.totalorder %s19, 1
    %p168 = por %p166, %p167
    %p170 = scmp.ne.s32.totalorder %s155, %s169
    %p171 = scmp.eq.s32.totalorder %s19, 0
    %p172 = por %p170, %p171
    %s173 = ssub.s32 %s13, %s20
    %p174 = scmp.eq.s32.totalorder %s173, 0
    %s176 = sadd.s32 %s175, 1
    %s177 = scalar_select %p174, %s175, %s176
    %p180 = pneg %p174
    %p181 = scmp.eq.s32.totalorder %s13, 1
    %p182 = por %p180, %p181
    %p183 = scmp.ne.s32.totalorder %s175, %s178
    %p184 = scmp.eq.s32.totalorder %s13, 0
    %p185 = por %p183, %p184
    %p186 = scmp.ne.s32.totalorder %s175, %s178
    %p187 = scmp.eq.s32.totalorder %s18, 1
    %p188 = por %p186, %p187
    %p189 = scmp.ne.s32.totalorder %s178, %s179
    %p190 = scmp.eq.s32.totalorder %s18, 0
    %p191 = por %p189, %p190
    %p192 = scmp.ne.s32.totalorder %s178, %s179
    %p193 = scmp.eq.s32.totalorder %s19, 1
    %p194 = por %p192, %p193
    %p196 = scmp.ne.s32.totalorder %s179, %s195
    %p197 = scmp.eq.s32.totalorder %s19, 0
    %p198 = por %p196, %p197
    %p199 = scmp.le.s32.totalorder 1, %s13
    %p200 = scmp.lt.s32.totalorder %s13, 3
    %p201 = pnand %p199, %p200
    %p202 = pneg %p201
    // Predicated region
    $region9: #{downconv_forward.1} parent=5 // pred_check
      _
    $region10: #{downconv_forward.1} parent=5 // pred_check_branch
      %204 = sbr.rel (%p201) target = $region12
    $region11: #{downconv_forward.1} parent=5 // pred_region
      %s205 = ssub.s32 %s13, 1
      // Predicated region
      $region13: #{downconv_forward.1} parent=11 // pred_check
        %p206 = pneg %p60
      $region14: #{downconv_forward.1} parent=11 // pred_check_branch
        %208 = sbr.rel (%p206) target = $region16
      $region15: #{downconv_forward.1} parent=11 // pred_region
        _
      $region16: #{downconv_forward.1} parent=11 // pred_fallthru
        _
      // Predicated region
      $region17: #{downconv_forward.1} parent=11 // pred_check
        %p209 = pneg %p81
      $region18: #{downconv_forward.1} parent=11 // pred_check_branch
        %211 = sbr.rel (%p209) target = $region20
      $region19: #{downconv_forward.1} parent=11 // pred_region
        _
      $region20: #{downconv_forward.1} parent=11 // pred_fallthru
        _
      // Predicated region
      $region21: #{downconv_forward.1} parent=11 // pred_check
        %p212 = pneg %p102
      $region22: #{downconv_forward.1} parent=11 // pred_check_branch
        %214 = sbr.rel (%p212) target = $region24
      $region23: #{downconv_forward.1} parent=11 // pred_region
        _
      $region24: #{downconv_forward.1} parent=11 // pred_fallthru
        _
      // Predicated region
      $region25: #{downconv_forward.1} parent=11 // pred_check
        %p215 = pneg %p123
      $region26: #{downconv_forward.1} parent=11 // pred_check_branch
        %217 = sbr.rel (%p215) target = $region28
      $region27: #{downconv_forward.1} parent=11 // pred_region
        _
      $region28: #{downconv_forward.1} parent=11 // pred_fallthru
        _
      // Predicated region
      $region29: #{downconv_forward.1} parent=11 // pred_check
        %p218 = pneg %p144
      $region30: #{downconv_forward.1} parent=11 // pred_check_branch
        %220 = sbr.rel (%p218) target = $region32
      $region31: #{downconv_forward.1} parent=11 // pred_region
        _
      $region32: #{downconv_forward.1} parent=11 // pred_fallthru
        _
      // Predicated region
      $region33: #{downconv_forward.1} parent=11 // pred_check
        %p221 = pneg %p165
      $region34: #{downconv_forward.1} parent=11 // pred_check_branch
        %223 = sbr.rel (%p221) target = $region36
      $region35: #{downconv_forward.1} parent=11 // pred_region
        _
      $region36: #{downconv_forward.1} parent=11 // pred_fallthru
        _
    $region12: #{downconv_forward.1} parent=5 // pred_fallthru
      _
    %p224 = scmp.lt.s32.totalorder %s13, 2
    // Predicated region
    $region37: #{downconv_forward.1} parent=5 // pred_check
      %p225 = pneg %p224
    $region38: #{downconv_forward.1} parent=5 // pred_check_branch
      %227 = sbr.rel (%p225) target = $region40
    $region39: #{downconv_forward.1} parent=5 // pred_region
      // Predicated region
      $region41: #{downconv_forward.1} parent=39 // pred_check
        %p228 = pneg %p33
      $region42: #{downconv_forward.1} parent=39 // pred_check_branch
        %230 = sbr.rel (%p228) target = $region44
      $region43: #{downconv_forward.1} parent=39 // pred_region
        %p231 = scmp.lt.s32.totalorder %s13, 1
        %s232 = scalar_select %p231, %s13, 1
        %s233 = smul.addr %s232, 32
        %s234 = smul.addr %s233, 4
        %s235 = scalar_lea.vmem %s0, %s234
      $region44: #{downconv_forward.1} parent=39 // pred_fallthru
        _
    $region40: #{downconv_forward.1} parent=5 // pred_fallthru
      _
    %p236 = scmp.le.s32.totalorder 1, %s13
    %p237 = scmp.lt.s32.totalorder %s13, 3
    %p238 = pnand %p236, %p237
    %p239 = pneg %p238
    // Predicated region
    $region45: #{downconv_forward.1} parent=5 // pred_check
      _
    $region46: #{downconv_forward.1} parent=5 // pred_check_branch
      %241 = sbr.rel (%p238) target = $region48
    $region47: #{downconv_forward.1} parent=5 // pred_region
      %s242 = ssub.s32 %s13, 1
      %p243 = scmp.lt.s32.totalorder %s18, 1
      %s244 = scalar_select %p243, %s18, 1
      %s245 = smul.addr %s244, 32
      %s246 = smul.addr %s245, 4
      %s247 = scalar_lea.vmem %s0, %s246
      %p248 = pneg %p39
      %p249 = pneg %p36
      %p250 = pneg %p60
      %p251 = pneg %p57
      %p252 = pneg %p81
      %p253 = pneg %p78
      %p254 = pneg %p102
      %p255 = pneg %p99
      %p256 = pneg %p123
      %p257 = pneg %p120
      %p258 = pneg %p144
      %p259 = pneg %p141
      %p260 = pneg %p165
      %p261 = pneg %p162
      %p262 = pneg %p191
      %p263 = pneg %p188
      %p264 = scmp.lt.s32.totalorder %s18, 1
      %s265 = scalar_select %p264, %s18, 1
      %s266 = smul.addr %s265, 2
      %s267 = smul.addr %s266, 4
      %s268 = scalar_lea.vmem %s7, %s267
      %p269 = scmp.lt.s32.totalorder %s18, 1
      %s270 = scalar_select %p269, %s18, 1
      %s271 = smul.addr %s270, 32
      %s272 = smul.addr %s271, 4
      %s273 = scalar_lea.vmem %s0, %s272
      %p274 = scmp.lt.s32.totalorder %s18, 1
      %s275 = scalar_select %p274, %s18, 1
      %s276 = smul.addr %s275, 2
      %s277 = smul.addr %s276, 4
      %s278 = scalar_lea.vmem %s7, %s277
      %vm280 = vcmask 27648
      %281 = vst.msk [vmem:[#allocation2] sm:$0xf] %vm280, 0
      %282 = vst.msk [vmem:[#allocation2 + $0x4] sm:$0xf] %vm280, 0
      %vm283 = vcmask 24576
      %284 = vst.msk [vmem:[#allocation2 + $0x8] sm:$0x1] %vm283, 0
      %s285 = scalar_lea.vmem [#allocation2], 204
      %286 = vst.msk [vmem:[%s285] sm:$0xf] %vm280, 0
      %287 = vst.msk [vmem:[%s285 + $0x4] sm:$0xf] %vm280, 0
      %288 = vst.msk [vmem:[%s285 + $0x8] sm:$0x1] %vm283, 0
      %vm289 = vcmask 24576
      %vm290 = vsmask.f32 256
      %vm291 = vmand %vm289, %vm290
      %v292 = vld [vmem:[#allocation2] sm:$0x1]
      %v293 = vsel %vm291, 0, %v292
      %294 = vst [vmem:[#allocation2] sm:$0x1] %v293
      %v295 = vld [vmem:[#allocation2 + $0xc] sm:$0x1]
      %v296 = vsel %vm291, 0, %v295
      %297 = vst [vmem:[#allocation2 + $0xc] sm:$0x1] %v296
      %v298 = vld [vmem:[#allocation2 + $0x18] sm:$0x1]
      %v299 = vsel %vm291, 0, %v298
      %300 = vst [vmem:[#allocation2 + $0x18] sm:$0x1] %v299
      %v301 = vld [vmem:[#allocation2 + $0x24] sm:$0x1]
      %v302 = vsel %vm291, 0, %v301
      %303 = vst [vmem:[#allocation2 + $0x24] sm:$0x1] %v302
      %v304 = vld [vmem:[#allocation2 + $0x30] sm:$0x1]
      %v305 = vsel %vm291, 0, %v304
      %306 = vst [vmem:[#allocation2 + $0x30] sm:$0x1] %v305
      %v307 = vld [vmem:[#allocation2 + $0x3c] sm:$0x1]
      %v308 = vsel %vm291, 0, %v307
      %309 = vst [vmem:[#allocation2 + $0x3c] sm:$0x1] %v308
      %v310 = vld [vmem:[#allocation2 + $0x48] sm:$0x1]
      %v311 = vsel %vm291, 0, %v310
      %312 = vst [vmem:[#allocation2 + $0x48] sm:$0x1] %v311
      %v313 = vld [vmem:[#allocation2 + $0x54] sm:$0x1]
      %v314 = vsel %vm291, 0, %v313
      %315 = vst [vmem:[#allocation2 + $0x54] sm:$0x1] %v314
      %v316 = vld [vmem:[#allocation2 + $0x60] sm:$0x1]
      %v317 = vsel %vm291, 0, %v316
      %318 = vst [vmem:[#allocation2 + $0x60] sm:$0x1] %v317
      %v319 = vld [vmem:[#allocation2 + $0x6c] sm:$0x1]
      %v320 = vsel %vm291, 0, %v319
      %321 = vst [vmem:[#allocation2 + $0x6c] sm:$0x1] %v320
      %v322 = vld [vmem:[#allocation2 + $0x78] sm:$0x1]
      %v323 = vsel %vm291, 0, %v322
      %324 = vst [vmem:[#allocation2 + $0x78] sm:$0x1] %v323
      %v325 = vld [vmem:[#allocation2 + $0x84] sm:$0x1]
      %v326 = vsel %vm291, 0, %v325
      %327 = vst [vmem:[#allocation2 + $0x84] sm:$0x1] %v326
      %v328 = vld [vmem:[#allocation2 + $0x90] sm:$0x1]
      %v329 = vsel %vm291, 0, %v328
      %330 = vst [vmem:[#allocation2 + $0x90] sm:$0x1] %v329
      %v331 = vld [vmem:[#allocation2 + $0x9c] sm:$0x1]
      %v332 = vsel %vm291, 0, %v331
      %333 = vst [vmem:[#allocation2 + $0x9c] sm:$0x1] %v332
      %v334 = vld [vmem:[#allocation2 + $0xa8] sm:$0x1]
      %v335 = vsel %vm291, 0, %v334
      %336 = vst [vmem:[#allocation2 + $0xa8] sm:$0x1] %v335
      %v337 = vld [vmem:[#allocation2 + $0xb4] sm:$0x1]
      %v338 = vsel %vm291, 0, %v337
      %339 = vst [vmem:[#allocation2 + $0xb4] sm:$0x1] %v338
      %v340 = vld [vmem:[#allocation2 + $0xc0] sm:$0x1]
      %v341 = vsel %vm291, 0, %v340
      %342 = vst [vmem:[#allocation2 + $0xc0] sm:$0x1] %v341
      %v343 = vld [vmem:[#allocation2 + $0xcc] sm:$0x1]
      %v344 = vsel %vm291, 0, %v343
      %345 = vst [vmem:[#allocation2 + $0xcc] sm:$0x1] %v344
      %vm346 = vsmask.f32 7938
      %vm347 = vmand %vm289, %vm346
      %v348 = vld [vmem:[#allocation2 + $0x8] sm:$0x1]
      %v349 = vsel %vm347, 0, %v348
      %350 = vst [vmem:[#allocation2 + $0x8] sm:$0x1] %v349
      %v351 = vld [vmem:[#allocation2 + $0x14] sm:$0x1]
      %v352 = vsel %vm347, 0, %v351
      %353 = vst [vmem:[#allocation2 + $0x14] sm:$0x1] %v352
      %v354 = vld [vmem:[#allocation2 + $0x20] sm:$0x1]
      %v355 = vsel %vm347, 0, %v354
      %356 = vst [vmem:[#allocation2 + $0x20] sm:$0x1] %v355
      %v357 = vld [vmem:[#allocation2 + $0x2c] sm:$0x1]
      %v358 = vsel %vm347, 0, %v357
      %359 = vst [vmem:[#allocation2 + $0x2c] sm:$0x1] %v358
      %v360 = vld [vmem:[#allocation2 + $0x38] sm:$0x1]
      %v361 = vsel %vm347, 0, %v360
      %362 = vst [vmem:[#allocation2 + $0x38] sm:$0x1] %v361
      %v363 = vld [vmem:[#allocation2 + $0x44] sm:$0x1]
      %v364 = vsel %vm347, 0, %v363
      %365 = vst [vmem:[#allocation2 + $0x44] sm:$0x1] %v364
      %v366 = vld [vmem:[#allocation2 + $0x50] sm:$0x1]
      %v367 = vsel %vm347, 0, %v366
      %368 = vst [vmem:[#allocation2 + $0x50] sm:$0x1] %v367
      %v369 = vld [vmem:[#allocation2 + $0x5c] sm:$0x1]
      %v370 = vsel %vm347, 0, %v369
      %371 = vst [vmem:[#allocation2 + $0x5c] sm:$0x1] %v370
      %v372 = vld [vmem:[#allocation2 + $0x68] sm:$0x1]
      %v373 = vsel %vm347, 0, %v372
      %374 = vst [vmem:[#allocation2 + $0x68] sm:$0x1] %v373
      %v375 = vld [vmem:[#allocation2 + $0x74] sm:$0x1]
      %v376 = vsel %vm347, 0, %v375
      %377 = vst [vmem:[#allocation2 + $0x74] sm:$0x1] %v376
      %v378 = vld [vmem:[#allocation2 + $0x80] sm:$0x1]
      %v379 = vsel %vm347, 0, %v378
      %380 = vst [vmem:[#allocation2 + $0x80] sm:$0x1] %v379
      %v381 = vld [vmem:[#allocation2 + $0x8c] sm:$0x1]
      %v382 = vsel %vm347, 0, %v381
      %383 = vst [vmem:[#allocation2 + $0x8c] sm:$0x1] %v382
      %v384 = vld [vmem:[#allocation2 + $0x98] sm:$0x1]
      %v385 = vsel %vm347, 0, %v384
      %386 = vst [vmem:[#allocation2 + $0x98] sm:$0x1] %v385
      %v387 = vld [vmem:[#allocation2 + $0xa4] sm:$0x1]
      %v388 = vsel %vm347, 0, %v387
      %389 = vst [vmem:[#allocation2 + $0xa4] sm:$0x1] %v388
      %v390 = vld [vmem:[#allocation2 + $0xb0] sm:$0x1]
      %v391 = vsel %vm347, 0, %v390
      %392 = vst [vmem:[#allocation2 + $0xb0] sm:$0x1] %v391
      %v393 = vld [vmem:[#allocation2 + $0xbc] sm:$0x1]
      %v394 = vsel %vm347, 0, %v393
      %395 = vst [vmem:[#allocation2 + $0xbc] sm:$0x1] %v394
      %v396 = vld [vmem:[#allocation2 + $0xc8] sm:$0x1]
      %v397 = vsel %vm347, 0, %v396
      %398 = vst [vmem:[#allocation2 + $0xc8] sm:$0x1] %v397
      %v399 = vld [vmem:[#allocation2 + $0xd4] sm:$0x1]
      %v400 = vsel %vm347, 0, %v399
      %401 = vst [vmem:[#allocation2 + $0xd4] sm:$0x1] %v400
      %v402 = vld [vmem:[%s273] sm:$0xf]
      %v403 = vld [vmem:[%s273 + $0x4] sm:$0xf]
      %v404 = vld [vmem:[%s273 + $0x8] sm:$0xf]
      %v405 = vld [vmem:[%s273 + $0xc] sm:$0xf]
      %v406 = vld [vmem:[%s273 + $0x10] sm:$0xf]
      %v407 = vld [vmem:[%s273 + $0x14] sm:$0xf]
      %v408 = vld [vmem:[%s273 + $0x18] sm:$0xf]
      %v409 = vld [vmem:[%s273 + $0x1c] sm:$0xf]
      %v410 = vld [vmem:[%s273 + $0x20] sm:$0xf]
      %v411 = vld [vmem:[%s273 + $0x24] sm:$0xf]
      %v412 = vld [vmem:[%s273 + $0x28] sm:$0xf]
      %v413 = vld [vmem:[%s273 + $0x2c] sm:$0xf]
      %v414 = vld [vmem:[%s273 + $0x30] sm:$0xf]
      %v415 = vld [vmem:[%s273 + $0x34] sm:$0xf]
      %v416 = vld [vmem:[%s273 + $0x38] sm:$0xf]
      %v417 = vld [vmem:[%s273 + $0x3c] sm:$0xf]
      %v418 = vld [vmem:[%s273 + $0x40] sm:$0xf]
      %v419 = vld [vmem:[%s273 + $0x44] sm:$0xf]
      %v420 = vld [vmem:[%s273 + $0x48] sm:$0xf]
      %v421 = vld [vmem:[%s273 + $0x4c] sm:$0xf]
      %v422 = vld [vmem:[%s273 + $0x50] sm:$0xf]
      %v423 = vld [vmem:[%s273 + $0x54] sm:$0xf]
      %v424 = vld [vmem:[%s273 + $0x58] sm:$0xf]
      %v425 = vld [vmem:[%s273 + $0x5c] sm:$0xf]
      %v426 = vld [vmem:[%s273 + $0x60] sm:$0xf]
      %v427 = vld [vmem:[%s273 + $0x64] sm:$0xf]
      %v428 = vld [vmem:[%s273 + $0x68] sm:$0xf]
      %v429 = vld [vmem:[%s273 + $0x6c] sm:$0xf]
      %v430 = vld [vmem:[%s273 + $0x70] sm:$0xf]
      %v431 = vld [vmem:[%s273 + $0x74] sm:$0xf]
      %v432 = vld [vmem:[%s273 + $0x78] sm:$0xf]
      %v433 = vld [vmem:[%s273 + $0x7c] sm:$0xf]
      %vm434 = vsmask.f32 4368
      %vm435 = vmor %vm290, %vm434
      %v437 = vshrl.u32 %v402, 16
      %v439 = vrot.slane %v437, 7
      %v440 = vshll.u32 %v402, 16
      %v442 = vor.u32 %v439, %v440
      %v443 = vrot.slane %v439, 4
      %v445 = vshrl.u32 %v403, 16
      %v447 = vrot.slane %v445, 7
      %v448 = vshll.u32 %v403, 16
      %v450 = vor.u32 %v447, %v448
      %v451 = vsel %vm435, %v443, %v450
      %v452 = vrot.slane %v447, 4
      %v454 = vshrl.u32 %v404, 16
      %v456 = vrot.slane %v454, 7
      %v457 = vshll.u32 %v404, 16
      %v459 = vor.u32 %v456, %v457
      %v460 = vrot.slane %v456, 4
      %v462 = vshrl.u32 %v405, 16
      %v464 = vrot.slane %v462, 7
      %v465 = vshll.u32 %v405, 16
      %v467 = vor.u32 %v464, %v465
      %v468 = vsel %vm435, %v460, %v467
      %v469 = vrot.slane %v464, 4
      %v471 = vshrl.u32 %v406, 16
      %v473 = vrot.slane %v471, 7
      %v474 = vshll.u32 %v406, 16
      %v476 = vor.u32 %v473, %v474
      %v477 = vrot.slane %v473, 4
      %v479 = vshrl.u32 %v407, 16
      %v481 = vrot.slane %v479, 7
      %v482 = vshll.u32 %v407, 16
      %v484 = vor.u32 %v481, %v482
      %v485 = vsel %vm435, %v477, %v484
      %v486 = vrot.slane %v481, 4
      %v488 = vshrl.u32 %v408, 16
      %v490 = vrot.slane %v488, 7
      %v491 = vshll.u32 %v408, 16
      %v493 = vor.u32 %v490, %v491
      %v494 = vrot.slane %v490, 4
      %v496 = vshrl.u32 %v409, 16
      %v498 = vrot.slane %v496, 7
      %v499 = vshll.u32 %v409, 16
      %v501 = vor.u32 %v498, %v499
      %v502 = vsel %vm435, %v494, %v501
      %v503 = vrot.slane %v498, 4
      %v505 = vshrl.u32 %v410, 16
      %v507 = vrot.slane %v505, 7
      %v508 = vshll.u32 %v410, 16
      %v510 = vor.u32 %v507, %v508
      %v511 = vrot.slane %v507, 4
      %v513 = vshrl.u32 %v411, 16
      %v515 = vrot.slane %v513, 7
      %v516 = vshll.u32 %v411, 16
      %v518 = vor.u32 %v515, %v516
      %v519 = vsel %vm435, %v511, %v518
      %v520 = vrot.slane %v515, 4
      %v522 = vshrl.u32 %v412, 16
      %v524 = vrot.slane %v522, 7
      %v525 = vshll.u32 %v412, 16
      %v527 = vor.u32 %v524, %v525
      %v528 = vrot.slane %v524, 4
      %v530 = vshrl.u32 %v413, 16
      %v532 = vrot.slane %v530, 7
      %v533 = vshll.u32 %v413, 16
      %v535 = vor.u32 %v532, %v533
      %v536 = vsel %vm435, %v528, %v535
      %v537 = vrot.slane %v532, 4
      %v539 = vshrl.u32 %v414, 16
      %v541 = vrot.slane %v539, 7
      %v542 = vshll.u32 %v414, 16
      %v544 = vor.u32 %v541, %v542
      %v545 = vrot.slane %v541, 4
      %v547 = vshrl.u32 %v415, 16
      %v549 = vrot.slane %v547, 7
      %v550 = vshll.u32 %v415, 16
      %v552 = vor.u32 %v549, %v550
      %v553 = vsel %vm435, %v545, %v552
      %v554 = vrot.slane %v549, 4
      %v556 = vshrl.u32 %v416, 16
      %v558 = vrot.slane %v556, 7
      %v559 = vshll.u32 %v416, 16
      %v561 = vor.u32 %v558, %v559
      %v562 = vrot.slane %v558, 4
      %v564 = vshrl.u32 %v417, 16
      %v566 = vrot.slane %v564, 7
      %v567 = vshll.u32 %v417, 16
      %v569 = vor.u32 %v566, %v567
      %v570 = vsel %vm435, %v562, %v569
      %v571 = vrot.slane %v566, 4
      %v573 = vshrl.u32 %v418, 16
      %v575 = vrot.slane %v573, 7
      %v576 = vshll.u32 %v418, 16
      %v578 = vor.u32 %v575, %v576
      %v579 = vrot.slane %v575, 4
      %v581 = vshrl.u32 %v419, 16
      %v583 = vrot.slane %v581, 7
      %v584 = vshll.u32 %v419, 16
      %v586 = vor.u32 %v583, %v584
      %v587 = vsel %vm435, %v579, %v586
      %v588 = vrot.slane %v583, 4
      %v590 = vshrl.u32 %v420, 16
      %v592 = vrot.slane %v590, 7
      %v593 = vshll.u32 %v420, 16
      %v595 = vor.u32 %v592, %v593
      %v596 = vrot.slane %v592, 4
      %v598 = vshrl.u32 %v421, 16
      %v600 = vrot.slane %v598, 7
      %v601 = vshll.u32 %v421, 16
      %v603 = vor.u32 %v600, %v601
      %v604 = vsel %vm435, %v596, %v603
      %v605 = vrot.slane %v600, 4
      %v607 = vshrl.u32 %v422, 16
      %v609 = vrot.slane %v607, 7
      %v610 = vshll.u32 %v422, 16
      %v612 = vor.u32 %v609, %v610
      %v613 = vrot.slane %v609, 4
      %v615 = vshrl.u32 %v423, 16
      %v617 = vrot.slane %v615, 7
      %v618 = vshll.u32 %v423, 16
      %v620 = vor.u32 %v617, %v618
      %v621 = vsel %vm435, %v613, %v620
      %v622 = vrot.slane %v617, 4
      %v624 = vshrl.u32 %v424, 16
      %v626 = vrot.slane %v624, 7
      %v627 = vshll.u32 %v424, 16
      %v629 = vor.u32 %v626, %v627
      %v630 = vrot.slane %v626, 4
      %v632 = vshrl.u32 %v425, 16
      %v634 = vrot.slane %v632, 7
      %v635 = vshll.u32 %v425, 16
      %v637 = vor.u32 %v634, %v635
      %v638 = vsel %vm435, %v630, %v637
      %v639 = vrot.slane %v634, 4
      %v641 = vshrl.u32 %v426, 16
      %v643 = vrot.slane %v641, 7
      %v644 = vshll.u32 %v426, 16
      %v646 = vor.u32 %v643, %v644
      %v647 = vrot.slane %v643, 4
      %v649 = vshrl.u32 %v427, 16
      %v651 = vrot.slane %v649, 7
      %v652 = vshll.u32 %v427, 16
      %v654 = vor.u32 %v651, %v652
      %v655 = vsel %vm435, %v647, %v654
      %v656 = vrot.slane %v651, 4
      %v658 = vshrl.u32 %v428, 16
      %v660 = vrot.slane %v658, 7
      %v661 = vshll.u32 %v428, 16
      %v663 = vor.u32 %v660, %v661
      %v664 = vrot.slane %v660, 4
      %v666 = vshrl.u32 %v429, 16
      %v668 = vrot.slane %v666, 7
      %v669 = vshll.u32 %v429, 16
      %v671 = vor.u32 %v668, %v669
      %v672 = vsel %vm435, %v664, %v671
      %v673 = vrot.slane %v668, 4
      %v675 = vshrl.u32 %v430, 16
      %v677 = vrot.slane %v675, 7
      %v678 = vshll.u32 %v430, 16
      %v680 = vor.u32 %v677, %v678
      %v681 = vrot.slane %v677, 4
      %v683 = vshrl.u32 %v431, 16
      %v685 = vrot.slane %v683, 7
      %v686 = vshll.u32 %v431, 16
      %v688 = vor.u32 %v685, %v686
      %v689 = vsel %vm435, %v681, %v688
      %v690 = vrot.slane %v685, 4
      %v692 = vshrl.u32 %v432, 16
      %v694 = vrot.slane %v692, 7
      %v695 = vshll.u32 %v432, 16
      %v697 = vor.u32 %v694, %v695
      %v698 = vrot.slane %v694, 4
      %v700 = vshrl.u32 %v433, 16
      %v702 = vrot.slane %v700, 7
      %v703 = vshll.u32 %v433, 16
      %v705 = vor.u32 %v702, %v703
      %v706 = vsel %vm435, %v698, %v705
      %v707 = vrot.slane %v702, 4
      %s756 = scalar_lea.vmem [#allocation2], 12
      %vm757 = vcmask 27648
      %vm758 = vmand %vm757, %vm346
      %v759 = vld [vmem:[%s756] sm:$0xf]
      %v760 = vsel %vm758, %v442, %v759
      %761 = vst [vmem:[%s756] sm:$0xf] %v760
      %762 = vst.msk [vmem:[%s756 + $0x4] sm:$0xf] %vm280, %v451
      %v763 = vld [vmem:[%s756 + $0x8] sm:$0x1]
      %v764 = vsel %vm291, %v452, %v763
      %765 = vst [vmem:[%s756 + $0x8] sm:$0x1] %v764
      %v766 = vld [vmem:[%s756 + $0xc] sm:$0xf]
      %v767 = vsel %vm758, %v459, %v766
      %768 = vst [vmem:[%s756 + $0xc] sm:$0xf] %v767
      %769 = vst.msk [vmem:[%s756 + $0x10] sm:$0xf] %vm280, %v468
      %v770 = vld [vmem:[%s756 + $0x14] sm:$0x1]
      %v771 = vsel %vm291, %v469, %v770
      %772 = vst [vmem:[%s756 + $0x14] sm:$0x1] %v771
      %v773 = vld [vmem:[%s756 + $0x18] sm:$0xf]
      %v774 = vsel %vm758, %v476, %v773
      %775 = vst [vmem:[%s756 + $0x18] sm:$0xf] %v774
      %776 = vst.msk [vmem:[%s756 + $0x1c] sm:$0xf] %vm280, %v485
      %v777 = vld [vmem:[%s756 + $0x20] sm:$0x1]
      %v778 = vsel %vm291, %v486, %v777
      %779 = vst [vmem:[%s756 + $0x20] sm:$0x1] %v778
      %v780 = vld [vmem:[%s756 + $0x24] sm:$0xf]
      %v781 = vsel %vm758, %v493, %v780
      %782 = vst [vmem:[%s756 + $0x24] sm:$0xf] %v781
      %783 = vst.msk [vmem:[%s756 + $0x28] sm:$0xf] %vm280, %v502
      %v784 = vld [vmem:[%s756 + $0x2c] sm:$0x1]
      %v785 = vsel %vm291, %v503, %v784
      %786 = vst [vmem:[%s756 + $0x2c] sm:$0x1] %v785
      %v787 = vld [vmem:[%s756 + $0x30] sm:$0xf]
      %v788 = vsel %vm758, %v510, %v787
      %789 = vst [vmem:[%s756 + $0x30] sm:$0xf] %v788
      %790 = vst.msk [vmem:[%s756 + $0x34] sm:$0xf] %vm280, %v519
      %v791 = vld [vmem:[%s756 + $0x38] sm:$0x1]
      %v792 = vsel %vm291, %v520, %v791
      %793 = vst [vmem:[%s756 + $0x38] sm:$0x1] %v792
      %v794 = vld [vmem:[%s756 + $0x3c] sm:$0xf]
      %v795 = vsel %vm758, %v527, %v794
      %796 = vst [vmem:[%s756 + $0x3c] sm:$0xf] %v795
      %797 = vst.msk [vmem:[%s756 + $0x40] sm:$0xf] %vm280, %v536
      %v798 = vld [vmem:[%s756 + $0x44] sm:$0x1]
      %v799 = vsel %vm291, %v537, %v798
      %800 = vst [vmem:[%s756 + $0x44] sm:$0x1] %v799
      %v801 = vld [vmem:[%s756 + $0x48] sm:$0xf]
      %v802 = vsel %vm758, %v544, %v801
      %803 = vst [vmem:[%s756 + $0x48] sm:$0xf] %v802
      %804 = vst.msk [vmem:[%s756 + $0x4c] sm:$0xf] %vm280, %v553
      %v805 = vld [vmem:[%s756 + $0x50] sm:$0x1]
      %v806 = vsel %vm291, %v554, %v805
      %807 = vst [vmem:[%s756 + $0x50] sm:$0x1] %v806
      %v808 = vld [vmem:[%s756 + $0x54] sm:$0xf]
      %v809 = vsel %vm758, %v561, %v808
      %810 = vst [vmem:[%s756 + $0x54] sm:$0xf] %v809
      %811 = vst.msk [vmem:[%s756 + $0x58] sm:$0xf] %vm280, %v570
      %v812 = vld [vmem:[%s756 + $0x5c] sm:$0x1]
      %v813 = vsel %vm291, %v571, %v812
      %814 = vst [vmem:[%s756 + $0x5c] sm:$0x1] %v813
      %v815 = vld [vmem:[%s756 + $0x60] sm:$0xf]
      %v816 = vsel %vm758, %v578, %v815
      %817 = vst [vmem:[%s756 + $0x60] sm:$0xf] %v816
      %818 = vst.msk [vmem:[%s756 + $0x64] sm:$0xf] %vm280, %v587
      %v819 = vld [vmem:[%s756 + $0x68] sm:$0x1]
      %v820 = vsel %vm291, %v588, %v819
      %821 = vst [vmem:[%s756 + $0x68] sm:$0x1] %v820
      %v822 = vld [vmem:[%s756 + $0x6c] sm:$0xf]
      %v823 = vsel %vm758, %v595, %v822
      %824 = vst [vmem:[%s756 + $0x6c] sm:$0xf] %v823
      %825 = vst.msk [vmem:[%s756 + $0x70] sm:$0xf] %vm280, %v604
      %v826 = vld [vmem:[%s756 + $0x74] sm:$0x1]
      %v827 = vsel %vm291, %v605, %v826
      %828 = vst [vmem:[%s756 + $0x74] sm:$0x1] %v827
      %v829 = vld [vmem:[%s756 + $0x78] sm:$0xf]
      %v830 = vsel %vm758, %v612, %v829
      %831 = vst [vmem:[%s756 + $0x78] sm:$0xf] %v830
      %832 = vst.msk [vmem:[%s756 + $0x7c] sm:$0xf] %vm280, %v621
      %v833 = vld [vmem:[%s756 + $0x80] sm:$0x1]
      %v834 = vsel %vm291, %v622, %v833
      %835 = vst [vmem:[%s756 + $0x80] sm:$0x1] %v834
      %v836 = vld [vmem:[%s756 + $0x84] sm:$0xf]
      %v837 = vsel %vm758, %v629, %v836
      %838 = vst [vmem:[%s756 + $0x84] sm:$0xf] %v837
      %839 = vst.msk [vmem:[%s756 + $0x88] sm:$0xf] %vm280, %v638
      %v840 = vld [vmem:[%s756 + $0x8c] sm:$0x1]
      %v841 = vsel %vm291, %v639, %v840
      %842 = vst [vmem:[%s756 + $0x8c] sm:$0x1] %v841
      %v843 = vld [vmem:[%s756 + $0x90] sm:$0xf]
      %v844 = vsel %vm758, %v646, %v843
      %845 = vst [vmem:[%s756 + $0x90] sm:$0xf] %v844
      %846 = vst.msk [vmem:[%s756 + $0x94] sm:$0xf] %vm280, %v655
      %v847 = vld [vmem:[%s756 + $0x98] sm:$0x1]
      %v848 = vsel %vm291, %v656, %v847
      %849 = vst [vmem:[%s756 + $0x98] sm:$0x1] %v848
      %v850 = vld [vmem:[%s756 + $0x9c] sm:$0xf]
      %v851 = vsel %vm758, %v663, %v850
      %852 = vst [vmem:[%s756 + $0x9c] sm:$0xf] %v851
      %853 = vst.msk [vmem:[%s756 + $0xa0] sm:$0xf] %vm280, %v672
      %v854 = vld [vmem:[%s756 + $0xa4] sm:$0x1]
      %v855 = vsel %vm291, %v673, %v854
      %856 = vst [vmem:[%s756 + $0xa4] sm:$0x1] %v855
      %v857 = vld [vmem:[%s756 + $0xa8] sm:$0xf]
      %v858 = vsel %vm758, %v680, %v857
      %859 = vst [vmem:[%s756 + $0xa8] sm:$0xf] %v858
      %860 = vst.msk [vmem:[%s756 + $0xac] sm:$0xf] %vm280, %v689
      %v861 = vld [vmem:[%s756 + $0xb0] sm:$0x1]
      %v862 = vsel %vm291, %v690, %v861
      %863 = vst [vmem:[%s756 + $0xb0] sm:$0x1] %v862
      %v864 = vld [vmem:[%s756 + $0xb4] sm:$0xf]
      %v865 = vsel %vm758, %v697, %v864
      %866 = vst [vmem:[%s756 + $0xb4] sm:$0xf] %v865
      %867 = vst.msk [vmem:[%s756 + $0xb8] sm:$0xf] %vm280, %v706
      %v868 = vld [vmem:[%s756 + $0xbc] sm:$0x1]
      %v869 = vsel %vm291, %v707, %v868
      %870 = vst [vmem:[%s756 + $0xbc] sm:$0x1] %v869
      %v871 = vld [vmem:[#allocation2] sm:$0xf]
      %v872 = vld [vmem:[#allocation2 + $0x4] sm:$0xf]
      %v873 = vld [vmem:[#allocation2 + $0xc] sm:$0xf]
      %v874 = vld [vmem:[#allocation2 + $0x10] sm:$0xf]
      %v875 = vld [vmem:[#allocation2 + $0x18] sm:$0xf]
      %v876 = vld [vmem:[#allocation2 + $0x1c] sm:$0xf]
      %v877 = vld [vmem:[#allocation2 + $0x24] sm:$0xf]
      %v878 = vld [vmem:[#allocation2 + $0x28] sm:$0xf]
      %v879 = vld [vmem:[#allocation2 + $0x30] sm:$0xf]
      %v880 = vld [vmem:[#allocation2 + $0x34] sm:$0xf]
      %v881 = vld [vmem:[#allocation2 + $0x3c] sm:$0xf]
      %v882 = vld [vmem:[#allocation2 + $0x40] sm:$0xf]
      %v883 = vld [vmem:[#allocation2 + $0x48] sm:$0xf]
      %v884 = vld [vmem:[#allocation2 + $0x4c] sm:$0xf]
      %v885 = vld [vmem:[#allocation2 + $0x54] sm:$0xf]
      %v886 = vld [vmem:[#allocation2 + $0x58] sm:$0xf]
      %v887 = vld [vmem:[#allocation2 + $0x60] sm:$0xf]
      %v888 = vld [vmem:[#allocation2 + $0x64] sm:$0xf]
      %v889 = vld [vmem:[#allocation2 + $0x6c] sm:$0xf]
      %v890 = vld [vmem:[#allocation2 + $0x70] sm:$0xf]
      %v891 = vld [vmem:[#allocation2 + $0x78] sm:$0xf]
      %v892 = vld [vmem:[#allocation2 + $0x7c] sm:$0xf]
      %v893 = vld [vmem:[#allocation2 + $0x84] sm:$0xf]
      %v894 = vld [vmem:[#allocation2 + $0x88] sm:$0xf]
      %v895 = vld [vmem:[#allocation2 + $0x90] sm:$0xf]
      %v896 = vld [vmem:[#allocation2 + $0x94] sm:$0xf]
      %v897 = vld [vmem:[#allocation2 + $0x9c] sm:$0xf]
      %v898 = vld [vmem:[#allocation2 + $0xa0] sm:$0xf]
      %v899 = vld [vmem:[#allocation2 + $0xa8] sm:$0xf]
      %v900 = vld [vmem:[#allocation2 + $0xac] sm:$0xf]
      %v901 = vld [vmem:[#allocation2 + $0xb4] sm:$0xf]
      %v902 = vld [vmem:[#allocation2 + $0xb8] sm:$0xf]
      %v903 = vld [vmem:[#allocation2 + $0x8] sm:$0x1]
      %v904 = vld [vmem:[#allocation2 + $0x14] sm:$0x1]
      %v905 = vld [vmem:[#allocation2 + $0x20] sm:$0x1]
      %v906 = vld [vmem:[#allocation2 + $0x2c] sm:$0x1]
      %v907 = vld [vmem:[#allocation2 + $0x38] sm:$0x1]
      %v908 = vld [vmem:[#allocation2 + $0x44] sm:$0x1]
      %v909 = vld [vmem:[#allocation2 + $0x50] sm:$0x1]
      %v910 = vld [vmem:[#allocation2 + $0x5c] sm:$0x1]
      %v911 = vld [vmem:[#allocation2 + $0x68] sm:$0x1]
      %v912 = vld [vmem:[#allocation2 + $0x74] sm:$0x1]
      %v913 = vld [vmem:[#allocation2 + $0x80] sm:$0x1]
      %v914 = vld [vmem:[#allocation2 + $0x8c] sm:$0x1]
      %v915 = vld [vmem:[#allocation2 + $0x98] sm:$0x1]
      %v916 = vld [vmem:[#allocation2 + $0xa4] sm:$0x1]
      %v917 = vld [vmem:[#allocation2 + $0xb0] sm:$0x1]
      %v918 = vld [vmem:[#allocation2 + $0xbc] sm:$0x1]
      %v919 = vld [vmem:[#allocation2] sm:$0xe]
      %v920 = vld [vmem:[#allocation2 + $0xc] sm:$0xe]
      %v921 = vld [vmem:[#allocation2 + $0x18] sm:$0xe]
      %v922 = vld [vmem:[#allocation2 + $0x24] sm:$0xe]
      %v923 = vld [vmem:[#allocation2 + $0x30] sm:$0xe]
      %v924 = vld [vmem:[#allocation2 + $0x3c] sm:$0xe]
      %v925 = vld [vmem:[#allocation2 + $0x48] sm:$0xe]
      %v926 = vld [vmem:[#allocation2 + $0x54] sm:$0xe]
      %v927 = vld [vmem:[#allocation2 + $0x60] sm:$0xe]
      %v928 = vld [vmem:[#allocation2 + $0x6c] sm:$0xe]
      %v929 = vld [vmem:[#allocation2 + $0x78] sm:$0xe]
      %v930 = vld [vmem:[#allocation2 + $0x84] sm:$0xe]
      %v931 = vld [vmem:[#allocation2 + $0x90] sm:$0xe]
      %v932 = vld [vmem:[#allocation2 + $0x9c] sm:$0xe]
      %v933 = vld [vmem:[#allocation2 + $0xa8] sm:$0xe]
      %v934 = vld [vmem:[#allocation2 + $0xb4] sm:$0xe]
      %v967 = vunpack.c.l.b16 %v871
      %v968 = vunpack.c.l.b16 %v872
      %v969 = vunpack.c.l.b16 %v873
      %v970 = vunpack.c.l.b16 %v874
      %v971 = vunpack.c.l.b16 %v875
      %v972 = vunpack.c.l.b16 %v876
      %v973 = vunpack.c.l.b16 %v877
      %v974 = vunpack.c.l.b16 %v878
      %v975 = vunpack.c.l.b16 %v879
      %v976 = vunpack.c.l.b16 %v880
      %v977 = vunpack.c.l.b16 %v881
      %v978 = vunpack.c.l.b16 %v882
      %v979 = vunpack.c.l.b16 %v883
      %v980 = vunpack.c.l.b16 %v884
      %v981 = vunpack.c.l.b16 %v885
      %v982 = vunpack.c.l.b16 %v886
      %v983 = vunpack.c.l.b16 %v887
      %v984 = vunpack.c.l.b16 %v888
      %v985 = vunpack.c.l.b16 %v889
      %v986 = vunpack.c.l.b16 %v890
      %v987 = vunpack.c.l.b16 %v891
      %v988 = vunpack.c.l.b16 %v892
      %v989 = vunpack.c.l.b16 %v893
      %v990 = vunpack.c.l.b16 %v894
      %v991 = vunpack.c.l.b16 %v895
      %v992 = vunpack.c.l.b16 %v896
      %v993 = vunpack.c.l.b16 %v897
      %v994 = vunpack.c.l.b16 %v898
      %v995 = vunpack.c.l.b16 %v899
      %v996 = vunpack.c.l.b16 %v900
      %v997 = vunpack.c.l.b16 %v901
      %v998 = vunpack.c.l.b16 %v902
      %v999 = vpack.c.b16 %v968, %v967
      %v1000 = vpack.c.b16 %v970, %v969
      %v1001 = vpack.c.b16 %v972, %v971
      %v1002 = vpack.c.b16 %v974, %v973
      %v1003 = vpack.c.b16 %v976, %v975
      %v1004 = vpack.c.b16 %v978, %v977
      %v1005 = vpack.c.b16 %v980, %v979
      %v1006 = vpack.c.b16 %v982, %v981
      %v1007 = vpack.c.b16 %v984, %v983
      %v1008 = vpack.c.b16 %v986, %v985
      %v1009 = vpack.c.b16 %v988, %v987
      %v1010 = vpack.c.b16 %v990, %v989
      %v1011 = vpack.c.b16 %v992, %v991
      %v1012 = vpack.c.b16 %v994, %v993
      %v1013 = vpack.c.b16 %v996, %v995
      %v1014 = vpack.c.b16 %v998, %v997
      %v1031 = vunpack.c.l.b16 %v903
      %v1032 = vunpack.c.l.b16 %v904
      %v1033 = vunpack.c.l.b16 %v905
      %v1034 = vunpack.c.l.b16 %v906
      %v1035 = vunpack.c.l.b16 %v907
      %v1036 = vunpack.c.l.b16 %v908
      %v1037 = vunpack.c.l.b16 %v909
      %v1038 = vunpack.c.l.b16 %v910
      %v1039 = vunpack.c.l.b16 %v911
      %v1040 = vunpack.c.l.b16 %v912
      %v1041 = vunpack.c.l.b16 %v913
      %v1042 = vunpack.c.l.b16 %v914
      %v1043 = vunpack.c.l.b16 %v915
      %v1044 = vunpack.c.l.b16 %v916
      %v1045 = vunpack.c.l.b16 %v917
      %v1046 = vunpack.c.l.b16 %v918
      %v1047 = vpack.c.b16 %v1031, %v1031
      %v1048 = vpack.c.b16 %v1032, %v1032
      %v1049 = vpack.c.b16 %v1033, %v1033
      %v1050 = vpack.c.b16 %v1034, %v1034
      %v1051 = vpack.c.b16 %v1035, %v1035
      %v1052 = vpack.c.b16 %v1036, %v1036
      %v1053 = vpack.c.b16 %v1037, %v1037
      %v1054 = vpack.c.b16 %v1038, %v1038
      %v1055 = vpack.c.b16 %v1039, %v1039
      %v1056 = vpack.c.b16 %v1040, %v1040
      %v1057 = vpack.c.b16 %v1041, %v1041
      %v1058 = vpack.c.b16 %v1042, %v1042
      %v1059 = vpack.c.b16 %v1043, %v1043
      %v1060 = vpack.c.b16 %v1044, %v1044
      %v1061 = vpack.c.b16 %v1045, %v1045
      %v1062 = vpack.c.b16 %v1046, %v1046
      %vm1063 = vsmask.f32 7424
      %v1065 = vshrl.u32 %v999, 16
      %v1067 = vshll.u32 %v999, 16
      %v1069 = vrot.slane %v1067, 1
      %v1070 = vor.u32 %v1065, %v1069
      %v1072 = vshll.u32 %v1047, 16
      %v1074 = vrot.slane %v1072, 1
      %v1075 = vsel %vm1063, %v1070, %v1074
      %v1077 = vshrl.u32 %v1000, 16
      %v1079 = vshll.u32 %v1000, 16
      %v1081 = vrot.slane %v1079, 1
      %v1082 = vor.u32 %v1077, %v1081
      %v1084 = vshll.u32 %v1048, 16
      %v1086 = vrot.slane %v1084, 1
      %v1087 = vsel %vm1063, %v1082, %v1086
      %v1089 = vshrl.u32 %v1001, 16
      %v1091 = vshll.u32 %v1001, 16
      %v1093 = vrot.slane %v1091, 1
      %v1094 = vor.u32 %v1089, %v1093
      %v1096 = vshll.u32 %v1049, 16
      %v1098 = vrot.slane %v1096, 1
      %v1099 = vsel %vm1063, %v1094, %v1098
      %v1101 = vshrl.u32 %v1002, 16
      %v1103 = vshll.u32 %v1002, 16
      %v1105 = vrot.slane %v1103, 1
      %v1106 = vor.u32 %v1101, %v1105
      %v1108 = vshll.u32 %v1050, 16
      %v1110 = vrot.slane %v1108, 1
      %v1111 = vsel %vm1063, %v1106, %v1110
      %v1113 = vshrl.u32 %v1003, 16
      %v1115 = vshll.u32 %v1003, 16
      %v1117 = vrot.slane %v1115, 1
      %v1118 = vor.u32 %v1113, %v1117
      %v1120 = vshll.u32 %v1051, 16
      %v1122 = vrot.slane %v1120, 1
      %v1123 = vsel %vm1063, %v1118, %v1122
      %v1125 = vshrl.u32 %v1004, 16
      %v1127 = vshll.u32 %v1004, 16
      %v1129 = vrot.slane %v1127, 1
      %v1130 = vor.u32 %v1125, %v1129
      %v1132 = vshll.u32 %v1052, 16
      %v1134 = vrot.slane %v1132, 1
      %v1135 = vsel %vm1063, %v1130, %v1134
      %v1137 = vshrl.u32 %v1005, 16
      %v1139 = vshll.u32 %v1005, 16
      %v1141 = vrot.slane %v1139, 1
      %v1142 = vor.u32 %v1137, %v1141
      %v1144 = vshll.u32 %v1053, 16
      %v1146 = vrot.slane %v1144, 1
      %v1147 = vsel %vm1063, %v1142, %v1146
      %v1149 = vshrl.u32 %v1006, 16
      %v1151 = vshll.u32 %v1006, 16
      %v1153 = vrot.slane %v1151, 1
      %v1154 = vor.u32 %v1149, %v1153
      %v1156 = vshll.u32 %v1054, 16
      %v1158 = vrot.slane %v1156, 1
      %v1159 = vsel %vm1063, %v1154, %v1158
      %v1161 = vshrl.u32 %v1007, 16
      %v1163 = vshll.u32 %v1007, 16
      %v1165 = vrot.slane %v1163, 1
      %v1166 = vor.u32 %v1161, %v1165
      %v1168 = vshll.u32 %v1055, 16
      %v1170 = vrot.slane %v1168, 1
      %v1171 = vsel %vm1063, %v1166, %v1170
      %v1173 = vshrl.u32 %v1008, 16
      %v1175 = vshll.u32 %v1008, 16
      %v1177 = vrot.slane %v1175, 1
      %v1178 = vor.u32 %v1173, %v1177
      %v1180 = vshll.u32 %v1056, 16
      %v1182 = vrot.slane %v1180, 1
      %v1183 = vsel %vm1063, %v1178, %v1182
      %v1185 = vshrl.u32 %v1009, 16
      %v1187 = vshll.u32 %v1009, 16
      %v1189 = vrot.slane %v1187, 1
      %v1190 = vor.u32 %v1185, %v1189
      %v1192 = vshll.u32 %v1057, 16
      %v1194 = vrot.slane %v1192, 1
      %v1195 = vsel %vm1063, %v1190, %v1194
      %v1197 = vshrl.u32 %v1010, 16
      %v1199 = vshll.u32 %v1010, 16
      %v1201 = vrot.slane %v1199, 1
      %v1202 = vor.u32 %v1197, %v1201
      %v1204 = vshll.u32 %v1058, 16
      %v1206 = vrot.slane %v1204, 1
      %v1207 = vsel %vm1063, %v1202, %v1206
      %v1209 = vshrl.u32 %v1011, 16
      %v1211 = vshll.u32 %v1011, 16
      %v1213 = vrot.slane %v1211, 1
      %v1214 = vor.u32 %v1209, %v1213
      %v1216 = vshll.u32 %v1059, 16
      %v1218 = vrot.slane %v1216, 1
      %v1219 = vsel %vm1063, %v1214, %v1218
      %v1221 = vshrl.u32 %v1012, 16
      %v1223 = vshll.u32 %v1012, 16
      %v1225 = vrot.slane %v1223, 1
      %v1226 = vor.u32 %v1221, %v1225
      %v1228 = vshll.u32 %v1060, 16
      %v1230 = vrot.slane %v1228, 1
      %v1231 = vsel %vm1063, %v1226, %v1230
      %v1233 = vshrl.u32 %v1013, 16
      %v1235 = vshll.u32 %v1013, 16
      %v1237 = vrot.slane %v1235, 1
      %v1238 = vor.u32 %v1233, %v1237
      %v1240 = vshll.u32 %v1061, 16
      %v1242 = vrot.slane %v1240, 1
      %v1243 = vsel %vm1063, %v1238, %v1242
      %v1245 = vshrl.u32 %v1014, 16
      %v1247 = vshll.u32 %v1014, 16
      %v1249 = vrot.slane %v1247, 1
      %v1250 = vor.u32 %v1245, %v1249
      %v1252 = vshll.u32 %v1062, 16
      %v1254 = vrot.slane %v1252, 1
      %v1255 = vsel %vm1063, %v1250, %v1254
      %1256 = vrot.lane.b32.xlu0 %v1075, 4
      %v1257 = vpop.permute.xlu0 %1256
      %1258 = vrot.lane.b32.xlu0 %v1087, 4
      %v1259 = vpop.permute.xlu0 %1258
      %1260 = vrot.lane.b32.xlu0 %v1099, 4
      %v1261 = vpop.permute.xlu0 %1260
      %1262 = vrot.lane.b32.xlu0 %v1111, 4
      %v1263 = vpop.permute.xlu0 %1262
      %1264 = vrot.lane.b32.xlu0 %v1123, 4
      %v1265 = vpop.permute.xlu0 %1264
      %1266 = vrot.lane.b32.xlu0 %v1135, 4
      %v1267 = vpop.permute.xlu0 %1266
      %1268 = vrot.lane.b32.xlu0 %v1147, 4
      %v1269 = vpop.permute.xlu0 %1268
      %1270 = vrot.lane.b32.xlu0 %v1159, 4
      %v1271 = vpop.permute.xlu0 %1270
      %1272 = vrot.lane.b32.xlu0 %v1171, 4
      %v1273 = vpop.permute.xlu0 %1272
      %1274 = vrot.lane.b32.xlu0 %v1183, 4
      %v1275 = vpop.permute.xlu0 %1274
      %1276 = vrot.lane.b32.xlu0 %v1195, 4
      %v1277 = vpop.permute.xlu0 %1276
      %1278 = vrot.lane.b32.xlu0 %v1207, 4
      %v1279 = vpop.permute.xlu0 %1278
      %1280 = vrot.lane.b32.xlu0 %v1219, 4
      %v1281 = vpop.permute.xlu0 %1280
      %1282 = vrot.lane.b32.xlu0 %v1231, 4
      %v1283 = vpop.permute.xlu0 %1282
      %1284 = vrot.lane.b32.xlu0 %v1243, 4
      %v1285 = vpop.permute.xlu0 %1284
      %1286 = vrot.lane.b32.xlu0 %v1255, 4
      %v1287 = vpop.permute.xlu0 %1286
      %v1304 = vunpack.c.l.b16 %v919
      %v1305 = vunpack.c.l.b16 %v920
      %v1306 = vunpack.c.l.b16 %v921
      %v1307 = vunpack.c.l.b16 %v922
      %v1308 = vunpack.c.l.b16 %v923
      %v1309 = vunpack.c.l.b16 %v924
      %v1310 = vunpack.c.l.b16 %v925
      %v1311 = vunpack.c.l.b16 %v926
      %v1312 = vunpack.c.l.b16 %v927
      %v1313 = vunpack.c.l.b16 %v928
      %v1314 = vunpack.c.l.b16 %v929
      %v1315 = vunpack.c.l.b16 %v930
      %v1316 = vunpack.c.l.b16 %v931
      %v1317 = vunpack.c.l.b16 %v932
      %v1318 = vunpack.c.l.b16 %v933
      %v1319 = vunpack.c.l.b16 %v934
      %v1320 = vpack.c.b16 %v968, %v1304
      %v1321 = vpack.c.b16 %v970, %v1305
      %v1322 = vpack.c.b16 %v972, %v1306
      %v1323 = vpack.c.b16 %v974, %v1307
      %v1324 = vpack.c.b16 %v976, %v1308
      %v1325 = vpack.c.b16 %v978, %v1309
      %v1326 = vpack.c.b16 %v980, %v1310
      %v1327 = vpack.c.b16 %v982, %v1311
      %v1328 = vpack.c.b16 %v984, %v1312
      %v1329 = vpack.c.b16 %v986, %v1313
      %v1330 = vpack.c.b16 %v988, %v1314
      %v1331 = vpack.c.b16 %v990, %v1315
      %v1332 = vpack.c.b16 %v992, %v1316
      %v1333 = vpack.c.b16 %v994, %v1317
      %v1334 = vpack.c.b16 %v996, %v1318
      %v1335 = vpack.c.b16 %v998, %v1319
      %vm1336 = vcmask 1046528
      %v1337 = vrot.slane %v1320, 1
      %v1338 = vrot.slane %v1047, 1
      %v1339 = vsel %vm1336, %v1337, %v1338
      %v1340 = vrot.slane %v1321, 1
      %v1341 = vrot.slane %v1048, 1
      %v1342 = vsel %vm1336, %v1340, %v1341
      %v1343 = vrot.slane %v1322, 1
      %v1344 = vrot.slane %v1049, 1
      %v1345 = vsel %vm1336, %v1343, %v1344
      %v1346 = vrot.slane %v1323, 1
      %v1347 = vrot.slane %v1050, 1
      %v1348 = vsel %vm1336, %v1346, %v1347
      %v1349 = vrot.slane %v1324, 1
      %v1350 = vrot.slane %v1051, 1
      %v1351 = vsel %vm1336, %v1349, %v1350
      %v1352 = vrot.slane %v1325, 1
      %v1353 = vrot.slane %v1052, 1
      %v1354 = vsel %vm1336, %v1352, %v1353
      %v1355 = vrot.slane %v1326, 1
      %v1356 = vrot.slane %v1053, 1
      %v1357 = vsel %vm1336, %v1355, %v1356
      %v1358 = vrot.slane %v1327, 1
      %v1359 = vrot.slane %v1054, 1
      %v1360 = vsel %vm1336, %v1358, %v1359
      %v1361 = vrot.slane %v1328, 1
      %v1362 = vrot.slane %v1055, 1
      %v1363 = vsel %vm1336, %v1361, %v1362
      %v1364 = vrot.slane %v1329, 1
      %v1365 = vrot.slane %v1056, 1
      %v1366 = vsel %vm1336, %v1364, %v1365
      %v1367 = vrot.slane %v1330, 1
      %v1368 = vrot.slane %v1057, 1
      %v1369 = vsel %vm1336, %v1367, %v1368
      %v1370 = vrot.slane %v1331, 1
      %v1371 = vrot.slane %v1058, 1
      %v1372 = vsel %vm1336, %v1370, %v1371
      %v1373 = vrot.slane %v1332, 1
      %v1374 = vrot.slane %v1059, 1
      %v1375 = vsel %vm1336, %v1373, %v1374
      %v1376 = vrot.slane %v1333, 1
      %v1377 = vrot.slane %v1060, 1
      %v1378 = vsel %vm1336, %v1376, %v1377
      %v1379 = vrot.slane %v1334, 1
      %v1380 = vrot.slane %v1061, 1
      %v1381 = vsel %vm1336, %v1379, %v1380
      %v1382 = vrot.slane %v1335, 1
      %v1383 = vrot.slane %v1062, 1
      %v1384 = vsel %vm1336, %v1382, %v1383
      %1385 = vrot.lane.b32.xlu0 %v1339, 8
      %v1386 = vpop.permute.xlu0 %1385
      %1387 = vrot.lane.b32.xlu0 %v1342, 8
      %v1388 = vpop.permute.xlu0 %1387
      %1389 = vrot.lane.b32.xlu0 %v1345, 8
      %v1390 = vpop.permute.xlu0 %1389
      %1391 = vrot.lane.b32.xlu0 %v1348, 8
      %v1392 = vpop.permute.xlu0 %1391
      %1393 = vrot.lane.b32.xlu0 %v1351, 8
      %v1394 = vpop.permute.xlu0 %1393
      %1395 = vrot.lane.b32.xlu0 %v1354, 8
      %v1396 = vpop.permute.xlu0 %1395
      %1397 = vrot.lane.b32.xlu0 %v1357, 8
      %v1398 = vpop.permute.xlu0 %1397
      %1399 = vrot.lane.b32.xlu0 %v1360, 8
      %v1400 = vpop.permute.xlu0 %1399
      %1401 = vrot.lane.b32.xlu0 %v1363, 8
      %v1402 = vpop.permute.xlu0 %1401
      %1403 = vrot.lane.b32.xlu0 %v1366, 8
      %v1404 = vpop.permute.xlu0 %1403
      %1405 = vrot.lane.b32.xlu0 %v1369, 8
      %v1406 = vpop.permute.xlu0 %1405
      %1407 = vrot.lane.b32.xlu0 %v1372, 8
      %v1408 = vpop.permute.xlu0 %1407
      %1409 = vrot.lane.b32.xlu0 %v1375, 8
      %v1410 = vpop.permute.xlu0 %1409
      %1411 = vrot.lane.b32.xlu0 %v1378, 8
      %v1412 = vpop.permute.xlu0 %1411
      %1413 = vrot.lane.b32.xlu0 %v1381, 8
      %v1414 = vpop.permute.xlu0 %1413
      %1415 = vrot.lane.b32.xlu0 %v1384, 8
      %v1416 = vpop.permute.xlu0 %1415
      %vm1417 = vcmask 31744
      %v1419 = vsel %vm1417, %v999, %v1257
      %v1421 = vsel %vm1417, %v1000, %v1259
      %v1423 = vsel %vm1417, %v1001, %v1261
      %v1425 = vsel %vm1417, %v1002, %v1263
      %v1427 = vsel %vm1417, %v1003, %v1265
      %v1429 = vsel %vm1417, %v1004, %v1267
      %v1431 = vsel %vm1417, %v1005, %v1269
      %v1433 = vsel %vm1417, %v1006, %v1271
      %v1435 = vsel %vm1417, %v1007, %v1273
      %v1437 = vsel %vm1417, %v1008, %v1275
      %v1439 = vsel %vm1417, %v1009, %v1277
      %v1441 = vsel %vm1417, %v1010, %v1279
      %v1443 = vsel %vm1417, %v1011, %v1281
      %v1445 = vsel %vm1417, %v1012, %v1283
      %v1447 = vsel %vm1417, %v1013, %v1285
      %v1449 = vsel %vm1417, %v1014, %v1287
      %vm1450 = vcmask 64512
      %v1452 = vsel %vm1450, %v1419, %v1386
      %v1454 = vsel %vm1450, %v1421, %v1388
      %v1456 = vsel %vm1450, %v1423, %v1390
      %v1458 = vsel %vm1450, %v1425, %v1392
      %v1460 = vsel %vm1450, %v1427, %v1394
      %v1462 = vsel %vm1450, %v1429, %v1396
      %v1464 = vsel %vm1450, %v1431, %v1398
      %v1466 = vsel %vm1450, %v1433, %v1400
      %v1468 = vsel %vm1450, %v1435, %v1402
      %v1470 = vsel %vm1450, %v1437, %v1404
      %v1472 = vsel %vm1450, %v1439, %v1406
      %v1474 = vsel %vm1450, %v1441, %v1408
      %v1476 = vsel %vm1450, %v1443, %v1410
      %v1478 = vsel %vm1450, %v1445, %v1412
      %v1480 = vsel %vm1450, %v1447, %v1414
      %v1482 = vsel %vm1450, %v1449, %v1416
      %v1483 = vld [vmem:[%s1] sm:$0xf]
      %v1484 = vld [vmem:[%s1 + $0x4] sm:$0x3]
      %v1485 = vld [vmem:[%s756] sm:$0xf]
      %v1486 = vld [vmem:[%s756 + $0x4] sm:$0xf]
      %v1487 = vld [vmem:[%s756 + $0xc] sm:$0xf]
      %v1488 = vld [vmem:[%s756 + $0x10] sm:$0xf]
      %v1489 = vld [vmem:[%s756 + $0x18] sm:$0xf]
      %v1490 = vld [vmem:[%s756 + $0x1c] sm:$0xf]
      %v1491 = vld [vmem:[%s756 + $0x24] sm:$0xf]
      %v1492 = vld [vmem:[%s756 + $0x28] sm:$0xf]
      %v1493 = vld [vmem:[%s756 + $0x30] sm:$0xf]
      %v1494 = vld [vmem:[%s756 + $0x34] sm:$0xf]
      %v1495 = vld [vmem:[%s756 + $0x3c] sm:$0xf]
      %v1496 = vld [vmem:[%s756 + $0x40] sm:$0xf]
      %v1497 = vld [vmem:[%s756 + $0x48] sm:$0xf]
      %v1498 = vld [vmem:[%s756 + $0x4c] sm:$0xf]
      %v1499 = vld [vmem:[%s756 + $0x54] sm:$0xf]
      %v1500 = vld [vmem:[%s756 + $0x58] sm:$0xf]
      %v1501 = vld [vmem:[%s756 + $0x60] sm:$0xf]
      %v1502 = vld [vmem:[%s756 + $0x64] sm:$0xf]
      %v1503 = vld [vmem:[%s756 + $0x6c] sm:$0xf]
      %v1504 = vld [vmem:[%s756 + $0x70] sm:$0xf]
      %v1505 = vld [vmem:[%s756 + $0x78] sm:$0xf]
      %v1506 = vld [vmem:[%s756 + $0x7c] sm:$0xf]
      %v1507 = vld [vmem:[%s756 + $0x84] sm:$0xf]
      %v1508 = vld [vmem:[%s756 + $0x88] sm:$0xf]
      %v1509 = vld [vmem:[%s756 + $0x90] sm:$0xf]
      %v1510 = vld [vmem:[%s756 + $0x94] sm:$0xf]
      %v1511 = vld [vmem:[%s756 + $0x9c] sm:$0xf]
      %v1512 = vld [vmem:[%s756 + $0xa0] sm:$0xf]
      %v1513 = vld [vmem:[%s756 + $0xa8] sm:$0xf]
      %v1514 = vld [vmem:[%s756 + $0xac] sm:$0xf]
      %v1515 = vld [vmem:[%s756 + $0xb4] sm:$0xf]
      %v1516 = vld [vmem:[%s756 + $0xb8] sm:$0xf]
      %v1517 = vld [vmem:[%s756 + $0x8] sm:$0x1]
      %v1518 = vld [vmem:[%s756 + $0x14] sm:$0x1]
      %v1519 = vld [vmem:[%s756 + $0x20] sm:$0x1]
      %v1520 = vld [vmem:[%s756 + $0x2c] sm:$0x1]
      %v1521 = vld [vmem:[%s756 + $0x38] sm:$0x1]
      %v1522 = vld [vmem:[%s756 + $0x44] sm:$0x1]
      %v1523 = vld [vmem:[%s756 + $0x50] sm:$0x1]
      %v1524 = vld [vmem:[%s756 + $0x5c] sm:$0x1]
      %v1525 = vld [vmem:[%s756 + $0x68] sm:$0x1]
      %v1526 = vld [vmem:[%s756 + $0x74] sm:$0x1]
      %v1527 = vld [vmem:[%s756 + $0x80] sm:$0x1]
      %v1528 = vld [vmem:[%s756 + $0x8c] sm:$0x1]
      %v1529 = vld [vmem:[%s756 + $0x98] sm:$0x1]
      %v1530 = vld [vmem:[%s756 + $0xa4] sm:$0x1]
      %v1531 = vld [vmem:[%s756 + $0xb0] sm:$0x1]
      %v1532 = vld [vmem:[%s756 + $0xbc] sm:$0x1]
      %v1533 = vld [vmem:[%s756] sm:$0xe]
      %v1534 = vld [vmem:[%s756 + $0xc] sm:$0xe]
      %v1535 = vld [vmem:[%s756 + $0x18] sm:$0xe]
      %v1536 = vld [vmem:[%s756 + $0x24] sm:$0xe]
      %v1537 = vld [vmem:[%s756 + $0x30] sm:$0xe]
      %v1538 = vld [vmem:[%s756 + $0x3c] sm:$0xe]
      %v1539 = vld [vmem:[%s756 + $0x48] sm:$0xe]
      %v1540 = vld [vmem:[%s756 + $0x54] sm:$0xe]
      %v1541 = vld [vmem:[%s756 + $0x60] sm:$0xe]
      %v1542 = vld [vmem:[%s756 + $0x6c] sm:$0xe]
      %v1543 = vld [vmem:[%s756 + $0x78] sm:$0xe]
      %v1544 = vld [vmem:[%s756 + $0x84] sm:$0xe]
      %v1545 = vld [vmem:[%s756 + $0x90] sm:$0xe]
      %v1546 = vld [vmem:[%s756 + $0x9c] sm:$0xe]
      %v1547 = vld [vmem:[%s756 + $0xa8] sm:$0xe]
      %v1548 = vld [vmem:[%s756 + $0xb4] sm:$0xe]
      %v1581 = vunpack.c.l.b16 %v1485
      %v1582 = vunpack.c.l.b16 %v1486
      %v1583 = vunpack.c.l.b16 %v1487
      %v1584 = vunpack.c.l.b16 %v1488
      %v1585 = vunpack.c.l.b16 %v1489
      %v1586 = vunpack.c.l.b16 %v1490
      %v1587 = vunpack.c.l.b16 %v1491
      %v1588 = vunpack.c.l.b16 %v1492
      %v1589 = vunpack.c.l.b16 %v1493
      %v1590 = vunpack.c.l.b16 %v1494
      %v1591 = vunpack.c.l.b16 %v1495
      %v1592 = vunpack.c.l.b16 %v1496
      %v1593 = vunpack.c.l.b16 %v1497
      %v1594 = vunpack.c.l.b16 %v1498
      %v1595 = vunpack.c.l.b16 %v1499
      %v1596 = vunpack.c.l.b16 %v1500
      %v1597 = vunpack.c.l.b16 %v1501
      %v1598 = vunpack.c.l.b16 %v1502
      %v1599 = vunpack.c.l.b16 %v1503
      %v1600 = vunpack.c.l.b16 %v1504
      %v1601 = vunpack.c.l.b16 %v1505
      %v1602 = vunpack.c.l.b16 %v1506
      %v1603 = vunpack.c.l.b16 %v1507
      %v1604 = vunpack.c.l.b16 %v1508
      %v1605 = vunpack.c.l.b16 %v1509
      %v1606 = vunpack.c.l.b16 %v1510
      %v1607 = vunpack.c.l.b16 %v1511
      %v1608 = vunpack.c.l.b16 %v1512
      %v1609 = vunpack.c.l.b16 %v1513
      %v1610 = vunpack.c.l.b16 %v1514
      %v1611 = vunpack.c.l.b16 %v1515
      %v1612 = vunpack.c.l.b16 %v1516
      %v1613 = vpack.c.b16 %v1582, %v1581
      %v1614 = vpack.c.b16 %v1584, %v1583
      %v1615 = vpack.c.b16 %v1586, %v1585
      %v1616 = vpack.c.b16 %v1588, %v1587
      %v1617 = vpack.c.b16 %v1590, %v1589
      %v1618 = vpack.c.b16 %v1592, %v1591
      %v1619 = vpack.c.b16 %v1594, %v1593
      %v1620 = vpack.c.b16 %v1596, %v1595
      %v1621 = vpack.c.b16 %v1598, %v1597
      %v1622 = vpack.c.b16 %v1600, %v1599
      %v1623 = vpack.c.b16 %v1602, %v1601
      %v1624 = vpack.c.b16 %v1604, %v1603
      %v1625 = vpack.c.b16 %v1606, %v1605
      %v1626 = vpack.c.b16 %v1608, %v1607
      %v1627 = vpack.c.b16 %v1610, %v1609
      %v1628 = vpack.c.b16 %v1612, %v1611
      %v1645 = vunpack.c.l.b16 %v1517
      %v1646 = vunpack.c.l.b16 %v1518
      %v1647 = vunpack.c.l.b16 %v1519
      %v1648 = vunpack.c.l.b16 %v1520
      %v1649 = vunpack.c.l.b16 %v1521
      %v1650 = vunpack.c.l.b16 %v1522
      %v1651 = vunpack.c.l.b16 %v1523
      %v1652 = vunpack.c.l.b16 %v1524
      %v1653 = vunpack.c.l.b16 %v1525
      %v1654 = vunpack.c.l.b16 %v1526
      %v1655 = vunpack.c.l.b16 %v1527
      %v1656 = vunpack.c.l.b16 %v1528
      %v1657 = vunpack.c.l.b16 %v1529
      %v1658 = vunpack.c.l.b16 %v1530
      %v1659 = vunpack.c.l.b16 %v1531
      %v1660 = vunpack.c.l.b16 %v1532
      %v1661 = vpack.c.b16 %v1645, %v1645
      %v1662 = vpack.c.b16 %v1646, %v1646
      %v1663 = vpack.c.b16 %v1647, %v1647
      %v1664 = vpack.c.b16 %v1648, %v1648
      %v1665 = vpack.c.b16 %v1649, %v1649
      %v1666 = vpack.c.b16 %v1650, %v1650
      %v1667 = vpack.c.b16 %v1651, %v1651
      %v1668 = vpack.c.b16 %v1652, %v1652
      %v1669 = vpack.c.b16 %v1653, %v1653
      %v1670 = vpack.c.b16 %v1654, %v1654
      %v1671 = vpack.c.b16 %v1655, %v1655
      %v1672 = vpack.c.b16 %v1656, %v1656
      %v1673 = vpack.c.b16 %v1657, %v1657
      %v1674 = vpack.c.b16 %v1658, %v1658
      %v1675 = vpack.c.b16 %v1659, %v1659
      %v1676 = vpack.c.b16 %v1660, %v1660
      %v1678 = vshrl.u32 %v1613, 16
      %v1680 = vshll.u32 %v1613, 16
      %v1682 = vrot.slane %v1680, 1
      %v1683 = vor.u32 %v1678, %v1682
      %v1685 = vshll.u32 %v1661, 16
      %v1687 = vrot.slane %v1685, 1
      %v1688 = vsel %vm1063, %v1683, %v1687
      %v1690 = vshrl.u32 %v1614, 16
      %v1692 = vshll.u32 %v1614, 16
      %v1694 = vrot.slane %v1692, 1
      %v1695 = vor.u32 %v1690, %v1694
      %v1697 = vshll.u32 %v1662, 16
      %v1699 = vrot.slane %v1697, 1
      %v1700 = vsel %vm1063, %v1695, %v1699
      %v1702 = vshrl.u32 %v1615, 16
      %v1704 = vshll.u32 %v1615, 16
      %v1706 = vrot.slane %v1704, 1
      %v1707 = vor.u32 %v1702, %v1706
      %v1709 = vshll.u32 %v1663, 16
      %v1711 = vrot.slane %v1709, 1
      %v1712 = vsel %vm1063, %v1707, %v1711
      %v1714 = vshrl.u32 %v1616, 16
      %v1716 = vshll.u32 %v1616, 16
      %v1718 = vrot.slane %v1716, 1
      %v1719 = vor.u32 %v1714, %v1718
      %v1721 = vshll.u32 %v1664, 16
      %v1723 = vrot.slane %v1721, 1
      %v1724 = vsel %vm1063, %v1719, %v1723
      %v1726 = vshrl.u32 %v1617, 16
      %v1728 = vshll.u32 %v1617, 16
      %v1730 = vrot.slane %v1728, 1
      %v1731 = vor.u32 %v1726, %v1730
      %v1733 = vshll.u32 %v1665, 16
      %v1735 = vrot.slane %v1733, 1
      %v1736 = vsel %vm1063, %v1731, %v1735
      %v1738 = vshrl.u32 %v1618, 16
      %v1740 = vshll.u32 %v1618, 16
      %v1742 = vrot.slane %v1740, 1
      %v1743 = vor.u32 %v1738, %v1742
      %v1745 = vshll.u32 %v1666, 16
      %v1747 = vrot.slane %v1745, 1
      %v1748 = vsel %vm1063, %v1743, %v1747
      %v1750 = vshrl.u32 %v1619, 16
      %v1752 = vshll.u32 %v1619, 16
      %v1754 = vrot.slane %v1752, 1
      %v1755 = vor.u32 %v1750, %v1754
      %v1757 = vshll.u32 %v1667, 16
      %v1759 = vrot.slane %v1757, 1
      %v1760 = vsel %vm1063, %v1755, %v1759
      %v1762 = vshrl.u32 %v1620, 16
      %v1764 = vshll.u32 %v1620, 16
      %v1766 = vrot.slane %v1764, 1
      %v1767 = vor.u32 %v1762, %v1766
      %v1769 = vshll.u32 %v1668, 16
      %v1771 = vrot.slane %v1769, 1
      %v1772 = vsel %vm1063, %v1767, %v1771
      %v1774 = vshrl.u32 %v1621, 16
      %v1776 = vshll.u32 %v1621, 16
      %v1778 = vrot.slane %v1776, 1
      %v1779 = vor.u32 %v1774, %v1778
      %v1781 = vshll.u32 %v1669, 16
      %v1783 = vrot.slane %v1781, 1
      %v1784 = vsel %vm1063, %v1779, %v1783
      %v1786 = vshrl.u32 %v1622, 16
      %v1788 = vshll.u32 %v1622, 16
      %v1790 = vrot.slane %v1788, 1
      %v1791 = vor.u32 %v1786, %v1790
      %v1793 = vshll.u32 %v1670, 16
      %v1795 = vrot.slane %v1793, 1
      %v1796 = vsel %vm1063, %v1791, %v1795
      %v1798 = vshrl.u32 %v1623, 16
      %v1800 = vshll.u32 %v1623, 16
      %v1802 = vrot.slane %v1800, 1
      %v1803 = vor.u32 %v1798, %v1802
      %v1805 = vshll.u32 %v1671, 16
      %v1807 = vrot.slane %v1805, 1
      %v1808 = vsel %vm1063, %v1803, %v1807
      %v1810 = vshrl.u32 %v1624, 16
      %v1812 = vshll.u32 %v1624, 16
      %v1814 = vrot.slane %v1812, 1
      %v1815 = vor.u32 %v1810, %v1814
      %v1817 = vshll.u32 %v1672, 16
      %v1819 = vrot.slane %v1817, 1
      %v1820 = vsel %vm1063, %v1815, %v1819
      %v1822 = vshrl.u32 %v1625, 16
      %v1824 = vshll.u32 %v1625, 16
      %v1826 = vrot.slane %v1824, 1
      %v1827 = vor.u32 %v1822, %v1826
      %v1829 = vshll.u32 %v1673, 16
      %v1831 = vrot.slane %v1829, 1
      %v1832 = vsel %vm1063, %v1827, %v1831
      %v1834 = vshrl.u32 %v1626, 16
      %v1836 = vshll.u32 %v1626, 16
      %v1838 = vrot.slane %v1836, 1
      %v1839 = vor.u32 %v1834, %v1838
      %v1841 = vshll.u32 %v1674, 16
      %v1843 = vrot.slane %v1841, 1
      %v1844 = vsel %vm1063, %v1839, %v1843
      %v1846 = vshrl.u32 %v1627, 16
      %v1848 = vshll.u32 %v1627, 16
      %v1850 = vrot.slane %v1848, 1
      %v1851 = vor.u32 %v1846, %v1850
      %v1853 = vshll.u32 %v1675, 16
      %v1855 = vrot.slane %v1853, 1
      %v1856 = vsel %vm1063, %v1851, %v1855
      %v1858 = vshrl.u32 %v1628, 16
      %v1860 = vshll.u32 %v1628, 16
      %v1862 = vrot.slane %v1860, 1
      %v1863 = vor.u32 %v1858, %v1862
      %v1865 = vshll.u32 %v1676, 16
      %v1867 = vrot.slane %v1865, 1
      %v1868 = vsel %vm1063, %v1863, %v1867
      %1869 = vrot.lane.b32.xlu0 %v1688, 4
      %v1870 = vpop.permute.xlu0 %1869
      %1871 = vrot.lane.b32.xlu0 %v1700, 4
      %v1872 = vpop.permute.xlu0 %1871
      %1873 = vrot.lane.b32.xlu0 %v1712, 4
      %v1874 = vpop.permute.xlu0 %1873
      %1875 = vrot.lane.b32.xlu0 %v1724, 4
      %v1876 = vpop.permute.xlu0 %1875
      %1877 = vrot.lane.b32.xlu0 %v1736, 4
      %v1878 = vpop.permute.xlu0 %1877
      %1879 = vrot.lane.b32.xlu0 %v1748, 4
      %v1880 = vpop.permute.xlu0 %1879
      %1881 = vrot.lane.b32.xlu0 %v1760, 4
      %v1882 = vpop.permute.xlu0 %1881
      %1883 = vrot.lane.b32.xlu0 %v1772, 4
      %v1884 = vpop.permute.xlu0 %1883
      %1885 = vrot.lane.b32.xlu0 %v1784, 4
      %v1886 = vpop.permute.xlu0 %1885
      %1887 = vrot.lane.b32.xlu0 %v1796, 4
      %v1888 = vpop.permute.xlu0 %1887
      %1889 = vrot.lane.b32.xlu0 %v1808, 4
      %v1890 = vpop.permute.xlu0 %1889
      %1891 = vrot.lane.b32.xlu0 %v1820, 4
      %v1892 = vpop.permute.xlu0 %1891
      %1893 = vrot.lane.b32.xlu0 %v1832, 4
      %v1894 = vpop.permute.xlu0 %1893
      %1895 = vrot.lane.b32.xlu0 %v1844, 4
      %v1896 = vpop.permute.xlu0 %1895
      %1897 = vrot.lane.b32.xlu0 %v1856, 4
      %v1898 = vpop.permute.xlu0 %1897
      %1899 = vrot.lane.b32.xlu0 %v1868, 4
      %v1900 = vpop.permute.xlu0 %1899
      %v1917 = vunpack.c.l.b16 %v1533
      %v1918 = vunpack.c.l.b16 %v1534
      %v1919 = vunpack.c.l.b16 %v1535
      %v1920 = vunpack.c.l.b16 %v1536
      %v1921 = vunpack.c.l.b16 %v1537
      %v1922 = vunpack.c.l.b16 %v1538
      %v1923 = vunpack.c.l.b16 %v1539
      %v1924 = vunpack.c.l.b16 %v1540
      %v1925 = vunpack.c.l.b16 %v1541
      %v1926 = vunpack.c.l.b16 %v1542
      %v1927 = vunpack.c.l.b16 %v1543
      %v1928 = vunpack.c.l.b16 %v1544
      %v1929 = vunpack.c.l.b16 %v1545
      %v1930 = vunpack.c.l.b16 %v1546
      %v1931 = vunpack.c.l.b16 %v1547
      %v1932 = vunpack.c.l.b16 %v1548
      %v1933 = vpack.c.b16 %v1582, %v1917
      %v1934 = vpack.c.b16 %v1584, %v1918
      %v1935 = vpack.c.b16 %v1586, %v1919
      %v1936 = vpack.c.b16 %v1588, %v1920
      %v1937 = vpack.c.b16 %v1590, %v1921
      %v1938 = vpack.c.b16 %v1592, %v1922
      %v1939 = vpack.c.b16 %v1594, %v1923
      %v1940 = vpack.c.b16 %v1596, %v1924
      %v1941 = vpack.c.b16 %v1598, %v1925
      %v1942 = vpack.c.b16 %v1600, %v1926
      %v1943 = vpack.c.b16 %v1602, %v1927
      %v1944 = vpack.c.b16 %v1604, %v1928
      %v1945 = vpack.c.b16 %v1606, %v1929
      %v1946 = vpack.c.b16 %v1608, %v1930
      %v1947 = vpack.c.b16 %v1610, %v1931
      %v1948 = vpack.c.b16 %v1612, %v1932
      %v1949 = vrot.slane %v1933, 1
      %v1950 = vrot.slane %v1661, 1
      %v1951 = vsel %vm1336, %v1949, %v1950
      %v1952 = vrot.slane %v1934, 1
      %v1953 = vrot.slane %v1662, 1
      %v1954 = vsel %vm1336, %v1952, %v1953
      %v1955 = vrot.slane %v1935, 1
      %v1956 = vrot.slane %v1663, 1
      %v1957 = vsel %vm1336, %v1955, %v1956
      %v1958 = vrot.slane %v1936, 1
      %v1959 = vrot.slane %v1664, 1
      %v1960 = vsel %vm1336, %v1958, %v1959
      %v1961 = vrot.slane %v1937, 1
      %v1962 = vrot.slane %v1665, 1
      %v1963 = vsel %vm1336, %v1961, %v1962
      %v1964 = vrot.slane %v1938, 1
      %v1965 = vrot.slane %v1666, 1
      %v1966 = vsel %vm1336, %v1964, %v1965
      %v1967 = vrot.slane %v1939, 1
      %v1968 = vrot.slane %v1667, 1
      %v1969 = vsel %vm1336, %v1967, %v1968
      %v1970 = vrot.slane %v1940, 1
      %v1971 = vrot.slane %v1668, 1
      %v1972 = vsel %vm1336, %v1970, %v1971
      %v1973 = vrot.slane %v1941, 1
      %v1974 = vrot.slane %v1669, 1
      %v1975 = vsel %vm1336, %v1973, %v1974
      %v1976 = vrot.slane %v1942, 1
      %v1977 = vrot.slane %v1670, 1
      %v1978 = vsel %vm1336, %v1976, %v1977
      %v1979 = vrot.slane %v1943, 1
      %v1980 = vrot.slane %v1671, 1
      %v1981 = vsel %vm1336, %v1979, %v1980
      %v1982 = vrot.slane %v1944, 1
      %v1983 = vrot.slane %v1672, 1
      %v1984 = vsel %vm1336, %v1982, %v1983
      %v1985 = vrot.slane %v1945, 1
      %v1986 = vrot.slane %v1673, 1
      %v1987 = vsel %vm1336, %v1985, %v1986
      %v1988 = vrot.slane %v1946, 1
      %v1989 = vrot.slane %v1674, 1
      %v1990 = vsel %vm1336, %v1988, %v1989
      %v1991 = vrot.slane %v1947, 1
      %v1992 = vrot.slane %v1675, 1
      %v1993 = vsel %vm1336, %v1991, %v1992
      %v1994 = vrot.slane %v1948, 1
      %v1995 = vrot.slane %v1676, 1
      %v1996 = vsel %vm1336, %v1994, %v1995
      %1997 = vrot.lane.b32.xlu0 %v1951, 8
      %v1998 = vpop.permute.xlu0 %1997
      %1999 = vrot.lane.b32.xlu0 %v1954, 8
      %v2000 = vpop.permute.xlu0 %1999
      %2001 = vrot.lane.b32.xlu0 %v1957, 8
      %v2002 = vpop.permute.xlu0 %2001
      %2003 = vrot.lane.b32.xlu0 %v1960, 8
      %v2004 = vpop.permute.xlu0 %2003
      %2005 = vrot.lane.b32.xlu0 %v1963, 8
      %v2006 = vpop.permute.xlu0 %2005
      %2007 = vrot.lane.b32.xlu0 %v1966, 8
      %v2008 = vpop.permute.xlu0 %2007
      %2009 = vrot.lane.b32.xlu0 %v1969, 8
      %v2010 = vpop.permute.xlu0 %2009
      %2011 = vrot.lane.b32.xlu0 %v1972, 8
      %v2012 = vpop.permute.xlu0 %2011
      %2013 = vrot.lane.b32.xlu0 %v1975, 8
      %v2014 = vpop.permute.xlu0 %2013
      %2015 = vrot.lane.b32.xlu0 %v1978, 8
      %v2016 = vpop.permute.xlu0 %2015
      %2017 = vrot.lane.b32.xlu0 %v1981, 8
      %v2018 = vpop.permute.xlu0 %2017
      %2019 = vrot.lane.b32.xlu0 %v1984, 8
      %v2020 = vpop.permute.xlu0 %2019
      %2021 = vrot.lane.b32.xlu0 %v1987, 8
      %v2022 = vpop.permute.xlu0 %2021
      %2023 = vrot.lane.b32.xlu0 %v1990, 8
      %v2024 = vpop.permute.xlu0 %2023
      %2025 = vrot.lane.b32.xlu0 %v1993, 8
      %v2026 = vpop.permute.xlu0 %2025
      %2027 = vrot.lane.b32.xlu0 %v1996, 8
      %v2028 = vpop.permute.xlu0 %2027
      %v2030 = vsel %vm1417, %v1613, %v1870
      %v2032 = vsel %vm1417, %v1614, %v1872
      %v2034 = vsel %vm1417, %v1615, %v1874
      %v2036 = vsel %vm1417, %v1616, %v1876
      %v2038 = vsel %vm1417, %v1617, %v1878
      %v2040 = vsel %vm1417, %v1618, %v1880
      %v2042 = vsel %vm1417, %v1619, %v1882
      %v2044 = vsel %vm1417, %v1620, %v1884
      %v2046 = vsel %vm1417, %v1621, %v1886
      %v2048 = vsel %vm1417, %v1622, %v1888
      %v2050 = vsel %vm1417, %v1623, %v1890
      %v2052 = vsel %vm1417, %v1624, %v1892
      %v2054 = vsel %vm1417, %v1625, %v1894
      %v2056 = vsel %vm1417, %v1626, %v1896
      %v2058 = vsel %vm1417, %v1627, %v1898
      %v2060 = vsel %vm1417, %v1628, %v1900
      %v2062 = vsel %vm1450, %v2030, %v1998
      %v2064 = vsel %vm1450, %v2032, %v2000
      %v2066 = vsel %vm1450, %v2034, %v2002
      %v2068 = vsel %vm1450, %v2036, %v2004
      %v2070 = vsel %vm1450, %v2038, %v2006
      %v2072 = vsel %vm1450, %v2040, %v2008
      %v2074 = vsel %vm1450, %v2042, %v2010
      %v2076 = vsel %vm1450, %v2044, %v2012
      %v2078 = vsel %vm1450, %v2046, %v2014
      %v2080 = vsel %vm1450, %v2048, %v2016
      %v2082 = vsel %vm1450, %v2050, %v2018
      %v2084 = vsel %vm1450, %v2052, %v2020
      %v2086 = vsel %vm1450, %v2054, %v2022
      %v2088 = vsel %vm1450, %v2056, %v2024
      %v2090 = vsel %vm1450, %v2058, %v2026
      %v2092 = vsel %vm1450, %v2060, %v2028
      %s2093 = scalar_lea.vmem %s1, 8
      %v2094 = vld [vmem:[%s2093] sm:$0xf]
      %v2095 = vld [vmem:[%s2093 + $0x4] sm:$0x3]
      %v2098 = vunpack.c.l.b16 %v2094
      %v2099 = vunpack.c.l.b16 %v2095
      %v2100 = vpack.c.b16 %v2099, %v2098
      %vm2101 = vcmask 97280
      %v2102 = vsel %vm2101, %v2062, 0
      %v2104 = vsel %vm2101, %v2064, 0
      %v2106 = vsel %vm2101, %v2066, 0
      %v2108 = vsel %vm2101, %v2068, 0
      %v2110 = vsel %vm2101, %v2070, 0
      %v2112 = vsel %vm2101, %v2072, 0
      %v2114 = vsel %vm2101, %v2074, 0
      %v2116 = vsel %vm2101, %v2076, 0
      %v2118 = vsel %vm2101, %v2078, 0
      %v2120 = vsel %vm2101, %v2080, 0
      %v2122 = vsel %vm2101, %v2082, 0
      %v2124 = vsel %vm2101, %v2084, 0
      %v2126 = vsel %vm2101, %v2086, 0
      %v2128 = vsel %vm2101, %v2088, 0
      %v2130 = vsel %vm2101, %v2090, 0
      %v2132 = vsel %vm2101, %v2092, 0
      %vm2134 = vcmask 1045504
      %v2136 = vsel %vm2134, %v2100, 0
      %2138 = vmatprep.subr.bf16.mxu0 0
      %2139 = vmatpush1.bf16.msra.mxu0 0
      %2140 = vmatprep.subr.bf16.mxu0 0
      %2141 = vmatpush1.bf16.msra.mxu0 0
      %2142 = vmatprep.subr.bf16.mxu0 0
      %2143 = vmatpush1.bf16.msra.mxu0 0
      %2144 = vmatprep.subr.bf16.mxu0 0
      %2145 = vmatpush1.bf16.msra.mxu0 0
      %2146 = vmatprep.subr.bf16.mxu0 0
      %2147 = vmatpush1.bf16.msra.mxu0 0
      %2148 = vmatprep.subr.bf16.mxu0 0
      %2149 = vmatpush1.bf16.msra.mxu0 0
      %2150 = vmatprep.subr.bf16.mxu0 0
      %2151 = vmatpush1.bf16.msra.mxu0 0
      %2152 = vmatprep.subr.bf16.mxu0 0
      %2153 = vmatpush1.bf16.msra.mxu0 %v2136
      %2154 = vmatprep.subr.bf16.mxu0 0
      %2155 = vmatpush2.bf16.msra.mxu0 0
      %2156 = vmatprep.subr.bf16.mxu0 0
      %2157 = vmatpush2.bf16.msra.mxu0 0
      %2158 = vmatprep.subr.bf16.mxu0 0
      %2159 = vmatpush2.bf16.msra.mxu0 0
      %2160 = vmatprep.subr.bf16.mxu0 0
      %2161 = vmatpush2.bf16.msra.mxu0 0
      %2162 = vmatprep.subr.bf16.mxu0 0
      %2163 = vmatpush2.bf16.msra.mxu0 0
      %2164 = vmatprep.subr.bf16.mxu0 0
      %2165 = vmatpush2.bf16.msra.mxu0 0
      %2166 = vmatprep.subr.bf16.mxu0 0
      %2167 = vmatpush2.bf16.msra.mxu0 0
      %2168 = vmatprep.subr.bf16.mxu0 0
      %2169 = vmatpush2.bf16.msra.mxu0 0
      %2170 = vmatprep.mubr.bf16.mxu0 0
      %2171 = vmatmul.mubr.bf16.gmra.mxu0 %v2102
      %v2172 = vpop.f32.mrf.mxu0
      %v2173 = vadd.f32 0.0, %v2172
      %v2174 = vpop.f32.mrf.mxu0
      %v2175 = vpop.f32.mrf.mxu0
      %v2176 = vadd.f32 0.0, %v2175
      %v2177 = vpop.f32.mrf.mxu0
      %2178 = vmatprep.mubr.bf16.mxu0 0
      %2179 = vmatmul.mubr.bf16.gmra.mxu0 %v2104
      %v2180 = vpop.f32.mrf.mxu0
      %v2181 = vadd.f32 0.0, %v2180
      %v2182 = vpop.f32.mrf.mxu0
      %v2183 = vpop.f32.mrf.mxu0
      %v2184 = vadd.f32 0.0, %v2183
      %v2185 = vpop.f32.mrf.mxu0
      %2186 = vmatprep.mubr.bf16.mxu0 0
      %2187 = vmatmul.mubr.bf16.gmra.mxu0 %v2106
      %v2188 = vpop.f32.mrf.mxu0
      %v2189 = vadd.f32 0.0, %v2188
      %v2190 = vpop.f32.mrf.mxu0
      %v2191 = vpop.f32.mrf.mxu0
      %v2192 = vadd.f32 0.0, %v2191
      %v2193 = vpop.f32.mrf.mxu0
      %2194 = vmatprep.mubr.bf16.mxu0 0
      %2195 = vmatmul.mubr.bf16.gmra.mxu0 %v2108
      %v2196 = vpop.f32.mrf.mxu0
      %v2197 = vadd.f32 0.0, %v2196
      %v2198 = vpop.f32.mrf.mxu0
      %v2199 = vpop.f32.mrf.mxu0
      %v2200 = vadd.f32 0.0, %v2199
      %v2201 = vpop.f32.mrf.mxu0
      %2202 = vmatprep.mubr.bf16.mxu0 0
      %2203 = vmatmul.mubr.bf16.gmra.mxu0 %v2110
      %v2204 = vpop.f32.mrf.mxu0
      %v2205 = vadd.f32 0.0, %v2204
      %v2206 = vpop.f32.mrf.mxu0
      %v2207 = vpop.f32.mrf.mxu0
      %v2208 = vadd.f32 0.0, %v2207
      %v2209 = vpop.f32.mrf.mxu0
      %2210 = vmatprep.mubr.bf16.mxu0 0
      %2211 = vmatmul.mubr.bf16.gmra.mxu0 %v2112
      %v2212 = vpop.f32.mrf.mxu0
      %v2213 = vadd.f32 0.0, %v2212
      %v2214 = vpop.f32.mrf.mxu0
      %v2215 = vpop.f32.mrf.mxu0
      %v2216 = vadd.f32 0.0, %v2215
      %v2217 = vpop.f32.mrf.mxu0
      %2218 = vmatprep.mubr.bf16.mxu0 0
      %2219 = vmatmul.mubr.bf16.gmra.mxu0 %v2114
      %v2220 = vpop.f32.mrf.mxu0
      %v2221 = vadd.f32 0.0, %v2220
      %v2222 = vpop.f32.mrf.mxu0
      %v2223 = vpop.f32.mrf.mxu0
      %v2224 = vadd.f32 0.0, %v2223
      %v2225 = vpop.f32.mrf.mxu0
      %2226 = vmatprep.mubr.bf16.mxu0 0
      %2227 = vmatmul.mubr.bf16.gmra.mxu0 %v2116
      %v2228 = vpop.f32.mrf.mxu0
      %v2229 = vadd.f32 0.0, %v2228
      %v2230 = vpop.f32.mrf.mxu0
      %v2231 = vpop.f32.mrf.mxu0
      %v2232 = vadd.f32 0.0, %v2231
      %v2233 = vpop.f32.mrf.mxu0
      %2234 = vmatprep.mubr.bf16.mxu0 0
      %2235 = vmatmul.mubr.bf16.gmra.mxu0 %v2118
      %v2236 = vpop.f32.mrf.mxu0
      %v2237 = vadd.f32 0.0, %v2236
      %v2238 = vpop.f32.mrf.mxu0
      %v2239 = vpop.f32.mrf.mxu0
      %v2240 = vadd.f32 0.0, %v2239
      %v2241 = vpop.f32.mrf.mxu0
      %2242 = vmatprep.mubr.bf16.mxu0 0
      %2243 = vmatmul.mubr.bf16.gmra.mxu0 %v2120
      %v2244 = vpop.f32.mrf.mxu0
      %v2245 = vadd.f32 0.0, %v2244
      %v2246 = vpop.f32.mrf.mxu0
      %v2247 = vpop.f32.mrf.mxu0
      %v2248 = vadd.f32 0.0, %v2247
      %v2249 = vpop.f32.mrf.mxu0
      %2250 = vmatprep.mubr.bf16.mxu0 0
      %2251 = vmatmul.mubr.bf16.gmra.mxu0 %v2122
      %v2252 = vpop.f32.mrf.mxu0
      %v2253 = vadd.f32 0.0, %v2252
      %v2254 = vpop.f32.mrf.mxu0
      %v2255 = vpop.f32.mrf.mxu0
      %v2256 = vadd.f32 0.0, %v2255
      %v2257 = vpop.f32.mrf.mxu0
      %2258 = vmatprep.mubr.bf16.mxu0 0
      %2259 = vmatmul.mubr.bf16.gmra.mxu0 %v2124
      %v2260 = vpop.f32.mrf.mxu0
      %v2261 = vadd.f32 0.0, %v2260
      %v2262 = vpop.f32.mrf.mxu0
      %v2263 = vpop.f32.mrf.mxu0
      %v2264 = vadd.f32 0.0, %v2263
      %v2265 = vpop.f32.mrf.mxu0
      %2266 = vmatprep.mubr.bf16.mxu0 0
      %2267 = vmatmul.mubr.bf16.gmra.mxu0 %v2126
      %v2268 = vpop.f32.mrf.mxu0
      %v2269 = vadd.f32 0.0, %v2268
      %v2270 = vpop.f32.mrf.mxu0
      %v2271 = vpop.f32.mrf.mxu0
      %v2272 = vadd.f32 0.0, %v2271
      %v2273 = vpop.f32.mrf.mxu0
      %2274 = vmatprep.mubr.bf16.mxu0 0
      %2275 = vmatmul.mubr.bf16.gmra.mxu0 %v2128
      %v2276 = vpop.f32.mrf.mxu0
      %v2277 = vadd.f32 0.0, %v2276
      %v2278 = vpop.f32.mrf.mxu0
      %v2279 = vpop.f32.mrf.mxu0
      %v2280 = vadd.f32 0.0, %v2279
      %v2281 = vpop.f32.mrf.mxu0
      %2282 = vmatprep.mubr.bf16.mxu0 0
      %2283 = vmatmul.mubr.bf16.gmra.mxu0 %v2130
      %v2284 = vpop.f32.mrf.mxu0
      %v2285 = vadd.f32 0.0, %v2284
      %v2286 = vpop.f32.mrf.mxu0
      %v2287 = vpop.f32.mrf.mxu0
      %v2288 = vadd.f32 0.0, %v2287
      %v2289 = vpop.f32.mrf.mxu0
      %2290 = vmatprep.mubr.bf16.mxu0 0
      %2291 = vmatmul.mubr.bf16.gmra.mxu0 %v2132
      %v2292 = vpop.f32.mrf.mxu0
      %v2293 = vadd.f32 0.0, %v2292
      %v2294 = vpop.f32.mrf.mxu0
      %v2295 = vpop.f32.mrf.mxu0
      %v2296 = vadd.f32 0.0, %v2295
      %v2297 = vpop.f32.mrf.mxu0
      %2298 = vdwg.mxu0
      %v2301 = vunpack.c.l.b16 %v1483
      %v2302 = vunpack.c.l.b16 %v1484
      %v2303 = vpack.c.b16 %v2302, %v2301
      %v2304 = vsel %vm2101, %v1452, 0
      %v2306 = vsel %vm2101, %v1454, 0
      %v2308 = vsel %vm2101, %v1456, 0
      %v2310 = vsel %vm2101, %v1458, 0
      %v2312 = vsel %vm2101, %v1460, 0
      %v2314 = vsel %vm2101, %v1462, 0
      %v2316 = vsel %vm2101, %v1464, 0
      %v2318 = vsel %vm2101, %v1466, 0
      %v2320 = vsel %vm2101, %v1468, 0
      %v2322 = vsel %vm2101, %v1470, 0
      %v2324 = vsel %vm2101, %v1472, 0
      %v2326 = vsel %vm2101, %v1474, 0
      %v2328 = vsel %vm2101, %v1476, 0
      %v2330 = vsel %vm2101, %v1478, 0
      %v2332 = vsel %vm2101, %v1480, 0
      %v2334 = vsel %vm2101, %v1482, 0
      %v2337 = vsel %vm2134, %v2303, 0
      %2339 = vmatprep.subr.bf16.mxu0 0
      %2340 = vmatpush1.bf16.msra.mxu0 0
      %2341 = vmatprep.subr.bf16.mxu0 0
      %2342 = vmatpush1.bf16.msra.mxu0 0
      %2343 = vmatprep.subr.bf16.mxu0 0
      %2344 = vmatpush1.bf16.msra.mxu0 0
      %2345 = vmatprep.subr.bf16.mxu0 0
      %2346 = vmatpush1.bf16.msra.mxu0 0
      %2347 = vmatprep.subr.bf16.mxu0 0
      %2348 = vmatpush1.bf16.msra.mxu0 0
      %2349 = vmatprep.subr.bf16.mxu0 0
      %2350 = vmatpush1.bf16.msra.mxu0 0
      %2351 = vmatprep.subr.bf16.mxu0 0
      %2352 = vmatpush1.bf16.msra.mxu0 0
      %2353 = vmatprep.subr.bf16.mxu0 0
      %2354 = vmatpush1.bf16.msra.mxu0 %v2337
      %2355 = vmatprep.subr.bf16.mxu0 0
      %2356 = vmatpush2.bf16.msra.mxu0 0
      %2357 = vmatprep.subr.bf16.mxu0 0
      %2358 = vmatpush2.bf16.msra.mxu0 0
      %2359 = vmatprep.subr.bf16.mxu0 0
      %2360 = vmatpush2.bf16.msra.mxu0 0
      %2361 = vmatprep.subr.bf16.mxu0 0
      %2362 = vmatpush2.bf16.msra.mxu0 0
      %2363 = vmatprep.subr.bf16.mxu0 0
      %2364 = vmatpush2.bf16.msra.mxu0 0
      %2365 = vmatprep.subr.bf16.mxu0 0
      %2366 = vmatpush2.bf16.msra.mxu0 0
      %2367 = vmatprep.subr.bf16.mxu0 0
      %2368 = vmatpush2.bf16.msra.mxu0 0
      %2369 = vmatprep.subr.bf16.mxu0 0
      %2370 = vmatpush2.bf16.msra.mxu0 0
      %2371 = vmatprep.mubr.bf16.mxu0 0
      %2372 = vmatmul.mubr.bf16.gmra.mxu0 %v2304
      %v2373 = vpop.f32.mrf.mxu0
      %v2374 = vadd.f32 %v2173, %v2373
      %v2375 = vpop.f32.mrf.mxu0
      %v2376 = vpop.f32.mrf.mxu0
      %v2377 = vadd.f32 %v2176, %v2376
      %v2378 = vpop.f32.mrf.mxu0
      %2379 = vmatprep.mubr.bf16.mxu0 0
      %2380 = vmatmul.mubr.bf16.gmra.mxu0 %v2306
      %v2381 = vpop.f32.mrf.mxu0
      %v2382 = vadd.f32 %v2181, %v2381
      %v2383 = vpop.f32.mrf.mxu0
      %v2384 = vpop.f32.mrf.mxu0
      %v2385 = vadd.f32 %v2184, %v2384
      %v2386 = vpop.f32.mrf.mxu0
      %2387 = vmatprep.mubr.bf16.mxu0 0
      %2388 = vmatmul.mubr.bf16.gmra.mxu0 %v2308
      %v2389 = vpop.f32.mrf.mxu0
      %v2390 = vadd.f32 %v2189, %v2389
      %v2391 = vpop.f32.mrf.mxu0
      %v2392 = vpop.f32.mrf.mxu0
      %v2393 = vadd.f32 %v2192, %v2392
      %v2394 = vpop.f32.mrf.mxu0
      %2395 = vmatprep.mubr.bf16.mxu0 0
      %2396 = vmatmul.mubr.bf16.gmra.mxu0 %v2310
      %v2397 = vpop.f32.mrf.mxu0
      %v2398 = vadd.f32 %v2197, %v2397
      %v2399 = vpop.f32.mrf.mxu0
      %v2400 = vpop.f32.mrf.mxu0
      %v2401 = vadd.f32 %v2200, %v2400
      %v2402 = vpop.f32.mrf.mxu0
      %2403 = vmatprep.mubr.bf16.mxu0 0
      %2404 = vmatmul.mubr.bf16.gmra.mxu0 %v2312
      %v2405 = vpop.f32.mrf.mxu0
      %v2406 = vadd.f32 %v2205, %v2405
      %v2407 = vpop.f32.mrf.mxu0
      %v2408 = vpop.f32.mrf.mxu0
      %v2409 = vadd.f32 %v2208, %v2408
      %v2410 = vpop.f32.mrf.mxu0
      %2411 = vmatprep.mubr.bf16.mxu0 0
      %2412 = vmatmul.mubr.bf16.gmra.mxu0 %v2314
      %v2413 = vpop.f32.mrf.mxu0
      %v2414 = vadd.f32 %v2213, %v2413
      %v2415 = vpop.f32.mrf.mxu0
      %v2416 = vpop.f32.mrf.mxu0
      %v2417 = vadd.f32 %v2216, %v2416
      %v2418 = vpop.f32.mrf.mxu0
      %2419 = vmatprep.mubr.bf16.mxu0 0
      %2420 = vmatmul.mubr.bf16.gmra.mxu0 %v2316
      %v2421 = vpop.f32.mrf.mxu0
      %v2422 = vadd.f32 %v2221, %v2421
      %v2423 = vpop.f32.mrf.mxu0
      %v2424 = vpop.f32.mrf.mxu0
      %v2425 = vadd.f32 %v2224, %v2424
      %v2426 = vpop.f32.mrf.mxu0
      %2427 = vmatprep.mubr.bf16.mxu0 0
      %2428 = vmatmul.mubr.bf16.gmra.mxu0 %v2318
      %v2429 = vpop.f32.mrf.mxu0
      %v2430 = vadd.f32 %v2229, %v2429
      %v2431 = vpop.f32.mrf.mxu0
      %v2432 = vpop.f32.mrf.mxu0
      %v2433 = vadd.f32 %v2232, %v2432
      %v2434 = vpop.f32.mrf.mxu0
      %2435 = vmatprep.mubr.bf16.mxu0 0
      %2436 = vmatmul.mubr.bf16.gmra.mxu0 %v2320
      %v2437 = vpop.f32.mrf.mxu0
      %v2438 = vadd.f32 %v2237, %v2437
      %v2439 = vpop.f32.mrf.mxu0
      %v2440 = vpop.f32.mrf.mxu0
      %v2441 = vadd.f32 %v2240, %v2440
      %v2442 = vpop.f32.mrf.mxu0
      %2443 = vmatprep.mubr.bf16.mxu0 0
      %2444 = vmatmul.mubr.bf16.gmra.mxu0 %v2322
      %v2445 = vpop.f32.mrf.mxu0
      %v2446 = vadd.f32 %v2245, %v2445
      %v2447 = vpop.f32.mrf.mxu0
      %v2448 = vpop.f32.mrf.mxu0
      %v2449 = vadd.f32 %v2248, %v2448
      %v2450 = vpop.f32.mrf.mxu0
      %2451 = vmatprep.mubr.bf16.mxu0 0
      %2452 = vmatmul.mubr.bf16.gmra.mxu0 %v2324
      %v2453 = vpop.f32.mrf.mxu0
      %v2454 = vadd.f32 %v2253, %v2453
      %v2455 = vpop.f32.mrf.mxu0
      %v2456 = vpop.f32.mrf.mxu0
      %v2457 = vadd.f32 %v2256, %v2456
      %v2458 = vpop.f32.mrf.mxu0
      %2459 = vmatprep.mubr.bf16.mxu0 0
      %2460 = vmatmul.mubr.bf16.gmra.mxu0 %v2326
      %v2461 = vpop.f32.mrf.mxu0
      %v2462 = vadd.f32 %v2261, %v2461
      %v2463 = vpop.f32.mrf.mxu0
      %v2464 = vpop.f32.mrf.mxu0
      %v2465 = vadd.f32 %v2264, %v2464
      %v2466 = vpop.f32.mrf.mxu0
      %2467 = vmatprep.mubr.bf16.mxu0 0
      %2468 = vmatmul.mubr.bf16.gmra.mxu0 %v2328
      %v2469 = vpop.f32.mrf.mxu0
      %v2470 = vadd.f32 %v2269, %v2469
      %v2471 = vpop.f32.mrf.mxu0
      %v2472 = vpop.f32.mrf.mxu0
      %v2473 = vadd.f32 %v2272, %v2472
      %v2474 = vpop.f32.mrf.mxu0
      %2475 = vmatprep.mubr.bf16.mxu0 0
      %2476 = vmatmul.mubr.bf16.gmra.mxu0 %v2330
      %v2477 = vpop.f32.mrf.mxu0
      %v2478 = vadd.f32 %v2277, %v2477
      %v2479 = vpop.f32.mrf.mxu0
      %v2480 = vpop.f32.mrf.mxu0
      %v2481 = vadd.f32 %v2280, %v2480
      %v2482 = vpop.f32.mrf.mxu0
      %2483 = vmatprep.mubr.bf16.mxu0 0
      %2484 = vmatmul.mubr.bf16.gmra.mxu0 %v2332
      %v2485 = vpop.f32.mrf.mxu0
      %v2486 = vadd.f32 %v2285, %v2485
      %v2487 = vpop.f32.mrf.mxu0
      %v2488 = vpop.f32.mrf.mxu0
      %v2489 = vadd.f32 %v2288, %v2488
      %v2490 = vpop.f32.mrf.mxu0
      %2491 = vmatprep.mubr.bf16.mxu0 0
      %2492 = vmatmul.mubr.bf16.gmra.mxu0 %v2334
      %v2493 = vpop.f32.mrf.mxu0
      %v2494 = vadd.f32 %v2293, %v2493
      %v2495 = vpop.f32.mrf.mxu0
      %v2496 = vpop.f32.mrf.mxu0
      %v2497 = vadd.f32 %v2296, %v2496
      %v2498 = vpop.f32.mrf.mxu0
      %2499 = vdwg.mxu0
      %s2500 = scalar_lea.vmem [#allocation2], 24
      %v2501 = vld [vmem:[%s2500] sm:$0xf]
      %v2502 = vld [vmem:[%s2500 + $0x4] sm:$0xf]
      %v2503 = vld [vmem:[%s2500 + $0xc] sm:$0xf]
      %v2504 = vld [vmem:[%s2500 + $0x10] sm:$0xf]
      %v2505 = vld [vmem:[%s2500 + $0x18] sm:$0xf]
      %v2506 = vld [vmem:[%s2500 + $0x1c] sm:$0xf]
      %v2507 = vld [vmem:[%s2500 + $0x24] sm:$0xf]
      %v2508 = vld [vmem:[%s2500 + $0x28] sm:$0xf]
      %v2509 = vld [vmem:[%s2500 + $0x30] sm:$0xf]
      %v2510 = vld [vmem:[%s2500 + $0x34] sm:$0xf]
      %v2511 = vld [vmem:[%s2500 + $0x3c] sm:$0xf]
      %v2512 = vld [vmem:[%s2500 + $0x40] sm:$0xf]
      %v2513 = vld [vmem:[%s2500 + $0x48] sm:$0xf]
      %v2514 = vld [vmem:[%s2500 + $0x4c] sm:$0xf]
      %v2515 = vld [vmem:[%s2500 + $0x54] sm:$0xf]
      %v2516 = vld [vmem:[%s2500 + $0x58] sm:$0xf]
      %v2517 = vld [vmem:[%s2500 + $0x60] sm:$0xf]
      %v2518 = vld [vmem:[%s2500 + $0x64] sm:$0xf]
      %v2519 = vld [vmem:[%s2500 + $0x6c] sm:$0xf]
      %v2520 = vld [vmem:[%s2500 + $0x70] sm:$0xf]
      %v2521 = vld [vmem:[%s2500 + $0x78] sm:$0xf]
      %v2522 = vld [vmem:[%s2500 + $0x7c] sm:$0xf]
      %v2523 = vld [vmem:[%s2500 + $0x84] sm:$0xf]
      %v2524 = vld [vmem:[%s2500 + $0x88] sm:$0xf]
      %v2525 = vld [vmem:[%s2500 + $0x90] sm:$0xf]
      %v2526 = vld [vmem:[%s2500 + $0x94] sm:$0xf]
      %v2527 = vld [vmem:[%s2500 + $0x9c] sm:$0xf]
      %v2528 = vld [vmem:[%s2500 + $0xa0] sm:$0xf]
      %v2529 = vld [vmem:[%s2500 + $0xa8] sm:$0xf]
      %v2530 = vld [vmem:[%s2500 + $0xac] sm:$0xf]
      %v2531 = vld [vmem:[%s2500 + $0xb4] sm:$0xf]
      %v2532 = vld [vmem:[%s2500 + $0xb8] sm:$0xf]
      %v2533 = vld [vmem:[%s2500 + $0x8] sm:$0x1]
      %v2534 = vld [vmem:[%s2500 + $0x14] sm:$0x1]
      %v2535 = vld [vmem:[%s2500 + $0x20] sm:$0x1]
      %v2536 = vld [vmem:[%s2500 + $0x2c] sm:$0x1]
      %v2537 = vld [vmem:[%s2500 + $0x38] sm:$0x1]
      %v2538 = vld [vmem:[%s2500 + $0x44] sm:$0x1]
      %v2539 = vld [vmem:[%s2500 + $0x50] sm:$0x1]
      %v2540 = vld [vmem:[%s2500 + $0x5c] sm:$0x1]
      %v2541 = vld [vmem:[%s2500 + $0x68] sm:$0x1]
      %v2542 = vld [vmem:[%s2500 + $0x74] sm:$0x1]
      %v2543 = vld [vmem:[%s2500 + $0x80] sm:$0x1]
      %v2544 = vld [vmem:[%s2500 + $0x8c] sm:$0x1]
      %v2545 = vld [vmem:[%s2500 + $0x98] sm:$0x1]
      %v2546 = vld [vmem:[%s2500 + $0xa4] sm:$0x1]
      %v2547 = vld [vmem:[%s2500 + $0xb0] sm:$0x1]
      %v2548 = vld [vmem:[%s2500 + $0xbc] sm:$0x1]
      %v2549 = vld [vmem:[%s2500] sm:$0xe]
      %v2550 = vld [vmem:[%s2500 + $0xc] sm:$0xe]
      %v2551 = vld [vmem:[%s2500 + $0x18] sm:$0xe]
      %v2552 = vld [vmem:[%s2500 + $0x24] sm:$0xe]
      %v2553 = vld [vmem:[%s2500 + $0x30] sm:$0xe]
      %v2554 = vld [vmem:[%s2500 + $0x3c] sm:$0xe]
      %v2555 = vld [vmem:[%s2500 + $0x48] sm:$0xe]
      %v2556 = vld [vmem:[%s2500 + $0x54] sm:$0xe]
      %v2557 = vld [vmem:[%s2500 + $0x60] sm:$0xe]
      %v2558 = vld [vmem:[%s2500 + $0x6c] sm:$0xe]
      %v2559 = vld [vmem:[%s2500 + $0x78] sm:$0xe]
      %v2560 = vld [vmem:[%s2500 + $0x84] sm:$0xe]
      %v2561 = vld [vmem:[%s2500 + $0x90] sm:$0xe]
      %v2562 = vld [vmem:[%s2500 + $0x9c] sm:$0xe]
      %v2563 = vld [vmem:[%s2500 + $0xa8] sm:$0xe]
      %v2564 = vld [vmem:[%s2500 + $0xb4] sm:$0xe]
      %v2597 = vunpack.c.l.b16 %v2501
      %v2598 = vunpack.c.l.b16 %v2502
      %v2599 = vunpack.c.l.b16 %v2503
      %v2600 = vunpack.c.l.b16 %v2504
      %v2601 = vunpack.c.l.b16 %v2505
      %v2602 = vunpack.c.l.b16 %v2506
      %v2603 = vunpack.c.l.b16 %v2507
      %v2604 = vunpack.c.l.b16 %v2508
      %v2605 = vunpack.c.l.b16 %v2509
      %v2606 = vunpack.c.l.b16 %v2510
      %v2607 = vunpack.c.l.b16 %v2511
      %v2608 = vunpack.c.l.b16 %v2512
      %v2609 = vunpack.c.l.b16 %v2513
      %v2610 = vunpack.c.l.b16 %v2514
      %v2611 = vunpack.c.l.b16 %v2515
      %v2612 = vunpack.c.l.b16 %v2516
      %v2613 = vunpack.c.l.b16 %v2517
      %v2614 = vunpack.c.l.b16 %v2518
      %v2615 = vunpack.c.l.b16 %v2519
      %v2616 = vunpack.c.l.b16 %v2520
      %v2617 = vunpack.c.l.b16 %v2521
      %v2618 = vunpack.c.l.b16 %v2522
      %v2619 = vunpack.c.l.b16 %v2523
      %v2620 = vunpack.c.l.b16 %v2524
      %v2621 = vunpack.c.l.b16 %v2525
      %v2622 = vunpack.c.l.b16 %v2526
      %v2623 = vunpack.c.l.b16 %v2527
      %v2624 = vunpack.c.l.b16 %v2528
      %v2625 = vunpack.c.l.b16 %v2529
      %v2626 = vunpack.c.l.b16 %v2530
      %v2627 = vunpack.c.l.b16 %v2531
      %v2628 = vunpack.c.l.b16 %v2532
      %v2629 = vpack.c.b16 %v2598, %v2597
      %v2630 = vpack.c.b16 %v2600, %v2599
      %v2631 = vpack.c.b16 %v2602, %v2601
      %v2632 = vpack.c.b16 %v2604, %v2603
      %v2633 = vpack.c.b16 %v2606, %v2605
      %v2634 = vpack.c.b16 %v2608, %v2607
      %v2635 = vpack.c.b16 %v2610, %v2609
      %v2636 = vpack.c.b16 %v2612, %v2611
      %v2637 = vpack.c.b16 %v2614, %v2613
      %v2638 = vpack.c.b16 %v2616, %v2615
      %v2639 = vpack.c.b16 %v2618, %v2617
      %v2640 = vpack.c.b16 %v2620, %v2619
      %v2641 = vpack.c.b16 %v2622, %v2621
      %v2642 = vpack.c.b16 %v2624, %v2623
      %v2643 = vpack.c.b16 %v2626, %v2625
      %v2644 = vpack.c.b16 %v2628, %v2627
      %v2661 = vunpack.c.l.b16 %v2533
      %v2662 = vunpack.c.l.b16 %v2534
      %v2663 = vunpack.c.l.b16 %v2535
      %v2664 = vunpack.c.l.b16 %v2536
      %v2665 = vunpack.c.l.b16 %v2537
      %v2666 = vunpack.c.l.b16 %v2538
      %v2667 = vunpack.c.l.b16 %v2539
      %v2668 = vunpack.c.l.b16 %v2540
      %v2669 = vunpack.c.l.b16 %v2541
      %v2670 = vunpack.c.l.b16 %v2542
      %v2671 = vunpack.c.l.b16 %v2543
      %v2672 = vunpack.c.l.b16 %v2544
      %v2673 = vunpack.c.l.b16 %v2545
      %v2674 = vunpack.c.l.b16 %v2546
      %v2675 = vunpack.c.l.b16 %v2547
      %v2676 = vunpack.c.l.b16 %v2548
      %v2677 = vpack.c.b16 %v2661, %v2661
      %v2678 = vpack.c.b16 %v2662, %v2662
      %v2679 = vpack.c.b16 %v2663, %v2663
      %v2680 = vpack.c.b16 %v2664, %v2664
      %v2681 = vpack.c.b16 %v2665, %v2665
      %v2682 = vpack.c.b16 %v2666, %v2666
      %v2683 = vpack.c.b16 %v2667, %v2667
      %v2684 = vpack.c.b16 %v2668, %v2668
      %v2685 = vpack.c.b16 %v2669, %v2669
      %v2686 = vpack.c.b16 %v2670, %v2670
      %v2687 = vpack.c.b16 %v2671, %v2671
      %v2688 = vpack.c.b16 %v2672, %v2672
      %v2689 = vpack.c.b16 %v2673, %v2673
      %v2690 = vpack.c.b16 %v2674, %v2674
      %v2691 = vpack.c.b16 %v2675, %v2675
      %v2692 = vpack.c.b16 %v2676, %v2676
      %v2694 = vshrl.u32 %v2629, 16
      %v2696 = vshll.u32 %v2629, 16
      %v2698 = vrot.slane %v2696, 1
      %v2699 = vor.u32 %v2694, %v2698
      %v2701 = vshll.u32 %v2677, 16
      %v2703 = vrot.slane %v2701, 1
      %v2704 = vsel %vm1063, %v2699, %v2703
      %v2706 = vshrl.u32 %v2630, 16
      %v2708 = vshll.u32 %v2630, 16
      %v2710 = vrot.slane %v2708, 1
      %v2711 = vor.u32 %v2706, %v2710
      %v2713 = vshll.u32 %v2678, 16
      %v2715 = vrot.slane %v2713, 1
      %v2716 = vsel %vm1063, %v2711, %v2715
      %v2718 = vshrl.u32 %v2631, 16
      %v2720 = vshll.u32 %v2631, 16
      %v2722 = vrot.slane %v2720, 1
      %v2723 = vor.u32 %v2718, %v2722
      %v2725 = vshll.u32 %v2679, 16
      %v2727 = vrot.slane %v2725, 1
      %v2728 = vsel %vm1063, %v2723, %v2727
      %v2730 = vshrl.u32 %v2632, 16
      %v2732 = vshll.u32 %v2632, 16
      %v2734 = vrot.slane %v2732, 1
      %v2735 = vor.u32 %v2730, %v2734
      %v2737 = vshll.u32 %v2680, 16
      %v2739 = vrot.slane %v2737, 1
      %v2740 = vsel %vm1063, %v2735, %v2739
      %v2742 = vshrl.u32 %v2633, 16
      %v2744 = vshll.u32 %v2633, 16
      %v2746 = vrot.slane %v2744, 1
      %v2747 = vor.u32 %v2742, %v2746
      %v2749 = vshll.u32 %v2681, 16
      %v2751 = vrot.slane %v2749, 1
      %v2752 = vsel %vm1063, %v2747, %v2751
      %v2754 = vshrl.u32 %v2634, 16
      %v2756 = vshll.u32 %v2634, 16
      %v2758 = vrot.slane %v2756, 1
      %v2759 = vor.u32 %v2754, %v2758
      %v2761 = vshll.u32 %v2682, 16
      %v2763 = vrot.slane %v2761, 1
      %v2764 = vsel %vm1063, %v2759, %v2763
      %v2766 = vshrl.u32 %v2635, 16
      %v2768 = vshll.u32 %v2635, 16
      %v2770 = vrot.slane %v2768, 1
      %v2771 = vor.u32 %v2766, %v2770
      %v2773 = vshll.u32 %v2683, 16
      %v2775 = vrot.slane %v2773, 1
      %v2776 = vsel %vm1063, %v2771, %v2775
      %v2778 = vshrl.u32 %v2636, 16
      %v2780 = vshll.u32 %v2636, 16
      %v2782 = vrot.slane %v2780, 1
      %v2783 = vor.u32 %v2778, %v2782
      %v2785 = vshll.u32 %v2684, 16
      %v2787 = vrot.slane %v2785, 1
      %v2788 = vsel %vm1063, %v2783, %v2787
      %v2790 = vshrl.u32 %v2637, 16
      %v2792 = vshll.u32 %v2637, 16
      %v2794 = vrot.slane %v2792, 1
      %v2795 = vor.u32 %v2790, %v2794
      %v2797 = vshll.u32 %v2685, 16
      %v2799 = vrot.slane %v2797, 1
      %v2800 = vsel %vm1063, %v2795, %v2799
      %v2802 = vshrl.u32 %v2638, 16
      %v2804 = vshll.u32 %v2638, 16
      %v2806 = vrot.slane %v2804, 1
      %v2807 = vor.u32 %v2802, %v2806
      %v2809 = vshll.u32 %v2686, 16
      %v2811 = vrot.slane %v2809, 1
      %v2812 = vsel %vm1063, %v2807, %v2811
      %v2814 = vshrl.u32 %v2639, 16
      %v2816 = vshll.u32 %v2639, 16
      %v2818 = vrot.slane %v2816, 1
      %v2819 = vor.u32 %v2814, %v2818
      %v2821 = vshll.u32 %v2687, 16
      %v2823 = vrot.slane %v2821, 1
      %v2824 = vsel %vm1063, %v2819, %v2823
      %v2826 = vshrl.u32 %v2640, 16
      %v2828 = vshll.u32 %v2640, 16
      %v2830 = vrot.slane %v2828, 1
      %v2831 = vor.u32 %v2826, %v2830
      %v2833 = vshll.u32 %v2688, 16
      %v2835 = vrot.slane %v2833, 1
      %v2836 = vsel %vm1063, %v2831, %v2835
      %v2838 = vshrl.u32 %v2641, 16
      %v2840 = vshll.u32 %v2641, 16
      %v2842 = vrot.slane %v2840, 1
      %v2843 = vor.u32 %v2838, %v2842
      %v2845 = vshll.u32 %v2689, 16
      %v2847 = vrot.slane %v2845, 1
      %v2848 = vsel %vm1063, %v2843, %v2847
      %v2850 = vshrl.u32 %v2642, 16
      %v2852 = vshll.u32 %v2642, 16
      %v2854 = vrot.slane %v2852, 1
      %v2855 = vor.u32 %v2850, %v2854
      %v2857 = vshll.u32 %v2690, 16
      %v2859 = vrot.slane %v2857, 1
      %v2860 = vsel %vm1063, %v2855, %v2859
      %v2862 = vshrl.u32 %v2643, 16
      %v2864 = vshll.u32 %v2643, 16
      %v2866 = vrot.slane %v2864, 1
      %v2867 = vor.u32 %v2862, %v2866
      %v2869 = vshll.u32 %v2691, 16
      %v2871 = vrot.slane %v2869, 1
      %v2872 = vsel %vm1063, %v2867, %v2871
      %v2874 = vshrl.u32 %v2644, 16
      %v2876 = vshll.u32 %v2644, 16
      %v2878 = vrot.slane %v2876, 1
      %v2879 = vor.u32 %v2874, %v2878
      %v2881 = vshll.u32 %v2692, 16
      %v2883 = vrot.slane %v2881, 1
      %v2884 = vsel %vm1063, %v2879, %v2883
      %2885 = vrot.lane.b32.xlu0 %v2704, 4
      %v2886 = vpop.permute.xlu0 %2885
      %2887 = vrot.lane.b32.xlu0 %v2716, 4
      %v2888 = vpop.permute.xlu0 %2887
      %2889 = vrot.lane.b32.xlu0 %v2728, 4
      %v2890 = vpop.permute.xlu0 %2889
      %2891 = vrot.lane.b32.xlu0 %v2740, 4
      %v2892 = vpop.permute.xlu0 %2891
      %2893 = vrot.lane.b32.xlu0 %v2752, 4
      %v2894 = vpop.permute.xlu0 %2893
      %2895 = vrot.lane.b32.xlu0 %v2764, 4
      %v2896 = vpop.permute.xlu0 %2895
      %2897 = vrot.lane.b32.xlu0 %v2776, 4
      %v2898 = vpop.permute.xlu0 %2897
      %2899 = vrot.lane.b32.xlu0 %v2788, 4
      %v2900 = vpop.permute.xlu0 %2899
      %2901 = vrot.lane.b32.xlu0 %v2800, 4
      %v2902 = vpop.permute.xlu0 %2901
      %2903 = vrot.lane.b32.xlu0 %v2812, 4
      %v2904 = vpop.permute.xlu0 %2903
      %2905 = vrot.lane.b32.xlu0 %v2824, 4
      %v2906 = vpop.permute.xlu0 %2905
      %2907 = vrot.lane.b32.xlu0 %v2836, 4
      %v2908 = vpop.permute.xlu0 %2907
      %2909 = vrot.lane.b32.xlu0 %v2848, 4
      %v2910 = vpop.permute.xlu0 %2909
      %2911 = vrot.lane.b32.xlu0 %v2860, 4
      %v2912 = vpop.permute.xlu0 %2911
      %2913 = vrot.lane.b32.xlu0 %v2872, 4
      %v2914 = vpop.permute.xlu0 %2913
      %2915 = vrot.lane.b32.xlu0 %v2884, 4
      %v2916 = vpop.permute.xlu0 %2915
      %v2933 = vunpack.c.l.b16 %v2549
      %v2934 = vunpack.c.l.b16 %v2550
      %v2935 = vunpack.c.l.b16 %v2551
      %v2936 = vunpack.c.l.b16 %v2552
      %v2937 = vunpack.c.l.b16 %v2553
      %v2938 = vunpack.c.l.b16 %v2554
      %v2939 = vunpack.c.l.b16 %v2555
      %v2940 = vunpack.c.l.b16 %v2556
      %v2941 = vunpack.c.l.b16 %v2557
      %v2942 = vunpack.c.l.b16 %v2558
      %v2943 = vunpack.c.l.b16 %v2559
      %v2944 = vunpack.c.l.b16 %v2560
      %v2945 = vunpack.c.l.b16 %v2561
      %v2946 = vunpack.c.l.b16 %v2562
      %v2947 = vunpack.c.l.b16 %v2563
      %v2948 = vunpack.c.l.b16 %v2564
      %v2949 = vpack.c.b16 %v2598, %v2933
      %v2950 = vpack.c.b16 %v2600, %v2934
      %v2951 = vpack.c.b16 %v2602, %v2935
      %v2952 = vpack.c.b16 %v2604, %v2936
      %v2953 = vpack.c.b16 %v2606, %v2937
      %v2954 = vpack.c.b16 %v2608, %v2938
      %v2955 = vpack.c.b16 %v2610, %v2939
      %v2956 = vpack.c.b16 %v2612, %v2940
      %v2957 = vpack.c.b16 %v2614, %v2941
      %v2958 = vpack.c.b16 %v2616, %v2942
      %v2959 = vpack.c.b16 %v2618, %v2943
      %v2960 = vpack.c.b16 %v2620, %v2944
      %v2961 = vpack.c.b16 %v2622, %v2945
      %v2962 = vpack.c.b16 %v2624, %v2946
      %v2963 = vpack.c.b16 %v2626, %v2947
      %v2964 = vpack.c.b16 %v2628, %v2948
      %v2965 = vrot.slane %v2949, 1
      %v2966 = vrot.slane %v2677, 1
      %v2967 = vsel %vm1336, %v2965, %v2966
      %v2968 = vrot.slane %v2950, 1
      %v2969 = vrot.slane %v2678, 1
      %v2970 = vsel %vm1336, %v2968, %v2969
      %v2971 = vrot.slane %v2951, 1
      %v2972 = vrot.slane %v2679, 1
      %v2973 = vsel %vm1336, %v2971, %v2972
      %v2974 = vrot.slane %v2952, 1
      %v2975 = vrot.slane %v2680, 1
      %v2976 = vsel %vm1336, %v2974, %v2975
      %v2977 = vrot.slane %v2953, 1
      %v2978 = vrot.slane %v2681, 1
      %v2979 = vsel %vm1336, %v2977, %v2978
      %v2980 = vrot.slane %v2954, 1
      %v2981 = vrot.slane %v2682, 1
      %v2982 = vsel %vm1336, %v2980, %v2981
      %v2983 = vrot.slane %v2955, 1
      %v2984 = vrot.slane %v2683, 1
      %v2985 = vsel %vm1336, %v2983, %v2984
      %v2986 = vrot.slane %v2956, 1
      %v2987 = vrot.slane %v2684, 1
      %v2988 = vsel %vm1336, %v2986, %v2987
      %v2989 = vrot.slane %v2957, 1
      %v2990 = vrot.slane %v2685, 1
      %v2991 = vsel %vm1336, %v2989, %v2990
      %v2992 = vrot.slane %v2958, 1
      %v2993 = vrot.slane %v2686, 1
      %v2994 = vsel %vm1336, %v2992, %v2993
      %v2995 = vrot.slane %v2959, 1
      %v2996 = vrot.slane %v2687, 1
      %v2997 = vsel %vm1336, %v2995, %v2996
      %v2998 = vrot.slane %v2960, 1
      %v2999 = vrot.slane %v2688, 1
      %v3000 = vsel %vm1336, %v2998, %v2999
      %v3001 = vrot.slane %v2961, 1
      %v3002 = vrot.slane %v2689, 1
      %v3003 = vsel %vm1336, %v3001, %v3002
      %v3004 = vrot.slane %v2962, 1
      %v3005 = vrot.slane %v2690, 1
      %v3006 = vsel %vm1336, %v3004, %v3005
      %v3007 = vrot.slane %v2963, 1
      %v3008 = vrot.slane %v2691, 1
      %v3009 = vsel %vm1336, %v3007, %v3008
      %v3010 = vrot.slane %v2964, 1
      %v3011 = vrot.slane %v2692, 1
      %v3012 = vsel %vm1336, %v3010, %v3011
      %3013 = vrot.lane.b32.xlu0 %v2967, 8
      %v3014 = vpop.permute.xlu0 %3013
      %3015 = vrot.lane.b32.xlu0 %v2970, 8
      %v3016 = vpop.permute.xlu0 %3015
      %3017 = vrot.lane.b32.xlu0 %v2973, 8
      %v3018 = vpop.permute.xlu0 %3017
      %3019 = vrot.lane.b32.xlu0 %v2976, 8
      %v3020 = vpop.permute.xlu0 %3019
      %3021 = vrot.lane.b32.xlu0 %v2979, 8
      %v3022 = vpop.permute.xlu0 %3021
      %3023 = vrot.lane.b32.xlu0 %v2982, 8
      %v3024 = vpop.permute.xlu0 %3023
      %3025 = vrot.lane.b32.xlu0 %v2985, 8
      %v3026 = vpop.permute.xlu0 %3025
      %3027 = vrot.lane.b32.xlu0 %v2988, 8
      %v3028 = vpop.permute.xlu0 %3027
      %3029 = vrot.lane.b32.xlu0 %v2991, 8
      %v3030 = vpop.permute.xlu0 %3029
      %3031 = vrot.lane.b32.xlu0 %v2994, 8
      %v3032 = vpop.permute.xlu0 %3031
      %3033 = vrot.lane.b32.xlu0 %v2997, 8
      %v3034 = vpop.permute.xlu0 %3033
      %3035 = vrot.lane.b32.xlu0 %v3000, 8
      %v3036 = vpop.permute.xlu0 %3035
      %3037 = vrot.lane.b32.xlu0 %v3003, 8
      %v3038 = vpop.permute.xlu0 %3037
      %3039 = vrot.lane.b32.xlu0 %v3006, 8
      %v3040 = vpop.permute.xlu0 %3039
      %3041 = vrot.lane.b32.xlu0 %v3009, 8
      %v3042 = vpop.permute.xlu0 %3041
      %3043 = vrot.lane.b32.xlu0 %v3012, 8
      %v3044 = vpop.permute.xlu0 %3043
      %v3046 = vsel %vm1417, %v2629, %v2886
      %v3048 = vsel %vm1417, %v2630, %v2888
      %v3050 = vsel %vm1417, %v2631, %v2890
      %v3052 = vsel %vm1417, %v2632, %v2892
      %v3054 = vsel %vm1417, %v2633, %v2894
      %v3056 = vsel %vm1417, %v2634, %v2896
      %v3058 = vsel %vm1417, %v2635, %v2898
      %v3060 = vsel %vm1417, %v2636, %v2900
      %v3062 = vsel %vm1417, %v2637, %v2902
      %v3064 = vsel %vm1417, %v2638, %v2904
      %v3066 = vsel %vm1417, %v2639, %v2906
      %v3068 = vsel %vm1417, %v2640, %v2908
      %v3070 = vsel %vm1417, %v2641, %v2910
      %v3072 = vsel %vm1417, %v2642, %v2912
      %v3074 = vsel %vm1417, %v2643, %v2914
      %v3076 = vsel %vm1417, %v2644, %v2916
      %v3078 = vsel %vm1450, %v3046, %v3014
      %v3080 = vsel %vm1450, %v3048, %v3016
      %v3082 = vsel %vm1450, %v3050, %v3018
      %v3084 = vsel %vm1450, %v3052, %v3020
      %v3086 = vsel %vm1450, %v3054, %v3022
      %v3088 = vsel %vm1450, %v3056, %v3024
      %v3090 = vsel %vm1450, %v3058, %v3026
      %v3092 = vsel %vm1450, %v3060, %v3028
      %v3094 = vsel %vm1450, %v3062, %v3030
      %v3096 = vsel %vm1450, %v3064, %v3032
      %v3098 = vsel %vm1450, %v3066, %v3034
      %v3100 = vsel %vm1450, %v3068, %v3036
      %v3102 = vsel %vm1450, %v3070, %v3038
      %v3104 = vsel %vm1450, %v3072, %v3040
      %v3106 = vsel %vm1450, %v3074, %v3042
      %v3108 = vsel %vm1450, %v3076, %v3044
      %s3109 = scalar_lea.vmem %s1, 16
      %v3110 = vld [vmem:[%s3109] sm:$0xf]
      %v3111 = vld [vmem:[%s3109 + $0x4] sm:$0x3]
      %v3114 = vunpack.c.l.b16 %v3110
      %v3115 = vunpack.c.l.b16 %v3111
      %v3116 = vpack.c.b16 %v3115, %v3114
      %v3117 = vsel %vm2101, %v3078, 0
      %v3119 = vsel %vm2101, %v3080, 0
      %v3121 = vsel %vm2101, %v3082, 0
      %v3123 = vsel %vm2101, %v3084, 0
      %v3125 = vsel %vm2101, %v3086, 0
      %v3127 = vsel %vm2101, %v3088, 0
      %v3129 = vsel %vm2101, %v3090, 0
      %v3131 = vsel %vm2101, %v3092, 0
      %v3133 = vsel %vm2101, %v3094, 0
      %v3135 = vsel %vm2101, %v3096, 0
      %v3137 = vsel %vm2101, %v3098, 0
      %v3139 = vsel %vm2101, %v3100, 0
      %v3141 = vsel %vm2101, %v3102, 0
      %v3143 = vsel %vm2101, %v3104, 0
      %v3145 = vsel %vm2101, %v3106, 0
      %v3147 = vsel %vm2101, %v3108, 0
      %v3150 = vsel %vm2134, %v3116, 0
      %3152 = vmatprep.subr.bf16.mxu0 0
      %3153 = vmatpush1.bf16.msra.mxu0 0
      %3154 = vmatprep.subr.bf16.mxu0 0
      %3155 = vmatpush1.bf16.msra.mxu0 0
      %3156 = vmatprep.subr.bf16.mxu0 0
      %3157 = vmatpush1.bf16.msra.mxu0 0
      %3158 = vmatprep.subr.bf16.mxu0 0
      %3159 = vmatpush1.bf16.msra.mxu0 0
      %3160 = vmatprep.subr.bf16.mxu0 0
      %3161 = vmatpush1.bf16.msra.mxu0 0
      %3162 = vmatprep.subr.bf16.mxu0 0
      %3163 = vmatpush1.bf16.msra.mxu0 0
      %3164 = vmatprep.subr.bf16.mxu0 0
      %3165 = vmatpush1.bf16.msra.mxu0 0
      %3166 = vmatprep.subr.bf16.mxu0 0
      %3167 = vmatpush1.bf16.msra.mxu0 %v3150
      %3168 = vmatprep.subr.bf16.mxu0 0
      %3169 = vmatpush2.bf16.msra.mxu0 0
      %3170 = vmatprep.subr.bf16.mxu0 0
      %3171 = vmatpush2.bf16.msra.mxu0 0
      %3172 = vmatprep.subr.bf16.mxu0 0
      %3173 = vmatpush2.bf16.msra.mxu0 0
      %3174 = vmatprep.subr.bf16.mxu0 0
      %3175 = vmatpush2.bf16.msra.mxu0 0
      %3176 = vmatprep.subr.bf16.mxu0 0
      %3177 = vmatpush2.bf16.msra.mxu0 0
      %3178 = vmatprep.subr.bf16.mxu0 0
      %3179 = vmatpush2.bf16.msra.mxu0 0
      %3180 = vmatprep.subr.bf16.mxu0 0
      %3181 = vmatpush2.bf16.msra.mxu0 0
      %3182 = vmatprep.subr.bf16.mxu0 0
      %3183 = vmatpush2.bf16.msra.mxu0 0
      %3184 = vmatprep.mubr.bf16.mxu0 0
      %3185 = vmatmul.mubr.bf16.gmra.mxu0 %v3117
      %v3186 = vpop.f32.mrf.mxu0
      %v3187 = vadd.f32 0.0, %v3186
      %v3188 = vpop.f32.mrf.mxu0
      %v3189 = vpop.f32.mrf.mxu0
      %v3190 = vadd.f32 0.0, %v3189
      %v3191 = vpop.f32.mrf.mxu0
      %3192 = vmatprep.mubr.bf16.mxu0 0
      %3193 = vmatmul.mubr.bf16.gmra.mxu0 %v3119
      %v3194 = vpop.f32.mrf.mxu0
      %v3195 = vadd.f32 0.0, %v3194
      %v3196 = vpop.f32.mrf.mxu0
      %v3197 = vpop.f32.mrf.mxu0
      %v3198 = vadd.f32 0.0, %v3197
      %v3199 = vpop.f32.mrf.mxu0
      %3200 = vmatprep.mubr.bf16.mxu0 0
      %3201 = vmatmul.mubr.bf16.gmra.mxu0 %v3121
      %v3202 = vpop.f32.mrf.mxu0
      %v3203 = vadd.f32 0.0, %v3202
      %v3204 = vpop.f32.mrf.mxu0
      %v3205 = vpop.f32.mrf.mxu0
      %v3206 = vadd.f32 0.0, %v3205
      %v3207 = vpop.f32.mrf.mxu0
      %3208 = vmatprep.mubr.bf16.mxu0 0
      %3209 = vmatmul.mubr.bf16.gmra.mxu0 %v3123
      %v3210 = vpop.f32.mrf.mxu0
      %v3211 = vadd.f32 0.0, %v3210
      %v3212 = vpop.f32.mrf.mxu0
      %v3213 = vpop.f32.mrf.mxu0
      %v3214 = vadd.f32 0.0, %v3213
      %v3215 = vpop.f32.mrf.mxu0
      %3216 = vmatprep.mubr.bf16.mxu0 0
      %3217 = vmatmul.mubr.bf16.gmra.mxu0 %v3125
      %v3218 = vpop.f32.mrf.mxu0
      %v3219 = vadd.f32 0.0, %v3218
      %v3220 = vpop.f32.mrf.mxu0
      %v3221 = vpop.f32.mrf.mxu0
      %v3222 = vadd.f32 0.0, %v3221
      %v3223 = vpop.f32.mrf.mxu0
      %3224 = vmatprep.mubr.bf16.mxu0 0
      %3225 = vmatmul.mubr.bf16.gmra.mxu0 %v3127
      %v3226 = vpop.f32.mrf.mxu0
      %v3227 = vadd.f32 0.0, %v3226
      %v3228 = vpop.f32.mrf.mxu0
      %v3229 = vpop.f32.mrf.mxu0
      %v3230 = vadd.f32 0.0, %v3229
      %v3231 = vpop.f32.mrf.mxu0
      %3232 = vmatprep.mubr.bf16.mxu0 0
      %3233 = vmatmul.mubr.bf16.gmra.mxu0 %v3129
      %v3234 = vpop.f32.mrf.mxu0
      %v3235 = vadd.f32 0.0, %v3234
      %v3236 = vpop.f32.mrf.mxu0
      %v3237 = vpop.f32.mrf.mxu0
      %v3238 = vadd.f32 0.0, %v3237
      %v3239 = vpop.f32.mrf.mxu0
      %3240 = vmatprep.mubr.bf16.mxu0 0
      %3241 = vmatmul.mubr.bf16.gmra.mxu0 %v3131
      %v3242 = vpop.f32.mrf.mxu0
      %v3243 = vadd.f32 0.0, %v3242
      %v3244 = vpop.f32.mrf.mxu0
      %v3245 = vpop.f32.mrf.mxu0
      %v3246 = vadd.f32 0.0, %v3245
      %v3247 = vpop.f32.mrf.mxu0
      %3248 = vmatprep.mubr.bf16.mxu0 0
      %3249 = vmatmul.mubr.bf16.gmra.mxu0 %v3133
      %v3250 = vpop.f32.mrf.mxu0
      %v3251 = vadd.f32 0.0, %v3250
      %v3252 = vpop.f32.mrf.mxu0
      %v3253 = vpop.f32.mrf.mxu0
      %v3254 = vadd.f32 0.0, %v3253
      %v3255 = vpop.f32.mrf.mxu0
      %3256 = vmatprep.mubr.bf16.mxu0 0
      %3257 = vmatmul.mubr.bf16.gmra.mxu0 %v3135
      %v3258 = vpop.f32.mrf.mxu0
      %v3259 = vadd.f32 0.0, %v3258
      %v3260 = vpop.f32.mrf.mxu0
      %v3261 = vpop.f32.mrf.mxu0
      %v3262 = vadd.f32 0.0, %v3261
      %v3263 = vpop.f32.mrf.mxu0
      %3264 = vmatprep.mubr.bf16.mxu0 0
      %3265 = vmatmul.mubr.bf16.gmra.mxu0 %v3137
      %v3266 = vpop.f32.mrf.mxu0
      %v3267 = vadd.f32 0.0, %v3266
      %v3268 = vpop.f32.mrf.mxu0
      %v3269 = vpop.f32.mrf.mxu0
      %v3270 = vadd.f32 0.0, %v3269
      %v3271 = vpop.f32.mrf.mxu0
      %3272 = vmatprep.mubr.bf16.mxu0 0
      %3273 = vmatmul.mubr.bf16.gmra.mxu0 %v3139
      %v3274 = vpop.f32.mrf.mxu0
      %v3275 = vadd.f32 0.0, %v3274
      %v3276 = vpop.f32.mrf.mxu0
      %v3277 = vpop.f32.mrf.mxu0
      %v3278 = vadd.f32 0.0, %v3277
      %v3279 = vpop.f32.mrf.mxu0
      %3280 = vmatprep.mubr.bf16.mxu0 0
      %3281 = vmatmul.mubr.bf16.gmra.mxu0 %v3141
      %v3282 = vpop.f32.mrf.mxu0
      %v3283 = vadd.f32 0.0, %v3282
      %v3284 = vpop.f32.mrf.mxu0
      %v3285 = vpop.f32.mrf.mxu0
      %v3286 = vadd.f32 0.0, %v3285
      %v3287 = vpop.f32.mrf.mxu0
      %3288 = vmatprep.mubr.bf16.mxu0 0
      %3289 = vmatmul.mubr.bf16.gmra.mxu0 %v3143
      %v3290 = vpop.f32.mrf.mxu0
      %v3291 = vadd.f32 0.0, %v3290
      %v3292 = vpop.f32.mrf.mxu0
      %v3293 = vpop.f32.mrf.mxu0
      %v3294 = vadd.f32 0.0, %v3293
      %v3295 = vpop.f32.mrf.mxu0
      %3296 = vmatprep.mubr.bf16.mxu0 0
      %3297 = vmatmul.mubr.bf16.gmra.mxu0 %v3145
      %v3298 = vpop.f32.mrf.mxu0
      %v3299 = vadd.f32 0.0, %v3298
      %v3300 = vpop.f32.mrf.mxu0
      %v3301 = vpop.f32.mrf.mxu0
      %v3302 = vadd.f32 0.0, %v3301
      %v3303 = vpop.f32.mrf.mxu0
      %3304 = vmatprep.mubr.bf16.mxu0 0
      %3305 = vmatmul.mubr.bf16.gmra.mxu0 %v3147
      %v3306 = vpop.f32.mrf.mxu0
      %v3307 = vadd.f32 0.0, %v3306
      %v3308 = vpop.f32.mrf.mxu0
      %v3309 = vpop.f32.mrf.mxu0
      %v3310 = vadd.f32 0.0, %v3309
      %v3311 = vpop.f32.mrf.mxu0
      %3312 = vdwg.mxu0
      %v3313 = vadd.f32 %v2374, %v3187
      %v3314 = vadd.f32 %v2377, %v3190
      %v3315 = vadd.f32 %v2382, %v3195
      %v3316 = vadd.f32 %v2385, %v3198
      %v3317 = vadd.f32 %v2390, %v3203
      %v3318 = vadd.f32 %v2393, %v3206
      %v3319 = vadd.f32 %v2398, %v3211
      %v3320 = vadd.f32 %v2401, %v3214
      %v3321 = vadd.f32 %v2406, %v3219
      %v3322 = vadd.f32 %v2409, %v3222
      %v3323 = vadd.f32 %v2414, %v3227
      %v3324 = vadd.f32 %v2417, %v3230
      %v3325 = vadd.f32 %v2422, %v3235
      %v3326 = vadd.f32 %v2425, %v3238
      %v3327 = vadd.f32 %v2430, %v3243
      %v3328 = vadd.f32 %v2433, %v3246
      %v3329 = vadd.f32 %v2438, %v3251
      %v3330 = vadd.f32 %v2441, %v3254
      %v3331 = vadd.f32 %v2446, %v3259
      %v3332 = vadd.f32 %v2449, %v3262
      %v3333 = vadd.f32 %v2454, %v3267
      %v3334 = vadd.f32 %v2457, %v3270
      %v3335 = vadd.f32 %v2462, %v3275
      %v3336 = vadd.f32 %v2465, %v3278
      %v3337 = vadd.f32 %v2470, %v3283
      %v3338 = vadd.f32 %v2473, %v3286
      %v3339 = vadd.f32 %v2478, %v3291
      %v3340 = vadd.f32 %v2481, %v3294
      %v3341 = vadd.f32 %v2486, %v3299
      %v3342 = vadd.f32 %v2489, %v3302
      %v3343 = vadd.f32 %v2494, %v3307
      %v3344 = vadd.f32 %v2497, %v3310
      %v3345 = vld [vmem:[%s2] sm:$0x1]
      %v3347 = vlaneseq
      %v3348 = vshrl.u32 %v3347, 7
      %v3349 = vsub.s32 0, %v3348
      %v3350 = vrot.slane %v3345, %v3349
      %v3352 = vmul.f32 %v3313, %v3350
      %v3353 = vmul.f32 %v3314, %v3350
      %v3354 = vmul.f32 %v3315, %v3350
      %v3355 = vmul.f32 %v3316, %v3350
      %v3356 = vmul.f32 %v3317, %v3350
      %v3357 = vmul.f32 %v3318, %v3350
      %v3358 = vmul.f32 %v3319, %v3350
      %v3359 = vmul.f32 %v3320, %v3350
      %v3360 = vmul.f32 %v3321, %v3350
      %v3361 = vmul.f32 %v3322, %v3350
      %v3362 = vmul.f32 %v3323, %v3350
      %v3363 = vmul.f32 %v3324, %v3350
      %v3364 = vmul.f32 %v3325, %v3350
      %v3365 = vmul.f32 %v3326, %v3350
      %v3366 = vmul.f32 %v3327, %v3350
      %v3367 = vmul.f32 %v3328, %v3350
      %v3368 = vmul.f32 %v3329, %v3350
      %v3369 = vmul.f32 %v3330, %v3350
      %v3370 = vmul.f32 %v3331, %v3350
      %v3371 = vmul.f32 %v3332, %v3350
      %v3372 = vmul.f32 %v3333, %v3350
      %v3373 = vmul.f32 %v3334, %v3350
      %v3374 = vmul.f32 %v3335, %v3350
      %v3375 = vmul.f32 %v3336, %v3350
      %v3376 = vmul.f32 %v3337, %v3350
      %v3377 = vmul.f32 %v3338, %v3350
      %v3378 = vmul.f32 %v3339, %v3350
      %v3379 = vmul.f32 %v3340, %v3350
      %v3380 = vmul.f32 %v3341, %v3350
      %v3381 = vmul.f32 %v3342, %v3350
      %v3382 = vmul.f32 %v3343, %v3350
      %v3383 = vmul.f32 %v3344, %v3350
      %v3384 = vld [vmem:[%s3] sm:$0x1]
      %v3386 = vlaneseq
      %v3387 = vshrl.u32 %v3386, 7
      %v3388 = vsub.s32 0, %v3387
      %v3389 = vrot.slane %v3384, %v3388
      %v3391 = vadd.f32 %v3352, %v3389
      %v3392 = vadd.f32 %v3353, %v3389
      %v3393 = vadd.f32 %v3354, %v3389
      %v3394 = vadd.f32 %v3355, %v3389
      %v3395 = vadd.f32 %v3356, %v3389
      %v3396 = vadd.f32 %v3357, %v3389
      %v3397 = vadd.f32 %v3358, %v3389
      %v3398 = vadd.f32 %v3359, %v3389
      %v3399 = vadd.f32 %v3360, %v3389
      %v3400 = vadd.f32 %v3361, %v3389
      %v3401 = vadd.f32 %v3362, %v3389
      %v3402 = vadd.f32 %v3363, %v3389
      %v3403 = vadd.f32 %v3364, %v3389
      %v3404 = vadd.f32 %v3365, %v3389
      %v3405 = vadd.f32 %v3366, %v3389
      %v3406 = vadd.f32 %v3367, %v3389
      %v3407 = vadd.f32 %v3368, %v3389
      %v3408 = vadd.f32 %v3369, %v3389
      %v3409 = vadd.f32 %v3370, %v3389
      %v3410 = vadd.f32 %v3371, %v3389
      %v3411 = vadd.f32 %v3372, %v3389
      %v3412 = vadd.f32 %v3373, %v3389
      %v3413 = vadd.f32 %v3374, %v3389
      %v3414 = vadd.f32 %v3375, %v3389
      %v3415 = vadd.f32 %v3376, %v3389
      %v3416 = vadd.f32 %v3377, %v3389
      %v3417 = vadd.f32 %v3378, %v3389
      %v3418 = vadd.f32 %v3379, %v3389
      %v3419 = vadd.f32 %v3380, %v3389
      %v3420 = vadd.f32 %v3381, %v3389
      %v3421 = vadd.f32 %v3382, %v3389
      %v3422 = vadd.f32 %v3383, %v3389
      %v3423 = vmax.f32 %v3391, 0.0
      %v3424 = vmax.f32 %v3392, 0.0
      %v3425 = vmax.f32 %v3393, 0.0
      %v3426 = vmax.f32 %v3394, 0.0
      %v3427 = vmax.f32 %v3395, 0.0
      %v3428 = vmax.f32 %v3396, 0.0
      %v3429 = vmax.f32 %v3397, 0.0
      %v3430 = vmax.f32 %v3398, 0.0
      %v3431 = vmax.f32 %v3399, 0.0
      %v3432 = vmax.f32 %v3400, 0.0
      %v3433 = vmax.f32 %v3401, 0.0
      %v3434 = vmax.f32 %v3402, 0.0
      %v3435 = vmax.f32 %v3403, 0.0
      %v3436 = vmax.f32 %v3404, 0.0
      %v3437 = vmax.f32 %v3405, 0.0
      %v3438 = vmax.f32 %v3406, 0.0
      %v3439 = vmax.f32 %v3407, 0.0
      %v3440 = vmax.f32 %v3408, 0.0
      %v3441 = vmax.f32 %v3409, 0.0
      %v3442 = vmax.f32 %v3410, 0.0
      %v3443 = vmax.f32 %v3411, 0.0
      %v3444 = vmax.f32 %v3412, 0.0
      %v3445 = vmax.f32 %v3413, 0.0
      %v3446 = vmax.f32 %v3414, 0.0
      %v3447 = vmax.f32 %v3415, 0.0
      %v3448 = vmax.f32 %v3416, 0.0
      %v3449 = vmax.f32 %v3417, 0.0
      %v3450 = vmax.f32 %v3418, 0.0
      %v3451 = vmax.f32 %v3419, 0.0
      %v3452 = vmax.f32 %v3420, 0.0
      %v3453 = vmax.f32 %v3421, 0.0
      %v3454 = vmax.f32 %v3422, 0.0
      %vm3455 = vcmask 257024
      %3456 = vst.msk [vmem:[#allocation3] sm:$0xf] %vm3455, 0
      %3457 = vst.msk [vmem:[#allocation3 + $0x4] sm:$0xf] %vm3455, 0
      %vm3458 = vcmask 253952
      %3459 = vst.msk [vmem:[#allocation3 + $0x8] sm:$0x1] %vm3458, 0
      %s3460 = scalar_lea.vmem [#allocation3], 204
      %3461 = vst.msk [vmem:[%s3460] sm:$0xf] %vm3455, 0
      %3462 = vst.msk [vmem:[%s3460 + $0x4] sm:$0xf] %vm3455, 0
      %3463 = vst.msk [vmem:[%s3460 + $0x8] sm:$0x1] %vm3458, 0
      %vm3464 = vcmask 253952
      %vm3465 = vmand %vm3464, %vm290
      %v3466 = vld [vmem:[#allocation3] sm:$0x1]
      %v3467 = vsel %vm3465, 0, %v3466
      %3468 = vst [vmem:[#allocation3] sm:$0x1] %v3467
      %v3469 = vld [vmem:[#allocation3 + $0xc] sm:$0x1]
      %v3470 = vsel %vm3465, 0, %v3469
      %3471 = vst [vmem:[#allocation3 + $0xc] sm:$0x1] %v3470
      %v3472 = vld [vmem:[#allocation3 + $0x18] sm:$0x1]
      %v3473 = vsel %vm3465, 0, %v3472
      %3474 = vst [vmem:[#allocation3 + $0x18] sm:$0x1] %v3473
      %v3475 = vld [vmem:[#allocation3 + $0x24] sm:$0x1]
      %v3476 = vsel %vm3465, 0, %v3475
      %3477 = vst [vmem:[#allocation3 + $0x24] sm:$0x1] %v3476
      %v3478 = vld [vmem:[#allocation3 + $0x30] sm:$0x1]
      %v3479 = vsel %vm3465, 0, %v3478
      %3480 = vst [vmem:[#allocation3 + $0x30] sm:$0x1] %v3479
      %v3481 = vld [vmem:[#allocation3 + $0x3c] sm:$0x1]
      %v3482 = vsel %vm3465, 0, %v3481
      %3483 = vst [vmem:[#allocation3 + $0x3c] sm:$0x1] %v3482
      %v3484 = vld [vmem:[#allocation3 + $0x48] sm:$0x1]
      %v3485 = vsel %vm3465, 0, %v3484
      %3486 = vst [vmem:[#allocation3 + $0x48] sm:$0x1] %v3485
      %v3487 = vld [vmem:[#allocation3 + $0x54] sm:$0x1]
      %v3488 = vsel %vm3465, 0, %v3487
      %3489 = vst [vmem:[#allocation3 + $0x54] sm:$0x1] %v3488
      %v3490 = vld [vmem:[#allocation3 + $0x60] sm:$0x1]
      %v3491 = vsel %vm3465, 0, %v3490
      %3492 = vst [vmem:[#allocation3 + $0x60] sm:$0x1] %v3491
      %v3493 = vld [vmem:[#allocation3 + $0x6c] sm:$0x1]
      %v3494 = vsel %vm3465, 0, %v3493
      %3495 = vst [vmem:[#allocation3 + $0x6c] sm:$0x1] %v3494
      %v3496 = vld [vmem:[#allocation3 + $0x78] sm:$0x1]
      %v3497 = vsel %vm3465, 0, %v3496
      %3498 = vst [vmem:[#allocation3 + $0x78] sm:$0x1] %v3497
      %v3499 = vld [vmem:[#allocation3 + $0x84] sm:$0x1]
      %v3500 = vsel %vm3465, 0, %v3499
      %3501 = vst [vmem:[#allocation3 + $0x84] sm:$0x1] %v3500
      %v3502 = vld [vmem:[#allocation3 + $0x90] sm:$0x1]
      %v3503 = vsel %vm3465, 0, %v3502
      %3504 = vst [vmem:[#allocation3 + $0x90] sm:$0x1] %v3503
      %v3505 = vld [vmem:[#allocation3 + $0x9c] sm:$0x1]
      %v3506 = vsel %vm3465, 0, %v3505
      %3507 = vst [vmem:[#allocation3 + $0x9c] sm:$0x1] %v3506
      %v3508 = vld [vmem:[#allocation3 + $0xa8] sm:$0x1]
      %v3509 = vsel %vm3465, 0, %v3508
      %3510 = vst [vmem:[#allocation3 + $0xa8] sm:$0x1] %v3509
      %v3511 = vld [vmem:[#allocation3 + $0xb4] sm:$0x1]
      %v3512 = vsel %vm3465, 0, %v3511
      %3513 = vst [vmem:[#allocation3 + $0xb4] sm:$0x1] %v3512
      %v3514 = vld [vmem:[#allocation3 + $0xc0] sm:$0x1]
      %v3515 = vsel %vm3465, 0, %v3514
      %3516 = vst [vmem:[#allocation3 + $0xc0] sm:$0x1] %v3515
      %v3517 = vld [vmem:[#allocation3 + $0xcc] sm:$0x1]
      %v3518 = vsel %vm3465, 0, %v3517
      %3519 = vst [vmem:[#allocation3 + $0xcc] sm:$0x1] %v3518
      %vm3520 = vmand %vm3464, %vm346
      %v3521 = vld [vmem:[#allocation3 + $0x8] sm:$0x1]
      %v3522 = vsel %vm3520, 0, %v3521
      %3523 = vst [vmem:[#allocation3 + $0x8] sm:$0x1] %v3522
      %v3524 = vld [vmem:[#allocation3 + $0x14] sm:$0x1]
      %v3525 = vsel %vm3520, 0, %v3524
      %3526 = vst [vmem:[#allocation3 + $0x14] sm:$0x1] %v3525
      %v3527 = vld [vmem:[#allocation3 + $0x20] sm:$0x1]
      %v3528 = vsel %vm3520, 0, %v3527
      %3529 = vst [vmem:[#allocation3 + $0x20] sm:$0x1] %v3528
      %v3530 = vld [vmem:[#allocation3 + $0x2c] sm:$0x1]
      %v3531 = vsel %vm3520, 0, %v3530
      %3532 = vst [vmem:[#allocation3 + $0x2c] sm:$0x1] %v3531
      %v3533 = vld [vmem:[#allocation3 + $0x38] sm:$0x1]
      %v3534 = vsel %vm3520, 0, %v3533
      %3535 = vst [vmem:[#allocation3 + $0x38] sm:$0x1] %v3534
      %v3536 = vld [vmem:[#allocation3 + $0x44] sm:$0x1]
      %v3537 = vsel %vm3520, 0, %v3536
      %3538 = vst [vmem:[#allocation3 + $0x44] sm:$0x1] %v3537
      %v3539 = vld [vmem:[#allocation3 + $0x50] sm:$0x1]
      %v3540 = vsel %vm3520, 0, %v3539
      %3541 = vst [vmem:[#allocation3 + $0x50] sm:$0x1] %v3540
      %v3542 = vld [vmem:[#allocation3 + $0x5c] sm:$0x1]
      %v3543 = vsel %vm3520, 0, %v3542
      %3544 = vst [vmem:[#allocation3 + $0x5c] sm:$0x1] %v3543
      %v3545 = vld [vmem:[#allocation3 + $0x68] sm:$0x1]
      %v3546 = vsel %vm3520, 0, %v3545
      %3547 = vst [vmem:[#allocation3 + $0x68] sm:$0x1] %v3546
      %v3548 = vld [vmem:[#allocation3 + $0x74] sm:$0x1]
      %v3549 = vsel %vm3520, 0, %v3548
      %3550 = vst [vmem:[#allocation3 + $0x74] sm:$0x1] %v3549
      %v3551 = vld [vmem:[#allocation3 + $0x80] sm:$0x1]
      %v3552 = vsel %vm3520, 0, %v3551
      %3553 = vst [vmem:[#allocation3 + $0x80] sm:$0x1] %v3552
      %v3554 = vld [vmem:[#allocation3 + $0x8c] sm:$0x1]
      %v3555 = vsel %vm3520, 0, %v3554
      %3556 = vst [vmem:[#allocation3 + $0x8c] sm:$0x1] %v3555
      %v3557 = vld [vmem:[#allocation3 + $0x98] sm:$0x1]
      %v3558 = vsel %vm3520, 0, %v3557
      %3559 = vst [vmem:[#allocation3 + $0x98] sm:$0x1] %v3558
      %v3560 = vld [vmem:[#allocation3 + $0xa4] sm:$0x1]
      %v3561 = vsel %vm3520, 0, %v3560
      %3562 = vst [vmem:[#allocation3 + $0xa4] sm:$0x1] %v3561
      %v3563 = vld [vmem:[#allocation3 + $0xb0] sm:$0x1]
      %v3564 = vsel %vm3520, 0, %v3563
      %3565 = vst [vmem:[#allocation3 + $0xb0] sm:$0x1] %v3564
      %v3566 = vld [vmem:[#allocation3 + $0xbc] sm:$0x1]
      %v3567 = vsel %vm3520, 0, %v3566
      %3568 = vst [vmem:[#allocation3 + $0xbc] sm:$0x1] %v3567
      %v3569 = vld [vmem:[#allocation3 + $0xc8] sm:$0x1]
      %v3570 = vsel %vm3520, 0, %v3569
      %3571 = vst [vmem:[#allocation3 + $0xc8] sm:$0x1] %v3570
      %v3572 = vld [vmem:[#allocation3 + $0xd4] sm:$0x1]
      %v3573 = vsel %vm3520, 0, %v3572
      %3574 = vst [vmem:[#allocation3 + $0xd4] sm:$0x1] %v3573
      %v3575 = vpack.c.bf16 %v3424, %v3423
      %v3576 = vpack.c.bf16 %v3426, %v3425
      %v3577 = vpack.c.bf16 %v3428, %v3427
      %v3578 = vpack.c.bf16 %v3430, %v3429
      %v3579 = vpack.c.bf16 %v3432, %v3431
      %v3580 = vpack.c.bf16 %v3434, %v3433
      %v3581 = vpack.c.bf16 %v3436, %v3435
      %v3582 = vpack.c.bf16 %v3438, %v3437
      %v3583 = vpack.c.bf16 %v3440, %v3439
      %v3584 = vpack.c.bf16 %v3442, %v3441
      %v3585 = vpack.c.bf16 %v3444, %v3443
      %v3586 = vpack.c.bf16 %v3446, %v3445
      %v3587 = vpack.c.bf16 %v3448, %v3447
      %v3588 = vpack.c.bf16 %v3450, %v3449
      %v3589 = vpack.c.bf16 %v3452, %v3451
      %v3590 = vpack.c.bf16 %v3454, %v3453
      %v3607 = vunpack.c.l.b16 %v3575
      %v3608 = vunpack.c.h.b16 %v3575
      %v3609 = vunpack.c.l.b16 %v3576
      %v3610 = vunpack.c.h.b16 %v3576
      %v3611 = vunpack.c.l.b16 %v3577
      %v3612 = vunpack.c.h.b16 %v3577
      %v3613 = vunpack.c.l.b16 %v3578
      %v3614 = vunpack.c.h.b16 %v3578
      %v3615 = vunpack.c.l.b16 %v3579
      %v3616 = vunpack.c.h.b16 %v3579
      %v3617 = vunpack.c.l.b16 %v3580
      %v3618 = vunpack.c.h.b16 %v3580
      %v3619 = vunpack.c.l.b16 %v3581
      %v3620 = vunpack.c.h.b16 %v3581
      %v3621 = vunpack.c.l.b16 %v3582
      %v3622 = vunpack.c.h.b16 %v3582
      %v3623 = vunpack.c.l.b16 %v3583
      %v3624 = vunpack.c.h.b16 %v3583
      %v3625 = vunpack.c.l.b16 %v3584
      %v3626 = vunpack.c.h.b16 %v3584
      %v3627 = vunpack.c.l.b16 %v3585
      %v3628 = vunpack.c.h.b16 %v3585
      %v3629 = vunpack.c.l.b16 %v3586
      %v3630 = vunpack.c.h.b16 %v3586
      %v3631 = vunpack.c.l.b16 %v3587
      %v3632 = vunpack.c.h.b16 %v3587
      %v3633 = vunpack.c.l.b16 %v3588
      %v3634 = vunpack.c.h.b16 %v3588
      %v3635 = vunpack.c.l.b16 %v3589
      %v3636 = vunpack.c.h.b16 %v3589
      %v3637 = vunpack.c.l.b16 %v3590
      %v3638 = vunpack.c.h.b16 %v3590
      %v3639 = vpack.c.b16 %v3607, %v3607
      %v3640 = vpack.c.b16 %v3608, %v3608
      %v3641 = vpack.c.b16 %v3609, %v3609
      %v3642 = vpack.c.b16 %v3610, %v3610
      %v3643 = vpack.c.b16 %v3611, %v3611
      %v3644 = vpack.c.b16 %v3612, %v3612
      %v3645 = vpack.c.b16 %v3613, %v3613
      %v3646 = vpack.c.b16 %v3614, %v3614
      %v3647 = vpack.c.b16 %v3615, %v3615
      %v3648 = vpack.c.b16 %v3616, %v3616
      %v3649 = vpack.c.b16 %v3617, %v3617
      %v3650 = vpack.c.b16 %v3618, %v3618
      %v3651 = vpack.c.b16 %v3619, %v3619
      %v3652 = vpack.c.b16 %v3620, %v3620
      %v3653 = vpack.c.b16 %v3621, %v3621
      %v3654 = vpack.c.b16 %v3622, %v3622
      %v3655 = vpack.c.b16 %v3623, %v3623
      %v3656 = vpack.c.b16 %v3624, %v3624
      %v3657 = vpack.c.b16 %v3625, %v3625
      %v3658 = vpack.c.b16 %v3626, %v3626
      %v3659 = vpack.c.b16 %v3627, %v3627
      %v3660 = vpack.c.b16 %v3628, %v3628
      %v3661 = vpack.c.b16 %v3629, %v3629
      %v3662 = vpack.c.b16 %v3630, %v3630
      %v3663 = vpack.c.b16 %v3631, %v3631
      %v3664 = vpack.c.b16 %v3632, %v3632
      %v3665 = vpack.c.b16 %v3633, %v3633
      %v3666 = vpack.c.b16 %v3634, %v3634
      %v3667 = vpack.c.b16 %v3635, %v3635
      %v3668 = vpack.c.b16 %v3636, %v3636
      %v3669 = vpack.c.b16 %v3637, %v3637
      %v3670 = vpack.c.b16 %v3638, %v3638
      %v3672 = vshrl.u32 %v3639, 16
      %v3674 = vrot.slane %v3672, 7
      %v3675 = vshll.u32 %v3639, 16
      %v3677 = vor.u32 %v3674, %v3675
      %v3678 = vrot.slane %v3674, 4
      %v3680 = vshrl.u32 %v3640, 16
      %v3682 = vrot.slane %v3680, 7
      %v3683 = vshll.u32 %v3640, 16
      %v3685 = vor.u32 %v3682, %v3683
      %v3686 = vsel %vm435, %v3678, %v3685
      %v3687 = vrot.slane %v3682, 4
      %v3689 = vshrl.u32 %v3641, 16
      %v3691 = vrot.slane %v3689, 7
      %v3692 = vshll.u32 %v3641, 16
      %v3694 = vor.u32 %v3691, %v3692
      %v3695 = vrot.slane %v3691, 4
      %v3697 = vshrl.u32 %v3642, 16
      %v3699 = vrot.slane %v3697, 7
      %v3700 = vshll.u32 %v3642, 16
      %v3702 = vor.u32 %v3699, %v3700
      %v3703 = vsel %vm435, %v3695, %v3702
      %v3704 = vrot.slane %v3699, 4
      %v3706 = vshrl.u32 %v3643, 16
      %v3708 = vrot.slane %v3706, 7
      %v3709 = vshll.u32 %v3643, 16
      %v3711 = vor.u32 %v3708, %v3709
      %v3712 = vrot.slane %v3708, 4
      %v3714 = vshrl.u32 %v3644, 16
      %v3716 = vrot.slane %v3714, 7
      %v3717 = vshll.u32 %v3644, 16
      %v3719 = vor.u32 %v3716, %v3717
      %v3720 = vsel %vm435, %v3712, %v3719
      %v3721 = vrot.slane %v3716, 4
      %v3723 = vshrl.u32 %v3645, 16
      %v3725 = vrot.slane %v3723, 7
      %v3726 = vshll.u32 %v3645, 16
      %v3728 = vor.u32 %v3725, %v3726
      %v3729 = vrot.slane %v3725, 4
      %v3731 = vshrl.u32 %v3646, 16
      %v3733 = vrot.slane %v3731, 7
      %v3734 = vshll.u32 %v3646, 16
      %v3736 = vor.u32 %v3733, %v3734
      %v3737 = vsel %vm435, %v3729, %v3736
      %v3738 = vrot.slane %v3733, 4
      %v3740 = vshrl.u32 %v3647, 16
      %v3742 = vrot.slane %v3740, 7
      %v3743 = vshll.u32 %v3647, 16
      %v3745 = vor.u32 %v3742, %v3743
      %v3746 = vrot.slane %v3742, 4
      %v3748 = vshrl.u32 %v3648, 16
      %v3750 = vrot.slane %v3748, 7
      %v3751 = vshll.u32 %v3648, 16
      %v3753 = vor.u32 %v3750, %v3751
      %v3754 = vsel %vm435, %v3746, %v3753
      %v3755 = vrot.slane %v3750, 4
      %v3757 = vshrl.u32 %v3649, 16
      %v3759 = vrot.slane %v3757, 7
      %v3760 = vshll.u32 %v3649, 16
      %v3762 = vor.u32 %v3759, %v3760
      %v3763 = vrot.slane %v3759, 4
      %v3765 = vshrl.u32 %v3650, 16
      %v3767 = vrot.slane %v3765, 7
      %v3768 = vshll.u32 %v3650, 16
      %v3770 = vor.u32 %v3767, %v3768
      %v3771 = vsel %vm435, %v3763, %v3770
      %v3772 = vrot.slane %v3767, 4
      %v3774 = vshrl.u32 %v3651, 16
      %v3776 = vrot.slane %v3774, 7
      %v3777 = vshll.u32 %v3651, 16
      %v3779 = vor.u32 %v3776, %v3777
      %v3780 = vrot.slane %v3776, 4
      %v3782 = vshrl.u32 %v3652, 16
      %v3784 = vrot.slane %v3782, 7
      %v3785 = vshll.u32 %v3652, 16
      %v3787 = vor.u32 %v3784, %v3785
      %v3788 = vsel %vm435, %v3780, %v3787
      %v3789 = vrot.slane %v3784, 4
      %v3791 = vshrl.u32 %v3653, 16
      %v3793 = vrot.slane %v3791, 7
      %v3794 = vshll.u32 %v3653, 16
      %v3796 = vor.u32 %v3793, %v3794
      %v3797 = vrot.slane %v3793, 4
      %v3799 = vshrl.u32 %v3654, 16
      %v3801 = vrot.slane %v3799, 7
      %v3802 = vshll.u32 %v3654, 16
      %v3804 = vor.u32 %v3801, %v3802
      %v3805 = vsel %vm435, %v3797, %v3804
      %v3806 = vrot.slane %v3801, 4
      %v3808 = vshrl.u32 %v3655, 16
      %v3810 = vrot.slane %v3808, 7
      %v3811 = vshll.u32 %v3655, 16
      %v3813 = vor.u32 %v3810, %v3811
      %v3814 = vrot.slane %v3810, 4
      %v3816 = vshrl.u32 %v3656, 16
      %v3818 = vrot.slane %v3816, 7
      %v3819 = vshll.u32 %v3656, 16
      %v3821 = vor.u32 %v3818, %v3819
      %v3822 = vsel %vm435, %v3814, %v3821
      %v3823 = vrot.slane %v3818, 4
      %v3825 = vshrl.u32 %v3657, 16
      %v3827 = vrot.slane %v3825, 7
      %v3828 = vshll.u32 %v3657, 16
      %v3830 = vor.u32 %v3827, %v3828
      %v3831 = vrot.slane %v3827, 4
      %v3833 = vshrl.u32 %v3658, 16
      %v3835 = vrot.slane %v3833, 7
      %v3836 = vshll.u32 %v3658, 16
      %v3838 = vor.u32 %v3835, %v3836
      %v3839 = vsel %vm435, %v3831, %v3838
      %v3840 = vrot.slane %v3835, 4
      %v3842 = vshrl.u32 %v3659, 16
      %v3844 = vrot.slane %v3842, 7
      %v3845 = vshll.u32 %v3659, 16
      %v3847 = vor.u32 %v3844, %v3845
      %v3848 = vrot.slane %v3844, 4
      %v3850 = vshrl.u32 %v3660, 16
      %v3852 = vrot.slane %v3850, 7
      %v3853 = vshll.u32 %v3660, 16
      %v3855 = vor.u32 %v3852, %v3853
      %v3856 = vsel %vm435, %v3848, %v3855
      %v3857 = vrot.slane %v3852, 4
      %v3859 = vshrl.u32 %v3661, 16
      %v3861 = vrot.slane %v3859, 7
      %v3862 = vshll.u32 %v3661, 16
      %v3864 = vor.u32 %v3861, %v3862
      %v3865 = vrot.slane %v3861, 4
      %v3867 = vshrl.u32 %v3662, 16
      %v3869 = vrot.slane %v3867, 7
      %v3870 = vshll.u32 %v3662, 16
      %v3872 = vor.u32 %v3869, %v3870
      %v3873 = vsel %vm435, %v3865, %v3872
      %v3874 = vrot.slane %v3869, 4
      %v3876 = vshrl.u32 %v3663, 16
      %v3878 = vrot.slane %v3876, 7
      %v3879 = vshll.u32 %v3663, 16
      %v3881 = vor.u32 %v3878, %v3879
      %v3882 = vrot.slane %v3878, 4
      %v3884 = vshrl.u32 %v3664, 16
      %v3886 = vrot.slane %v3884, 7
      %v3887 = vshll.u32 %v3664, 16
      %v3889 = vor.u32 %v3886, %v3887
      %v3890 = vsel %vm435, %v3882, %v3889
      %v3891 = vrot.slane %v3886, 4
      %v3893 = vshrl.u32 %v3665, 16
      %v3895 = vrot.slane %v3893, 7
      %v3896 = vshll.u32 %v3665, 16
      %v3898 = vor.u32 %v3895, %v3896
      %v3899 = vrot.slane %v3895, 4
      %v3901 = vshrl.u32 %v3666, 16
      %v3903 = vrot.slane %v3901, 7
      %v3904 = vshll.u32 %v3666, 16
      %v3906 = vor.u32 %v3903, %v3904
      %v3907 = vsel %vm435, %v3899, %v3906
      %v3908 = vrot.slane %v3903, 4
      %v3910 = vshrl.u32 %v3667, 16
      %v3912 = vrot.slane %v3910, 7
      %v3913 = vshll.u32 %v3667, 16
      %v3915 = vor.u32 %v3912, %v3913
      %v3916 = vrot.slane %v3912, 4
      %v3918 = vshrl.u32 %v3668, 16
      %v3920 = vrot.slane %v3918, 7
      %v3921 = vshll.u32 %v3668, 16
      %v3923 = vor.u32 %v3920, %v3921
      %v3924 = vsel %vm435, %v3916, %v3923
      %v3925 = vrot.slane %v3920, 4
      %v3927 = vshrl.u32 %v3669, 16
      %v3929 = vrot.slane %v3927, 7
      %v3930 = vshll.u32 %v3669, 16
      %v3932 = vor.u32 %v3929, %v3930
      %v3933 = vrot.slane %v3929, 4
      %v3935 = vshrl.u32 %v3670, 16
      %v3937 = vrot.slane %v3935, 7
      %v3938 = vshll.u32 %v3670, 16
      %v3940 = vor.u32 %v3937, %v3938
      %v3941 = vsel %vm435, %v3933, %v3940
      %v3942 = vrot.slane %v3937, 4
      %s3991 = scalar_lea.vmem [#allocation3], 12
      %vm3992 = vcmask 257024
      %vm3993 = vmand %vm3992, %vm346
      %v3994 = vld [vmem:[%s3991] sm:$0xf]
      %v3995 = vsel %vm3993, %v3677, %v3994
      %3996 = vst [vmem:[%s3991] sm:$0xf] %v3995
      %3997 = vst.msk [vmem:[%s3991 + $0x4] sm:$0xf] %vm3455, %v3686
      %v3998 = vld [vmem:[%s3991 + $0x8] sm:$0x1]
      %v3999 = vsel %vm3465, %v3687, %v3998
      %4000 = vst [vmem:[%s3991 + $0x8] sm:$0x1] %v3999
      %v4001 = vld [vmem:[%s3991 + $0xc] sm:$0xf]
      %v4002 = vsel %vm3993, %v3694, %v4001
      %4003 = vst [vmem:[%s3991 + $0xc] sm:$0xf] %v4002
      %4004 = vst.msk [vmem:[%s3991 + $0x10] sm:$0xf] %vm3455, %v3703
      %v4005 = vld [vmem:[%s3991 + $0x14] sm:$0x1]
      %v4006 = vsel %vm3465, %v3704, %v4005
      %4007 = vst [vmem:[%s3991 + $0x14] sm:$0x1] %v4006
      %v4008 = vld [vmem:[%s3991 + $0x18] sm:$0xf]
      %v4009 = vsel %vm3993, %v3711, %v4008
      %4010 = vst [vmem:[%s3991 + $0x18] sm:$0xf] %v4009
      %4011 = vst.msk [vmem:[%s3991 + $0x1c] sm:$0xf] %vm3455, %v3720
      %v4012 = vld [vmem:[%s3991 + $0x20] sm:$0x1]
      %v4013 = vsel %vm3465, %v3721, %v4012
      %4014 = vst [vmem:[%s3991 + $0x20] sm:$0x1] %v4013
      %v4015 = vld [vmem:[%s3991 + $0x24] sm:$0xf]
      %v4016 = vsel %vm3993, %v3728, %v4015
      %4017 = vst [vmem:[%s3991 + $0x24] sm:$0xf] %v4016
      %4018 = vst.msk [vmem:[%s3991 + $0x28] sm:$0xf] %vm3455, %v3737
      %v4019 = vld [vmem:[%s3991 + $0x2c] sm:$0x1]
      %v4020 = vsel %vm3465, %v3738, %v4019
      %4021 = vst [vmem:[%s3991 + $0x2c] sm:$0x1] %v4020
      %v4022 = vld [vmem:[%s3991 + $0x30] sm:$0xf]
      %v4023 = vsel %vm3993, %v3745, %v4022
      %4024 = vst [vmem:[%s3991 + $0x30] sm:$0xf] %v4023
      %4025 = vst.msk [vmem:[%s3991 + $0x34] sm:$0xf] %vm3455, %v3754
      %v4026 = vld [vmem:[%s3991 + $0x38] sm:$0x1]
      %v4027 = vsel %vm3465, %v3755, %v4026
      %4028 = vst [vmem:[%s3991 + $0x38] sm:$0x1] %v4027
      %v4029 = vld [vmem:[%s3991 + $0x3c] sm:$0xf]
      %v4030 = vsel %vm3993, %v3762, %v4029
      %4031 = vst [vmem:[%s3991 + $0x3c] sm:$0xf] %v4030
      %4032 = vst.msk [vmem:[%s3991 + $0x40] sm:$0xf] %vm3455, %v3771
      %v4033 = vld [vmem:[%s3991 + $0x44] sm:$0x1]
      %v4034 = vsel %vm3465, %v3772, %v4033
      %4035 = vst [vmem:[%s3991 + $0x44] sm:$0x1] %v4034
      %v4036 = vld [vmem:[%s3991 + $0x48] sm:$0xf]
      %v4037 = vsel %vm3993, %v3779, %v4036
      %4038 = vst [vmem:[%s3991 + $0x48] sm:$0xf] %v4037
      %4039 = vst.msk [vmem:[%s3991 + $0x4c] sm:$0xf] %vm3455, %v3788
      %v4040 = vld [vmem:[%s3991 + $0x50] sm:$0x1]
      %v4041 = vsel %vm3465, %v3789, %v4040
      %4042 = vst [vmem:[%s3991 + $0x50] sm:$0x1] %v4041
      %v4043 = vld [vmem:[%s3991 + $0x54] sm:$0xf]
      %v4044 = vsel %vm3993, %v3796, %v4043
      %4045 = vst [vmem:[%s3991 + $0x54] sm:$0xf] %v4044
      %4046 = vst.msk [vmem:[%s3991 + $0x58] sm:$0xf] %vm3455, %v3805
      %v4047 = vld [vmem:[%s3991 + $0x5c] sm:$0x1]
      %v4048 = vsel %vm3465, %v3806, %v4047
      %4049 = vst [vmem:[%s3991 + $0x5c] sm:$0x1] %v4048
      %v4050 = vld [vmem:[%s3991 + $0x60] sm:$0xf]
      %v4051 = vsel %vm3993, %v3813, %v4050
      %4052 = vst [vmem:[%s3991 + $0x60] sm:$0xf] %v4051
      %4053 = vst.msk [vmem:[%s3991 + $0x64] sm:$0xf] %vm3455, %v3822
      %v4054 = vld [vmem:[%s3991 + $0x68] sm:$0x1]
      %v4055 = vsel %vm3465, %v3823, %v4054
      %4056 = vst [vmem:[%s3991 + $0x68] sm:$0x1] %v4055
      %v4057 = vld [vmem:[%s3991 + $0x6c] sm:$0xf]
      %v4058 = vsel %vm3993, %v3830, %v4057
      %4059 = vst [vmem:[%s3991 + $0x6c] sm:$0xf] %v4058
      %4060 = vst.msk [vmem:[%s3991 + $0x70] sm:$0xf] %vm3455, %v3839
      %v4061 = vld [vmem:[%s3991 + $0x74] sm:$0x1]
      %v4062 = vsel %vm3465, %v3840, %v4061
      %4063 = vst [vmem:[%s3991 + $0x74] sm:$0x1] %v4062
      %v4064 = vld [vmem:[%s3991 + $0x78] sm:$0xf]
      %v4065 = vsel %vm3993, %v3847, %v4064
      %4066 = vst [vmem:[%s3991 + $0x78] sm:$0xf] %v4065
      %4067 = vst.msk [vmem:[%s3991 + $0x7c] sm:$0xf] %vm3455, %v3856
      %v4068 = vld [vmem:[%s3991 + $0x80] sm:$0x1]
      %v4069 = vsel %vm3465, %v3857, %v4068
      %4070 = vst [vmem:[%s3991 + $0x80] sm:$0x1] %v4069
      %v4071 = vld [vmem:[%s3991 + $0x84] sm:$0xf]
      %v4072 = vsel %vm3993, %v3864, %v4071
      %4073 = vst [vmem:[%s3991 + $0x84] sm:$0xf] %v4072
      %4074 = vst.msk [vmem:[%s3991 + $0x88] sm:$0xf] %vm3455, %v3873
      %v4075 = vld [vmem:[%s3991 + $0x8c] sm:$0x1]
      %v4076 = vsel %vm3465, %v3874, %v4075
      %4077 = vst [vmem:[%s3991 + $0x8c] sm:$0x1] %v4076
      %v4078 = vld [vmem:[%s3991 + $0x90] sm:$0xf]
      %v4079 = vsel %vm3993, %v3881, %v4078
      %4080 = vst [vmem:[%s3991 + $0x90] sm:$0xf] %v4079
      %4081 = vst.msk [vmem:[%s3991 + $0x94] sm:$0xf] %vm3455, %v3890
      %v4082 = vld [vmem:[%s3991 + $0x98] sm:$0x1]
      %v4083 = vsel %vm3465, %v3891, %v4082
      %4084 = vst [vmem:[%s3991 + $0x98] sm:$0x1] %v4083
      %v4085 = vld [vmem:[%s3991 + $0x9c] sm:$0xf]
      %v4086 = vsel %vm3993, %v3898, %v4085
      %4087 = vst [vmem:[%s3991 + $0x9c] sm:$0xf] %v4086
      %4088 = vst.msk [vmem:[%s3991 + $0xa0] sm:$0xf] %vm3455, %v3907
      %v4089 = vld [vmem:[%s3991 + $0xa4] sm:$0x1]
      %v4090 = vsel %vm3465, %v3908, %v4089
      %4091 = vst [vmem:[%s3991 + $0xa4] sm:$0x1] %v4090
      %v4092 = vld [vmem:[%s3991 + $0xa8] sm:$0xf]
      %v4093 = vsel %vm3993, %v3915, %v4092
      %4094 = vst [vmem:[%s3991 + $0xa8] sm:$0xf] %v4093
      %4095 = vst.msk [vmem:[%s3991 + $0xac] sm:$0xf] %vm3455, %v3924
      %v4096 = vld [vmem:[%s3991 + $0xb0] sm:$0x1]
      %v4097 = vsel %vm3465, %v3925, %v4096
      %4098 = vst [vmem:[%s3991 + $0xb0] sm:$0x1] %v4097
      %v4099 = vld [vmem:[%s3991 + $0xb4] sm:$0xf]
      %v4100 = vsel %vm3993, %v3932, %v4099
      %4101 = vst [vmem:[%s3991 + $0xb4] sm:$0xf] %v4100
      %4102 = vst.msk [vmem:[%s3991 + $0xb8] sm:$0xf] %vm3455, %v3941
      %v4103 = vld [vmem:[%s3991 + $0xbc] sm:$0x1]
      %v4104 = vsel %vm3465, %v3942, %v4103
      %4105 = vst [vmem:[%s3991 + $0xbc] sm:$0x1] %v4104
      %v4106 = vld [vmem:[#allocation3] sm:$0xf]
      %v4107 = vld [vmem:[#allocation3 + $0x4] sm:$0xf]
      %v4108 = vld [vmem:[#allocation3 + $0xc] sm:$0xf]
      %v4109 = vld [vmem:[#allocation3 + $0x10] sm:$0xf]
      %v4110 = vld [vmem:[#allocation3 + $0x18] sm:$0xf]
      %v4111 = vld [vmem:[#allocation3 + $0x1c] sm:$0xf]
      %v4112 = vld [vmem:[#allocation3 + $0x24] sm:$0xf]
      %v4113 = vld [vmem:[#allocation3 + $0x28] sm:$0xf]
      %v4114 = vld [vmem:[#allocation3 + $0x30] sm:$0xf]
      %v4115 = vld [vmem:[#allocation3 + $0x34] sm:$0xf]
      %v4116 = vld [vmem:[#allocation3 + $0x3c] sm:$0xf]
      %v4117 = vld [vmem:[#allocation3 + $0x40] sm:$0xf]
      %v4118 = vld [vmem:[#allocation3 + $0x48] sm:$0xf]
      %v4119 = vld [vmem:[#allocation3 + $0x4c] sm:$0xf]
      %v4120 = vld [vmem:[#allocation3 + $0x54] sm:$0xf]
      %v4121 = vld [vmem:[#allocation3 + $0x58] sm:$0xf]
      %v4122 = vld [vmem:[#allocation3 + $0x60] sm:$0xf]
      %v4123 = vld [vmem:[#allocation3 + $0x64] sm:$0xf]
      %v4124 = vld [vmem:[#allocation3 + $0x6c] sm:$0xf]
      %v4125 = vld [vmem:[#allocation3 + $0x70] sm:$0xf]
      %v4126 = vld [vmem:[#allocation3 + $0x78] sm:$0xf]
      %v4127 = vld [vmem:[#allocation3 + $0x7c] sm:$0xf]
      %v4128 = vld [vmem:[#allocation3 + $0x84] sm:$0xf]
      %v4129 = vld [vmem:[#allocation3 + $0x88] sm:$0xf]
      %v4130 = vld [vmem:[#allocation3 + $0x90] sm:$0xf]
      %v4131 = vld [vmem:[#allocation3 + $0x94] sm:$0xf]
      %v4132 = vld [vmem:[#allocation3 + $0x9c] sm:$0xf]
      %v4133 = vld [vmem:[#allocation3 + $0xa0] sm:$0xf]
      %v4134 = vld [vmem:[#allocation3 + $0xa8] sm:$0xf]
      %v4135 = vld [vmem:[#allocation3 + $0xac] sm:$0xf]
      %v4136 = vld [vmem:[#allocation3 + $0xb4] sm:$0xf]
      %v4137 = vld [vmem:[#allocation3 + $0xb8] sm:$0xf]
      %v4138 = vld [vmem:[#allocation3 + $0x8] sm:$0x1]
      %v4139 = vld [vmem:[#allocation3 + $0x14] sm:$0x1]
      %v4140 = vld [vmem:[#allocation3 + $0x20] sm:$0x1]
      %v4141 = vld [vmem:[#allocation3 + $0x2c] sm:$0x1]
      %v4142 = vld [vmem:[#allocation3 + $0x38] sm:$0x1]
      %v4143 = vld [vmem:[#allocation3 + $0x44] sm:$0x1]
      %v4144 = vld [vmem:[#allocation3 + $0x50] sm:$0x1]
      %v4145 = vld [vmem:[#allocation3 + $0x5c] sm:$0x1]
      %v4146 = vld [vmem:[#allocation3 + $0x68] sm:$0x1]
      %v4147 = vld [vmem:[#allocation3 + $0x74] sm:$0x1]
      %v4148 = vld [vmem:[#allocation3 + $0x80] sm:$0x1]
      %v4149 = vld [vmem:[#allocation3 + $0x8c] sm:$0x1]
      %v4150 = vld [vmem:[#allocation3 + $0x98] sm:$0x1]
      %v4151 = vld [vmem:[#allocation3 + $0xa4] sm:$0x1]
      %v4152 = vld [vmem:[#allocation3 + $0xb0] sm:$0x1]
      %v4153 = vld [vmem:[#allocation3 + $0xbc] sm:$0x1]
      %v4154 = vld [vmem:[#allocation3] sm:$0xe]
      %v4155 = vld [vmem:[#allocation3 + $0xc] sm:$0xe]
      %v4156 = vld [vmem:[#allocation3 + $0x18] sm:$0xe]
      %v4157 = vld [vmem:[#allocation3 + $0x24] sm:$0xe]
      %v4158 = vld [vmem:[#allocation3 + $0x30] sm:$0xe]
      %v4159 = vld [vmem:[#allocation3 + $0x3c] sm:$0xe]
      %v4160 = vld [vmem:[#allocation3 + $0x48] sm:$0xe]
      %v4161 = vld [vmem:[#allocation3 + $0x54] sm:$0xe]
      %v4162 = vld [vmem:[#allocation3 + $0x60] sm:$0xe]
      %v4163 = vld [vmem:[#allocation3 + $0x6c] sm:$0xe]
      %v4164 = vld [vmem:[#allocation3 + $0x78] sm:$0xe]
      %v4165 = vld [vmem:[#allocation3 + $0x84] sm:$0xe]
      %v4166 = vld [vmem:[#allocation3 + $0x90] sm:$0xe]
      %v4167 = vld [vmem:[#allocation3 + $0x9c] sm:$0xe]
      %v4168 = vld [vmem:[#allocation3 + $0xa8] sm:$0xe]
      %v4169 = vld [vmem:[#allocation3 + $0xb4] sm:$0xe]
      %v4202 = vunpack.c.l.b16 %v4106
      %v4203 = vunpack.c.l.b16 %v4107
      %v4204 = vunpack.c.l.b16 %v4108
      %v4205 = vunpack.c.l.b16 %v4109
      %v4206 = vunpack.c.l.b16 %v4110
      %v4207 = vunpack.c.l.b16 %v4111
      %v4208 = vunpack.c.l.b16 %v4112
      %v4209 = vunpack.c.l.b16 %v4113
      %v4210 = vunpack.c.l.b16 %v4114
      %v4211 = vunpack.c.l.b16 %v4115
      %v4212 = vunpack.c.l.b16 %v4116
      %v4213 = vunpack.c.l.b16 %v4117
      %v4214 = vunpack.c.l.b16 %v4118
      %v4215 = vunpack.c.l.b16 %v4119
      %v4216 = vunpack.c.l.b16 %v4120
      %v4217 = vunpack.c.l.b16 %v4121
      %v4218 = vunpack.c.l.b16 %v4122
      %v4219 = vunpack.c.l.b16 %v4123
      %v4220 = vunpack.c.l.b16 %v4124
      %v4221 = vunpack.c.l.b16 %v4125
      %v4222 = vunpack.c.l.b16 %v4126
      %v4223 = vunpack.c.l.b16 %v4127
      %v4224 = vunpack.c.l.b16 %v4128
      %v4225 = vunpack.c.l.b16 %v4129
      %v4226 = vunpack.c.l.b16 %v4130
      %v4227 = vunpack.c.l.b16 %v4131
      %v4228 = vunpack.c.l.b16 %v4132
      %v4229 = vunpack.c.l.b16 %v4133
      %v4230 = vunpack.c.l.b16 %v4134
      %v4231 = vunpack.c.l.b16 %v4135
      %v4232 = vunpack.c.l.b16 %v4136
      %v4233 = vunpack.c.l.b16 %v4137
      %v4234 = vpack.c.b16 %v4203, %v4202
      %v4235 = vpack.c.b16 %v4205, %v4204
      %v4236 = vpack.c.b16 %v4207, %v4206
      %v4237 = vpack.c.b16 %v4209, %v4208
      %v4238 = vpack.c.b16 %v4211, %v4210
      %v4239 = vpack.c.b16 %v4213, %v4212
      %v4240 = vpack.c.b16 %v4215, %v4214
      %v4241 = vpack.c.b16 %v4217, %v4216
      %v4242 = vpack.c.b16 %v4219, %v4218
      %v4243 = vpack.c.b16 %v4221, %v4220
      %v4244 = vpack.c.b16 %v4223, %v4222
      %v4245 = vpack.c.b16 %v4225, %v4224
      %v4246 = vpack.c.b16 %v4227, %v4226
      %v4247 = vpack.c.b16 %v4229, %v4228
      %v4248 = vpack.c.b16 %v4231, %v4230
      %v4249 = vpack.c.b16 %v4233, %v4232
      %v4266 = vunpack.c.l.b16 %v4138
      %v4267 = vunpack.c.l.b16 %v4139
      %v4268 = vunpack.c.l.b16 %v4140
      %v4269 = vunpack.c.l.b16 %v4141
      %v4270 = vunpack.c.l.b16 %v4142
      %v4271 = vunpack.c.l.b16 %v4143
      %v4272 = vunpack.c.l.b16 %v4144
      %v4273 = vunpack.c.l.b16 %v4145
      %v4274 = vunpack.c.l.b16 %v4146
      %v4275 = vunpack.c.l.b16 %v4147
      %v4276 = vunpack.c.l.b16 %v4148
      %v4277 = vunpack.c.l.b16 %v4149
      %v4278 = vunpack.c.l.b16 %v4150
      %v4279 = vunpack.c.l.b16 %v4151
      %v4280 = vunpack.c.l.b16 %v4152
      %v4281 = vunpack.c.l.b16 %v4153
      %v4282 = vpack.c.b16 %v4266, %v4266
      %v4283 = vpack.c.b16 %v4267, %v4267
      %v4284 = vpack.c.b16 %v4268, %v4268
      %v4285 = vpack.c.b16 %v4269, %v4269
      %v4286 = vpack.c.b16 %v4270, %v4270
      %v4287 = vpack.c.b16 %v4271, %v4271
      %v4288 = vpack.c.b16 %v4272, %v4272
      %v4289 = vpack.c.b16 %v4273, %v4273
      %v4290 = vpack.c.b16 %v4274, %v4274
      %v4291 = vpack.c.b16 %v4275, %v4275
      %v4292 = vpack.c.b16 %v4276, %v4276
      %v4293 = vpack.c.b16 %v4277, %v4277
      %v4294 = vpack.c.b16 %v4278, %v4278
      %v4295 = vpack.c.b16 %v4279, %v4279
      %v4296 = vpack.c.b16 %v4280, %v4280
      %v4297 = vpack.c.b16 %v4281, %v4281
      %v4299 = vshrl.u32 %v4234, 16
      %v4301 = vshll.u32 %v4234, 16
      %v4303 = vrot.slane %v4301, 1
      %v4304 = vor.u32 %v4299, %v4303
      %v4306 = vshll.u32 %v4282, 16
      %v4308 = vrot.slane %v4306, 1
      %v4309 = vsel %vm1063, %v4304, %v4308
      %v4311 = vshrl.u32 %v4235, 16
      %v4313 = vshll.u32 %v4235, 16
      %v4315 = vrot.slane %v4313, 1
      %v4316 = vor.u32 %v4311, %v4315
      %v4318 = vshll.u32 %v4283, 16
      %v4320 = vrot.slane %v4318, 1
      %v4321 = vsel %vm1063, %v4316, %v4320
      %v4323 = vshrl.u32 %v4236, 16
      %v4325 = vshll.u32 %v4236, 16
      %v4327 = vrot.slane %v4325, 1
      %v4328 = vor.u32 %v4323, %v4327
      %v4330 = vshll.u32 %v4284, 16
      %v4332 = vrot.slane %v4330, 1
      %v4333 = vsel %vm1063, %v4328, %v4332
      %v4335 = vshrl.u32 %v4237, 16
      %v4337 = vshll.u32 %v4237, 16
      %v4339 = vrot.slane %v4337, 1
      %v4340 = vor.u32 %v4335, %v4339
      %v4342 = vshll.u32 %v4285, 16
      %v4344 = vrot.slane %v4342, 1
      %v4345 = vsel %vm1063, %v4340, %v4344
      %v4347 = vshrl.u32 %v4238, 16
      %v4349 = vshll.u32 %v4238, 16
      %v4351 = vrot.slane %v4349, 1
      %v4352 = vor.u32 %v4347, %v4351
      %v4354 = vshll.u32 %v4286, 16
      %v4356 = vrot.slane %v4354, 1
      %v4357 = vsel %vm1063, %v4352, %v4356
      %v4359 = vshrl.u32 %v4239, 16
      %v4361 = vshll.u32 %v4239, 16
      %v4363 = vrot.slane %v4361, 1
      %v4364 = vor.u32 %v4359, %v4363
      %v4366 = vshll.u32 %v4287, 16
      %v4368 = vrot.slane %v4366, 1
      %v4369 = vsel %vm1063, %v4364, %v4368
      %v4371 = vshrl.u32 %v4240, 16
      %v4373 = vshll.u32 %v4240, 16
      %v4375 = vrot.slane %v4373, 1
      %v4376 = vor.u32 %v4371, %v4375
      %v4378 = vshll.u32 %v4288, 16
      %v4380 = vrot.slane %v4378, 1
      %v4381 = vsel %vm1063, %v4376, %v4380
      %v4383 = vshrl.u32 %v4241, 16
      %v4385 = vshll.u32 %v4241, 16
      %v4387 = vrot.slane %v4385, 1
      %v4388 = vor.u32 %v4383, %v4387
      %v4390 = vshll.u32 %v4289, 16
      %v4392 = vrot.slane %v4390, 1
      %v4393 = vsel %vm1063, %v4388, %v4392
      %v4395 = vshrl.u32 %v4242, 16
      %v4397 = vshll.u32 %v4242, 16
      %v4399 = vrot.slane %v4397, 1
      %v4400 = vor.u32 %v4395, %v4399
      %v4402 = vshll.u32 %v4290, 16
      %v4404 = vrot.slane %v4402, 1
      %v4405 = vsel %vm1063, %v4400, %v4404
      %v4407 = vshrl.u32 %v4243, 16
      %v4409 = vshll.u32 %v4243, 16
      %v4411 = vrot.slane %v4409, 1
      %v4412 = vor.u32 %v4407, %v4411
      %v4414 = vshll.u32 %v4291, 16
      %v4416 = vrot.slane %v4414, 1
      %v4417 = vsel %vm1063, %v4412, %v4416
      %v4419 = vshrl.u32 %v4244, 16
      %v4421 = vshll.u32 %v4244, 16
      %v4423 = vrot.slane %v4421, 1
      %v4424 = vor.u32 %v4419, %v4423
      %v4426 = vshll.u32 %v4292, 16
      %v4428 = vrot.slane %v4426, 1
      %v4429 = vsel %vm1063, %v4424, %v4428
      %v4431 = vshrl.u32 %v4245, 16
      %v4433 = vshll.u32 %v4245, 16
      %v4435 = vrot.slane %v4433, 1
      %v4436 = vor.u32 %v4431, %v4435
      %v4438 = vshll.u32 %v4293, 16
      %v4440 = vrot.slane %v4438, 1
      %v4441 = vsel %vm1063, %v4436, %v4440
      %v4443 = vshrl.u32 %v4246, 16
      %v4445 = vshll.u32 %v4246, 16
      %v4447 = vrot.slane %v4445, 1
      %v4448 = vor.u32 %v4443, %v4447
      %v4450 = vshll.u32 %v4294, 16
      %v4452 = vrot.slane %v4450, 1
      %v4453 = vsel %vm1063, %v4448, %v4452
      %v4455 = vshrl.u32 %v4247, 16
      %v4457 = vshll.u32 %v4247, 16
      %v4459 = vrot.slane %v4457, 1
      %v4460 = vor.u32 %v4455, %v4459
      %v4462 = vshll.u32 %v4295, 16
      %v4464 = vrot.slane %v4462, 1
      %v4465 = vsel %vm1063, %v4460, %v4464
      %v4467 = vshrl.u32 %v4248, 16
      %v4469 = vshll.u32 %v4248, 16
      %v4471 = vrot.slane %v4469, 1
      %v4472 = vor.u32 %v4467, %v4471
      %v4474 = vshll.u32 %v4296, 16
      %v4476 = vrot.slane %v4474, 1
      %v4477 = vsel %vm1063, %v4472, %v4476
      %v4479 = vshrl.u32 %v4249, 16
      %v4481 = vshll.u32 %v4249, 16
      %v4483 = vrot.slane %v4481, 1
      %v4484 = vor.u32 %v4479, %v4483
      %v4486 = vshll.u32 %v4297, 16
      %v4488 = vrot.slane %v4486, 1
      %v4489 = vsel %vm1063, %v4484, %v4488
      %4490 = vrot.lane.b32.xlu0 %v4309, 32
      %v4491 = vpop.permute.xlu0 %4490
      %4492 = vrot.lane.b32.xlu0 %v4321, 32
      %v4493 = vpop.permute.xlu0 %4492
      %4494 = vrot.lane.b32.xlu0 %v4333, 32
      %v4495 = vpop.permute.xlu0 %4494
      %4496 = vrot.lane.b32.xlu0 %v4345, 32
      %v4497 = vpop.permute.xlu0 %4496
      %4498 = vrot.lane.b32.xlu0 %v4357, 32
      %v4499 = vpop.permute.xlu0 %4498
      %4500 = vrot.lane.b32.xlu0 %v4369, 32
      %v4501 = vpop.permute.xlu0 %4500
      %4502 = vrot.lane.b32.xlu0 %v4381, 32
      %v4503 = vpop.permute.xlu0 %4502
      %4504 = vrot.lane.b32.xlu0 %v4393, 32
      %v4505 = vpop.permute.xlu0 %4504
      %4506 = vrot.lane.b32.xlu0 %v4405, 32
      %v4507 = vpop.permute.xlu0 %4506
      %4508 = vrot.lane.b32.xlu0 %v4417, 32
      %v4509 = vpop.permute.xlu0 %4508
      %4510 = vrot.lane.b32.xlu0 %v4429, 32
      %v4511 = vpop.permute.xlu0 %4510
      %4512 = vrot.lane.b32.xlu0 %v4441, 32
      %v4513 = vpop.permute.xlu0 %4512
      %4514 = vrot.lane.b32.xlu0 %v4453, 32
      %v4515 = vpop.permute.xlu0 %4514
      %4516 = vrot.lane.b32.xlu0 %v4465, 32
      %v4517 = vpop.permute.xlu0 %4516
      %4518 = vrot.lane.b32.xlu0 %v4477, 32
      %v4519 = vpop.permute.xlu0 %4518
      %4520 = vrot.lane.b32.xlu0 %v4489, 32
      %v4521 = vpop.permute.xlu0 %4520
      %v4538 = vunpack.c.l.b16 %v4154
      %v4539 = vunpack.c.l.b16 %v4155
      %v4540 = vunpack.c.l.b16 %v4156
      %v4541 = vunpack.c.l.b16 %v4157
      %v4542 = vunpack.c.l.b16 %v4158
      %v4543 = vunpack.c.l.b16 %v4159
      %v4544 = vunpack.c.l.b16 %v4160
      %v4545 = vunpack.c.l.b16 %v4161
      %v4546 = vunpack.c.l.b16 %v4162
      %v4547 = vunpack.c.l.b16 %v4163
      %v4548 = vunpack.c.l.b16 %v4164
      %v4549 = vunpack.c.l.b16 %v4165
      %v4550 = vunpack.c.l.b16 %v4166
      %v4551 = vunpack.c.l.b16 %v4167
      %v4552 = vunpack.c.l.b16 %v4168
      %v4553 = vunpack.c.l.b16 %v4169
      %v4554 = vpack.c.b16 %v4203, %v4538
      %v4555 = vpack.c.b16 %v4205, %v4539
      %v4556 = vpack.c.b16 %v4207, %v4540
      %v4557 = vpack.c.b16 %v4209, %v4541
      %v4558 = vpack.c.b16 %v4211, %v4542
      %v4559 = vpack.c.b16 %v4213, %v4543
      %v4560 = vpack.c.b16 %v4215, %v4544
      %v4561 = vpack.c.b16 %v4217, %v4545
      %v4562 = vpack.c.b16 %v4219, %v4546
      %v4563 = vpack.c.b16 %v4221, %v4547
      %v4564 = vpack.c.b16 %v4223, %v4548
      %v4565 = vpack.c.b16 %v4225, %v4549
      %v4566 = vpack.c.b16 %v4227, %v4550
      %v4567 = vpack.c.b16 %v4229, %v4551
      %v4568 = vpack.c.b16 %v4231, %v4552
      %v4569 = vpack.c.b16 %v4233, %v4553
      %v4570 = vrot.slane %v4554, 1
      %v4571 = vrot.slane %v4282, 1
      %v4572 = vsel %vm1336, %v4570, %v4571
      %v4573 = vrot.slane %v4555, 1
      %v4574 = vrot.slane %v4283, 1
      %v4575 = vsel %vm1336, %v4573, %v4574
      %v4576 = vrot.slane %v4556, 1
      %v4577 = vrot.slane %v4284, 1
      %v4578 = vsel %vm1336, %v4576, %v4577
      %v4579 = vrot.slane %v4557, 1
      %v4580 = vrot.slane %v4285, 1
      %v4581 = vsel %vm1336, %v4579, %v4580
      %v4582 = vrot.slane %v4558, 1
      %v4583 = vrot.slane %v4286, 1
      %v4584 = vsel %vm1336, %v4582, %v4583
      %v4585 = vrot.slane %v4559, 1
      %v4586 = vrot.slane %v4287, 1
      %v4587 = vsel %vm1336, %v4585, %v4586
      %v4588 = vrot.slane %v4560, 1
      %v4589 = vrot.slane %v4288, 1
      %v4590 = vsel %vm1336, %v4588, %v4589
      %v4591 = vrot.slane %v4561, 1
      %v4592 = vrot.slane %v4289, 1
      %v4593 = vsel %vm1336, %v4591, %v4592
      %v4594 = vrot.slane %v4562, 1
      %v4595 = vrot.slane %v4290, 1
      %v4596 = vsel %vm1336, %v4594, %v4595
      %v4597 = vrot.slane %v4563, 1
      %v4598 = vrot.slane %v4291, 1
      %v4599 = vsel %vm1336, %v4597, %v4598
      %v4600 = vrot.slane %v4564, 1
      %v4601 = vrot.slane %v4292, 1
      %v4602 = vsel %vm1336, %v4600, %v4601
      %v4603 = vrot.slane %v4565, 1
      %v4604 = vrot.slane %v4293, 1
      %v4605 = vsel %vm1336, %v4603, %v4604
      %v4606 = vrot.slane %v4566, 1
      %v4607 = vrot.slane %v4294, 1
      %v4608 = vsel %vm1336, %v4606, %v4607
      %v4609 = vrot.slane %v4567, 1
      %v4610 = vrot.slane %v4295, 1
      %v4611 = vsel %vm1336, %v4609, %v4610
      %v4612 = vrot.slane %v4568, 1
      %v4613 = vrot.slane %v4296, 1
      %v4614 = vsel %vm1336, %v4612, %v4613
      %v4615 = vrot.slane %v4569, 1
      %v4616 = vrot.slane %v4297, 1
      %v4617 = vsel %vm1336, %v4615, %v4616
      %4618 = vrot.lane.b32.xlu0 %v4572, 64
      %v4619 = vpop.permute.xlu0 %4618
      %4620 = vrot.lane.b32.xlu0 %v4575, 64
      %v4621 = vpop.permute.xlu0 %4620
      %4622 = vrot.lane.b32.xlu0 %v4578, 64
      %v4623 = vpop.permute.xlu0 %4622
      %4624 = vrot.lane.b32.xlu0 %v4581, 64
      %v4625 = vpop.permute.xlu0 %4624
      %4626 = vrot.lane.b32.xlu0 %v4584, 64
      %v4627 = vpop.permute.xlu0 %4626
      %4628 = vrot.lane.b32.xlu0 %v4587, 64
      %v4629 = vpop.permute.xlu0 %4628
      %4630 = vrot.lane.b32.xlu0 %v4590, 64
      %v4631 = vpop.permute.xlu0 %4630
      %4632 = vrot.lane.b32.xlu0 %v4593, 64
      %v4633 = vpop.permute.xlu0 %4632
      %4634 = vrot.lane.b32.xlu0 %v4596, 64
      %v4635 = vpop.permute.xlu0 %4634
      %4636 = vrot.lane.b32.xlu0 %v4599, 64
      %v4637 = vpop.permute.xlu0 %4636
      %4638 = vrot.lane.b32.xlu0 %v4602, 64
      %v4639 = vpop.permute.xlu0 %4638
      %4640 = vrot.lane.b32.xlu0 %v4605, 64
      %v4641 = vpop.permute.xlu0 %4640
      %4642 = vrot.lane.b32.xlu0 %v4608, 64
      %v4643 = vpop.permute.xlu0 %4642
      %4644 = vrot.lane.b32.xlu0 %v4611, 64
      %v4645 = vpop.permute.xlu0 %4644
      %4646 = vrot.lane.b32.xlu0 %v4614, 64
      %v4647 = vpop.permute.xlu0 %4646
      %4648 = vrot.lane.b32.xlu0 %v4617, 64
      %v4649 = vpop.permute.xlu0 %4648
      %vm4650 = vcmask 261120
      %v4652 = vsel %vm4650, %v4234, %v4491
      %v4654 = vsel %vm4650, %v4235, %v4493
      %v4656 = vsel %vm4650, %v4236, %v4495
      %v4658 = vsel %vm4650, %v4237, %v4497
      %v4660 = vsel %vm4650, %v4238, %v4499
      %v4662 = vsel %vm4650, %v4239, %v4501
      %v4664 = vsel %vm4650, %v4240, %v4503
      %v4666 = vsel %vm4650, %v4241, %v4505
      %v4668 = vsel %vm4650, %v4242, %v4507
      %v4670 = vsel %vm4650, %v4243, %v4509
      %v4672 = vsel %vm4650, %v4244, %v4511
      %v4674 = vsel %vm4650, %v4245, %v4513
      %v4676 = vsel %vm4650, %v4246, %v4515
      %v4678 = vsel %vm4650, %v4247, %v4517
      %v4680 = vsel %vm4650, %v4248, %v4519
      %v4682 = vsel %vm4650, %v4249, %v4521
      %vm4683 = vcmask 523264
      %v4685 = vsel %vm4683, %v4652, %v4619
      %v4687 = vsel %vm4683, %v4654, %v4621
      %v4689 = vsel %vm4683, %v4656, %v4623
      %v4691 = vsel %vm4683, %v4658, %v4625
      %v4693 = vsel %vm4683, %v4660, %v4627
      %v4695 = vsel %vm4683, %v4662, %v4629
      %v4697 = vsel %vm4683, %v4664, %v4631
      %v4699 = vsel %vm4683, %v4666, %v4633
      %v4701 = vsel %vm4683, %v4668, %v4635
      %v4703 = vsel %vm4683, %v4670, %v4637
      %v4705 = vsel %vm4683, %v4672, %v4639
      %v4707 = vsel %vm4683, %v4674, %v4641
      %v4709 = vsel %vm4683, %v4676, %v4643
      %v4711 = vsel %vm4683, %v4678, %v4645
      %v4713 = vsel %vm4683, %v4680, %v4647
      %v4715 = vsel %vm4683, %v4682, %v4649
      %v4716 = vld [vmem:[%s4] sm:$0xf]
      %v4717 = vld [vmem:[%s4 + $0x4] sm:$0xf]
      %v4718 = vld [vmem:[%s4 + $0x8] sm:$0xf]
      %v4719 = vld [vmem:[%s4 + $0xc] sm:$0xf]
      %v4720 = vld [vmem:[%s4 + $0x10] sm:$0xf]
      %v4721 = vld [vmem:[%s4 + $0x14] sm:$0xf]
      %v4722 = vld [vmem:[%s4 + $0x18] sm:$0xf]
      %v4723 = vld [vmem:[%s4 + $0x1c] sm:$0xf]
      %v4724 = vld [vmem:[%s4 + $0x20] sm:$0xf]
      %v4725 = vld [vmem:[%s4 + $0x24] sm:$0xf]
      %v4726 = vld [vmem:[%s4 + $0x28] sm:$0xf]
      %v4727 = vld [vmem:[%s4 + $0x2c] sm:$0xf]
      %v4728 = vld [vmem:[%s3991] sm:$0xf]
      %v4729 = vld [vmem:[%s3991 + $0x4] sm:$0xf]
      %v4730 = vld [vmem:[%s3991 + $0xc] sm:$0xf]
      %v4731 = vld [vmem:[%s3991 + $0x10] sm:$0xf]
      %v4732 = vld [vmem:[%s3991 + $0x18] sm:$0xf]
      %v4733 = vld [vmem:[%s3991 + $0x1c] sm:$0xf]
      %v4734 = vld [vmem:[%s3991 + $0x24] sm:$0xf]
      %v4735 = vld [vmem:[%s3991 + $0x28] sm:$0xf]
      %v4736 = vld [vmem:[%s3991 + $0x30] sm:$0xf]
      %v4737 = vld [vmem:[%s3991 + $0x34] sm:$0xf]
      %v4738 = vld [vmem:[%s3991 + $0x3c] sm:$0xf]
      %v4739 = vld [vmem:[%s3991 + $0x40] sm:$0xf]
      %v4740 = vld [vmem:[%s3991 + $0x48] sm:$0xf]
      %v4741 = vld [vmem:[%s3991 + $0x4c] sm:$0xf]
      %v4742 = vld [vmem:[%s3991 + $0x54] sm:$0xf]
      %v4743 = vld [vmem:[%s3991 + $0x58] sm:$0xf]
      %v4744 = vld [vmem:[%s3991 + $0x60] sm:$0xf]
      %v4745 = vld [vmem:[%s3991 + $0x64] sm:$0xf]
      %v4746 = vld [vmem:[%s3991 + $0x6c] sm:$0xf]
      %v4747 = vld [vmem:[%s3991 + $0x70] sm:$0xf]
      %v4748 = vld [vmem:[%s3991 + $0x78] sm:$0xf]
      %v4749 = vld [vmem:[%s3991 + $0x7c] sm:$0xf]
      %v4750 = vld [vmem:[%s3991 + $0x84] sm:$0xf]
      %v4751 = vld [vmem:[%s3991 + $0x88] sm:$0xf]
      %v4752 = vld [vmem:[%s3991 + $0x90] sm:$0xf]
      %v4753 = vld [vmem:[%s3991 + $0x94] sm:$0xf]
      %v4754 = vld [vmem:[%s3991 + $0x9c] sm:$0xf]
      %v4755 = vld [vmem:[%s3991 + $0xa0] sm:$0xf]
      %v4756 = vld [vmem:[%s3991 + $0xa8] sm:$0xf]
      %v4757 = vld [vmem:[%s3991 + $0xac] sm:$0xf]
      %v4758 = vld [vmem:[%s3991 + $0xb4] sm:$0xf]
      %v4759 = vld [vmem:[%s3991 + $0xb8] sm:$0xf]
      %v4760 = vld [vmem:[%s3991 + $0x8] sm:$0x1]
      %v4761 = vld [vmem:[%s3991 + $0x14] sm:$0x1]
      %v4762 = vld [vmem:[%s3991 + $0x20] sm:$0x1]
      %v4763 = vld [vmem:[%s3991 + $0x2c] sm:$0x1]
      %v4764 = vld [vmem:[%s3991 + $0x38] sm:$0x1]
      %v4765 = vld [vmem:[%s3991 + $0x44] sm:$0x1]
      %v4766 = vld [vmem:[%s3991 + $0x50] sm:$0x1]
      %v4767 = vld [vmem:[%s3991 + $0x5c] sm:$0x1]
      %v4768 = vld [vmem:[%s3991 + $0x68] sm:$0x1]
      %v4769 = vld [vmem:[%s3991 + $0x74] sm:$0x1]
      %v4770 = vld [vmem:[%s3991 + $0x80] sm:$0x1]
      %v4771 = vld [vmem:[%s3991 + $0x8c] sm:$0x1]
      %v4772 = vld [vmem:[%s3991 + $0x98] sm:$0x1]
      %v4773 = vld [vmem:[%s3991 + $0xa4] sm:$0x1]
      %v4774 = vld [vmem:[%s3991 + $0xb0] sm:$0x1]
      %v4775 = vld [vmem:[%s3991 + $0xbc] sm:$0x1]
      %v4776 = vld [vmem:[%s3991] sm:$0xe]
      %v4777 = vld [vmem:[%s3991 + $0xc] sm:$0xe]
      %v4778 = vld [vmem:[%s3991 + $0x18] sm:$0xe]
      %v4779 = vld [vmem:[%s3991 + $0x24] sm:$0xe]
      %v4780 = vld [vmem:[%s3991 + $0x30] sm:$0xe]
      %v4781 = vld [vmem:[%s3991 + $0x3c] sm:$0xe]
      %v4782 = vld [vmem:[%s3991 + $0x48] sm:$0xe]
      %v4783 = vld [vmem:[%s3991 + $0x54] sm:$0xe]
      %v4784 = vld [vmem:[%s3991 + $0x60] sm:$0xe]
      %v4785 = vld [vmem:[%s3991 + $0x6c] sm:$0xe]
      %v4786 = vld [vmem:[%s3991 + $0x78] sm:$0xe]
      %v4787 = vld [vmem:[%s3991 + $0x84] sm:$0xe]
      %v4788 = vld [vmem:[%s3991 + $0x90] sm:$0xe]
      %v4789 = vld [vmem:[%s3991 + $0x9c] sm:$0xe]
      %v4790 = vld [vmem:[%s3991 + $0xa8] sm:$0xe]
      %v4791 = vld [vmem:[%s3991 + $0xb4] sm:$0xe]
      %v4824 = vunpack.c.l.b16 %v4728
      %v4825 = vunpack.c.l.b16 %v4729
      %v4826 = vunpack.c.l.b16 %v4730
      %v4827 = vunpack.c.l.b16 %v4731
      %v4828 = vunpack.c.l.b16 %v4732
      %v4829 = vunpack.c.l.b16 %v4733
      %v4830 = vunpack.c.l.b16 %v4734
      %v4831 = vunpack.c.l.b16 %v4735
      %v4832 = vunpack.c.l.b16 %v4736
      %v4833 = vunpack.c.l.b16 %v4737
      %v4834 = vunpack.c.l.b16 %v4738
      %v4835 = vunpack.c.l.b16 %v4739
      %v4836 = vunpack.c.l.b16 %v4740
      %v4837 = vunpack.c.l.b16 %v4741
      %v4838 = vunpack.c.l.b16 %v4742
      %v4839 = vunpack.c.l.b16 %v4743
      %v4840 = vunpack.c.l.b16 %v4744
      %v4841 = vunpack.c.l.b16 %v4745
      %v4842 = vunpack.c.l.b16 %v4746
      %v4843 = vunpack.c.l.b16 %v4747
      %v4844 = vunpack.c.l.b16 %v4748
      %v4845 = vunpack.c.l.b16 %v4749
      %v4846 = vunpack.c.l.b16 %v4750
      %v4847 = vunpack.c.l.b16 %v4751
      %v4848 = vunpack.c.l.b16 %v4752
      %v4849 = vunpack.c.l.b16 %v4753
      %v4850 = vunpack.c.l.b16 %v4754
      %v4851 = vunpack.c.l.b16 %v4755
      %v4852 = vunpack.c.l.b16 %v4756
      %v4853 = vunpack.c.l.b16 %v4757
      %v4854 = vunpack.c.l.b16 %v4758
      %v4855 = vunpack.c.l.b16 %v4759
      %v4856 = vpack.c.b16 %v4825, %v4824
      %v4857 = vpack.c.b16 %v4827, %v4826
      %v4858 = vpack.c.b16 %v4829, %v4828
      %v4859 = vpack.c.b16 %v4831, %v4830
      %v4860 = vpack.c.b16 %v4833, %v4832
      %v4861 = vpack.c.b16 %v4835, %v4834
      %v4862 = vpack.c.b16 %v4837, %v4836
      %v4863 = vpack.c.b16 %v4839, %v4838
      %v4864 = vpack.c.b16 %v4841, %v4840
      %v4865 = vpack.c.b16 %v4843, %v4842
      %v4866 = vpack.c.b16 %v4845, %v4844
      %v4867 = vpack.c.b16 %v4847, %v4846
      %v4868 = vpack.c.b16 %v4849, %v4848
      %v4869 = vpack.c.b16 %v4851, %v4850
      %v4870 = vpack.c.b16 %v4853, %v4852
      %v4871 = vpack.c.b16 %v4855, %v4854
      %v4888 = vunpack.c.l.b16 %v4760
      %v4889 = vunpack.c.l.b16 %v4761
      %v4890 = vunpack.c.l.b16 %v4762
      %v4891 = vunpack.c.l.b16 %v4763
      %v4892 = vunpack.c.l.b16 %v4764
      %v4893 = vunpack.c.l.b16 %v4765
      %v4894 = vunpack.c.l.b16 %v4766
      %v4895 = vunpack.c.l.b16 %v4767
      %v4896 = vunpack.c.l.b16 %v4768
      %v4897 = vunpack.c.l.b16 %v4769
      %v4898 = vunpack.c.l.b16 %v4770
      %v4899 = vunpack.c.l.b16 %v4771
      %v4900 = vunpack.c.l.b16 %v4772
      %v4901 = vunpack.c.l.b16 %v4773
      %v4902 = vunpack.c.l.b16 %v4774
      %v4903 = vunpack.c.l.b16 %v4775
      %v4904 = vpack.c.b16 %v4888, %v4888
      %v4905 = vpack.c.b16 %v4889, %v4889
      %v4906 = vpack.c.b16 %v4890, %v4890
      %v4907 = vpack.c.b16 %v4891, %v4891
      %v4908 = vpack.c.b16 %v4892, %v4892
      %v4909 = vpack.c.b16 %v4893, %v4893
      %v4910 = vpack.c.b16 %v4894, %v4894
      %v4911 = vpack.c.b16 %v4895, %v4895
      %v4912 = vpack.c.b16 %v4896, %v4896
      %v4913 = vpack.c.b16 %v4897, %v4897
      %v4914 = vpack.c.b16 %v4898, %v4898
      %v4915 = vpack.c.b16 %v4899, %v4899
      %v4916 = vpack.c.b16 %v4900, %v4900
      %v4917 = vpack.c.b16 %v4901, %v4901
      %v4918 = vpack.c.b16 %v4902, %v4902
      %v4919 = vpack.c.b16 %v4903, %v4903
      %v4921 = vshrl.u32 %v4856, 16
      %v4923 = vshll.u32 %v4856, 16
      %v4925 = vrot.slane %v4923, 1
      %v4926 = vor.u32 %v4921, %v4925
      %v4928 = vshll.u32 %v4904, 16
      %v4930 = vrot.slane %v4928, 1
      %v4931 = vsel %vm1063, %v4926, %v4930
      %v4933 = vshrl.u32 %v4857, 16
      %v4935 = vshll.u32 %v4857, 16
      %v4937 = vrot.slane %v4935, 1
      %v4938 = vor.u32 %v4933, %v4937
      %v4940 = vshll.u32 %v4905, 16
      %v4942 = vrot.slane %v4940, 1
      %v4943 = vsel %vm1063, %v4938, %v4942
      %v4945 = vshrl.u32 %v4858, 16
      %v4947 = vshll.u32 %v4858, 16
      %v4949 = vrot.slane %v4947, 1
      %v4950 = vor.u32 %v4945, %v4949
      %v4952 = vshll.u32 %v4906, 16
      %v4954 = vrot.slane %v4952, 1
      %v4955 = vsel %vm1063, %v4950, %v4954
      %v4957 = vshrl.u32 %v4859, 16
      %v4959 = vshll.u32 %v4859, 16
      %v4961 = vrot.slane %v4959, 1
      %v4962 = vor.u32 %v4957, %v4961
      %v4964 = vshll.u32 %v4907, 16
      %v4966 = vrot.slane %v4964, 1
      %v4967 = vsel %vm1063, %v4962, %v4966
      %v4969 = vshrl.u32 %v4860, 16
      %v4971 = vshll.u32 %v4860, 16
      %v4973 = vrot.slane %v4971, 1
      %v4974 = vor.u32 %v4969, %v4973
      %v4976 = vshll.u32 %v4908, 16
      %v4978 = vrot.slane %v4976, 1
      %v4979 = vsel %vm1063, %v4974, %v4978
      %v4981 = vshrl.u32 %v4861, 16
      %v4983 = vshll.u32 %v4861, 16
      %v4985 = vrot.slane %v4983, 1
      %v4986 = vor.u32 %v4981, %v4985
      %v4988 = vshll.u32 %v4909, 16
      %v4990 = vrot.slane %v4988, 1
      %v4991 = vsel %vm1063, %v4986, %v4990
      %v4993 = vshrl.u32 %v4862, 16
      %v4995 = vshll.u32 %v4862, 16
      %v4997 = vrot.slane %v4995, 1
      %v4998 = vor.u32 %v4993, %v4997
      %v5000 = vshll.u32 %v4910, 16
      %v5002 = vrot.slane %v5000, 1
      %v5003 = vsel %vm1063, %v4998, %v5002
      %v5005 = vshrl.u32 %v4863, 16
      %v5007 = vshll.u32 %v4863, 16
      %v5009 = vrot.slane %v5007, 1
      %v5010 = vor.u32 %v5005, %v5009
      %v5012 = vshll.u32 %v4911, 16
      %v5014 = vrot.slane %v5012, 1
      %v5015 = vsel %vm1063, %v5010, %v5014
      %v5017 = vshrl.u32 %v4864, 16
      %v5019 = vshll.u32 %v4864, 16
      %v5021 = vrot.slane %v5019, 1
      %v5022 = vor.u32 %v5017, %v5021
      %v5024 = vshll.u32 %v4912, 16
      %v5026 = vrot.slane %v5024, 1
      %v5027 = vsel %vm1063, %v5022, %v5026
      %v5029 = vshrl.u32 %v4865, 16
      %v5031 = vshll.u32 %v4865, 16
      %v5033 = vrot.slane %v5031, 1
      %v5034 = vor.u32 %v5029, %v5033
      %v5036 = vshll.u32 %v4913, 16
      %v5038 = vrot.slane %v5036, 1
      %v5039 = vsel %vm1063, %v5034, %v5038
      %v5041 = vshrl.u32 %v4866, 16
      %v5043 = vshll.u32 %v4866, 16
      %v5045 = vrot.slane %v5043, 1
      %v5046 = vor.u32 %v5041, %v5045
      %v5048 = vshll.u32 %v4914, 16
      %v5050 = vrot.slane %v5048, 1
      %v5051 = vsel %vm1063, %v5046, %v5050
      %v5053 = vshrl.u32 %v4867, 16
      %v5055 = vshll.u32 %v4867, 16
      %v5057 = vrot.slane %v5055, 1
      %v5058 = vor.u32 %v5053, %v5057
      %v5060 = vshll.u32 %v4915, 16
      %v5062 = vrot.slane %v5060, 1
      %v5063 = vsel %vm1063, %v5058, %v5062
      %v5065 = vshrl.u32 %v4868, 16
      %v5067 = vshll.u32 %v4868, 16
      %v5069 = vrot.slane %v5067, 1
      %v5070 = vor.u32 %v5065, %v5069
      %v5072 = vshll.u32 %v4916, 16
      %v5074 = vrot.slane %v5072, 1
      %v5075 = vsel %vm1063, %v5070, %v5074
      %v5077 = vshrl.u32 %v4869, 16
      %v5079 = vshll.u32 %v4869, 16
      %v5081 = vrot.slane %v5079, 1
      %v5082 = vor.u32 %v5077, %v5081
      %v5084 = vshll.u32 %v4917, 16
      %v5086 = vrot.slane %v5084, 1
      %v5087 = vsel %vm1063, %v5082, %v5086
      %v5089 = vshrl.u32 %v4870, 16
      %v5091 = vshll.u32 %v4870, 16
      %v5093 = vrot.slane %v5091, 1
      %v5094 = vor.u32 %v5089, %v5093
      %v5096 = vshll.u32 %v4918, 16
      %v5098 = vrot.slane %v5096, 1
      %v5099 = vsel %vm1063, %v5094, %v5098
      %v5101 = vshrl.u32 %v4871, 16
      %v5103 = vshll.u32 %v4871, 16
      %v5105 = vrot.slane %v5103, 1
      %v5106 = vor.u32 %v5101, %v5105
      %v5108 = vshll.u32 %v4919, 16
      %v5110 = vrot.slane %v5108, 1
      %v5111 = vsel %vm1063, %v5106, %v5110
      %5112 = vrot.lane.b32.xlu0 %v4931, 32
      %v5113 = vpop.permute.xlu0 %5112
      %5114 = vrot.lane.b32.xlu0 %v4943, 32
      %v5115 = vpop.permute.xlu0 %5114
      %5116 = vrot.lane.b32.xlu0 %v4955, 32
      %v5117 = vpop.permute.xlu0 %5116
      %5118 = vrot.lane.b32.xlu0 %v4967, 32
      %v5119 = vpop.permute.xlu0 %5118
      %5120 = vrot.lane.b32.xlu0 %v4979, 32
      %v5121 = vpop.permute.xlu0 %5120
      %5122 = vrot.lane.b32.xlu0 %v4991, 32
      %v5123 = vpop.permute.xlu0 %5122
      %5124 = vrot.lane.b32.xlu0 %v5003, 32
      %v5125 = vpop.permute.xlu0 %5124
      %5126 = vrot.lane.b32.xlu0 %v5015, 32
      %v5127 = vpop.permute.xlu0 %5126
      %5128 = vrot.lane.b32.xlu0 %v5027, 32
      %v5129 = vpop.permute.xlu0 %5128
      %5130 = vrot.lane.b32.xlu0 %v5039, 32
      %v5131 = vpop.permute.xlu0 %5130
      %5132 = vrot.lane.b32.xlu0 %v5051, 32
      %v5133 = vpop.permute.xlu0 %5132
      %5134 = vrot.lane.b32.xlu0 %v5063, 32
      %v5135 = vpop.permute.xlu0 %5134
      %5136 = vrot.lane.b32.xlu0 %v5075, 32
      %v5137 = vpop.permute.xlu0 %5136
      %5138 = vrot.lane.b32.xlu0 %v5087, 32
      %v5139 = vpop.permute.xlu0 %5138
      %5140 = vrot.lane.b32.xlu0 %v5099, 32
      %v5141 = vpop.permute.xlu0 %5140
      %5142 = vrot.lane.b32.xlu0 %v5111, 32
      %v5143 = vpop.permute.xlu0 %5142
      %v5160 = vunpack.c.l.b16 %v4776
      %v5161 = vunpack.c.l.b16 %v4777
      %v5162 = vunpack.c.l.b16 %v4778
      %v5163 = vunpack.c.l.b16 %v4779
      %v5164 = vunpack.c.l.b16 %v4780
      %v5165 = vunpack.c.l.b16 %v4781
      %v5166 = vunpack.c.l.b16 %v4782
      %v5167 = vunpack.c.l.b16 %v4783
      %v5168 = vunpack.c.l.b16 %v4784
      %v5169 = vunpack.c.l.b16 %v4785
      %v5170 = vunpack.c.l.b16 %v4786
      %v5171 = vunpack.c.l.b16 %v4787
      %v5172 = vunpack.c.l.b16 %v4788
      %v5173 = vunpack.c.l.b16 %v4789
      %v5174 = vunpack.c.l.b16 %v4790
      %v5175 = vunpack.c.l.b16 %v4791
      %v5176 = vpack.c.b16 %v4825, %v5160
      %v5177 = vpack.c.b16 %v4827, %v5161
      %v5178 = vpack.c.b16 %v4829, %v5162
      %v5179 = vpack.c.b16 %v4831, %v5163
      %v5180 = vpack.c.b16 %v4833, %v5164
      %v5181 = vpack.c.b16 %v4835, %v5165
      %v5182 = vpack.c.b16 %v4837, %v5166
      %v5183 = vpack.c.b16 %v4839, %v5167
      %v5184 = vpack.c.b16 %v4841, %v5168
      %v5185 = vpack.c.b16 %v4843, %v5169
      %v5186 = vpack.c.b16 %v4845, %v5170
      %v5187 = vpack.c.b16 %v4847, %v5171
      %v5188 = vpack.c.b16 %v4849, %v5172
      %v5189 = vpack.c.b16 %v4851, %v5173
      %v5190 = vpack.c.b16 %v4853, %v5174
      %v5191 = vpack.c.b16 %v4855, %v5175
      %v5192 = vrot.slane %v5176, 1
      %v5193 = vrot.slane %v4904, 1
      %v5194 = vsel %vm1336, %v5192, %v5193
      %v5195 = vrot.slane %v5177, 1
      %v5196 = vrot.slane %v4905, 1
      %v5197 = vsel %vm1336, %v5195, %v5196
      %v5198 = vrot.slane %v5178, 1
      %v5199 = vrot.slane %v4906, 1
      %v5200 = vsel %vm1336, %v5198, %v5199
      %v5201 = vrot.slane %v5179, 1
      %v5202 = vrot.slane %v4907, 1
      %v5203 = vsel %vm1336, %v5201, %v5202
      %v5204 = vrot.slane %v5180, 1
      %v5205 = vrot.slane %v4908, 1
      %v5206 = vsel %vm1336, %v5204, %v5205
      %v5207 = vrot.slane %v5181, 1
      %v5208 = vrot.slane %v4909, 1
      %v5209 = vsel %vm1336, %v5207, %v5208
      %v5210 = vrot.slane %v5182, 1
      %v5211 = vrot.slane %v4910, 1
      %v5212 = vsel %vm1336, %v5210, %v5211
      %v5213 = vrot.slane %v5183, 1
      %v5214 = vrot.slane %v4911, 1
      %v5215 = vsel %vm1336, %v5213, %v5214
      %v5216 = vrot.slane %v5184, 1
      %v5217 = vrot.slane %v4912, 1
      %v5218 = vsel %vm1336, %v5216, %v5217
      %v5219 = vrot.slane %v5185, 1
      %v5220 = vrot.slane %v4913, 1
      %v5221 = vsel %vm1336, %v5219, %v5220
      %v5222 = vrot.slane %v5186, 1
      %v5223 = vrot.slane %v4914, 1
      %v5224 = vsel %vm1336, %v5222, %v5223
      %v5225 = vrot.slane %v5187, 1
      %v5226 = vrot.slane %v4915, 1
      %v5227 = vsel %vm1336, %v5225, %v5226
      %v5228 = vrot.slane %v5188, 1
      %v5229 = vrot.slane %v4916, 1
      %v5230 = vsel %vm1336, %v5228, %v5229
      %v5231 = vrot.slane %v5189, 1
      %v5232 = vrot.slane %v4917, 1
      %v5233 = vsel %vm1336, %v5231, %v5232
      %v5234 = vrot.slane %v5190, 1
      %v5235 = vrot.slane %v4918, 1
      %v5236 = vsel %vm1336, %v5234, %v5235
      %v5237 = vrot.slane %v5191, 1
      %v5238 = vrot.slane %v4919, 1
      %v5239 = vsel %vm1336, %v5237, %v5238
      %5240 = vrot.lane.b32.xlu0 %v5194, 64
      %v5241 = vpop.permute.xlu0 %5240
      %5242 = vrot.lane.b32.xlu0 %v5197, 64
      %v5243 = vpop.permute.xlu0 %5242
      %5244 = vrot.lane.b32.xlu0 %v5200, 64
      %v5245 = vpop.permute.xlu0 %5244
      %5246 = vrot.lane.b32.xlu0 %v5203, 64
      %v5247 = vpop.permute.xlu0 %5246
      %5248 = vrot.lane.b32.xlu0 %v5206, 64
      %v5249 = vpop.permute.xlu0 %5248
      %5250 = vrot.lane.b32.xlu0 %v5209, 64
      %v5251 = vpop.permute.xlu0 %5250
      %5252 = vrot.lane.b32.xlu0 %v5212, 64
      %v5253 = vpop.permute.xlu0 %5252
      %5254 = vrot.lane.b32.xlu0 %v5215, 64
      %v5255 = vpop.permute.xlu0 %5254
      %5256 = vrot.lane.b32.xlu0 %v5218, 64
      %v5257 = vpop.permute.xlu0 %5256
      %5258 = vrot.lane.b32.xlu0 %v5221, 64
      %v5259 = vpop.permute.xlu0 %5258
      %5260 = vrot.lane.b32.xlu0 %v5224, 64
      %v5261 = vpop.permute.xlu0 %5260
      %5262 = vrot.lane.b32.xlu0 %v5227, 64
      %v5263 = vpop.permute.xlu0 %5262
      %5264 = vrot.lane.b32.xlu0 %v5230, 64
      %v5265 = vpop.permute.xlu0 %5264
      %5266 = vrot.lane.b32.xlu0 %v5233, 64
      %v5267 = vpop.permute.xlu0 %5266
      %5268 = vrot.lane.b32.xlu0 %v5236, 64
      %v5269 = vpop.permute.xlu0 %5268
      %5270 = vrot.lane.b32.xlu0 %v5239, 64
      %v5271 = vpop.permute.xlu0 %5270
      %v5273 = vsel %vm4650, %v4856, %v5113
      %v5275 = vsel %vm4650, %v4857, %v5115
      %v5277 = vsel %vm4650, %v4858, %v5117
      %v5279 = vsel %vm4650, %v4859, %v5119
      %v5281 = vsel %vm4650, %v4860, %v5121
      %v5283 = vsel %vm4650, %v4861, %v5123
      %v5285 = vsel %vm4650, %v4862, %v5125
      %v5287 = vsel %vm4650, %v4863, %v5127
      %v5289 = vsel %vm4650, %v4864, %v5129
      %v5291 = vsel %vm4650, %v4865, %v5131
      %v5293 = vsel %vm4650, %v4866, %v5133
      %v5295 = vsel %vm4650, %v4867, %v5135
      %v5297 = vsel %vm4650, %v4868, %v5137
      %v5299 = vsel %vm4650, %v4869, %v5139
      %v5301 = vsel %vm4650, %v4870, %v5141
      %v5303 = vsel %vm4650, %v4871, %v5143
      %v5305 = vsel %vm4683, %v5273, %v5241
      %v5307 = vsel %vm4683, %v5275, %v5243
      %v5309 = vsel %vm4683, %v5277, %v5245
      %v5311 = vsel %vm4683, %v5279, %v5247
      %v5313 = vsel %vm4683, %v5281, %v5249
      %v5315 = vsel %vm4683, %v5283, %v5251
      %v5317 = vsel %vm4683, %v5285, %v5253
      %v5319 = vsel %vm4683, %v5287, %v5255
      %v5321 = vsel %vm4683, %v5289, %v5257
      %v5323 = vsel %vm4683, %v5291, %v5259
      %v5325 = vsel %vm4683, %v5293, %v5261
      %v5327 = vsel %vm4683, %v5295, %v5263
      %v5329 = vsel %vm4683, %v5297, %v5265
      %v5331 = vsel %vm4683, %v5299, %v5267
      %v5333 = vsel %vm4683, %v5301, %v5269
      %v5335 = vsel %vm4683, %v5303, %v5271
      %s5336 = scalar_lea.vmem %s4, 48
      %v5337 = vld [vmem:[%s5336] sm:$0xf]
      %v5338 = vld [vmem:[%s5336 + $0x4] sm:$0xf]
      %v5339 = vld [vmem:[%s5336 + $0x8] sm:$0xf]
      %v5340 = vld [vmem:[%s5336 + $0xc] sm:$0xf]
      %v5341 = vld [vmem:[%s5336 + $0x10] sm:$0xf]
      %v5342 = vld [vmem:[%s5336 + $0x14] sm:$0xf]
      %v5343 = vld [vmem:[%s5336 + $0x18] sm:$0xf]
      %v5344 = vld [vmem:[%s5336 + $0x1c] sm:$0xf]
      %v5345 = vld [vmem:[%s5336 + $0x20] sm:$0xf]
      %v5346 = vld [vmem:[%s5336 + $0x24] sm:$0xf]
      %v5347 = vld [vmem:[%s5336 + $0x28] sm:$0xf]
      %v5348 = vld [vmem:[%s5336 + $0x2c] sm:$0xf]
      %v5361 = vunpack.c.l.b16 %v5337
      %v5362 = vunpack.c.l.b16 %v5338
      %v5363 = vunpack.c.l.b16 %v5339
      %v5364 = vunpack.c.l.b16 %v5340
      %v5365 = vunpack.c.l.b16 %v5341
      %v5366 = vunpack.c.l.b16 %v5342
      %v5367 = vunpack.c.l.b16 %v5343
      %v5368 = vunpack.c.l.b16 %v5344
      %v5369 = vunpack.c.l.b16 %v5345
      %v5370 = vunpack.c.l.b16 %v5346
      %v5371 = vunpack.c.l.b16 %v5347
      %v5372 = vunpack.c.l.b16 %v5348
      %v5373 = vpack.c.b16 %v5362, %v5361
      %v5374 = vpack.c.b16 %v5364, %v5363
      %v5375 = vpack.c.b16 %v5366, %v5365
      %v5376 = vpack.c.b16 %v5368, %v5367
      %v5377 = vpack.c.b16 %v5370, %v5369
      %v5378 = vpack.c.b16 %v5372, %v5371
      %vm5385 = vcmask 785408
      %v5386 = vsel %vm5385, %v5305, 0
      %v5388 = vsel %vm5385, %v5307, 0
      %v5390 = vsel %vm5385, %v5309, 0
      %v5392 = vsel %vm5385, %v5311, 0
      %v5394 = vsel %vm5385, %v5313, 0
      %v5396 = vsel %vm5385, %v5315, 0
      %v5398 = vsel %vm5385, %v5317, 0
      %v5400 = vsel %vm5385, %v5319, 0
      %v5402 = vsel %vm5385, %v5321, 0
      %v5404 = vsel %vm5385, %v5323, 0
      %v5406 = vsel %vm5385, %v5325, 0
      %v5408 = vsel %vm5385, %v5327, 0
      %v5410 = vsel %vm5385, %v5329, 0
      %v5412 = vsel %vm5385, %v5331, 0
      %v5414 = vsel %vm5385, %v5333, 0
      %v5416 = vsel %vm5385, %v5335, 0
      %5418 = vmatprep.subr.bf16.mxu0 0
      %5419 = vmatpush1.bf16.msra.mxu0 0
      %5420 = vmatprep.subr.bf16.mxu0 0
      %5421 = vmatpush1.bf16.msra.mxu0 0
      %5422 = vmatprep.subr.bf16.mxu0 0
      %5423 = vmatpush1.bf16.msra.mxu0 %v5378
      %5424 = vmatprep.subr.bf16.mxu0 0
      %5425 = vmatpush1.bf16.msra.mxu0 %v5377
      %5426 = vmatprep.subr.bf16.mxu0 0
      %5427 = vmatpush1.bf16.msra.mxu0 %v5376
      %5428 = vmatprep.subr.bf16.mxu0 0
      %5429 = vmatpush1.bf16.msra.mxu0 %v5375
      %5430 = vmatprep.subr.bf16.mxu0 0
      %5431 = vmatpush1.bf16.msra.mxu0 %v5374
      %5432 = vmatprep.subr.bf16.mxu0 0
      %5433 = vmatpush1.bf16.msra.mxu0 %v5373
      %5434 = vmatprep.subr.bf16.mxu0 0
      %5435 = vmatpush2.bf16.msra.mxu0 0
      %5436 = vmatprep.subr.bf16.mxu0 0
      %5437 = vmatpush2.bf16.msra.mxu0 0
      %5438 = vmatprep.subr.bf16.mxu0 0
      %5439 = vmatpush2.bf16.msra.mxu0 0
      %5440 = vmatprep.subr.bf16.mxu0 0
      %5441 = vmatpush2.bf16.msra.mxu0 0
      %5442 = vmatprep.subr.bf16.mxu0 0
      %5443 = vmatpush2.bf16.msra.mxu0 0
      %5444 = vmatprep.subr.bf16.mxu0 0
      %5445 = vmatpush2.bf16.msra.mxu0 0
      %5446 = vmatprep.subr.bf16.mxu0 0
      %5447 = vmatpush2.bf16.msra.mxu0 0
      %5448 = vmatprep.subr.bf16.mxu0 0
      %5449 = vmatpush2.bf16.msra.mxu0 0
      %5450 = vmatprep.mubr.bf16.mxu0 0
      %5451 = vmatmul.mubr.bf16.gmra.mxu0 %v5386
      %v5452 = vpop.f32.mrf.mxu0
      %v5453 = vadd.f32 0.0, %v5452
      %v5454 = vpop.f32.mrf.mxu0
      %v5455 = vpop.f32.mrf.mxu0
      %v5456 = vadd.f32 0.0, %v5455
      %v5457 = vpop.f32.mrf.mxu0
      %5458 = vmatprep.mubr.bf16.mxu0 0
      %5459 = vmatmul.mubr.bf16.gmra.mxu0 %v5388
      %v5460 = vpop.f32.mrf.mxu0
      %v5461 = vadd.f32 0.0, %v5460
      %v5462 = vpop.f32.mrf.mxu0
      %v5463 = vpop.f32.mrf.mxu0
      %v5464 = vadd.f32 0.0, %v5463
      %v5465 = vpop.f32.mrf.mxu0
      %5466 = vmatprep.mubr.bf16.mxu0 0
      %5467 = vmatmul.mubr.bf16.gmra.mxu0 %v5390
      %v5468 = vpop.f32.mrf.mxu0
      %v5469 = vadd.f32 0.0, %v5468
      %v5470 = vpop.f32.mrf.mxu0
      %v5471 = vpop.f32.mrf.mxu0
      %v5472 = vadd.f32 0.0, %v5471
      %v5473 = vpop.f32.mrf.mxu0
      %5474 = vmatprep.mubr.bf16.mxu0 0
      %5475 = vmatmul.mubr.bf16.gmra.mxu0 %v5392
      %v5476 = vpop.f32.mrf.mxu0
      %v5477 = vadd.f32 0.0, %v5476
      %v5478 = vpop.f32.mrf.mxu0
      %v5479 = vpop.f32.mrf.mxu0
      %v5480 = vadd.f32 0.0, %v5479
      %v5481 = vpop.f32.mrf.mxu0
      %5482 = vmatprep.mubr.bf16.mxu0 0
      %5483 = vmatmul.mubr.bf16.gmra.mxu0 %v5394
      %v5484 = vpop.f32.mrf.mxu0
      %v5485 = vadd.f32 0.0, %v5484
      %v5486 = vpop.f32.mrf.mxu0
      %v5487 = vpop.f32.mrf.mxu0
      %v5488 = vadd.f32 0.0, %v5487
      %v5489 = vpop.f32.mrf.mxu0
      %5490 = vmatprep.mubr.bf16.mxu0 0
      %5491 = vmatmul.mubr.bf16.gmra.mxu0 %v5396
      %v5492 = vpop.f32.mrf.mxu0
      %v5493 = vadd.f32 0.0, %v5492
      %v5494 = vpop.f32.mrf.mxu0
      %v5495 = vpop.f32.mrf.mxu0
      %v5496 = vadd.f32 0.0, %v5495
      %v5497 = vpop.f32.mrf.mxu0
      %5498 = vmatprep.mubr.bf16.mxu0 0
      %5499 = vmatmul.mubr.bf16.gmra.mxu0 %v5398
      %v5500 = vpop.f32.mrf.mxu0
      %v5501 = vadd.f32 0.0, %v5500
      %v5502 = vpop.f32.mrf.mxu0
      %v5503 = vpop.f32.mrf.mxu0
      %v5504 = vadd.f32 0.0, %v5503
      %v5505 = vpop.f32.mrf.mxu0
      %5506 = vmatprep.mubr.bf16.mxu0 0
      %5507 = vmatmul.mubr.bf16.gmra.mxu0 %v5400
      %v5508 = vpop.f32.mrf.mxu0
      %v5509 = vadd.f32 0.0, %v5508
      %v5510 = vpop.f32.mrf.mxu0
      %v5511 = vpop.f32.mrf.mxu0
      %v5512 = vadd.f32 0.0, %v5511
      %v5513 = vpop.f32.mrf.mxu0
      %5514 = vmatprep.mubr.bf16.mxu0 0
      %5515 = vmatmul.mubr.bf16.gmra.mxu0 %v5402
      %v5516 = vpop.f32.mrf.mxu0
      %v5517 = vadd.f32 0.0, %v5516
      %v5518 = vpop.f32.mrf.mxu0
      %v5519 = vpop.f32.mrf.mxu0
      %v5520 = vadd.f32 0.0, %v5519
      %v5521 = vpop.f32.mrf.mxu0
      %5522 = vmatprep.mubr.bf16.mxu0 0
      %5523 = vmatmul.mubr.bf16.gmra.mxu0 %v5404
      %v5524 = vpop.f32.mrf.mxu0
      %v5525 = vadd.f32 0.0, %v5524
      %v5526 = vpop.f32.mrf.mxu0
      %v5527 = vpop.f32.mrf.mxu0
      %v5528 = vadd.f32 0.0, %v5527
      %v5529 = vpop.f32.mrf.mxu0
      %5530 = vmatprep.mubr.bf16.mxu0 0
      %5531 = vmatmul.mubr.bf16.gmra.mxu0 %v5406
      %v5532 = vpop.f32.mrf.mxu0
      %v5533 = vadd.f32 0.0, %v5532
      %v5534 = vpop.f32.mrf.mxu0
      %v5535 = vpop.f32.mrf.mxu0
      %v5536 = vadd.f32 0.0, %v5535
      %v5537 = vpop.f32.mrf.mxu0
      %5538 = vmatprep.mubr.bf16.mxu0 0
      %5539 = vmatmul.mubr.bf16.gmra.mxu0 %v5408
      %v5540 = vpop.f32.mrf.mxu0
      %v5541 = vadd.f32 0.0, %v5540
      %v5542 = vpop.f32.mrf.mxu0
      %v5543 = vpop.f32.mrf.mxu0
      %v5544 = vadd.f32 0.0, %v5543
      %v5545 = vpop.f32.mrf.mxu0
      %5546 = vmatprep.mubr.bf16.mxu0 0
      %5547 = vmatmul.mubr.bf16.gmra.mxu0 %v5410
      %v5548 = vpop.f32.mrf.mxu0
      %v5549 = vadd.f32 0.0, %v5548
      %v5550 = vpop.f32.mrf.mxu0
      %v5551 = vpop.f32.mrf.mxu0
      %v5552 = vadd.f32 0.0, %v5551
      %v5553 = vpop.f32.mrf.mxu0
      %5554 = vmatprep.mubr.bf16.mxu0 0
      %5555 = vmatmul.mubr.bf16.gmra.mxu0 %v5412
      %v5556 = vpop.f32.mrf.mxu0
      %v5557 = vadd.f32 0.0, %v5556
      %v5558 = vpop.f32.mrf.mxu0
      %v5559 = vpop.f32.mrf.mxu0
      %v5560 = vadd.f32 0.0, %v5559
      %v5561 = vpop.f32.mrf.mxu0
      %5562 = vmatprep.mubr.bf16.mxu0 0
      %5563 = vmatmul.mubr.bf16.gmra.mxu0 %v5414
      %v5564 = vpop.f32.mrf.mxu0
      %v5565 = vadd.f32 0.0, %v5564
      %v5566 = vpop.f32.mrf.mxu0
      %v5567 = vpop.f32.mrf.mxu0
      %v5568 = vadd.f32 0.0, %v5567
      %v5569 = vpop.f32.mrf.mxu0
      %5570 = vmatprep.mubr.bf16.mxu0 0
      %5571 = vmatmul.mubr.bf16.gmra.mxu0 %v5416
      %v5572 = vpop.f32.mrf.mxu0
      %v5573 = vadd.f32 0.0, %v5572
      %v5574 = vpop.f32.mrf.mxu0
      %v5575 = vpop.f32.mrf.mxu0
      %v5576 = vadd.f32 0.0, %v5575
      %v5577 = vpop.f32.mrf.mxu0
      %5578 = vdwg.mxu0
      %v5591 = vunpack.c.l.b16 %v4716
      %v5592 = vunpack.c.l.b16 %v4717
      %v5593 = vunpack.c.l.b16 %v4718
      %v5594 = vunpack.c.l.b16 %v4719
      %v5595 = vunpack.c.l.b16 %v4720
      %v5596 = vunpack.c.l.b16 %v4721
      %v5597 = vunpack.c.l.b16 %v4722
      %v5598 = vunpack.c.l.b16 %v4723
      %v5599 = vunpack.c.l.b16 %v4724
      %v5600 = vunpack.c.l.b16 %v4725
      %v5601 = vunpack.c.l.b16 %v4726
      %v5602 = vunpack.c.l.b16 %v4727
      %v5603 = vpack.c.b16 %v5592, %v5591
      %v5604 = vpack.c.b16 %v5594, %v5593
      %v5605 = vpack.c.b16 %v5596, %v5595
      %v5606 = vpack.c.b16 %v5598, %v5597
      %v5607 = vpack.c.b16 %v5600, %v5599
      %v5608 = vpack.c.b16 %v5602, %v5601
      %v5615 = vsel %vm5385, %v4685, 0
      %v5617 = vsel %vm5385, %v4687, 0
      %v5619 = vsel %vm5385, %v4689, 0
      %v5621 = vsel %vm5385, %v4691, 0
      %v5623 = vsel %vm5385, %v4693, 0
      %v5625 = vsel %vm5385, %v4695, 0
      %v5627 = vsel %vm5385, %v4697, 0
      %v5629 = vsel %vm5385, %v4699, 0
      %v5631 = vsel %vm5385, %v4701, 0
      %v5633 = vsel %vm5385, %v4703, 0
      %v5635 = vsel %vm5385, %v4705, 0
      %v5637 = vsel %vm5385, %v4707, 0
      %v5639 = vsel %vm5385, %v4709, 0
      %v5641 = vsel %vm5385, %v4711, 0
      %v5643 = vsel %vm5385, %v4713, 0
      %v5645 = vsel %vm5385, %v4715, 0
      %5647 = vmatprep.subr.bf16.mxu0 0
      %5648 = vmatpush1.bf16.msra.mxu0 0
      %5649 = vmatprep.subr.bf16.mxu0 0
      %5650 = vmatpush1.bf16.msra.mxu0 0
      %5651 = vmatprep.subr.bf16.mxu0 0
      %5652 = vmatpush1.bf16.msra.mxu0 %v5608
      %5653 = vmatprep.subr.bf16.mxu0 0
      %5654 = vmatpush1.bf16.msra.mxu0 %v5607
      %5655 = vmatprep.subr.bf16.mxu0 0
      %5656 = vmatpush1.bf16.msra.mxu0 %v5606
      %5657 = vmatprep.subr.bf16.mxu0 0
      %5658 = vmatpush1.bf16.msra.mxu0 %v5605
      %5659 = vmatprep.subr.bf16.mxu0 0
      %5660 = vmatpush1.bf16.msra.mxu0 %v5604
      %5661 = vmatprep.subr.bf16.mxu0 0
      %5662 = vmatpush1.bf16.msra.mxu0 %v5603
      %5663 = vmatprep.subr.bf16.mxu0 0
      %5664 = vmatpush2.bf16.msra.mxu0 0
      %5665 = vmatprep.subr.bf16.mxu0 0
      %5666 = vmatpush2.bf16.msra.mxu0 0
      %5667 = vmatprep.subr.bf16.mxu0 0
      %5668 = vmatpush2.bf16.msra.mxu0 0
      %5669 = vmatprep.subr.bf16.mxu0 0
      %5670 = vmatpush2.bf16.msra.mxu0 0
      %5671 = vmatprep.subr.bf16.mxu0 0
      %5672 = vmatpush2.bf16.msra.mxu0 0
      %5673 = vmatprep.subr.bf16.mxu0 0
      %5674 = vmatpush2.bf16.msra.mxu0 0
      %5675 = vmatprep.subr.bf16.mxu0 0
      %5676 = vmatpush2.bf16.msra.mxu0 0
      %5677 = vmatprep.subr.bf16.mxu0 0
      %5678 = vmatpush2.bf16.msra.mxu0 0
      %5679 = vmatprep.mubr.bf16.mxu0 0
      %5680 = vmatmul.mubr.bf16.gmra.mxu0 %v5615
      %v5681 = vpop.f32.mrf.mxu0
      %v5682 = vadd.f32 %v5453, %v5681
      %v5683 = vpop.f32.mrf.mxu0
      %v5684 = vpop.f32.mrf.mxu0
      %v5685 = vadd.f32 %v5456, %v5684
      %v5686 = vpop.f32.mrf.mxu0
      %5687 = vmatprep.mubr.bf16.mxu0 0
      %5688 = vmatmul.mubr.bf16.gmra.mxu0 %v5617
      %v5689 = vpop.f32.mrf.mxu0
      %v5690 = vadd.f32 %v5461, %v5689
      %v5691 = vpop.f32.mrf.mxu0
      %v5692 = vpop.f32.mrf.mxu0
      %v5693 = vadd.f32 %v5464, %v5692
      %v5694 = vpop.f32.mrf.mxu0
      %5695 = vmatprep.mubr.bf16.mxu0 0
      %5696 = vmatmul.mubr.bf16.gmra.mxu0 %v5619
      %v5697 = vpop.f32.mrf.mxu0
      %v5698 = vadd.f32 %v5469, %v5697
      %v5699 = vpop.f32.mrf.mxu0
      %v5700 = vpop.f32.mrf.mxu0
      %v5701 = vadd.f32 %v5472, %v5700
      %v5702 = vpop.f32.mrf.mxu0
      %5703 = vmatprep.mubr.bf16.mxu0 0
      %5704 = vmatmul.mubr.bf16.gmra.mxu0 %v5621
      %v5705 = vpop.f32.mrf.mxu0
      %v5706 = vadd.f32 %v5477, %v5705
      %v5707 = vpop.f32.mrf.mxu0
      %v5708 = vpop.f32.mrf.mxu0
      %v5709 = vadd.f32 %v5480, %v5708
      %v5710 = vpop.f32.mrf.mxu0
      %5711 = vmatprep.mubr.bf16.mxu0 0
      %5712 = vmatmul.mubr.bf16.gmra.mxu0 %v5623
      %v5713 = vpop.f32.mrf.mxu0
      %v5714 = vadd.f32 %v5485, %v5713
      %v5715 = vpop.f32.mrf.mxu0
      %v5716 = vpop.f32.mrf.mxu0
      %v5717 = vadd.f32 %v5488, %v5716
      %v5718 = vpop.f32.mrf.mxu0
      %5719 = vmatprep.mubr.bf16.mxu0 0
      %5720 = vmatmul.mubr.bf16.gmra.mxu0 %v5625
      %v5721 = vpop.f32.mrf.mxu0
      %v5722 = vadd.f32 %v5493, %v5721
      %v5723 = vpop.f32.mrf.mxu0
      %v5724 = vpop.f32.mrf.mxu0
      %v5725 = vadd.f32 %v5496, %v5724
      %v5726 = vpop.f32.mrf.mxu0
      %5727 = vmatprep.mubr.bf16.mxu0 0
      %5728 = vmatmul.mubr.bf16.gmra.mxu0 %v5627
      %v5729 = vpop.f32.mrf.mxu0
      %v5730 = vadd.f32 %v5501, %v5729
      %v5731 = vpop.f32.mrf.mxu0
      %v5732 = vpop.f32.mrf.mxu0
      %v5733 = vadd.f32 %v5504, %v5732
      %v5734 = vpop.f32.mrf.mxu0
      %5735 = vmatprep.mubr.bf16.mxu0 0
      %5736 = vmatmul.mubr.bf16.gmra.mxu0 %v5629
      %v5737 = vpop.f32.mrf.mxu0
      %v5738 = vadd.f32 %v5509, %v5737
      %v5739 = vpop.f32.mrf.mxu0
      %v5740 = vpop.f32.mrf.mxu0
      %v5741 = vadd.f32 %v5512, %v5740
      %v5742 = vpop.f32.mrf.mxu0
      %5743 = vmatprep.mubr.bf16.mxu0 0
      %5744 = vmatmul.mubr.bf16.gmra.mxu0 %v5631
      %v5745 = vpop.f32.mrf.mxu0
      %v5746 = vadd.f32 %v5517, %v5745
      %v5747 = vpop.f32.mrf.mxu0
      %v5748 = vpop.f32.mrf.mxu0
      %v5749 = vadd.f32 %v5520, %v5748
      %v5750 = vpop.f32.mrf.mxu0
      %5751 = vmatprep.mubr.bf16.mxu0 0
      %5752 = vmatmul.mubr.bf16.gmra.mxu0 %v5633
      %v5753 = vpop.f32.mrf.mxu0
      %v5754 = vadd.f32 %v5525, %v5753
      %v5755 = vpop.f32.mrf.mxu0
      %v5756 = vpop.f32.mrf.mxu0
      %v5757 = vadd.f32 %v5528, %v5756
      %v5758 = vpop.f32.mrf.mxu0
      %5759 = vmatprep.mubr.bf16.mxu0 0
      %5760 = vmatmul.mubr.bf16.gmra.mxu0 %v5635
      %v5761 = vpop.f32.mrf.mxu0
      %v5762 = vadd.f32 %v5533, %v5761
      %v5763 = vpop.f32.mrf.mxu0
      %v5764 = vpop.f32.mrf.mxu0
      %v5765 = vadd.f32 %v5536, %v5764
      %v5766 = vpop.f32.mrf.mxu0
      %5767 = vmatprep.mubr.bf16.mxu0 0
      %5768 = vmatmul.mubr.bf16.gmra.mxu0 %v5637
      %v5769 = vpop.f32.mrf.mxu0
      %v5770 = vadd.f32 %v5541, %v5769
      %v5771 = vpop.f32.mrf.mxu0
      %v5772 = vpop.f32.mrf.mxu0
      %v5773 = vadd.f32 %v5544, %v5772
      %v5774 = vpop.f32.mrf.mxu0
      %5775 = vmatprep.mubr.bf16.mxu0 0
      %5776 = vmatmul.mubr.bf16.gmra.mxu0 %v5639
      %v5777 = vpop.f32.mrf.mxu0
      %v5778 = vadd.f32 %v5549, %v5777
      %v5779 = vpop.f32.mrf.mxu0
      %v5780 = vpop.f32.mrf.mxu0
      %v5781 = vadd.f32 %v5552, %v5780
      %v5782 = vpop.f32.mrf.mxu0
      %5783 = vmatprep.mubr.bf16.mxu0 0
      %5784 = vmatmul.mubr.bf16.gmra.mxu0 %v5641
      %v5785 = vpop.f32.mrf.mxu0
      %v5786 = vadd.f32 %v5557, %v5785
      %v5787 = vpop.f32.mrf.mxu0
      %v5788 = vpop.f32.mrf.mxu0
      %v5789 = vadd.f32 %v5560, %v5788
      %v5790 = vpop.f32.mrf.mxu0
      %5791 = vmatprep.mubr.bf16.mxu0 0
      %5792 = vmatmul.mubr.bf16.gmra.mxu0 %v5643
      %v5793 = vpop.f32.mrf.mxu0
      %v5794 = vadd.f32 %v5565, %v5793
      %v5795 = vpop.f32.mrf.mxu0
      %v5796 = vpop.f32.mrf.mxu0
      %v5797 = vadd.f32 %v5568, %v5796
      %v5798 = vpop.f32.mrf.mxu0
      %5799 = vmatprep.mubr.bf16.mxu0 0
      %5800 = vmatmul.mubr.bf16.gmra.mxu0 %v5645
      %v5801 = vpop.f32.mrf.mxu0
      %v5802 = vadd.f32 %v5573, %v5801
      %v5803 = vpop.f32.mrf.mxu0
      %v5804 = vpop.f32.mrf.mxu0
      %v5805 = vadd.f32 %v5576, %v5804
      %v5806 = vpop.f32.mrf.mxu0
      %5807 = vdwg.mxu0
      %s5808 = scalar_lea.vmem [#allocation3], 24
      %v5809 = vld [vmem:[%s5808] sm:$0xf]
      %v5810 = vld [vmem:[%s5808 + $0x4] sm:$0xf]
      %v5811 = vld [vmem:[%s5808 + $0xc] sm:$0xf]
      %v5812 = vld [vmem:[%s5808 + $0x10] sm:$0xf]
      %v5813 = vld [vmem:[%s5808 + $0x18] sm:$0xf]
      %v5814 = vld [vmem:[%s5808 + $0x1c] sm:$0xf]
      %v5815 = vld [vmem:[%s5808 + $0x24] sm:$0xf]
      %v5816 = vld [vmem:[%s5808 + $0x28] sm:$0xf]
      %v5817 = vld [vmem:[%s5808 + $0x30] sm:$0xf]
      %v5818 = vld [vmem:[%s5808 + $0x34] sm:$0xf]
      %v5819 = vld [vmem:[%s5808 + $0x3c] sm:$0xf]
      %v5820 = vld [vmem:[%s5808 + $0x40] sm:$0xf]
      %v5821 = vld [vmem:[%s5808 + $0x48] sm:$0xf]
      %v5822 = vld [vmem:[%s5808 + $0x4c] sm:$0xf]
      %v5823 = vld [vmem:[%s5808 + $0x54] sm:$0xf]
      %v5824 = vld [vmem:[%s5808 + $0x58] sm:$0xf]
      %v5825 = vld [vmem:[%s5808 + $0x60] sm:$0xf]
      %v5826 = vld [vmem:[%s5808 + $0x64] sm:$0xf]
      %v5827 = vld [vmem:[%s5808 + $0x6c] sm:$0xf]
      %v5828 = vld [vmem:[%s5808 + $0x70] sm:$0xf]
      %v5829 = vld [vmem:[%s5808 + $0x78] sm:$0xf]
      %v5830 = vld [vmem:[%s5808 + $0x7c] sm:$0xf]
      %v5831 = vld [vmem:[%s5808 + $0x84] sm:$0xf]
      %v5832 = vld [vmem:[%s5808 + $0x88] sm:$0xf]
      %v5833 = vld [vmem:[%s5808 + $0x90] sm:$0xf]
      %v5834 = vld [vmem:[%s5808 + $0x94] sm:$0xf]
      %v5835 = vld [vmem:[%s5808 + $0x9c] sm:$0xf]
      %v5836 = vld [vmem:[%s5808 + $0xa0] sm:$0xf]
      %v5837 = vld [vmem:[%s5808 + $0xa8] sm:$0xf]
      %v5838 = vld [vmem:[%s5808 + $0xac] sm:$0xf]
      %v5839 = vld [vmem:[%s5808 + $0xb4] sm:$0xf]
      %v5840 = vld [vmem:[%s5808 + $0xb8] sm:$0xf]
      %v5841 = vld [vmem:[%s5808 + $0x8] sm:$0x1]
      %v5842 = vld [vmem:[%s5808 + $0x14] sm:$0x1]
      %v5843 = vld [vmem:[%s5808 + $0x20] sm:$0x1]
      %v5844 = vld [vmem:[%s5808 + $0x2c] sm:$0x1]
      %v5845 = vld [vmem:[%s5808 + $0x38] sm:$0x1]
      %v5846 = vld [vmem:[%s5808 + $0x44] sm:$0x1]
      %v5847 = vld [vmem:[%s5808 + $0x50] sm:$0x1]
      %v5848 = vld [vmem:[%s5808 + $0x5c] sm:$0x1]
      %v5849 = vld [vmem:[%s5808 + $0x68] sm:$0x1]
      %v5850 = vld [vmem:[%s5808 + $0x74] sm:$0x1]
      %v5851 = vld [vmem:[%s5808 + $0x80] sm:$0x1]
      %v5852 = vld [vmem:[%s5808 + $0x8c] sm:$0x1]
      %v5853 = vld [vmem:[%s5808 + $0x98] sm:$0x1]
      %v5854 = vld [vmem:[%s5808 + $0xa4] sm:$0x1]
      %v5855 = vld [vmem:[%s5808 + $0xb0] sm:$0x1]
      %v5856 = vld [vmem:[%s5808 + $0xbc] sm:$0x1]
      %v5857 = vld [vmem:[%s5808] sm:$0xe]
      %v5858 = vld [vmem:[%s5808 + $0xc] sm:$0xe]
      %v5859 = vld [vmem:[%s5808 + $0x18] sm:$0xe]
      %v5860 = vld [vmem:[%s5808 + $0x24] sm:$0xe]
      %v5861 = vld [vmem:[%s5808 + $0x30] sm:$0xe]
      %v5862 = vld [vmem:[%s5808 + $0x3c] sm:$0xe]
      %v5863 = vld [vmem:[%s5808 + $0x48] sm:$0xe]
      %v5864 = vld [vmem:[%s5808 + $0x54] sm:$0xe]
      %v5865 = vld [vmem:[%s5808 + $0x60] sm:$0xe]
      %v5866 = vld [vmem:[%s5808 + $0x6c] sm:$0xe]
      %v5867 = vld [vmem:[%s5808 + $0x78] sm:$0xe]
      %v5868 = vld [vmem:[%s5808 + $0x84] sm:$0xe]
      %v5869 = vld [vmem:[%s5808 + $0x90] sm:$0xe]
      %v5870 = vld [vmem:[%s5808 + $0x9c] sm:$0xe]
      %v5871 = vld [vmem:[%s5808 + $0xa8] sm:$0xe]
      %v5872 = vld [vmem:[%s5808 + $0xb4] sm:$0xe]
      %v5905 = vunpack.c.l.b16 %v5809
      %v5906 = vunpack.c.l.b16 %v5810
      %v5907 = vunpack.c.l.b16 %v5811
      %v5908 = vunpack.c.l.b16 %v5812
      %v5909 = vunpack.c.l.b16 %v5813
      %v5910 = vunpack.c.l.b16 %v5814
      %v5911 = vunpack.c.l.b16 %v5815
      %v5912 = vunpack.c.l.b16 %v5816
      %v5913 = vunpack.c.l.b16 %v5817
      %v5914 = vunpack.c.l.b16 %v5818
      %v5915 = vunpack.c.l.b16 %v5819
      %v5916 = vunpack.c.l.b16 %v5820
      %v5917 = vunpack.c.l.b16 %v5821
      %v5918 = vunpack.c.l.b16 %v5822
      %v5919 = vunpack.c.l.b16 %v5823
      %v5920 = vunpack.c.l.b16 %v5824
      %v5921 = vunpack.c.l.b16 %v5825
      %v5922 = vunpack.c.l.b16 %v5826
      %v5923 = vunpack.c.l.b16 %v5827
      %v5924 = vunpack.c.l.b16 %v5828
      %v5925 = vunpack.c.l.b16 %v5829
      %v5926 = vunpack.c.l.b16 %v5830
      %v5927 = vunpack.c.l.b16 %v5831
      %v5928 = vunpack.c.l.b16 %v5832
      %v5929 = vunpack.c.l.b16 %v5833
      %v5930 = vunpack.c.l.b16 %v5834
      %v5931 = vunpack.c.l.b16 %v5835
      %v5932 = vunpack.c.l.b16 %v5836
      %v5933 = vunpack.c.l.b16 %v5837
      %v5934 = vunpack.c.l.b16 %v5838
      %v5935 = vunpack.c.l.b16 %v5839
      %v5936 = vunpack.c.l.b16 %v5840
      %v5937 = vpack.c.b16 %v5906, %v5905
      %v5938 = vpack.c.b16 %v5908, %v5907
      %v5939 = vpack.c.b16 %v5910, %v5909
      %v5940 = vpack.c.b16 %v5912, %v5911
      %v5941 = vpack.c.b16 %v5914, %v5913
      %v5942 = vpack.c.b16 %v5916, %v5915
      %v5943 = vpack.c.b16 %v5918, %v5917
      %v5944 = vpack.c.b16 %v5920, %v5919
      %v5945 = vpack.c.b16 %v5922, %v5921
      %v5946 = vpack.c.b16 %v5924, %v5923
      %v5947 = vpack.c.b16 %v5926, %v5925
      %v5948 = vpack.c.b16 %v5928, %v5927
      %v5949 = vpack.c.b16 %v5930, %v5929
      %v5950 = vpack.c.b16 %v5932, %v5931
      %v5951 = vpack.c.b16 %v5934, %v5933
      %v5952 = vpack.c.b16 %v5936, %v5935
      %v5969 = vunpack.c.l.b16 %v5841
      %v5970 = vunpack.c.l.b16 %v5842
      %v5971 = vunpack.c.l.b16 %v5843
      %v5972 = vunpack.c.l.b16 %v5844
      %v5973 = vunpack.c.l.b16 %v5845
      %v5974 = vunpack.c.l.b16 %v5846
      %v5975 = vunpack.c.l.b16 %v5847
      %v5976 = vunpack.c.l.b16 %v5848
      %v5977 = vunpack.c.l.b16 %v5849
      %v5978 = vunpack.c.l.b16 %v5850
      %v5979 = vunpack.c.l.b16 %v5851
      %v5980 = vunpack.c.l.b16 %v5852
      %v5981 = vunpack.c.l.b16 %v5853
      %v5982 = vunpack.c.l.b16 %v5854
      %v5983 = vunpack.c.l.b16 %v5855
      %v5984 = vunpack.c.l.b16 %v5856
      %v5985 = vpack.c.b16 %v5969, %v5969
      %v5986 = vpack.c.b16 %v5970, %v5970
      %v5987 = vpack.c.b16 %v5971, %v5971
      %v5988 = vpack.c.b16 %v5972, %v5972
      %v5989 = vpack.c.b16 %v5973, %v5973
      %v5990 = vpack.c.b16 %v5974, %v5974
      %v5991 = vpack.c.b16 %v5975, %v5975
      %v5992 = vpack.c.b16 %v5976, %v5976
      %v5993 = vpack.c.b16 %v5977, %v5977
      %v5994 = vpack.c.b16 %v5978, %v5978
      %v5995 = vpack.c.b16 %v5979, %v5979
      %v5996 = vpack.c.b16 %v5980, %v5980
      %v5997 = vpack.c.b16 %v5981, %v5981
      %v5998 = vpack.c.b16 %v5982, %v5982
      %v5999 = vpack.c.b16 %v5983, %v5983
      %v6000 = vpack.c.b16 %v5984, %v5984
      %v6002 = vshrl.u32 %v5937, 16
      %v6004 = vshll.u32 %v5937, 16
      %v6006 = vrot.slane %v6004, 1
      %v6007 = vor.u32 %v6002, %v6006
      %v6009 = vshll.u32 %v5985, 16
      %v6011 = vrot.slane %v6009, 1
      %v6012 = vsel %vm1063, %v6007, %v6011
      %v6014 = vshrl.u32 %v5938, 16
      %v6016 = vshll.u32 %v5938, 16
      %v6018 = vrot.slane %v6016, 1
      %v6019 = vor.u32 %v6014, %v6018
      %v6021 = vshll.u32 %v5986, 16
      %v6023 = vrot.slane %v6021, 1
      %v6024 = vsel %vm1063, %v6019, %v6023
      %v6026 = vshrl.u32 %v5939, 16
      %v6028 = vshll.u32 %v5939, 16
      %v6030 = vrot.slane %v6028, 1
      %v6031 = vor.u32 %v6026, %v6030
      %v6033 = vshll.u32 %v5987, 16
      %v6035 = vrot.slane %v6033, 1
      %v6036 = vsel %vm1063, %v6031, %v6035
      %v6038 = vshrl.u32 %v5940, 16
      %v6040 = vshll.u32 %v5940, 16
      %v6042 = vrot.slane %v6040, 1
      %v6043 = vor.u32 %v6038, %v6042
      %v6045 = vshll.u32 %v5988, 16
      %v6047 = vrot.slane %v6045, 1
      %v6048 = vsel %vm1063, %v6043, %v6047
      %v6050 = vshrl.u32 %v5941, 16
      %v6052 = vshll.u32 %v5941, 16
      %v6054 = vrot.slane %v6052, 1
      %v6055 = vor.u32 %v6050, %v6054
      %v6057 = vshll.u32 %v5989, 16
      %v6059 = vrot.slane %v6057, 1
      %v6060 = vsel %vm1063, %v6055, %v6059
      %v6062 = vshrl.u32 %v5942, 16
      %v6064 = vshll.u32 %v5942, 16
      %v6066 = vrot.slane %v6064, 1
      %v6067 = vor.u32 %v6062, %v6066
      %v6069 = vshll.u32 %v5990, 16
      %v6071 = vrot.slane %v6069, 1
      %v6072 = vsel %vm1063, %v6067, %v6071
      %v6074 = vshrl.u32 %v5943, 16
      %v6076 = vshll.u32 %v5943, 16
      %v6078 = vrot.slane %v6076, 1
      %v6079 = vor.u32 %v6074, %v6078
      %v6081 = vshll.u32 %v5991, 16
      %v6083 = vrot.slane %v6081, 1
      %v6084 = vsel %vm1063, %v6079, %v6083
      %v6086 = vshrl.u32 %v5944, 16
      %v6088 = vshll.u32 %v5944, 16
      %v6090 = vrot.slane %v6088, 1
      %v6091 = vor.u32 %v6086, %v6090
      %v6093 = vshll.u32 %v5992, 16
      %v6095 = vrot.slane %v6093, 1
      %v6096 = vsel %vm1063, %v6091, %v6095
      %v6098 = vshrl.u32 %v5945, 16
      %v6100 = vshll.u32 %v5945, 16
      %v6102 = vrot.slane %v6100, 1
      %v6103 = vor.u32 %v6098, %v6102
      %v6105 = vshll.u32 %v5993, 16
      %v6107 = vrot.slane %v6105, 1
      %v6108 = vsel %vm1063, %v6103, %v6107
      %v6110 = vshrl.u32 %v5946, 16
      %v6112 = vshll.u32 %v5946, 16
      %v6114 = vrot.slane %v6112, 1
      %v6115 = vor.u32 %v6110, %v6114
      %v6117 = vshll.u32 %v5994, 16
      %v6119 = vrot.slane %v6117, 1
      %v6120 = vsel %vm1063, %v6115, %v6119
      %v6122 = vshrl.u32 %v5947, 16
      %v6124 = vshll.u32 %v5947, 16
      %v6126 = vrot.slane %v6124, 1
      %v6127 = vor.u32 %v6122, %v6126
      %v6129 = vshll.u32 %v5995, 16
      %v6131 = vrot.slane %v6129, 1
      %v6132 = vsel %vm1063, %v6127, %v6131
      %v6134 = vshrl.u32 %v5948, 16
      %v6136 = vshll.u32 %v5948, 16
      %v6138 = vrot.slane %v6136, 1
      %v6139 = vor.u32 %v6134, %v6138
      %v6141 = vshll.u32 %v5996, 16
      %v6143 = vrot.slane %v6141, 1
      %v6144 = vsel %vm1063, %v6139, %v6143
      %v6146 = vshrl.u32 %v5949, 16
      %v6148 = vshll.u32 %v5949, 16
      %v6150 = vrot.slane %v6148, 1
      %v6151 = vor.u32 %v6146, %v6150
      %v6153 = vshll.u32 %v5997, 16
      %v6155 = vrot.slane %v6153, 1
      %v6156 = vsel %vm1063, %v6151, %v6155
      %v6158 = vshrl.u32 %v5950, 16
      %v6160 = vshll.u32 %v5950, 16
      %v6162 = vrot.slane %v6160, 1
      %v6163 = vor.u32 %v6158, %v6162
      %v6165 = vshll.u32 %v5998, 16
      %v6167 = vrot.slane %v6165, 1
      %v6168 = vsel %vm1063, %v6163, %v6167
      %v6170 = vshrl.u32 %v5951, 16
      %v6172 = vshll.u32 %v5951, 16
      %v6174 = vrot.slane %v6172, 1
      %v6175 = vor.u32 %v6170, %v6174
      %v6177 = vshll.u32 %v5999, 16
      %v6179 = vrot.slane %v6177, 1
      %v6180 = vsel %vm1063, %v6175, %v6179
      %v6182 = vshrl.u32 %v5952, 16
      %v6184 = vshll.u32 %v5952, 16
      %v6186 = vrot.slane %v6184, 1
      %v6187 = vor.u32 %v6182, %v6186
      %v6189 = vshll.u32 %v6000, 16
      %v6191 = vrot.slane %v6189, 1
      %v6192 = vsel %vm1063, %v6187, %v6191
      %6193 = vrot.lane.b32.xlu0 %v6012, 32
      %v6194 = vpop.permute.xlu0 %6193
      %6195 = vrot.lane.b32.xlu0 %v6024, 32
      %v6196 = vpop.permute.xlu0 %6195
      %6197 = vrot.lane.b32.xlu0 %v6036, 32
      %v6198 = vpop.permute.xlu0 %6197
      %6199 = vrot.lane.b32.xlu0 %v6048, 32
      %v6200 = vpop.permute.xlu0 %6199
      %6201 = vrot.lane.b32.xlu0 %v6060, 32
      %v6202 = vpop.permute.xlu0 %6201
      %6203 = vrot.lane.b32.xlu0 %v6072, 32
      %v6204 = vpop.permute.xlu0 %6203
      %6205 = vrot.lane.b32.xlu0 %v6084, 32
      %v6206 = vpop.permute.xlu0 %6205
      %6207 = vrot.lane.b32.xlu0 %v6096, 32
      %v6208 = vpop.permute.xlu0 %6207
      %6209 = vrot.lane.b32.xlu0 %v6108, 32
      %v6210 = vpop.permute.xlu0 %6209
      %6211 = vrot.lane.b32.xlu0 %v6120, 32
      %v6212 = vpop.permute.xlu0 %6211
      %6213 = vrot.lane.b32.xlu0 %v6132, 32
      %v6214 = vpop.permute.xlu0 %6213
      %6215 = vrot.lane.b32.xlu0 %v6144, 32
      %v6216 = vpop.permute.xlu0 %6215
      %6217 = vrot.lane.b32.xlu0 %v6156, 32
      %v6218 = vpop.permute.xlu0 %6217
      %6219 = vrot.lane.b32.xlu0 %v6168, 32
      %v6220 = vpop.permute.xlu0 %6219
      %6221 = vrot.lane.b32.xlu0 %v6180, 32
      %v6222 = vpop.permute.xlu0 %6221
      %6223 = vrot.lane.b32.xlu0 %v6192, 32
      %v6224 = vpop.permute.xlu0 %6223
      %v6241 = vunpack.c.l.b16 %v5857
      %v6242 = vunpack.c.l.b16 %v5858
      %v6243 = vunpack.c.l.b16 %v5859
      %v6244 = vunpack.c.l.b16 %v5860
      %v6245 = vunpack.c.l.b16 %v5861
      %v6246 = vunpack.c.l.b16 %v5862
      %v6247 = vunpack.c.l.b16 %v5863
      %v6248 = vunpack.c.l.b16 %v5864
      %v6249 = vunpack.c.l.b16 %v5865
      %v6250 = vunpack.c.l.b16 %v5866
      %v6251 = vunpack.c.l.b16 %v5867
      %v6252 = vunpack.c.l.b16 %v5868
      %v6253 = vunpack.c.l.b16 %v5869
      %v6254 = vunpack.c.l.b16 %v5870
      %v6255 = vunpack.c.l.b16 %v5871
      %v6256 = vunpack.c.l.b16 %v5872
      %v6257 = vpack.c.b16 %v5906, %v6241
      %v6258 = vpack.c.b16 %v5908, %v6242
      %v6259 = vpack.c.b16 %v5910, %v6243
      %v6260 = vpack.c.b16 %v5912, %v6244
      %v6261 = vpack.c.b16 %v5914, %v6245
      %v6262 = vpack.c.b16 %v5916, %v6246
      %v6263 = vpack.c.b16 %v5918, %v6247
      %v6264 = vpack.c.b16 %v5920, %v6248
      %v6265 = vpack.c.b16 %v5922, %v6249
      %v6266 = vpack.c.b16 %v5924, %v6250
      %v6267 = vpack.c.b16 %v5926, %v6251
      %v6268 = vpack.c.b16 %v5928, %v6252
      %v6269 = vpack.c.b16 %v5930, %v6253
      %v6270 = vpack.c.b16 %v5932, %v6254
      %v6271 = vpack.c.b16 %v5934, %v6255
      %v6272 = vpack.c.b16 %v5936, %v6256
      %v6273 = vrot.slane %v6257, 1
      %v6274 = vrot.slane %v5985, 1
      %v6275 = vsel %vm1336, %v6273, %v6274
      %v6276 = vrot.slane %v6258, 1
      %v6277 = vrot.slane %v5986, 1
      %v6278 = vsel %vm1336, %v6276, %v6277
      %v6279 = vrot.slane %v6259, 1
      %v6280 = vrot.slane %v5987, 1
      %v6281 = vsel %vm1336, %v6279, %v6280
      %v6282 = vrot.slane %v6260, 1
      %v6283 = vrot.slane %v5988, 1
      %v6284 = vsel %vm1336, %v6282, %v6283
      %v6285 = vrot.slane %v6261, 1
      %v6286 = vrot.slane %v5989, 1
      %v6287 = vsel %vm1336, %v6285, %v6286
      %v6288 = vrot.slane %v6262, 1
      %v6289 = vrot.slane %v5990, 1
      %v6290 = vsel %vm1336, %v6288, %v6289
      %v6291 = vrot.slane %v6263, 1
      %v6292 = vrot.slane %v5991, 1
      %v6293 = vsel %vm1336, %v6291, %v6292
      %v6294 = vrot.slane %v6264, 1
      %v6295 = vrot.slane %v5992, 1
      %v6296 = vsel %vm1336, %v6294, %v6295
      %v6297 = vrot.slane %v6265, 1
      %v6298 = vrot.slane %v5993, 1
      %v6299 = vsel %vm1336, %v6297, %v6298
      %v6300 = vrot.slane %v6266, 1
      %v6301 = vrot.slane %v5994, 1
      %v6302 = vsel %vm1336, %v6300, %v6301
      %v6303 = vrot.slane %v6267, 1
      %v6304 = vrot.slane %v5995, 1
      %v6305 = vsel %vm1336, %v6303, %v6304
      %v6306 = vrot.slane %v6268, 1
      %v6307 = vrot.slane %v5996, 1
      %v6308 = vsel %vm1336, %v6306, %v6307
      %v6309 = vrot.slane %v6269, 1
      %v6310 = vrot.slane %v5997, 1
      %v6311 = vsel %vm1336, %v6309, %v6310
      %v6312 = vrot.slane %v6270, 1
      %v6313 = vrot.slane %v5998, 1
      %v6314 = vsel %vm1336, %v6312, %v6313
      %v6315 = vrot.slane %v6271, 1
      %v6316 = vrot.slane %v5999, 1
      %v6317 = vsel %vm1336, %v6315, %v6316
      %v6318 = vrot.slane %v6272, 1
      %v6319 = vrot.slane %v6000, 1
      %v6320 = vsel %vm1336, %v6318, %v6319
      %6321 = vrot.lane.b32.xlu0 %v6275, 64
      %v6322 = vpop.permute.xlu0 %6321
      %6323 = vrot.lane.b32.xlu0 %v6278, 64
      %v6324 = vpop.permute.xlu0 %6323
      %6325 = vrot.lane.b32.xlu0 %v6281, 64
      %v6326 = vpop.permute.xlu0 %6325
      %6327 = vrot.lane.b32.xlu0 %v6284, 64
      %v6328 = vpop.permute.xlu0 %6327
      %6329 = vrot.lane.b32.xlu0 %v6287, 64
      %v6330 = vpop.permute.xlu0 %6329
      %6331 = vrot.lane.b32.xlu0 %v6290, 64
      %v6332 = vpop.permute.xlu0 %6331
      %6333 = vrot.lane.b32.xlu0 %v6293, 64
      %v6334 = vpop.permute.xlu0 %6333
      %6335 = vrot.lane.b32.xlu0 %v6296, 64
      %v6336 = vpop.permute.xlu0 %6335
      %6337 = vrot.lane.b32.xlu0 %v6299, 64
      %v6338 = vpop.permute.xlu0 %6337
      %6339 = vrot.lane.b32.xlu0 %v6302, 64
      %v6340 = vpop.permute.xlu0 %6339
      %6341 = vrot.lane.b32.xlu0 %v6305, 64
      %v6342 = vpop.permute.xlu0 %6341
      %6343 = vrot.lane.b32.xlu0 %v6308, 64
      %v6344 = vpop.permute.xlu0 %6343
      %6345 = vrot.lane.b32.xlu0 %v6311, 64
      %v6346 = vpop.permute.xlu0 %6345
      %6347 = vrot.lane.b32.xlu0 %v6314, 64
      %v6348 = vpop.permute.xlu0 %6347
      %6349 = vrot.lane.b32.xlu0 %v6317, 64
      %v6350 = vpop.permute.xlu0 %6349
      %6351 = vrot.lane.b32.xlu0 %v6320, 64
      %v6352 = vpop.permute.xlu0 %6351
      %v6354 = vsel %vm4650, %v5937, %v6194
      %v6356 = vsel %vm4650, %v5938, %v6196
      %v6358 = vsel %vm4650, %v5939, %v6198
      %v6360 = vsel %vm4650, %v5940, %v6200
      %v6362 = vsel %vm4650, %v5941, %v6202
      %v6364 = vsel %vm4650, %v5942, %v6204
      %v6366 = vsel %vm4650, %v5943, %v6206
      %v6368 = vsel %vm4650, %v5944, %v6208
      %v6370 = vsel %vm4650, %v5945, %v6210
      %v6372 = vsel %vm4650, %v5946, %v6212
      %v6374 = vsel %vm4650, %v5947, %v6214
      %v6376 = vsel %vm4650, %v5948, %v6216
      %v6378 = vsel %vm4650, %v5949, %v6218
      %v6380 = vsel %vm4650, %v5950, %v6220
      %v6382 = vsel %vm4650, %v5951, %v6222
      %v6384 = vsel %vm4650, %v5952, %v6224
      %v6386 = vsel %vm4683, %v6354, %v6322
      %v6388 = vsel %vm4683, %v6356, %v6324
      %v6390 = vsel %vm4683, %v6358, %v6326
      %v6392 = vsel %vm4683, %v6360, %v6328
      %v6394 = vsel %vm4683, %v6362, %v6330
      %v6396 = vsel %vm4683, %v6364, %v6332
      %v6398 = vsel %vm4683, %v6366, %v6334
      %v6400 = vsel %vm4683, %v6368, %v6336
      %v6402 = vsel %vm4683, %v6370, %v6338
      %v6404 = vsel %vm4683, %v6372, %v6340
      %v6406 = vsel %vm4683, %v6374, %v6342
      %v6408 = vsel %vm4683, %v6376, %v6344
      %v6410 = vsel %vm4683, %v6378, %v6346
      %v6412 = vsel %vm4683, %v6380, %v6348
      %v6414 = vsel %vm4683, %v6382, %v6350
      %v6416 = vsel %vm4683, %v6384, %v6352
      %s6417 = scalar_lea.vmem %s4, 96
      %v6418 = vld [vmem:[%s6417] sm:$0xf]
      %v6419 = vld [vmem:[%s6417 + $0x4] sm:$0xf]
      %v6420 = vld [vmem:[%s6417 + $0x8] sm:$0xf]
      %v6421 = vld [vmem:[%s6417 + $0xc] sm:$0xf]
      %v6422 = vld [vmem:[%s6417 + $0x10] sm:$0xf]
      %v6423 = vld [vmem:[%s6417 + $0x14] sm:$0xf]
      %v6424 = vld [vmem:[%s6417 + $0x18] sm:$0xf]
      %v6425 = vld [vmem:[%s6417 + $0x1c] sm:$0xf]
      %v6426 = vld [vmem:[%s6417 + $0x20] sm:$0xf]
      %v6427 = vld [vmem:[%s6417 + $0x24] sm:$0xf]
      %v6428 = vld [vmem:[%s6417 + $0x28] sm:$0xf]
      %v6429 = vld [vmem:[%s6417 + $0x2c] sm:$0xf]
      %v6442 = vunpack.c.l.b16 %v6418
      %v6443 = vunpack.c.l.b16 %v6419
      %v6444 = vunpack.c.l.b16 %v6420
      %v6445 = vunpack.c.l.b16 %v6421
      %v6446 = vunpack.c.l.b16 %v6422
      %v6447 = vunpack.c.l.b16 %v6423
      %v6448 = vunpack.c.l.b16 %v6424
      %v6449 = vunpack.c.l.b16 %v6425
      %v6450 = vunpack.c.l.b16 %v6426
      %v6451 = vunpack.c.l.b16 %v6427
      %v6452 = vunpack.c.l.b16 %v6428
      %v6453 = vunpack.c.l.b16 %v6429
      %v6454 = vpack.c.b16 %v6443, %v6442
      %v6455 = vpack.c.b16 %v6445, %v6444
      %v6456 = vpack.c.b16 %v6447, %v6446
      %v6457 = vpack.c.b16 %v6449, %v6448
      %v6458 = vpack.c.b16 %v6451, %v6450
      %v6459 = vpack.c.b16 %v6453, %v6452
      %v6466 = vsel %vm5385, %v6386, 0
      %v6468 = vsel %vm5385, %v6388, 0
      %v6470 = vsel %vm5385, %v6390, 0
      %v6472 = vsel %vm5385, %v6392, 0
      %v6474 = vsel %vm5385, %v6394, 0
      %v6476 = vsel %vm5385, %v6396, 0
      %v6478 = vsel %vm5385, %v6398, 0
      %v6480 = vsel %vm5385, %v6400, 0
      %v6482 = vsel %vm5385, %v6402, 0
      %v6484 = vsel %vm5385, %v6404, 0
      %v6486 = vsel %vm5385, %v6406, 0
      %v6488 = vsel %vm5385, %v6408, 0
      %v6490 = vsel %vm5385, %v6410, 0
      %v6492 = vsel %vm5385, %v6412, 0
      %v6494 = vsel %vm5385, %v6414, 0
      %v6496 = vsel %vm5385, %v6416, 0
      %6498 = vmatprep.subr.bf16.mxu0 0
      %6499 = vmatpush1.bf16.msra.mxu0 0
      %6500 = vmatprep.subr.bf16.mxu0 0
      %6501 = vmatpush1.bf16.msra.mxu0 0
      %6502 = vmatprep.subr.bf16.mxu0 0
      %6503 = vmatpush1.bf16.msra.mxu0 %v6459
      %6504 = vmatprep.subr.bf16.mxu0 0
      %6505 = vmatpush1.bf16.msra.mxu0 %v6458
      %6506 = vmatprep.subr.bf16.mxu0 0
      %6507 = vmatpush1.bf16.msra.mxu0 %v6457
      %6508 = vmatprep.subr.bf16.mxu0 0
      %6509 = vmatpush1.bf16.msra.mxu0 %v6456
      %6510 = vmatprep.subr.bf16.mxu0 0
      %6511 = vmatpush1.bf16.msra.mxu0 %v6455
      %6512 = vmatprep.subr.bf16.mxu0 0
      %6513 = vmatpush1.bf16.msra.mxu0 %v6454
      %6514 = vmatprep.subr.bf16.mxu0 0
      %6515 = vmatpush2.bf16.msra.mxu0 0
      %6516 = vmatprep.subr.bf16.mxu0 0
      %6517 = vmatpush2.bf16.msra.mxu0 0
      %6518 = vmatprep.subr.bf16.mxu0 0
      %6519 = vmatpush2.bf16.msra.mxu0 0
      %6520 = vmatprep.subr.bf16.mxu0 0
      %6521 = vmatpush2.bf16.msra.mxu0 0
      %6522 = vmatprep.subr.bf16.mxu0 0
      %6523 = vmatpush2.bf16.msra.mxu0 0
      %6524 = vmatprep.subr.bf16.mxu0 0
      %6525 = vmatpush2.bf16.msra.mxu0 0
      %6526 = vmatprep.subr.bf16.mxu0 0
      %6527 = vmatpush2.bf16.msra.mxu0 0
      %6528 = vmatprep.subr.bf16.mxu0 0
      %6529 = vmatpush2.bf16.msra.mxu0 0
      %6530 = vmatprep.mubr.bf16.mxu0 0
      %6531 = vmatmul.mubr.bf16.gmra.mxu0 %v6466
      %v6532 = vpop.f32.mrf.mxu0
      %v6533 = vadd.f32 0.0, %v6532
      %v6534 = vpop.f32.mrf.mxu0
      %v6535 = vpop.f32.mrf.mxu0
      %v6536 = vadd.f32 0.0, %v6535
      %v6537 = vpop.f32.mrf.mxu0
      %6538 = vmatprep.mubr.bf16.mxu0 0
      %6539 = vmatmul.mubr.bf16.gmra.mxu0 %v6468
      %v6540 = vpop.f32.mrf.mxu0
      %v6541 = vadd.f32 0.0, %v6540
      %v6542 = vpop.f32.mrf.mxu0
      %v6543 = vpop.f32.mrf.mxu0
      %v6544 = vadd.f32 0.0, %v6543
      %v6545 = vpop.f32.mrf.mxu0
      %6546 = vmatprep.mubr.bf16.mxu0 0
      %6547 = vmatmul.mubr.bf16.gmra.mxu0 %v6470
      %v6548 = vpop.f32.mrf.mxu0
      %v6549 = vadd.f32 0.0, %v6548
      %v6550 = vpop.f32.mrf.mxu0
      %v6551 = vpop.f32.mrf.mxu0
      %v6552 = vadd.f32 0.0, %v6551
      %v6553 = vpop.f32.mrf.mxu0
      %6554 = vmatprep.mubr.bf16.mxu0 0
      %6555 = vmatmul.mubr.bf16.gmra.mxu0 %v6472
      %v6556 = vpop.f32.mrf.mxu0
      %v6557 = vadd.f32 0.0, %v6556
      %v6558 = vpop.f32.mrf.mxu0
      %v6559 = vpop.f32.mrf.mxu0
      %v6560 = vadd.f32 0.0, %v6559
      %v6561 = vpop.f32.mrf.mxu0
      %6562 = vmatprep.mubr.bf16.mxu0 0
      %6563 = vmatmul.mubr.bf16.gmra.mxu0 %v6474
      %v6564 = vpop.f32.mrf.mxu0
      %v6565 = vadd.f32 0.0, %v6564
      %v6566 = vpop.f32.mrf.mxu0
      %v6567 = vpop.f32.mrf.mxu0
      %v6568 = vadd.f32 0.0, %v6567
      %v6569 = vpop.f32.mrf.mxu0
      %6570 = vmatprep.mubr.bf16.mxu0 0
      %6571 = vmatmul.mubr.bf16.gmra.mxu0 %v6476
      %v6572 = vpop.f32.mrf.mxu0
      %v6573 = vadd.f32 0.0, %v6572
      %v6574 = vpop.f32.mrf.mxu0
      %v6575 = vpop.f32.mrf.mxu0
      %v6576 = vadd.f32 0.0, %v6575
      %v6577 = vpop.f32.mrf.mxu0
      %6578 = vmatprep.mubr.bf16.mxu0 0
      %6579 = vmatmul.mubr.bf16.gmra.mxu0 %v6478
      %v6580 = vpop.f32.mrf.mxu0
      %v6581 = vadd.f32 0.0, %v6580
      %v6582 = vpop.f32.mrf.mxu0
      %v6583 = vpop.f32.mrf.mxu0
      %v6584 = vadd.f32 0.0, %v6583
      %v6585 = vpop.f32.mrf.mxu0
      %6586 = vmatprep.mubr.bf16.mxu0 0
      %6587 = vmatmul.mubr.bf16.gmra.mxu0 %v6480
      %v6588 = vpop.f32.mrf.mxu0
      %v6589 = vadd.f32 0.0, %v6588
      %v6590 = vpop.f32.mrf.mxu0
      %v6591 = vpop.f32.mrf.mxu0
      %v6592 = vadd.f32 0.0, %v6591
      %v6593 = vpop.f32.mrf.mxu0
      %6594 = vmatprep.mubr.bf16.mxu0 0
      %6595 = vmatmul.mubr.bf16.gmra.mxu0 %v6482
      %v6596 = vpop.f32.mrf.mxu0
      %v6597 = vadd.f32 0.0, %v6596
      %v6598 = vpop.f32.mrf.mxu0
      %v6599 = vpop.f32.mrf.mxu0
      %v6600 = vadd.f32 0.0, %v6599
      %v6601 = vpop.f32.mrf.mxu0
      %6602 = vmatprep.mubr.bf16.mxu0 0
      %6603 = vmatmul.mubr.bf16.gmra.mxu0 %v6484
      %v6604 = vpop.f32.mrf.mxu0
      %v6605 = vadd.f32 0.0, %v6604
      %v6606 = vpop.f32.mrf.mxu0
      %v6607 = vpop.f32.mrf.mxu0
      %v6608 = vadd.f32 0.0, %v6607
      %v6609 = vpop.f32.mrf.mxu0
      %6610 = vmatprep.mubr.bf16.mxu0 0
      %6611 = vmatmul.mubr.bf16.gmra.mxu0 %v6486
      %v6612 = vpop.f32.mrf.mxu0
      %v6613 = vadd.f32 0.0, %v6612
      %v6614 = vpop.f32.mrf.mxu0
      %v6615 = vpop.f32.mrf.mxu0
      %v6616 = vadd.f32 0.0, %v6615
      %v6617 = vpop.f32.mrf.mxu0
      %6618 = vmatprep.mubr.bf16.mxu0 0
      %6619 = vmatmul.mubr.bf16.gmra.mxu0 %v6488
      %v6620 = vpop.f32.mrf.mxu0
      %v6621 = vadd.f32 0.0, %v6620
      %v6622 = vpop.f32.mrf.mxu0
      %v6623 = vpop.f32.mrf.mxu0
      %v6624 = vadd.f32 0.0, %v6623
      %v6625 = vpop.f32.mrf.mxu0
      %6626 = vmatprep.mubr.bf16.mxu0 0
      %6627 = vmatmul.mubr.bf16.gmra.mxu0 %v6490
      %v6628 = vpop.f32.mrf.mxu0
      %v6629 = vadd.f32 0.0, %v6628
      %v6630 = vpop.f32.mrf.mxu0
      %v6631 = vpop.f32.mrf.mxu0
      %v6632 = vadd.f32 0.0, %v6631
      %v6633 = vpop.f32.mrf.mxu0
      %6634 = vmatprep.mubr.bf16.mxu0 0
      %6635 = vmatmul.mubr.bf16.gmra.mxu0 %v6492
      %v6636 = vpop.f32.mrf.mxu0
      %v6637 = vadd.f32 0.0, %v6636
      %v6638 = vpop.f32.mrf.mxu0
      %v6639 = vpop.f32.mrf.mxu0
      %v6640 = vadd.f32 0.0, %v6639
      %v6641 = vpop.f32.mrf.mxu0
      %6642 = vmatprep.mubr.bf16.mxu0 0
      %6643 = vmatmul.mubr.bf16.gmra.mxu0 %v6494
      %v6644 = vpop.f32.mrf.mxu0
      %v6645 = vadd.f32 0.0, %v6644
      %v6646 = vpop.f32.mrf.mxu0
      %v6647 = vpop.f32.mrf.mxu0
      %v6648 = vadd.f32 0.0, %v6647
      %v6649 = vpop.f32.mrf.mxu0
      %6650 = vmatprep.mubr.bf16.mxu0 0
      %6651 = vmatmul.mubr.bf16.gmra.mxu0 %v6496
      %v6652 = vpop.f32.mrf.mxu0
      %v6653 = vadd.f32 0.0, %v6652
      %v6654 = vpop.f32.mrf.mxu0
      %v6655 = vpop.f32.mrf.mxu0
      %v6656 = vadd.f32 0.0, %v6655
      %v6657 = vpop.f32.mrf.mxu0
      %6658 = vdwg.mxu0
      %v6659 = vadd.f32 %v5682, %v6533
      %v6660 = vadd.f32 %v5685, %v6536
      %v6661 = vadd.f32 %v5690, %v6541
      %v6662 = vadd.f32 %v5693, %v6544
      %v6663 = vadd.f32 %v5698, %v6549
      %v6664 = vadd.f32 %v5701, %v6552
      %v6665 = vadd.f32 %v5706, %v6557
      %v6666 = vadd.f32 %v5709, %v6560
      %v6667 = vadd.f32 %v5714, %v6565
      %v6668 = vadd.f32 %v5717, %v6568
      %v6669 = vadd.f32 %v5722, %v6573
      %v6670 = vadd.f32 %v5725, %v6576
      %v6671 = vadd.f32 %v5730, %v6581
      %v6672 = vadd.f32 %v5733, %v6584
      %v6673 = vadd.f32 %v5738, %v6589
      %v6674 = vadd.f32 %v5741, %v6592
      %v6675 = vadd.f32 %v5746, %v6597
      %v6676 = vadd.f32 %v5749, %v6600
      %v6677 = vadd.f32 %v5754, %v6605
      %v6678 = vadd.f32 %v5757, %v6608
      %v6679 = vadd.f32 %v5762, %v6613
      %v6680 = vadd.f32 %v5765, %v6616
      %v6681 = vadd.f32 %v5770, %v6621
      %v6682 = vadd.f32 %v5773, %v6624
      %v6683 = vadd.f32 %v5778, %v6629
      %v6684 = vadd.f32 %v5781, %v6632
      %v6685 = vadd.f32 %v5786, %v6637
      %v6686 = vadd.f32 %v5789, %v6640
      %v6687 = vadd.f32 %v5794, %v6645
      %v6688 = vadd.f32 %v5797, %v6648
      %v6689 = vadd.f32 %v5802, %v6653
      %v6690 = vadd.f32 %v5805, %v6656
      %v6691 = vld [vmem:[%s5] sm:$0x1]
      %v6693 = vlaneseq
      %v6694 = vshrl.u32 %v6693, 7
      %v6695 = vsub.s32 0, %v6694
      %v6696 = vrot.slane %v6691, %v6695
      %v6698 = vmul.f32 %v6659, %v6696
      %v6699 = vmul.f32 %v6660, %v6696
      %v6700 = vmul.f32 %v6661, %v6696
      %v6701 = vmul.f32 %v6662, %v6696
      %v6702 = vmul.f32 %v6663, %v6696
      %v6703 = vmul.f32 %v6664, %v6696
      %v6704 = vmul.f32 %v6665, %v6696
      %v6705 = vmul.f32 %v6666, %v6696
      %v6706 = vmul.f32 %v6667, %v6696
      %v6707 = vmul.f32 %v6668, %v6696
      %v6708 = vmul.f32 %v6669, %v6696
      %v6709 = vmul.f32 %v6670, %v6696
      %v6710 = vmul.f32 %v6671, %v6696
      %v6711 = vmul.f32 %v6672, %v6696
      %v6712 = vmul.f32 %v6673, %v6696
      %v6713 = vmul.f32 %v6674, %v6696
      %v6714 = vmul.f32 %v6675, %v6696
      %v6715 = vmul.f32 %v6676, %v6696
      %v6716 = vmul.f32 %v6677, %v6696
      %v6717 = vmul.f32 %v6678, %v6696
      %v6718 = vmul.f32 %v6679, %v6696
      %v6719 = vmul.f32 %v6680, %v6696
      %v6720 = vmul.f32 %v6681, %v6696
      %v6721 = vmul.f32 %v6682, %v6696
      %v6722 = vmul.f32 %v6683, %v6696
      %v6723 = vmul.f32 %v6684, %v6696
      %v6724 = vmul.f32 %v6685, %v6696
      %v6725 = vmul.f32 %v6686, %v6696
      %v6726 = vmul.f32 %v6687, %v6696
      %v6727 = vmul.f32 %v6688, %v6696
      %v6728 = vmul.f32 %v6689, %v6696
      %v6729 = vmul.f32 %v6690, %v6696
      %v6730 = vld [vmem:[%s6] sm:$0x1]
      %v6732 = vlaneseq
      %v6733 = vshrl.u32 %v6732, 7
      %v6734 = vsub.s32 0, %v6733
      %v6735 = vrot.slane %v6730, %v6734
      %v6737 = vadd.f32 %v6698, %v6735
      %v6738 = vadd.f32 %v6699, %v6735
      %v6739 = vadd.f32 %v6700, %v6735
      %v6740 = vadd.f32 %v6701, %v6735
      %v6741 = vadd.f32 %v6702, %v6735
      %v6742 = vadd.f32 %v6703, %v6735
      %v6743 = vadd.f32 %v6704, %v6735
      %v6744 = vadd.f32 %v6705, %v6735
      %v6745 = vadd.f32 %v6706, %v6735
      %v6746 = vadd.f32 %v6707, %v6735
      %v6747 = vadd.f32 %v6708, %v6735
      %v6748 = vadd.f32 %v6709, %v6735
      %v6749 = vadd.f32 %v6710, %v6735
      %v6750 = vadd.f32 %v6711, %v6735
      %v6751 = vadd.f32 %v6712, %v6735
      %v6752 = vadd.f32 %v6713, %v6735
      %v6753 = vadd.f32 %v6714, %v6735
      %v6754 = vadd.f32 %v6715, %v6735
      %v6755 = vadd.f32 %v6716, %v6735
      %v6756 = vadd.f32 %v6717, %v6735
      %v6757 = vadd.f32 %v6718, %v6735
      %v6758 = vadd.f32 %v6719, %v6735
      %v6759 = vadd.f32 %v6720, %v6735
      %v6760 = vadd.f32 %v6721, %v6735
      %v6761 = vadd.f32 %v6722, %v6735
      %v6762 = vadd.f32 %v6723, %v6735
      %v6763 = vadd.f32 %v6724, %v6735
      %v6764 = vadd.f32 %v6725, %v6735
      %v6765 = vadd.f32 %v6726, %v6735
      %v6766 = vadd.f32 %v6727, %v6735
      %v6767 = vadd.f32 %v6728, %v6735
      %v6768 = vadd.f32 %v6729, %v6735
      %v6769 = vmax.f32 %v6737, 0.0
      %v6770 = vmax.f32 %v6738, 0.0
      %v6771 = vmax.f32 %v6739, 0.0
      %v6772 = vmax.f32 %v6740, 0.0
      %v6773 = vmax.f32 %v6741, 0.0
      %v6774 = vmax.f32 %v6742, 0.0
      %v6775 = vmax.f32 %v6743, 0.0
      %v6776 = vmax.f32 %v6744, 0.0
      %v6777 = vmax.f32 %v6745, 0.0
      %v6778 = vmax.f32 %v6746, 0.0
      %v6779 = vmax.f32 %v6747, 0.0
      %v6780 = vmax.f32 %v6748, 0.0
      %v6781 = vmax.f32 %v6749, 0.0
      %v6782 = vmax.f32 %v6750, 0.0
      %v6783 = vmax.f32 %v6751, 0.0
      %v6784 = vmax.f32 %v6752, 0.0
      %v6785 = vmax.f32 %v6753, 0.0
      %v6786 = vmax.f32 %v6754, 0.0
      %v6787 = vmax.f32 %v6755, 0.0
      %v6788 = vmax.f32 %v6756, 0.0
      %v6789 = vmax.f32 %v6757, 0.0
      %v6790 = vmax.f32 %v6758, 0.0
      %v6791 = vmax.f32 %v6759, 0.0
      %v6792 = vmax.f32 %v6760, 0.0
      %v6793 = vmax.f32 %v6761, 0.0
      %v6794 = vmax.f32 %v6762, 0.0
      %v6795 = vmax.f32 %v6763, 0.0
      %v6796 = vmax.f32 %v6764, 0.0
      %v6797 = vmax.f32 %v6765, 0.0
      %v6798 = vmax.f32 %v6766, 0.0
      %v6799 = vmax.f32 %v6767, 0.0
      %v6800 = vmax.f32 %v6768, 0.0
      %v6801 = vmax.f32 %v6769, %v6771
      %v6802 = vmax.f32 %v6770, %v6772
      %v6803 = vmax.f32 %v6773, %v6775
      %v6804 = vmax.f32 %v6774, %v6776
      %v6805 = vmax.f32 %v6777, %v6779
      %v6806 = vmax.f32 %v6778, %v6780
      %v6807 = vmax.f32 %v6781, %v6783
      %v6808 = vmax.f32 %v6782, %v6784
      %v6809 = vmax.f32 %v6785, %v6787
      %v6810 = vmax.f32 %v6786, %v6788
      %v6811 = vmax.f32 %v6789, %v6791
      %v6812 = vmax.f32 %v6790, %v6792
      %v6813 = vmax.f32 %v6793, %v6795
      %v6814 = vmax.f32 %v6794, %v6796
      %v6815 = vmax.f32 %v6797, %v6799
      %v6816 = vmax.f32 %v6798, %v6800
      %6817 = vst.msk [vmem:[#allocation4] sm:$0xff] %vm4650, %v6801
      %6818 = vst.msk [vmem:[#allocation4 + $0x8] sm:$0xff] %vm4650, %v6802
      %6819 = vst.msk [vmem:[#allocation4 + $0x10] sm:$0xff] %vm4650, %v6803
      %6820 = vst.msk [vmem:[#allocation4 + $0x18] sm:$0xff] %vm4650, %v6804
      %6821 = vst.msk [vmem:[#allocation4 + $0x20] sm:$0xff] %vm4650, %v6805
      %6822 = vst.msk [vmem:[#allocation4 + $0x28] sm:$0xff] %vm4650, %v6806
      %6823 = vst.msk [vmem:[#allocation4 + $0x30] sm:$0xff] %vm4650, %v6807
      %6824 = vst.msk [vmem:[#allocation4 + $0x38] sm:$0xff] %vm4650, %v6808
      %6825 = vst.msk [vmem:[#allocation4 + $0x40] sm:$0xff] %vm4650, %v6809
      %6826 = vst.msk [vmem:[#allocation4 + $0x48] sm:$0xff] %vm4650, %v6810
      %6827 = vst.msk [vmem:[#allocation4 + $0x50] sm:$0xff] %vm4650, %v6811
      %6828 = vst.msk [vmem:[#allocation4 + $0x58] sm:$0xff] %vm4650, %v6812
      %6829 = vst.msk [vmem:[#allocation4 + $0x60] sm:$0xff] %vm4650, %v6813
      %6830 = vst.msk [vmem:[#allocation4 + $0x68] sm:$0xff] %vm4650, %v6814
      %6831 = vst.msk [vmem:[#allocation4 + $0x70] sm:$0xff] %vm4650, %v6815
      %6832 = vst.msk [vmem:[#allocation4 + $0x78] sm:$0xff] %vm4650, %v6816
      %v6833 = vld [vmem:[#allocation4] sm:$0x1]
      %v6834 = vld [vmem:[#allocation4 + $0x10] sm:$0x1]
      %v6835 = vld [vmem:[#allocation4 + $0x20] sm:$0x1]
      %v6836 = vld [vmem:[#allocation4 + $0x30] sm:$0x1]
      %v6837 = vld [vmem:[#allocation4 + $0x40] sm:$0x1]
      %v6838 = vld [vmem:[#allocation4 + $0x50] sm:$0x1]
      %v6839 = vld [vmem:[#allocation4 + $0x60] sm:$0x1]
      %v6840 = vld [vmem:[#allocation4 + $0x70] sm:$0x1]
      %v6841 = vld [vmem:[#allocation4 + $0x1] sm:$0x1]
      %v6842 = vld [vmem:[#allocation4 + $0x11] sm:$0x1]
      %v6843 = vld [vmem:[#allocation4 + $0x21] sm:$0x1]
      %v6844 = vld [vmem:[#allocation4 + $0x31] sm:$0x1]
      %v6845 = vld [vmem:[#allocation4 + $0x41] sm:$0x1]
      %v6846 = vld [vmem:[#allocation4 + $0x51] sm:$0x1]
      %v6847 = vld [vmem:[#allocation4 + $0x61] sm:$0x1]
      %v6848 = vld [vmem:[#allocation4 + $0x71] sm:$0x1]
      %v6849 = vmax.f32 %v6833, %v6841
      %v6850 = vmax.f32 %v6834, %v6842
      %v6851 = vmax.f32 %v6835, %v6843
      %v6852 = vmax.f32 %v6836, %v6844
      %v6853 = vmax.f32 %v6837, %v6845
      %v6854 = vmax.f32 %v6838, %v6846
      %v6855 = vmax.f32 %v6839, %v6847
      %v6856 = vmax.f32 %v6840, %v6848
      %v6857 = vld [vmem:[#allocation4 + $0x2] sm:$0x1]
      %v6858 = vld [vmem:[#allocation4 + $0x12] sm:$0x1]
      %v6859 = vld [vmem:[#allocation4 + $0x22] sm:$0x1]
      %v6860 = vld [vmem:[#allocation4 + $0x32] sm:$0x1]
      %v6861 = vld [vmem:[#allocation4 + $0x42] sm:$0x1]
      %v6862 = vld [vmem:[#allocation4 + $0x52] sm:$0x1]
      %v6863 = vld [vmem:[#allocation4 + $0x62] sm:$0x1]
      %v6864 = vld [vmem:[#allocation4 + $0x72] sm:$0x1]
      %v6865 = vld [vmem:[#allocation4 + $0x3] sm:$0x1]
      %v6866 = vld [vmem:[#allocation4 + $0x13] sm:$0x1]
      %v6867 = vld [vmem:[#allocation4 + $0x23] sm:$0x1]
      %v6868 = vld [vmem:[#allocation4 + $0x33] sm:$0x1]
      %v6869 = vld [vmem:[#allocation4 + $0x43] sm:$0x1]
      %v6870 = vld [vmem:[#allocation4 + $0x53] sm:$0x1]
      %v6871 = vld [vmem:[#allocation4 + $0x63] sm:$0x1]
      %v6872 = vld [vmem:[#allocation4 + $0x73] sm:$0x1]
      %v6873 = vmax.f32 %v6857, %v6865
      %v6874 = vmax.f32 %v6858, %v6866
      %v6875 = vmax.f32 %v6859, %v6867
      %v6876 = vmax.f32 %v6860, %v6868
      %v6877 = vmax.f32 %v6861, %v6869
      %v6878 = vmax.f32 %v6862, %v6870
      %v6879 = vmax.f32 %v6863, %v6871
      %v6880 = vmax.f32 %v6864, %v6872
      %v6881 = vld [vmem:[#allocation4 + $0x4] sm:$0x1]
      %v6882 = vld [vmem:[#allocation4 + $0x14] sm:$0x1]
      %v6883 = vld [vmem:[#allocation4 + $0x24] sm:$0x1]
      %v6884 = vld [vmem:[#allocation4 + $0x34] sm:$0x1]
      %v6885 = vld [vmem:[#allocation4 + $0x44] sm:$0x1]
      %v6886 = vld [vmem:[#allocation4 + $0x54] sm:$0x1]
      %v6887 = vld [vmem:[#allocation4 + $0x64] sm:$0x1]
      %v6888 = vld [vmem:[#allocation4 + $0x74] sm:$0x1]
      %v6889 = vld [vmem:[#allocation4 + $0x5] sm:$0x1]
      %v6890 = vld [vmem:[#allocation4 + $0x15] sm:$0x1]
      %v6891 = vld [vmem:[#allocation4 + $0x25] sm:$0x1]
      %v6892 = vld [vmem:[#allocation4 + $0x35] sm:$0x1]
      %v6893 = vld [vmem:[#allocation4 + $0x45] sm:$0x1]
      %v6894 = vld [vmem:[#allocation4 + $0x55] sm:$0x1]
      %v6895 = vld [vmem:[#allocation4 + $0x65] sm:$0x1]
      %v6896 = vld [vmem:[#allocation4 + $0x75] sm:$0x1]
      %v6897 = vmax.f32 %v6881, %v6889
      %v6898 = vmax.f32 %v6882, %v6890
      %v6899 = vmax.f32 %v6883, %v6891
      %v6900 = vmax.f32 %v6884, %v6892
      %v6901 = vmax.f32 %v6885, %v6893
      %v6902 = vmax.f32 %v6886, %v6894
      %v6903 = vmax.f32 %v6887, %v6895
      %v6904 = vmax.f32 %v6888, %v6896
      %v6905 = vld [vmem:[#allocation4 + $0x6] sm:$0x1]
      %v6906 = vld [vmem:[#allocation4 + $0x16] sm:$0x1]
      %v6907 = vld [vmem:[#allocation4 + $0x26] sm:$0x1]
      %v6908 = vld [vmem:[#allocation4 + $0x36] sm:$0x1]
      %v6909 = vld [vmem:[#allocation4 + $0x46] sm:$0x1]
      %v6910 = vld [vmem:[#allocation4 + $0x56] sm:$0x1]
      %v6911 = vld [vmem:[#allocation4 + $0x66] sm:$0x1]
      %v6912 = vld [vmem:[#allocation4 + $0x76] sm:$0x1]
      %v6913 = vld [vmem:[#allocation4 + $0x7] sm:$0x1]
      %v6914 = vld [vmem:[#allocation4 + $0x17] sm:$0x1]
      %v6915 = vld [vmem:[#allocation4 + $0x27] sm:$0x1]
      %v6916 = vld [vmem:[#allocation4 + $0x37] sm:$0x1]
      %v6917 = vld [vmem:[#allocation4 + $0x47] sm:$0x1]
      %v6918 = vld [vmem:[#allocation4 + $0x57] sm:$0x1]
      %v6919 = vld [vmem:[#allocation4 + $0x67] sm:$0x1]
      %v6920 = vld [vmem:[#allocation4 + $0x77] sm:$0x1]
      %v6921 = vmax.f32 %v6905, %v6913
      %v6922 = vmax.f32 %v6906, %v6914
      %v6923 = vmax.f32 %v6907, %v6915
      %v6924 = vmax.f32 %v6908, %v6916
      %v6925 = vmax.f32 %v6909, %v6917
      %v6926 = vmax.f32 %v6910, %v6918
      %v6927 = vmax.f32 %v6911, %v6919
      %v6928 = vmax.f32 %v6912, %v6920
      %v6929 = vld [vmem:[#allocation4 + $0x8] sm:$0x1]
      %v6930 = vld [vmem:[#allocation4 + $0x18] sm:$0x1]
      %v6931 = vld [vmem:[#allocation4 + $0x28] sm:$0x1]
      %v6932 = vld [vmem:[#allocation4 + $0x38] sm:$0x1]
      %v6933 = vld [vmem:[#allocation4 + $0x48] sm:$0x1]
      %v6934 = vld [vmem:[#allocation4 + $0x58] sm:$0x1]
      %v6935 = vld [vmem:[#allocation4 + $0x68] sm:$0x1]
      %v6936 = vld [vmem:[#allocation4 + $0x78] sm:$0x1]
      %v6937 = vld [vmem:[#allocation4 + $0x9] sm:$0x1]
      %v6938 = vld [vmem:[#allocation4 + $0x19] sm:$0x1]
      %v6939 = vld [vmem:[#allocation4 + $0x29] sm:$0x1]
      %v6940 = vld [vmem:[#allocation4 + $0x39] sm:$0x1]
      %v6941 = vld [vmem:[#allocation4 + $0x49] sm:$0x1]
      %v6942 = vld [vmem:[#allocation4 + $0x59] sm:$0x1]
      %v6943 = vld [vmem:[#allocation4 + $0x69] sm:$0x1]
      %v6944 = vld [vmem:[#allocation4 + $0x79] sm:$0x1]
      %v6945 = vmax.f32 %v6929, %v6937
      %v6946 = vmax.f32 %v6930, %v6938
      %v6947 = vmax.f32 %v6931, %v6939
      %v6948 = vmax.f32 %v6932, %v6940
      %v6949 = vmax.f32 %v6933, %v6941
      %v6950 = vmax.f32 %v6934, %v6942
      %v6951 = vmax.f32 %v6935, %v6943
      %v6952 = vmax.f32 %v6936, %v6944
      %v6953 = vld [vmem:[#allocation4 + $0xa] sm:$0x1]
      %v6954 = vld [vmem:[#allocation4 + $0x1a] sm:$0x1]
      %v6955 = vld [vmem:[#allocation4 + $0x2a] sm:$0x1]
      %v6956 = vld [vmem:[#allocation4 + $0x3a] sm:$0x1]
      %v6957 = vld [vmem:[#allocation4 + $0x4a] sm:$0x1]
      %v6958 = vld [vmem:[#allocation4 + $0x5a] sm:$0x1]
      %v6959 = vld [vmem:[#allocation4 + $0x6a] sm:$0x1]
      %v6960 = vld [vmem:[#allocation4 + $0x7a] sm:$0x1]
      %v6961 = vld [vmem:[#allocation4 + $0xb] sm:$0x1]
      %v6962 = vld [vmem:[#allocation4 + $0x1b] sm:$0x1]
      %v6963 = vld [vmem:[#allocation4 + $0x2b] sm:$0x1]
      %v6964 = vld [vmem:[#allocation4 + $0x3b] sm:$0x1]
      %v6965 = vld [vmem:[#allocation4 + $0x4b] sm:$0x1]
      %v6966 = vld [vmem:[#allocation4 + $0x5b] sm:$0x1]
      %v6967 = vld [vmem:[#allocation4 + $0x6b] sm:$0x1]
      %v6968 = vld [vmem:[#allocation4 + $0x7b] sm:$0x1]
      %v6969 = vmax.f32 %v6953, %v6961
      %v6970 = vmax.f32 %v6954, %v6962
      %v6971 = vmax.f32 %v6955, %v6963
      %v6972 = vmax.f32 %v6956, %v6964
      %v6973 = vmax.f32 %v6957, %v6965
      %v6974 = vmax.f32 %v6958, %v6966
      %v6975 = vmax.f32 %v6959, %v6967
      %v6976 = vmax.f32 %v6960, %v6968
      %v6977 = vld [vmem:[#allocation4 + $0xc] sm:$0x1]
      %v6978 = vld [vmem:[#allocation4 + $0x1c] sm:$0x1]
      %v6979 = vld [vmem:[#allocation4 + $0x2c] sm:$0x1]
      %v6980 = vld [vmem:[#allocation4 + $0x3c] sm:$0x1]
      %v6981 = vld [vmem:[#allocation4 + $0x4c] sm:$0x1]
      %v6982 = vld [vmem:[#allocation4 + $0x5c] sm:$0x1]
      %v6983 = vld [vmem:[#allocation4 + $0x6c] sm:$0x1]
      %v6984 = vld [vmem:[#allocation4 + $0x7c] sm:$0x1]
      %v6985 = vld [vmem:[#allocation4 + $0xd] sm:$0x1]
      %v6986 = vld [vmem:[#allocation4 + $0x1d] sm:$0x1]
      %v6987 = vld [vmem:[#allocation4 + $0x2d] sm:$0x1]
      %v6988 = vld [vmem:[#allocation4 + $0x3d] sm:$0x1]
      %v6989 = vld [vmem:[#allocation4 + $0x4d] sm:$0x1]
      %v6990 = vld [vmem:[#allocation4 + $0x5d] sm:$0x1]
      %v6991 = vld [vmem:[#allocation4 + $0x6d] sm:$0x1]
      %v6992 = vld [vmem:[#allocation4 + $0x7d] sm:$0x1]
      %v6993 = vmax.f32 %v6977, %v6985
      %v6994 = vmax.f32 %v6978, %v6986
      %v6995 = vmax.f32 %v6979, %v6987
      %v6996 = vmax.f32 %v6980, %v6988
      %v6997 = vmax.f32 %v6981, %v6989
      %v6998 = vmax.f32 %v6982, %v6990
      %v6999 = vmax.f32 %v6983, %v6991
      %v7000 = vmax.f32 %v6984, %v6992
      %v7001 = vld [vmem:[#allocation4 + $0xe] sm:$0x1]
      %v7002 = vld [vmem:[#allocation4 + $0x1e] sm:$0x1]
      %v7003 = vld [vmem:[#allocation4 + $0x2e] sm:$0x1]
      %v7004 = vld [vmem:[#allocation4 + $0x3e] sm:$0x1]
      %v7005 = vld [vmem:[#allocation4 + $0x4e] sm:$0x1]
      %v7006 = vld [vmem:[#allocation4 + $0x5e] sm:$0x1]
      %v7007 = vld [vmem:[#allocation4 + $0x6e] sm:$0x1]
      %v7008 = vld [vmem:[#allocation4 + $0x7e] sm:$0x1]
      %v7009 = vld [vmem:[#allocation4 + $0xf] sm:$0x1]
      %v7010 = vld [vmem:[#allocation4 + $0x1f] sm:$0x1]
      %v7011 = vld [vmem:[#allocation4 + $0x2f] sm:$0x1]
      %v7012 = vld [vmem:[#allocation4 + $0x3f] sm:$0x1]
      %v7013 = vld [vmem:[#allocation4 + $0x4f] sm:$0x1]
      %v7014 = vld [vmem:[#allocation4 + $0x5f] sm:$0x1]
      %v7015 = vld [vmem:[#allocation4 + $0x6f] sm:$0x1]
      %v7016 = vld [vmem:[#allocation4 + $0x7f] sm:$0x1]
      %v7017 = vmax.f32 %v7001, %v7009
      %v7018 = vmax.f32 %v7002, %v7010
      %v7019 = vmax.f32 %v7003, %v7011
      %v7020 = vmax.f32 %v7004, %v7012
      %v7021 = vmax.f32 %v7005, %v7013
      %v7022 = vmax.f32 %v7006, %v7014
      %v7023 = vmax.f32 %v7007, %v7015
      %v7024 = vmax.f32 %v7008, %v7016
      %v7033 = vrot.slane %v6850, 7
      %vm7034 = vcmask 1041409
      %v7035 = vsel %vm7034, %v7033, %v6849
      %v7036 = vrot.slane %v6851, 6
      %vm7037 = vcmask 1042434
      %v7038 = vsel %vm7037, %v7036, %v7035
      %v7039 = vrot.slane %v6852, 5
      %vm7040 = vcmask 1043459
      %v7041 = vsel %vm7040, %v7039, %v7038
      %v7042 = vrot.slane %v6853, 4
      %vm7043 = vcmask 1044484
      %v7044 = vsel %vm7043, %v7042, %v7041
      %v7045 = vrot.slane %v6854, 3
      %vm7046 = vcmask 1045509
      %v7047 = vsel %vm7046, %v7045, %v7044
      %v7048 = vrot.slane %v6855, 2
      %vm7049 = vcmask 1046534
      %v7050 = vsel %vm7049, %v7048, %v7047
      %v7051 = vrot.slane %v6856, 1
      %vm7052 = vcmask 1047559
      %v7053 = vsel %vm7052, %v7051, %v7050
      %v7063 = vrot.slane %v6874, 7
      %v7064 = vsel %vm7034, %v7063, %v6873
      %v7065 = vrot.slane %v6875, 6
      %v7066 = vsel %vm7037, %v7065, %v7064
      %v7067 = vrot.slane %v6876, 5
      %v7068 = vsel %vm7040, %v7067, %v7066
      %v7069 = vrot.slane %v6877, 4
      %v7070 = vsel %vm7043, %v7069, %v7068
      %v7071 = vrot.slane %v6878, 3
      %v7072 = vsel %vm7046, %v7071, %v7070
      %v7073 = vrot.slane %v6879, 2
      %v7074 = vsel %vm7049, %v7073, %v7072
      %v7075 = vrot.slane %v6880, 1
      %v7076 = vsel %vm7052, %v7075, %v7074
      %7077 = vrot.lane.b32.xlu0 %v7076, 32
      %v7078 = vpop.permute.xlu0 %7077
      %v7088 = vrot.slane %v6898, 7
      %v7089 = vsel %vm7034, %v7088, %v6897
      %v7090 = vrot.slane %v6899, 6
      %v7091 = vsel %vm7037, %v7090, %v7089
      %v7092 = vrot.slane %v6900, 5
      %v7093 = vsel %vm7040, %v7092, %v7091
      %v7094 = vrot.slane %v6901, 4
      %v7095 = vsel %vm7043, %v7094, %v7093
      %v7096 = vrot.slane %v6902, 3
      %v7097 = vsel %vm7046, %v7096, %v7095
      %v7098 = vrot.slane %v6903, 2
      %v7099 = vsel %vm7049, %v7098, %v7097
      %v7100 = vrot.slane %v6904, 1
      %v7101 = vsel %vm7052, %v7100, %v7099
      %7102 = vrot.lane.b32.xlu0 %v7101, 64
      %v7103 = vpop.permute.xlu0 %7102
      %v7113 = vrot.slane %v6922, 7
      %v7114 = vsel %vm7034, %v7113, %v6921
      %v7115 = vrot.slane %v6923, 6
      %v7116 = vsel %vm7037, %v7115, %v7114
      %v7117 = vrot.slane %v6924, 5
      %v7118 = vsel %vm7040, %v7117, %v7116
      %v7119 = vrot.slane %v6925, 4
      %v7120 = vsel %vm7043, %v7119, %v7118
      %v7121 = vrot.slane %v6926, 3
      %v7122 = vsel %vm7046, %v7121, %v7120
      %v7123 = vrot.slane %v6927, 2
      %v7124 = vsel %vm7049, %v7123, %v7122
      %v7125 = vrot.slane %v6928, 1
      %v7126 = vsel %vm7052, %v7125, %v7124
      %7127 = vrot.lane.b32.xlu0 %v7126, 96
      %v7128 = vpop.permute.xlu0 %7127
      %v7138 = vrot.slane %v6946, 7
      %v7139 = vsel %vm7034, %v7138, %v6945
      %v7140 = vrot.slane %v6947, 6
      %v7141 = vsel %vm7037, %v7140, %v7139
      %v7142 = vrot.slane %v6948, 5
      %v7143 = vsel %vm7040, %v7142, %v7141
      %v7144 = vrot.slane %v6949, 4
      %v7145 = vsel %vm7043, %v7144, %v7143
      %v7146 = vrot.slane %v6950, 3
      %v7147 = vsel %vm7046, %v7146, %v7145
      %v7148 = vrot.slane %v6951, 2
      %v7149 = vsel %vm7049, %v7148, %v7147
      %v7150 = vrot.slane %v6952, 1
      %v7151 = vsel %vm7052, %v7150, %v7149
      %v7161 = vrot.slane %v6970, 7
      %v7162 = vsel %vm7034, %v7161, %v6969
      %v7163 = vrot.slane %v6971, 6
      %v7164 = vsel %vm7037, %v7163, %v7162
      %v7165 = vrot.slane %v6972, 5
      %v7166 = vsel %vm7040, %v7165, %v7164
      %v7167 = vrot.slane %v6973, 4
      %v7168 = vsel %vm7043, %v7167, %v7166
      %v7169 = vrot.slane %v6974, 3
      %v7170 = vsel %vm7046, %v7169, %v7168
      %v7171 = vrot.slane %v6975, 2
      %v7172 = vsel %vm7049, %v7171, %v7170
      %v7173 = vrot.slane %v6976, 1
      %v7174 = vsel %vm7052, %v7173, %v7172
      %7175 = vrot.lane.b32.xlu0 %v7174, 32
      %v7176 = vpop.permute.xlu0 %7175
      %v7186 = vrot.slane %v6994, 7
      %v7187 = vsel %vm7034, %v7186, %v6993
      %v7188 = vrot.slane %v6995, 6
      %v7189 = vsel %vm7037, %v7188, %v7187
      %v7190 = vrot.slane %v6996, 5
      %v7191 = vsel %vm7040, %v7190, %v7189
      %v7192 = vrot.slane %v6997, 4
      %v7193 = vsel %vm7043, %v7192, %v7191
      %v7194 = vrot.slane %v6998, 3
      %v7195 = vsel %vm7046, %v7194, %v7193
      %v7196 = vrot.slane %v6999, 2
      %v7197 = vsel %vm7049, %v7196, %v7195
      %v7198 = vrot.slane %v7000, 1
      %v7199 = vsel %vm7052, %v7198, %v7197
      %7200 = vrot.lane.b32.xlu0 %v7199, 64
      %v7201 = vpop.permute.xlu0 %7200
      %v7211 = vrot.slane %v7018, 7
      %v7212 = vsel %vm7034, %v7211, %v7017
      %v7213 = vrot.slane %v7019, 6
      %v7214 = vsel %vm7037, %v7213, %v7212
      %v7215 = vrot.slane %v7020, 5
      %v7216 = vsel %vm7040, %v7215, %v7214
      %v7217 = vrot.slane %v7021, 4
      %v7218 = vsel %vm7043, %v7217, %v7216
      %v7219 = vrot.slane %v7022, 3
      %v7220 = vsel %vm7046, %v7219, %v7218
      %v7221 = vrot.slane %v7023, 2
      %v7222 = vsel %vm7049, %v7221, %v7220
      %v7223 = vrot.slane %v7024, 1
      %v7224 = vsel %vm7052, %v7223, %v7222
      %7225 = vrot.lane.b32.xlu0 %v7224, 96
      %v7226 = vpop.permute.xlu0 %7225
      %v7228 = vsel %vm4650, %v7053, %v7078
      %v7229 = vsel %vm4683, %v7228, %v7103
      %v7230 = vsel %vm5385, %v7229, %v7128
      %v7231 = vsel %vm4650, %v7151, %v7176
      %v7232 = vsel %vm4683, %v7231, %v7201
      %v7233 = vsel %vm5385, %v7232, %v7226
      %v7234 = vpack.c.bf16 %v7230, %v7230
      %v7235 = vpack.c.bf16 %v7233, %v7233
      %v7238 = vunpack.c.l.b16 %v7234
      %v7239 = vunpack.c.l.b16 %v7235
      %v7240 = vpack.c.b16 %v7239, %v7238
      %7242 = vst [vmem:[%s278] sm:$0xff] %v7240
      %p7243 = scmp.lt.s32.totalorder %s18, 1
      %s7244 = scalar_select %p7243, %s18, 1
      %s7245 = smul.addr %s7244, 2
      %s7246 = smul.addr %s7245, 4
      %s7247 = scalar_lea.vmem %s7, %s7246
      // Predicated region
      $region49: #{downconv_forward.1} parent=47 // pred_check
        %p7248 = pneg %p188
      $region50: #{downconv_forward.1} parent=47 // pred_check_branch
        %7250 = sbr.rel (%p7248) target = $region52
      $region51: #{downconv_forward.1} parent=47 // pred_region
        _
      $region52: #{downconv_forward.1} parent=47 // pred_fallthru
        _
    $region48: #{downconv_forward.1} parent=5 // pred_fallthru
      _
    %p7251 = scmp.le.s32.totalorder 2, %s13
    // Predicated region
    $region53: #{downconv_forward.1} parent=5 // pred_check
      %p7252 = pneg %p7251
    $region54: #{downconv_forward.1} parent=5 // pred_check_branch
      %7254 = sbr.rel (%p7252) target = $region56
    $region55: #{downconv_forward.1} parent=5 // pred_region
      %s7255 = ssub.s32 %s13, 2
      // Predicated region
      $region57: #{downconv_forward.1} parent=55 // pred_check
        %p7256 = pneg %p194
      $region58: #{downconv_forward.1} parent=55 // pred_check_branch
        %7258 = sbr.rel (%p7256) target = $region60
      $region59: #{downconv_forward.1} parent=55 // pred_region
        %p7259 = scmp.lt.s32.totalorder %s19, 1
        %s7260 = scalar_select %p7259, %s19, 1
        %s7261 = smul.addr %s7260, 2
        %s7262 = smul.addr %s7261, 4
        %s7263 = scalar_lea.vmem %s7, %s7262
      $region60: #{downconv_forward.1} parent=55 // pred_fallthru
        _
    $region56: #{downconv_forward.1} parent=5 // pred_fallthru
      _
  $region6: #{downconv_forward.1} parent=0 // loop_footer
    %s17 = sadd.s32 1, %s13
  $region7: #{downconv_forward.1} parent=0 // loop_footer_branch
    %12 = sbr.rel target = $region3
  $region8: #{downconv_forward.1} parent=0 // loop_exit
    _

</llo_original>
